<compile_context>
chip_gen: v7x
topology: tpu7x:2x2x1
jax: 0.10.0
libtpu: 0.0.40
codegen_flags: <defaults>
</compile_context>

<pallas_src>
import functools

import numpy as np
import jax
import jax.numpy as jnp
from jax.experimental import pallas as pl
from jax.experimental.pallas import tpu as pltpu


# ----------------------------------------------------------------------------
# Generation detection + per-generation plan for the dominant linear1 kernel.
# ----------------------------------------------------------------------------
def _tpu_generation():
    try:
        kind = jax.devices()[0].device_kind.lower()
    except Exception:
        return 7  # most conservative VMEM budget
    for g in (7, 6, 5, 4):
        if f"v{g}" in kind:
            return g
    return 7


def _linear1_plan(K, H1):
    """Static (Python-int) tiling plan for the first Linear, per generation."""
    gen = _tpu_generation()
    # Split the 512 output columns across the two TensorCores only on v7x.
    nh = 2 if (gen >= 7 and H1 % 256 == 0) else 1
    # Big K tiles: 4096 on v7x (64 MiB VMEM), 8192 on v5e/v6e (128 MiB VMEM).
    tk_target = 4096 if gen >= 7 else 8192
    Kp = ((K + 511) // 512) * 512           # lane-friendly rounding first
    tk = min(tk_target, Kp)
    Kp = ((Kp + tk - 1) // tk) * tk         # Kp a multiple of tk
    vmem_l1 = (40 << 20) if gen >= 7 else (64 << 20)
    return dict(gen=gen, nh=nh, tk=tk, Kp=Kp, vmem_l1=vmem_l1)


# ----------------------------------------------------------------------------
# Kernel A: fused Conv2d(1->32, 3x3, VALID) + ReLU + MaxPool2d(2), direct from
# the (phase-split) image -- no im2col; bias/ReLU hoisted after the pool max;
# channel-tiled; bf16 output (and bf16 tap math on v6e/v7x).
# ----------------------------------------------------------------------------
def _make_conv_relu_pool_kernel(ct, compute_dtype):
    def kernel(x_ref, w_ref, b_ref, o_ref):
        # x_ref: (1, 4, Hh, Wh) f32 VMEM  -- one sample, phase p = 2*(r%2)+(c%2)
        # w_ref: (C, 9)         f32 SMEM  -- conv taps, t = dh*3 + dw
        # b_ref: (C,)           f32 SMEM
        # o_ref: (1, ct, Hp, Wp) bf16 VMEM -- channel group cj of the pooled map
        Hp, Wp = o_ref.shape[2], o_ref.shape[3]
        cj = pl.program_id(1)

        # 16 shared image windows: win[sr][sc][hp,wp] == x[2*hp+sr, 2*wp+sc].
        # Contiguous slices, hoisted across channels, cast once to compute dtype.
        win = [[x_ref[0, (sr % 2) * 2 + (sc % 2),
                      sr // 2: sr // 2 + Hp,
                      sc // 2: sc // 2 + Wp].astype(compute_dtype)
                for sc in range(4)] for sr in range(4)]

        for c in range(ct):                      # ct channels per grid point
            c_abs = cj * ct + c                  # dynamic SMEM scalar index
            w = [w_ref[c_abs, t].astype(compute_dtype) for t in range(9)]
            best = None
            for a in range(2):                   # 2x2 maxpool window
                for b in range(2):
                    acc = None
                    for dh in range(3):          # 3x3 conv taps
                        for dw in range(3):
                            term = w[dh * 3 + dw] * win[a + dh][b + dw]
                            acc = term if acc is None else acc + term
                    best = acc if best is None else jnp.maximum(best, acc)
            # bias + ReLU hoisted out of the pool max (monotone, shared bias)
            res = jnp.maximum(best.astype(jnp.float32) + b_ref[c_abs], 0.0)
            o_ref[0, c] = res.astype(o_ref.dtype)

    return kernel


def conv_relu_pool(phases, w_c9, b_c, Hp, Wp, plan):
    N, P, Hh, Wh = phases.shape
    C = w_c9.shape[0]
    ct = 8 if C % 8 == 0 else C
    compute_dtype = jnp.bfloat16 if plan["gen"] >= 6 else jnp.float32

    flops = 2 * N * C * 4 * 9 * Hp * Wp
    bytes_acc = (N * P * Hh * Wh * 4) + (N * C * Hp * Wp * 2) + (C * 10 * 4)

    return pl.pallas_call(
        _make_conv_relu_pool_kernel(ct, compute_dtype),
        out_shape=jax.ShapeDtypeStruct((N, C, Hp, Wp), jnp.bfloat16),
        grid=(N, C // ct),
        in_specs=[
            # x block index constant across the (inner) channel axis -> stays
            # resident; no re-DMA per channel group.
            pl.BlockSpec((1, P, Hh, Wh), lambda n, cj: (n, 0, 0, 0)),
            pl.BlockSpec(memory_space=pltpu.MemorySpace.SMEM),
            pl.BlockSpec(memory_space=pltpu.MemorySpace.SMEM),
        ],
        out_specs=pl.BlockSpec((1, ct, Hp, Wp), lambda n, cj: (n, cj, 0, 0)),
        compiler_params=pltpu.CompilerParams(
            dimension_semantics=("parallel", "parallel"),
            vmem_limit_bytes=32 * 1024 * 1024),
        cost_estimate=pl.CostEstimate(flops=flops, transcendentals=0,
                                      bytes_accessed=bytes_acc),
    )(phases, w_c9, b_c)


def build_phases(x2d):
    # (N, H, W) -> (N, 4, ceil(H/2), ceil(W/2)); pure layout plumbing (1x read).
    N, H, W = x2d.shape
    Hpad, Wpad = H + (H % 2), W + (W % 2)
    xp = jnp.pad(x2d, ((0, 0), (0, Hpad - H), (0, Wpad - W)))
    return jnp.stack([xp[:, pr::2, pc::2] for pr in (0, 1) for pc in (0, 1)],
                     axis=1)


# ----------------------------------------------------------------------------
# Kernel B: first Linear (the ~2.2 GB W1 stream at production size).
# bf16 weights/activations, f32 accumulation directly in the resident output
# block, large generation-tuned K tiles, H1 split over TCs only on v7x.
# ----------------------------------------------------------------------------
def _linear1_relu_kernel(x_ref, w1_ref, b1_ref, h_ref):
    k = pl.program_id(1)

    @pl.when(k == 0)
    def _():
        h_ref[...] = jnp.zeros_like(h_ref)

    # Output block index is constant across k -> h_ref is a resident f32
    # accumulator; no separate scratch buffer or final copy needed.
    h_ref[...] += jnp.dot(x_ref[...], w1_ref[...],
                          preferred_element_type=jnp.float32)

    @pl.when(k == pl.num_programs(1) - 1)
    def _():
        h_ref[...] = jnp.maximum(h_ref[...] + b1_ref[...], 0.0)


def linear1_relu(x_bf16, w1_bf16, b1, plan):
    N, K = x_bf16.shape
    Kp, tk, nh = plan["Kp"], plan["tk"], plan["nh"]
    H1 = w1_bf16.shape[1]
    H1c = H1 // nh
    assert w1_bf16.shape[0] == Kp, "W1 must be pre-padded in prepare_params"

    # Only the small activation row is padded per call (zero cols are inert);
    # the ~GB-scale weight was padded once at load time.
    if Kp != K:
        x_bf16 = jnp.pad(x_bf16, ((0, 0), (0, Kp - K)))

    return pl.pallas_call(
        _linear1_relu_kernel,
        out_shape=jax.ShapeDtypeStruct((N, H1), jnp.float32),
        grid=(nh, Kp // tk),
        in_specs=[
            pl.BlockSpec((N, tk), lambda j, k: (0, k)),
            # NOTE: if a trace still shows exposed DMA on this stream, add
            # pipeline_mode=pl.Buffered(3) here (budget against VMEM on v7x).
            pl.BlockSpec((tk, H1c), lambda j, k: (k, j)),
            pl.BlockSpec((1, H1c), lambda j, k: (0, j)),
        ],
        out_specs=pl.BlockSpec((N, H1c), lambda j, k: (0, j)),
        compiler_params=pltpu.CompilerParams(
            dimension_semantics=("parallel", "arbitrary"),
            vmem_limit_bytes=plan["vmem_l1"]),
        cost_estimate=pl.CostEstimate(
            flops=2 * N * Kp * H1, transcendentals=0,
            bytes_accessed=nh * N * Kp * 2 + Kp * H1 * 2 + H1 * 4 + N * H1 * 4),
    )(x_bf16, w1_bf16, b1)


# ----------------------------------------------------------------------------
# Kernel C: the tiny 512 -> 256 -> 128 -> 1 head (weights ~0.6 MB total).
# Final 128->1 layer is a VPU mul + lane reduction (w4 passed transposed).
# ----------------------------------------------------------------------------
def _mlp_head_kernel(h_ref, w2_ref, b2_ref, w3_ref, b3_ref, w4t_ref, b4_ref,
                     o_ref):
    h1 = h_ref[...].astype(jnp.bfloat16)
    h2 = jnp.maximum(
        jnp.dot(h1, w2_ref[...], preferred_element_type=jnp.float32)
        + b2_ref[...], 0.0)
    h3 = jnp.maximum(
        jnp.dot(h2.astype(jnp.bfloat16), w3_ref[...],
                preferred_element_type=jnp.float32) + b3_ref[...], 0.0)
    w4_row = w4t_ref[...].astype(jnp.float32)          # (1, H3)
    o_ref[...] = jnp.sum(h3 * w4_row, axis=-1, keepdims=True) + b4_ref[...]


def mlp_head(h1, w2, b2, w3, b3, w4t, b4):
    N, H1 = h1.shape
    H2, H3 = w2.shape[1], w3.shape[1]
    flops = 2 * N * (H1 * H2 + H2 * H3 + H3)
    bytes_acc = (N * H1 * 4 + H1 * H2 * 2 + H2 * H3 * 2 + H3 * 2
                 + (H2 + H3 + 1) * 4 + N * 4)
    return pl.pallas_call(
        _mlp_head_kernel,
        out_shape=jax.ShapeDtypeStruct((N, 1), jnp.float32),
        grid=(1,),
        in_specs=[
            pl.BlockSpec((N, H1), lambda i: (0, 0)),
            pl.BlockSpec((H1, H2), lambda i: (0, 0)),
            pl.BlockSpec((1, H2), lambda i: (0, 0)),
            pl.BlockSpec((H2, H3), lambda i: (0, 0)),
            pl.BlockSpec((1, H3), lambda i: (0, 0)),
            pl.BlockSpec((1, H3), lambda i: (0, 0)),
            pl.BlockSpec((1, 1), lambda i: (0, 0)),
        ],
        out_specs=pl.BlockSpec((N, 1), lambda i: (0, 0)),
        compiler_params=pltpu.CompilerParams(
            dimension_semantics=("arbitrary",),
            vmem_limit_bytes=32 * 1024 * 1024),
        cost_estimate=pl.CostEstimate(flops=flops, transcendentals=0,
                                      bytes_accessed=bytes_acc),
    )(h1, w2, b2, w3, b3, w4t, b4)


# ----------------------------------------------------------------------------
# Full forward pass (same semantics as the PyTorch module).
# ----------------------------------------------------------------------------
def lifespan_predictor_forward(x_nchw, p, plan):
    N, Cin, H, W = x_nchw.shape
    assert Cin == 1
    Hp, Wp = (H - 2) // 2, (W - 2) // 2
    C = p["wc9"].shape[0]

    phases = build_phases(x_nchw[:, 0])                               # (N,4,~H/2,~W/2)
    pooled = conv_relu_pool(phases, p["wc9"], p["bc"], Hp, Wp, plan)  # (N,C,Hp,Wp) bf16

    # nn.Flatten() after NCHW MaxPool2d -> pure reshape (conv already wrote bf16).
    feat = pooled.reshape(N, C * Hp * Wp)

    h1 = linear1_relu(feat, p["w1"], p["b1"], plan)                   # (N,512) f32
    return mlp_head(h1, p["w2"], p["b2"], p["w3"], p["b3"], p["w4t"], p["b4"])


# ----------------------------------------------------------------------------
# Parameters (PyTorch-style uniform(+-1/sqrt(fan_in))); Linear weights stored
# as (in, out) so kernels compute x @ W + b.  prepare_params() is the one-time
# weight repack (bf16 cast, tap flatten, bias reshape, W1 pre-pad) at load time.
# ----------------------------------------------------------------------------
def init_params(key, C=32, Hp=8, Wp=8, H1=512, H2=256, H3=128):
    F = C * Hp * Wp
    ks = jax.random.split(key, 10)

    def u(k, shape, fan_in):
        bound = 1.0 / np.sqrt(fan_in)
        return jax.random.uniform(k, shape, jnp.float32, -bound, bound)

    wc = u(ks[0], (C, 3, 3), 9)          # conv weight, Cin=1 squeezed (OIHW)
    bc = u(ks[1], (C,), 9)
    w1 = u(ks[2], (F, H1), F);   b1 = u(ks[3], (H1,), F)
    w2 = u(ks[4], (H1, H2), H1); b2 = u(ks[5], (H2,), H1)
    w3 = u(ks[6], (H2, H3), H2); b3 = u(ks[7], (H3,), H2)
    w4 = u(ks[8], (H3, 1), H3);  b4 = u(ks[9], (1,), H3)
    return (wc, bc, w1, b1, w2, b2, w3, b3, w4, b4)


def prepare_params(params):
    wc, bc, w1, b1, w2, b2, w3, b3, w4, b4 = params
    C = wc.shape[0]
    K, H1 = w1.shape
    plan = _linear1_plan(K, H1)

    w1b = w1.astype(jnp.bfloat16)
    if plan["Kp"] != K:                       # one-time pad at load time
        w1b = jnp.pad(w1b, ((0, plan["Kp"] - K), (0, 0)))

    kparams = dict(
        wc9=wc.reshape(C, 9), bc=bc,
        w1=w1b, b1=b1.reshape(1, -1),
        w2=w2.astype(jnp.bfloat16), b2=b2.reshape(1, -1),
        w3=w3.astype(jnp.bfloat16), b3=b3.reshape(1, -1),
        w4t=w4.T.astype(jnp.bfloat16), b4=b4.reshape(1, 1),
    )
    return kparams, plan


# Pure-JAX f32 reference with the exact PyTorch-module semantics.
def reference_forward(x_nchw, params):
    wc, bc, w1, b1, w2, b2, w3, b3, w4, b4 = params
    N = x_nchw.shape[0]
    C = wc.shape[0]
    w_oihw = wc[:, None, :, :]
    y = jax.lax.conv_general_dilated(x_nchw, w_oihw, (1, 1), 'VALID')
    y = jax.nn.relu(y + bc.reshape(1, C, 1, 1))
    y = jax.lax.reduce_window(y, -jnp.inf, jax.lax.max,
                              (1, 1, 2, 2), (1, 1, 2, 2), 'VALID')
    f = y.reshape(N, -1)
    h = jax.nn.relu(f @ w1 + b1)
    h = jax.nn.relu(h @ w2 + b2)
    h = jax.nn.relu(h @ w3 + b3)
    return h @ w4 + b4


if __name__ == "__main__":
    key = jax.random.PRNGKey(0)
    kx, kp = jax.random.split(key)

    # Small shapes consistent with the module: (N,1,18,18) -> conv3x3 ->
    # (N,32,16,16) -> pool2 -> (N,32,8,8) -> F = 2048 -> 512 -> 256 -> 128 -> 1.
    # (The real checkpoint has pooled spatial 176x191, F = 1,075,712; same path.)
    N, H, W = 2, 18, 18
    x = jax.random.normal(kx, (N, 1, H, W), jnp.float32)
    params = init_params(kp, C=32, Hp=(H - 2) // 2, Wp=(W - 2) // 2)
    kparams, plan = prepare_params(params)

    fwd = jax.jit(functools.partial(lifespan_predictor_forward, plan=plan))
    out = jax.block_until_ready(fwd(x, kparams))

    ref = reference_forward(x, params)
    np.testing.assert_allclose(np.asarray(out), np.asarray(ref),
                               rtol=2e-2, atol=2e-2)
    assert out.shape == (N, 1)
    print("KERNEL_OK")
</pallas_src>

<mosaic_0001>
module attributes {stable_mosaic.version = 11 : i64} {
  func.func @kernel(%arg0: i32, %arg1: i32, %arg2: memref<1x4x9x9xf32, #tpu.memory_space<vmem>>, %arg3: memref<32x9xf32, #tpu.memory_space<smem>>, %arg4: memref<32xf32, #tpu.memory_space<smem>>, %arg5: memref<1x8x8x8xbf16, #tpu.memory_space<vmem>>) attributes {dimension_semantics = [#tpu.dimension_semantics<parallel>, #tpu.dimension_semantics<parallel>], iteration_bounds = array<i64: 2, 4>, scalar_prefetch = 0 : i64, scratch_operands = 0 : i64, tpu.core_type = #tpu.core_type<tc>, window_params = [{transform_indices = @transform_0, window_bounds = array<i64: 1, 4, 9, 9>}, {transform_indices = @transform_1, window_bounds = array<i64: 32, 9>}, {transform_indices = @transform_2, window_bounds = array<i64: 32>}, {transform_indices = @transform_3, window_bounds = array<i64: 1, 8, 8, 8>}]} {
    %c0 = arith.constant 0 : index
    %c0_0 = arith.constant 0 : index
    %c0_1 = arith.constant 0 : index
    %c0_2 = arith.constant 0 : index
    %0 = vector.load %arg2[%c0, %c0_0, %c0_1, %c0_2] : memref<1x4x9x9xf32, #tpu.memory_space<vmem>>, vector<1x1x8x8xf32>
    %1 = vector.shape_cast %0 : vector<1x1x8x8xf32> to vector<8x8xf32>
    %2 = arith.truncf %1 : vector<8x8xf32> to vector<8x8xbf16>
    %c0_3 = arith.constant 0 : index
    %c1 = arith.constant 1 : index
    %c0_4 = arith.constant 0 : index
    %c0_5 = arith.constant 0 : index
    %3 = vector.load %arg2[%c0_3, %c1, %c0_4, %c0_5] : memref<1x4x9x9xf32, #tpu.memory_space<vmem>>, vector<1x1x8x8xf32>
    %4 = vector.shape_cast %3 : vector<1x1x8x8xf32> to vector<8x8xf32>
    %5 = arith.truncf %4 : vector<8x8xf32> to vector<8x8xbf16>
    %c0_6 = arith.constant 0 : index
    %c0_7 = arith.constant 0 : index
    %c0_8 = arith.constant 0 : index
    %c1_9 = arith.constant 1 : index
    %6 = vector.load %arg2[%c0_6, %c0_7, %c0_8, %c1_9] : memref<1x4x9x9xf32, #tpu.memory_space<vmem>>, vector<1x1x8x8xf32>
    %7 = vector.shape_cast %6 : vector<1x1x8x8xf32> to vector<8x8xf32>
    %8 = arith.truncf %7 : vector<8x8xf32> to vector<8x8xbf16>
    %c0_10 = arith.constant 0 : index
    %c1_11 = arith.constant 1 : index
    %c0_12 = arith.constant 0 : index
    %c1_13 = arith.constant 1 : index
    %9 = vector.load %arg2[%c0_10, %c1_11, %c0_12, %c1_13] : memref<1x4x9x9xf32, #tpu.memory_space<vmem>>, vector<1x1x8x8xf32>
    %10 = vector.shape_cast %9 : vector<1x1x8x8xf32> to vector<8x8xf32>
    %11 = arith.truncf %10 : vector<8x8xf32> to vector<8x8xbf16>
    %c0_14 = arith.constant 0 : index
    %c2 = arith.constant 2 : index
    %c0_15 = arith.constant 0 : index
    %c0_16 = arith.constant 0 : index
    %12 = vector.load %arg2[%c0_14, %c2, %c0_15, %c0_16] : memref<1x4x9x9xf32, #tpu.memory_space<vmem>>, vector<1x1x8x8xf32>
    %13 = vector.shape_cast %12 : vector<1x1x8x8xf32> to vector<8x8xf32>
    %14 = arith.truncf %13 : vector<8x8xf32> to vector<8x8xbf16>
    %c0_17 = arith.constant 0 : index
    %c3 = arith.constant 3 : index
    %c0_18 = arith.constant 0 : index
    %c0_19 = arith.constant 0 : index
    %15 = vector.load %arg2[%c0_17, %c3, %c0_18, %c0_19] : memref<1x4x9x9xf32, #tpu.memory_space<vmem>>, vector<1x1x8x8xf32>
    %16 = vector.shape_cast %15 : vector<1x1x8x8xf32> to vector<8x8xf32>
    %17 = arith.truncf %16 : vector<8x8xf32> to vector<8x8xbf16>
    %c0_20 = arith.constant 0 : index
    %c2_21 = arith.constant 2 : index
    %c0_22 = arith.constant 0 : index
    %c1_23 = arith.constant 1 : index
    %18 = vector.load %arg2[%c0_20, %c2_21, %c0_22, %c1_23] : memref<1x4x9x9xf32, #tpu.memory_space<vmem>>, vector<1x1x8x8xf32>
    %19 = vector.shape_cast %18 : vector<1x1x8x8xf32> to vector<8x8xf32>
    %20 = arith.truncf %19 : vector<8x8xf32> to vector<8x8xbf16>
    %c0_24 = arith.constant 0 : index
    %c3_25 = arith.constant 3 : index
    %c0_26 = arith.constant 0 : index
    %c1_27 = arith.constant 1 : index
    %21 = vector.load %arg2[%c0_24, %c3_25, %c0_26, %c1_27] : memref<1x4x9x9xf32, #tpu.memory_space<vmem>>, vector<1x1x8x8xf32>
    %22 = vector.shape_cast %21 : vector<1x1x8x8xf32> to vector<8x8xf32>
    %23 = arith.truncf %22 : vector<8x8xf32> to vector<8x8xbf16>
    %c0_28 = arith.constant 0 : index
    %c0_29 = arith.constant 0 : index
    %c1_30 = arith.constant 1 : index
    %c0_31 = arith.constant 0 : index
    %24 = vector.load %arg2[%c0_28, %c0_29, %c1_30, %c0_31] : memref<1x4x9x9xf32, #tpu.memory_space<vmem>>, vector<1x1x8x8xf32>
    %25 = vector.shape_cast %24 : vector<1x1x8x8xf32> to vector<8x8xf32>
    %26 = arith.truncf %25 : vector<8x8xf32> to vector<8x8xbf16>
    %c0_32 = arith.constant 0 : index
    %c1_33 = arith.constant 1 : index
    %c1_34 = arith.constant 1 : index
    %c0_35 = arith.constant 0 : index
    %27 = vector.load %arg2[%c0_32, %c1_33, %c1_34, %c0_35] : memref<1x4x9x9xf32, #tpu.memory_space<vmem>>, vector<1x1x8x8xf32>
    %28 = vector.shape_cast %27 : vector<1x1x8x8xf32> to vector<8x8xf32>
    %29 = arith.truncf %28 : vector<8x8xf32> to vector<8x8xbf16>
    %c0_36 = arith.constant 0 : index
    %c0_37 = arith.constant 0 : index
    %c1_38 = arith.constant 1 : index
    %c1_39 = arith.constant 1 : index
    %30 = vector.load %arg2[%c0_36, %c0_37, %c1_38, %c1_39] : memref<1x4x9x9xf32, #tpu.memory_space<vmem>>, vector<1x1x8x8xf32>
    %31 = vector.shape_cast %30 : vector<1x1x8x8xf32> to vector<8x8xf32>
    %32 = arith.truncf %31 : vector<8x8xf32> to vector<8x8xbf16>
    %c0_40 = arith.constant 0 : index
    %c1_41 = arith.constant 1 : index
    %c1_42 = arith.constant 1 : index
    %c1_43 = arith.constant 1 : index
    %33 = vector.load %arg2[%c0_40, %c1_41, %c1_42, %c1_43] : memref<1x4x9x9xf32, #tpu.memory_space<vmem>>, vector<1x1x8x8xf32>
    %34 = vector.shape_cast %33 : vector<1x1x8x8xf32> to vector<8x8xf32>
    %35 = arith.truncf %34 : vector<8x8xf32> to vector<8x8xbf16>
    %c0_44 = arith.constant 0 : index
    %c2_45 = arith.constant 2 : index
    %c1_46 = arith.constant 1 : index
    %c0_47 = arith.constant 0 : index
    %36 = vector.load %arg2[%c0_44, %c2_45, %c1_46, %c0_47] : memref<1x4x9x9xf32, #tpu.memory_space<vmem>>, vector<1x1x8x8xf32>
    %37 = vector.shape_cast %36 : vector<1x1x8x8xf32> to vector<8x8xf32>
    %38 = arith.truncf %37 : vector<8x8xf32> to vector<8x8xbf16>
    %c0_48 = arith.constant 0 : index
    %c3_49 = arith.constant 3 : index
    %c1_50 = arith.constant 1 : index
    %c0_51 = arith.constant 0 : index
    %39 = vector.load %arg2[%c0_48, %c3_49, %c1_50, %c0_51] : memref<1x4x9x9xf32, #tpu.memory_space<vmem>>, vector<1x1x8x8xf32>
    %40 = vector.shape_cast %39 : vector<1x1x8x8xf32> to vector<8x8xf32>
    %41 = arith.truncf %40 : vector<8x8xf32> to vector<8x8xbf16>
    %c0_52 = arith.constant 0 : index
    %c2_53 = arith.constant 2 : index
    %c1_54 = arith.constant 1 : index
    %c1_55 = arith.constant 1 : index
    %42 = vector.load %arg2[%c0_52, %c2_53, %c1_54, %c1_55] : memref<1x4x9x9xf32, #tpu.memory_space<vmem>>, vector<1x1x8x8xf32>
    %43 = vector.shape_cast %42 : vector<1x1x8x8xf32> to vector<8x8xf32>
    %44 = arith.truncf %43 : vector<8x8xf32> to vector<8x8xbf16>
    %c0_56 = arith.constant 0 : index
    %c3_57 = arith.constant 3 : index
    %c1_58 = arith.constant 1 : index
    %c1_59 = arith.constant 1 : index
    %45 = vector.load %arg2[%c0_56, %c3_57, %c1_58, %c1_59] : memref<1x4x9x9xf32, #tpu.memory_space<vmem>>, vector<1x1x8x8xf32>
    %46 = vector.shape_cast %45 : vector<1x1x8x8xf32> to vector<8x8xf32>
    %47 = arith.truncf %46 : vector<8x8xf32> to vector<8x8xbf16>
    %c8_i32 = arith.constant 8 : i32
    %48 = arith.muli %arg1, %c8_i32 : i32
    %c0_i32 = arith.constant 0 : i32
    %49 = arith.addi %48, %c0_i32 : i32
    %50 = arith.index_cast %49 : i32 to index
    %c0_60 = arith.constant 0 : index
    %51 = memref.load %arg3[%50, %c0_60] : memref<32x9xf32, #tpu.memory_space<smem>>
    %52 = arith.truncf %51 : f32 to bf16
    %53 = arith.index_cast %49 : i32 to index
    %c1_61 = arith.constant 1 : index
    %54 = memref.load %arg3[%53, %c1_61] : memref<32x9xf32, #tpu.memory_space<smem>>
    %55 = arith.truncf %54 : f32 to bf16
    %56 = arith.index_cast %49 : i32 to index
    %c2_62 = arith.constant 2 : index
    %57 = memref.load %arg3[%56, %c2_62] : memref<32x9xf32, #tpu.memory_space<smem>>
    %58 = arith.truncf %57 : f32 to bf16
    %59 = arith.index_cast %49 : i32 to index
    %c3_63 = arith.constant 3 : index
    %60 = memref.load %arg3[%59, %c3_63] : memref<32x9xf32, #tpu.memory_space<smem>>
    %61 = arith.truncf %60 : f32 to bf16
    %62 = arith.index_cast %49 : i32 to index
    %c4 = arith.constant 4 : index
    %63 = memref.load %arg3[%62, %c4] : memref<32x9xf32, #tpu.memory_space<smem>>
    %64 = arith.truncf %63 : f32 to bf16
    %65 = arith.index_cast %49 : i32 to index
    %c5 = arith.constant 5 : index
    %66 = memref.load %arg3[%65, %c5] : memref<32x9xf32, #tpu.memory_space<smem>>
    %67 = arith.truncf %66 : f32 to bf16
    %68 = arith.index_cast %49 : i32 to index
    %c6 = arith.constant 6 : index
    %69 = memref.load %arg3[%68, %c6] : memref<32x9xf32, #tpu.memory_space<smem>>
    %70 = arith.truncf %69 : f32 to bf16
    %71 = arith.index_cast %49 : i32 to index
    %c7 = arith.constant 7 : index
    %72 = memref.load %arg3[%71, %c7] : memref<32x9xf32, #tpu.memory_space<smem>>
    %73 = arith.truncf %72 : f32 to bf16
    %74 = arith.index_cast %49 : i32 to index
    %c8 = arith.constant 8 : index
    %75 = memref.load %arg3[%74, %c8] : memref<32x9xf32, #tpu.memory_space<smem>>
    %76 = arith.truncf %75 : f32 to bf16
    %77 = vector.broadcast %52 : bf16 to vector<8x8xbf16>
    %78 = arith.mulf %77, %2 : vector<8x8xbf16>
    %79 = vector.broadcast %55 : bf16 to vector<8x8xbf16>
    %80 = arith.mulf %79, %5 : vector<8x8xbf16>
    %81 = arith.addf %78, %80 : vector<8x8xbf16>
    %82 = vector.broadcast %58 : bf16 to vector<8x8xbf16>
    %83 = arith.mulf %82, %8 : vector<8x8xbf16>
    %84 = arith.addf %81, %83 : vector<8x8xbf16>
    %85 = vector.broadcast %61 : bf16 to vector<8x8xbf16>
    %86 = arith.mulf %85, %14 : vector<8x8xbf16>
    %87 = arith.addf %84, %86 : vector<8x8xbf16>
    %88 = vector.broadcast %64 : bf16 to vector<8x8xbf16>
    %89 = arith.mulf %88, %17 : vector<8x8xbf16>
    %90 = arith.addf %87, %89 : vector<8x8xbf16>
    %91 = vector.broadcast %67 : bf16 to vector<8x8xbf16>
    %92 = arith.mulf %91, %20 : vector<8x8xbf16>
    %93 = arith.addf %90, %92 : vector<8x8xbf16>
    %94 = vector.broadcast %70 : bf16 to vector<8x8xbf16>
    %95 = arith.mulf %94, %26 : vector<8x8xbf16>
    %96 = arith.addf %93, %95 : vector<8x8xbf16>
    %97 = vector.broadcast %73 : bf16 to vector<8x8xbf16>
    %98 = arith.mulf %97, %29 : vector<8x8xbf16>
    %99 = arith.addf %96, %98 : vector<8x8xbf16>
    %100 = vector.broadcast %76 : bf16 to vector<8x8xbf16>
    %101 = arith.mulf %100, %32 : vector<8x8xbf16>
    %102 = arith.addf %99, %101 : vector<8x8xbf16>
    %103 = vector.broadcast %52 : bf16 to vector<8x8xbf16>
    %104 = arith.mulf %103, %5 : vector<8x8xbf16>
    %105 = vector.broadcast %55 : bf16 to vector<8x8xbf16>
    %106 = arith.mulf %105, %8 : vector<8x8xbf16>
    %107 = arith.addf %104, %106 : vector<8x8xbf16>
    %108 = vector.broadcast %58 : bf16 to vector<8x8xbf16>
    %109 = arith.mulf %108, %11 : vector<8x8xbf16>
    %110 = arith.addf %107, %109 : vector<8x8xbf16>
    %111 = vector.broadcast %61 : bf16 to vector<8x8xbf16>
    %112 = arith.mulf %111, %17 : vector<8x8xbf16>
    %113 = arith.addf %110, %112 : vector<8x8xbf16>
    %114 = vector.broadcast %64 : bf16 to vector<8x8xbf16>
    %115 = arith.mulf %114, %20 : vector<8x8xbf16>
    %116 = arith.addf %113, %115 : vector<8x8xbf16>
    %117 = vector.broadcast %67 : bf16 to vector<8x8xbf16>
    %118 = arith.mulf %117, %23 : vector<8x8xbf16>
    %119 = arith.addf %116, %118 : vector<8x8xbf16>
    %120 = vector.broadcast %70 : bf16 to vector<8x8xbf16>
    %121 = arith.mulf %120, %29 : vector<8x8xbf16>
    %122 = arith.addf %119, %121 : vector<8x8xbf16>
    %123 = vector.broadcast %73 : bf16 to vector<8x8xbf16>
    %124 = arith.mulf %123, %32 : vector<8x8xbf16>
    %125 = arith.addf %122, %124 : vector<8x8xbf16>
    %126 = vector.broadcast %76 : bf16 to vector<8x8xbf16>
    %127 = arith.mulf %126, %35 : vector<8x8xbf16>
    %128 = arith.addf %125, %127 : vector<8x8xbf16>
    %129 = arith.maximumf %102, %128 : vector<8x8xbf16>
    %130 = vector.broadcast %52 : bf16 to vector<8x8xbf16>
    %131 = arith.mulf %130, %14 : vector<8x8xbf16>
    %132 = vector.broadcast %55 : bf16 to vector<8x8xbf16>
    %133 = arith.mulf %132, %17 : vector<8x8xbf16>
    %134 = arith.addf %131, %133 : vector<8x8xbf16>
    %135 = vector.broadcast %58 : bf16 to vector<8x8xbf16>
    %136 = arith.mulf %135, %20 : vector<8x8xbf16>
    %137 = arith.addf %134, %136 : vector<8x8xbf16>
    %138 = vector.broadcast %61 : bf16 to vector<8x8xbf16>
    %139 = arith.mulf %138, %26 : vector<8x8xbf16>
    %140 = arith.addf %137, %139 : vector<8x8xbf16>
    %141 = vector.broadcast %64 : bf16 to vector<8x8xbf16>
    %142 = arith.mulf %141, %29 : vector<8x8xbf16>
    %143 = arith.addf %140, %142 : vector<8x8xbf16>
    %144 = vector.broadcast %67 : bf16 to vector<8x8xbf16>
    %145 = arith.mulf %144, %32 : vector<8x8xbf16>
    %146 = arith.addf %143, %145 : vector<8x8xbf16>
    %147 = vector.broadcast %70 : bf16 to vector<8x8xbf16>
    %148 = arith.mulf %147, %38 : vector<8x8xbf16>
    %149 = arith.addf %146, %148 : vector<8x8xbf16>
    %150 = vector.broadcast %73 : bf16 to vector<8x8xbf16>
    %151 = arith.mulf %150, %41 : vector<8x8xbf16>
    %152 = arith.addf %149, %151 : vector<8x8xbf16>
    %153 = vector.broadcast %76 : bf16 to vector<8x8xbf16>
    %154 = arith.mulf %153, %44 : vector<8x8xbf16>
    %155 = arith.addf %152, %154 : vector<8x8xbf16>
    %156 = arith.maximumf %129, %155 : vector<8x8xbf16>
    %157 = vector.broadcast %52 : bf16 to vector<8x8xbf16>
    %158 = arith.mulf %157, %17 : vector<8x8xbf16>
    %159 = vector.broadcast %55 : bf16 to vector<8x8xbf16>
    %160 = arith.mulf %159, %20 : vector<8x8xbf16>
    %161 = arith.addf %158, %160 : vector<8x8xbf16>
    %162 = vector.broadcast %58 : bf16 to vector<8x8xbf16>
    %163 = arith.mulf %162, %23 : vector<8x8xbf16>
    %164 = arith.addf %161, %163 : vector<8x8xbf16>
    %165 = vector.broadcast %61 : bf16 to vector<8x8xbf16>
    %166 = arith.mulf %165, %29 : vector<8x8xbf16>
    %167 = arith.addf %164, %166 : vector<8x8xbf16>
    %168 = vector.broadcast %64 : bf16 to vector<8x8xbf16>
    %169 = arith.mulf %168, %32 : vector<8x8xbf16>
    %170 = arith.addf %167, %169 : vector<8x8xbf16>
    %171 = vector.broadcast %67 : bf16 to vector<8x8xbf16>
    %172 = arith.mulf %171, %35 : vector<8x8xbf16>
    %173 = arith.addf %170, %172 : vector<8x8xbf16>
    %174 = vector.broadcast %70 : bf16 to vector<8x8xbf16>
    %175 = arith.mulf %174, %41 : vector<8x8xbf16>
    %176 = arith.addf %173, %175 : vector<8x8xbf16>
    %177 = vector.broadcast %73 : bf16 to vector<8x8xbf16>
    %178 = arith.mulf %177, %44 : vector<8x8xbf16>
    %179 = arith.addf %176, %178 : vector<8x8xbf16>
    %180 = vector.broadcast %76 : bf16 to vector<8x8xbf16>
    %181 = arith.mulf %180, %47 : vector<8x8xbf16>
    %182 = arith.addf %179, %181 : vector<8x8xbf16>
    %183 = arith.maximumf %156, %182 : vector<8x8xbf16>
    %184 = arith.extf %183 : vector<8x8xbf16> to vector<8x8xf32>
    %185 = arith.index_cast %49 : i32 to index
    %186 = memref.load %arg4[%185] : memref<32xf32, #tpu.memory_space<smem>>
    %187 = vector.broadcast %186 : f32 to vector<8x8xf32>
    %188 = arith.addf %184, %187 : vector<8x8xf32>
    %cst = arith.constant 0.000000e+00 : f32
    %189 = vector.broadcast %cst : f32 to vector<8x8xf32>
    %190 = arith.maximumf %188, %189 : vector<8x8xf32>
    %191 = arith.truncf %190 : vector<8x8xf32> to vector<8x8xbf16>
    %c0_64 = arith.constant 0 : index
    %c0_65 = arith.constant 0 : index
    %c0_66 = arith.constant 0 : index
    %c0_67 = arith.constant 0 : index
    %192 = vector.load %arg5[%c0_64, %c0_65, %c0_66, %c0_67] : memref<1x8x8x8xbf16, #tpu.memory_space<vmem>>, vector<1x1x8x8xbf16>
    %193 = vector.shape_cast %192 : vector<1x1x8x8xbf16> to vector<8x8xbf16>
    %194 = vector.shape_cast %191 : vector<8x8xbf16> to vector<1x1x8x8xbf16>
    tpu.vector_store %arg5[%c0_64, %c0_65, %c0_66, %c0_67], %194 {strides = array<i32>} : memref<1x8x8x8xbf16, #tpu.memory_space<vmem>>, vector<1x1x8x8xbf16>,
    %c8_i32_68 = arith.constant 8 : i32
    %195 = arith.muli %arg1, %c8_i32_68 : i32
    %c1_i32 = arith.constant 1 : i32
    %196 = arith.addi %195, %c1_i32 : i32
    %197 = arith.index_cast %196 : i32 to index
    %c0_69 = arith.constant 0 : index
    %198 = memref.load %arg3[%197, %c0_69] : memref<32x9xf32, #tpu.memory_space<smem>>
    %199 = arith.truncf %198 : f32 to bf16
    %200 = arith.index_cast %196 : i32 to index
    %c1_70 = arith.constant 1 : index
    %201 = memref.load %arg3[%200, %c1_70] : memref<32x9xf32, #tpu.memory_space<smem>>
    %202 = arith.truncf %201 : f32 to bf16
    %203 = arith.index_cast %196 : i32 to index
    %c2_71 = arith.constant 2 : index
    %204 = memref.load %arg3[%203, %c2_71] : memref<32x9xf32, #tpu.memory_space<smem>>
    %205 = arith.truncf %204 : f32 to bf16
    %206 = arith.index_cast %196 : i32 to index
    %c3_72 = arith.constant 3 : index
    %207 = memref.load %arg3[%206, %c3_72] : memref<32x9xf32, #tpu.memory_space<smem>>
    %208 = arith.truncf %207 : f32 to bf16
    %209 = arith.index_cast %196 : i32 to index
    %c4_73 = arith.constant 4 : index
    %210 = memref.load %arg3[%209, %c4_73] : memref<32x9xf32, #tpu.memory_space<smem>>
    %211 = arith.truncf %210 : f32 to bf16
    %212 = arith.index_cast %196 : i32 to index
    %c5_74 = arith.constant 5 : index
    %213 = memref.load %arg3[%212, %c5_74] : memref<32x9xf32, #tpu.memory_space<smem>>
    %214 = arith.truncf %213 : f32 to bf16
    %215 = arith.index_cast %196 : i32 to index
    %c6_75 = arith.constant 6 : index
    %216 = memref.load %arg3[%215, %c6_75] : memref<32x9xf32, #tpu.memory_space<smem>>
    %217 = arith.truncf %216 : f32 to bf16
    %218 = arith.index_cast %196 : i32 to index
    %c7_76 = arith.constant 7 : index
    %219 = memref.load %arg3[%218, %c7_76] : memref<32x9xf32, #tpu.memory_space<smem>>
    %220 = arith.truncf %219 : f32 to bf16
    %221 = arith.index_cast %196 : i32 to index
    %c8_77 = arith.constant 8 : index
    %222 = memref.load %arg3[%221, %c8_77] : memref<32x9xf32, #tpu.memory_space<smem>>
    %223 = arith.truncf %222 : f32 to bf16
    %224 = vector.broadcast %199 : bf16 to vector<8x8xbf16>
    %225 = arith.mulf %224, %2 : vector<8x8xbf16>
    %226 = vector.broadcast %202 : bf16 to vector<8x8xbf16>
    %227 = arith.mulf %226, %5 : vector<8x8xbf16>
    %228 = arith.addf %225, %227 : vector<8x8xbf16>
    %229 = vector.broadcast %205 : bf16 to vector<8x8xbf16>
    %230 = arith.mulf %229, %8 : vector<8x8xbf16>
    %231 = arith.addf %228, %230 : vector<8x8xbf16>
    %232 = vector.broadcast %208 : bf16 to vector<8x8xbf16>
    %233 = arith.mulf %232, %14 : vector<8x8xbf16>
    %234 = arith.addf %231, %233 : vector<8x8xbf16>
    %235 = vector.broadcast %211 : bf16 to vector<8x8xbf16>
    %236 = arith.mulf %235, %17 : vector<8x8xbf16>
    %237 = arith.addf %234, %236 : vector<8x8xbf16>
    %238 = vector.broadcast %214 : bf16 to vector<8x8xbf16>
    %239 = arith.mulf %238, %20 : vector<8x8xbf16>
    %240 = arith.addf %237, %239 : vector<8x8xbf16>
    %241 = vector.broadcast %217 : bf16 to vector<8x8xbf16>
    %242 = arith.mulf %241, %26 : vector<8x8xbf16>
    %243 = arith.addf %240, %242 : vector<8x8xbf16>
    %244 = vector.broadcast %220 : bf16 to vector<8x8xbf16>
    %245 = arith.mulf %244, %29 : vector<8x8xbf16>
    %246 = arith.addf %243, %245 : vector<8x8xbf16>
    %247 = vector.broadcast %223 : bf16 to vector<8x8xbf16>
    %248 = arith.mulf %247, %32 : vector<8x8xbf16>
    %249 = arith.addf %246, %248 : vector<8x8xbf16>
    %250 = vector.broadcast %199 : bf16 to vector<8x8xbf16>
    %251 = arith.mulf %250, %5 : vector<8x8xbf16>
    %252 = vector.broadcast %202 : bf16 to vector<8x8xbf16>
    %253 = arith.mulf %252, %8 : vector<8x8xbf16>
    %254 = arith.addf %251, %253 : vector<8x8xbf16>
    %255 = vector.broadcast %205 : bf16 to vector<8x8xbf16>
    %256 = arith.mulf %255, %11 : vector<8x8xbf16>
    %257 = arith.addf %254, %256 : vector<8x8xbf16>
    %258 = vector.broadcast %208 : bf16 to vector<8x8xbf16>
    %259 = arith.mulf %258, %17 : vector<8x8xbf16>
    %260 = arith.addf %257, %259 : vector<8x8xbf16>
    %261 = vector.broadcast %211 : bf16 to vector<8x8xbf16>
    %262 = arith.mulf %261, %20 : vector<8x8xbf16>
    %263 = arith.addf %260, %262 : vector<8x8xbf16>
    %264 = vector.broadcast %214 : bf16 to vector<8x8xbf16>
    %265 = arith.mulf %264, %23 : vector<8x8xbf16>
    %266 = arith.addf %263, %265 : vector<8x8xbf16>
    %267 = vector.broadcast %217 : bf16 to vector<8x8xbf16>
    %268 = arith.mulf %267, %29 : vector<8x8xbf16>
    %269 = arith.addf %266, %268 : vector<8x8xbf16>
    %270 = vector.broadcast %220 : bf16 to vector<8x8xbf16>
    %271 = arith.mulf %270, %32 : vector<8x8xbf16>
    %272 = arith.addf %269, %271 : vector<8x8xbf16>
    %273 = vector.broadcast %223 : bf16 to vector<8x8xbf16>
    %274 = arith.mulf %273, %35 : vector<8x8xbf16>
    %275 = arith.addf %272, %274 : vector<8x8xbf16>
    %276 = arith.maximumf %249, %275 : vector<8x8xbf16>
    %277 = vector.broadcast %199 : bf16 to vector<8x8xbf16>
    %278 = arith.mulf %277, %14 : vector<8x8xbf16>
    %279 = vector.broadcast %202 : bf16 to vector<8x8xbf16>
    %280 = arith.mulf %279, %17 : vector<8x8xbf16>
    %281 = arith.addf %278, %280 : vector<8x8xbf16>
    %282 = vector.broadcast %205 : bf16 to vector<8x8xbf16>
    %283 = arith.mulf %282, %20 : vector<8x8xbf16>
    %284 = arith.addf %281, %283 : vector<8x8xbf16>
    %285 = vector.broadcast %208 : bf16 to vector<8x8xbf16>
    %286 = arith.mulf %285, %26 : vector<8x8xbf16>
    %287 = arith.addf %284, %286 : vector<8x8xbf16>
    %288 = vector.broadcast %211 : bf16 to vector<8x8xbf16>
    %289 = arith.mulf %288, %29 : vector<8x8xbf16>
    %290 = arith.addf %287, %289 : vector<8x8xbf16>
    %291 = vector.broadcast %214 : bf16 to vector<8x8xbf16>
    %292 = arith.mulf %291, %32 : vector<8x8xbf16>
    %293 = arith.addf %290, %292 : vector<8x8xbf16>
    %294 = vector.broadcast %217 : bf16 to vector<8x8xbf16>
    %295 = arith.mulf %294, %38 : vector<8x8xbf16>
    %296 = arith.addf %293, %295 : vector<8x8xbf16>
    %297 = vector.broadcast %220 : bf16 to vector<8x8xbf16>
    %298 = arith.mulf %297, %41 : vector<8x8xbf16>
    %299 = arith.addf %296, %298 : vector<8x8xbf16>
    %300 = vector.broadcast %223 : bf16 to vector<8x8xbf16>
    %301 = arith.mulf %300, %44 : vector<8x8xbf16>
    %302 = arith.addf %299, %301 : vector<8x8xbf16>
    %303 = arith.maximumf %276, %302 : vector<8x8xbf16>
    %304 = vector.broadcast %199 : bf16 to vector<8x8xbf16>
    %305 = arith.mulf %304, %17 : vector<8x8xbf16>
    %306 = vector.broadcast %202 : bf16 to vector<8x8xbf16>
    %307 = arith.mulf %306, %20 : vector<8x8xbf16>
    %308 = arith.addf %305, %307 : vector<8x8xbf16>
    %309 = vector.broadcast %205 : bf16 to vector<8x8xbf16>
    %310 = arith.mulf %309, %23 : vector<8x8xbf16>
    %311 = arith.addf %308, %310 : vector<8x8xbf16>
    %312 = vector.broadcast %208 : bf16 to vector<8x8xbf16>
    %313 = arith.mulf %312, %29 : vector<8x8xbf16>
    %314 = arith.addf %311, %313 : vector<8x8xbf16>
    %315 = vector.broadcast %211 : bf16 to vector<8x8xbf16>
    %316 = arith.mulf %315, %32 : vector<8x8xbf16>
    %317 = arith.addf %314, %316 : vector<8x8xbf16>
    %318 = vector.broadcast %214 : bf16 to vector<8x8xbf16>
    %319 = arith.mulf %318, %35 : vector<8x8xbf16>
    %320 = arith.addf %317, %319 : vector<8x8xbf16>
    %321 = vector.broadcast %217 : bf16 to vector<8x8xbf16>
    %322 = arith.mulf %321, %41 : vector<8x8xbf16>
    %323 = arith.addf %320, %322 : vector<8x8xbf16>
    %324 = vector.broadcast %220 : bf16 to vector<8x8xbf16>
    %325 = arith.mulf %324, %44 : vector<8x8xbf16>
    %326 = arith.addf %323, %325 : vector<8x8xbf16>
    %327 = vector.broadcast %223 : bf16 to vector<8x8xbf16>
    %328 = arith.mulf %327, %47 : vector<8x8xbf16>
    %329 = arith.addf %326, %328 : vector<8x8xbf16>
    %330 = arith.maximumf %303, %329 : vector<8x8xbf16>
    %331 = arith.extf %330 : vector<8x8xbf16> to vector<8x8xf32>
    %332 = arith.index_cast %196 : i32 to index
    %333 = memref.load %arg4[%332] : memref<32xf32, #tpu.memory_space<smem>>
    %334 = vector.broadcast %333 : f32 to vector<8x8xf32>
    %335 = arith.addf %331, %334 : vector<8x8xf32>
    %cst_78 = arith.constant 0.000000e+00 : f32
    %336 = vector.broadcast %cst_78 : f32 to vector<8x8xf32>
    %337 = arith.maximumf %335, %336 : vector<8x8xf32>
    %338 = arith.truncf %337 : vector<8x8xf32> to vector<8x8xbf16>
    %c0_79 = arith.constant 0 : index
    %c1_80 = arith.constant 1 : index
    %c0_81 = arith.constant 0 : index
    %c0_82 = arith.constant 0 : index
    %339 = vector.load %arg5[%c0_79, %c1_80, %c0_81, %c0_82] : memref<1x8x8x8xbf16, #tpu.memory_space<vmem>>, vector<1x1x8x8xbf16>
    %340 = vector.shape_cast %339 : vector<1x1x8x8xbf16> to vector<8x8xbf16>
    %341 = vector.shape_cast %338 : vector<8x8xbf16> to vector<1x1x8x8xbf16>
    tpu.vector_store %arg5[%c0_79, %c1_80, %c0_81, %c0_82], %341 {strides = array<i32>} : memref<1x8x8x8xbf16, #tpu.memory_space<vmem>>, vector<1x1x8x8xbf16>,
    %c8_i32_83 = arith.constant 8 : i32
    %342 = arith.muli %arg1, %c8_i32_83 : i32
    %c2_i32 = arith.constant 2 : i32
    %343 = arith.addi %342, %c2_i32 : i32
    %344 = arith.index_cast %343 : i32 to index
    %c0_84 = arith.constant 0 : index
    %345 = memref.load %arg3[%344, %c0_84] : memref<32x9xf32, #tpu.memory_space<smem>>
    %346 = arith.truncf %345 : f32 to bf16
    %347 = arith.index_cast %343 : i32 to index
    %c1_85 = arith.constant 1 : index
    %348 = memref.load %arg3[%347, %c1_85] : memref<32x9xf32, #tpu.memory_space<smem>>
    %349 = arith.truncf %348 : f32 to bf16
    %350 = arith.index_cast %343 : i32 to index
    %c2_86 = arith.constant 2 : index
    %351 = memref.load %arg3[%350, %c2_86] : memref<32x9xf32, #tpu.memory_space<smem>>
    %352 = arith.truncf %351 : f32 to bf16
    %353 = arith.index_cast %343 : i32 to index
    %c3_87 = arith.constant 3 : index
    %354 = memref.load %arg3[%353, %c3_87] : memref<32x9xf32, #tpu.memory_space<smem>>
    %355 = arith.truncf %354 : f32 to bf16
    %356 = arith.index_cast %343 : i32 to index
    %c4_88 = arith.constant 4 : index
    %357 = memref.load %arg3[%356, %c4_88] : memref<32x9xf32, #tpu.memory_space<smem>>
    %358 = arith.truncf %357 : f32 to bf16
    %359 = arith.index_cast %343 : i32 to index
    %c5_89 = arith.constant 5 : index
    %360 = memref.load %arg3[%359, %c5_89] : memref<32x9xf32, #tpu.memory_space<smem>>
    %361 = arith.truncf %360 : f32 to bf16
    %362 = arith.index_cast %343 : i32 to index
    %c6_90 = arith.constant 6 : index
    %363 = memref.load %arg3[%362, %c6_90] : memref<32x9xf32, #tpu.memory_space<smem>>
    %364 = arith.truncf %363 : f32 to bf16
    %365 = arith.index_cast %343 : i32 to index
    %c7_91 = arith.constant 7 : index
    %366 = memref.load %arg3[%365, %c7_91] : memref<32x9xf32, #tpu.memory_space<smem>>
    %367 = arith.truncf %366 : f32 to bf16
    %368 = arith.index_cast %343 : i32 to index
    %c8_92 = arith.constant 8 : index
    %369 = memref.load %arg3[%368, %c8_92] : memref<32x9xf32, #tpu.memory_space<smem>>
    %370 = arith.truncf %369 : f32 to bf16
    %371 = vector.broadcast %346 : bf16 to vector<8x8xbf16>
    %372 = arith.mulf %371, %2 : vector<8x8xbf16>
    %373 = vector.broadcast %349 : bf16 to vector<8x8xbf16>
    %374 = arith.mulf %373, %5 : vector<8x8xbf16>
    %375 = arith.addf %372, %374 : vector<8x8xbf16>
    %376 = vector.broadcast %352 : bf16 to vector<8x8xbf16>
    %377 = arith.mulf %376, %8 : vector<8x8xbf16>
    %378 = arith.addf %375, %377 : vector<8x8xbf16>
    %379 = vector.broadcast %355 : bf16 to vector<8x8xbf16>
    %380 = arith.mulf %379, %14 : vector<8x8xbf16>
    %381 = arith.addf %378, %380 : vector<8x8xbf16>
    %382 = vector.broadcast %358 : bf16 to vector<8x8xbf16>
    %383 = arith.mulf %382, %17 : vector<8x8xbf16>
    %384 = arith.addf %381, %383 : vector<8x8xbf16>
    %385 = vector.broadcast %361 : bf16 to vector<8x8xbf16>
    %386 = arith.mulf %385, %20 : vector<8x8xbf16>
    %387 = arith.addf %384, %386 : vector<8x8xbf16>
    %388 = vector.broadcast %364 : bf16 to vector<8x8xbf16>
    %389 = arith.mulf %388, %26 : vector<8x8xbf16>
    %390 = arith.addf %387, %389 : vector<8x8xbf16>
    %391 = vector.broadcast %367 : bf16 to vector<8x8xbf16>
    %392 = arith.mulf %391, %29 : vector<8x8xbf16>
    %393 = arith.addf %390, %392 : vector<8x8xbf16>
    %394 = vector.broadcast %370 : bf16 to vector<8x8xbf16>
    %395 = arith.mulf %394, %32 : vector<8x8xbf16>
    %396 = arith.addf %393, %395 : vector<8x8xbf16>
    %397 = vector.broadcast %346 : bf16 to vector<8x8xbf16>
    %398 = arith.mulf %397, %5 : vector<8x8xbf16>
    %399 = vector.broadcast %349 : bf16 to vector<8x8xbf16>
    %400 = arith.mulf %399, %8 : vector<8x8xbf16>
    %401 = arith.addf %398, %400 : vector<8x8xbf16>
    %402 = vector.broadcast %352 : bf16 to vector<8x8xbf16>
    %403 = arith.mulf %402, %11 : vector<8x8xbf16>
    %404 = arith.addf %401, %403 : vector<8x8xbf16>
    %405 = vector.broadcast %355 : bf16 to vector<8x8xbf16>
    %406 = arith.mulf %405, %17 : vector<8x8xbf16>
    %407 = arith.addf %404, %406 : vector<8x8xbf16>
    %408 = vector.broadcast %358 : bf16 to vector<8x8xbf16>
    %409 = arith.mulf %408, %20 : vector<8x8xbf16>
    %410 = arith.addf %407, %409 : vector<8x8xbf16>
    %411 = vector.broadcast %361 : bf16 to vector<8x8xbf16>
    %412 = arith.mulf %411, %23 : vector<8x8xbf16>
    %413 = arith.addf %410, %412 : vector<8x8xbf16>
    %414 = vector.broadcast %364 : bf16 to vector<8x8xbf16>
    %415 = arith.mulf %414, %29 : vector<8x8xbf16>
    %416 = arith.addf %413, %415 : vector<8x8xbf16>
    %417 = vector.broadcast %367 : bf16 to vector<8x8xbf16>
    %418 = arith.mulf %417, %32 : vector<8x8xbf16>
    %419 = arith.addf %416, %418 : vector<8x8xbf16>
    %420 = vector.broadcast %370 : bf16 to vector<8x8xbf16>
    %421 = arith.mulf %420, %35 : vector<8x8xbf16>
    %422 = arith.addf %419, %421 : vector<8x8xbf16>
    %423 = arith.maximumf %396, %422 : vector<8x8xbf16>
    %424 = vector.broadcast %346 : bf16 to vector<8x8xbf16>
    %425 = arith.mulf %424, %14 : vector<8x8xbf16>
    %426 = vector.broadcast %349 : bf16 to vector<8x8xbf16>
    %427 = arith.mulf %426, %17 : vector<8x8xbf16>
    %428 = arith.addf %425, %427 : vector<8x8xbf16>
    %429 = vector.broadcast %352 : bf16 to vector<8x8xbf16>
    %430 = arith.mulf %429, %20 : vector<8x8xbf16>
    %431 = arith.addf %428, %430 : vector<8x8xbf16>
    %432 = vector.broadcast %355 : bf16 to vector<8x8xbf16>
    %433 = arith.mulf %432, %26 : vector<8x8xbf16>
    %434 = arith.addf %431, %433 : vector<8x8xbf16>
    %435 = vector.broadcast %358 : bf16 to vector<8x8xbf16>
    %436 = arith.mulf %435, %29 : vector<8x8xbf16>
    %437 = arith.addf %434, %436 : vector<8x8xbf16>
    %438 = vector.broadcast %361 : bf16 to vector<8x8xbf16>
    %439 = arith.mulf %438, %32 : vector<8x8xbf16>
    %440 = arith.addf %437, %439 : vector<8x8xbf16>
    %441 = vector.broadcast %364 : bf16 to vector<8x8xbf16>
    %442 = arith.mulf %441, %38 : vector<8x8xbf16>
    %443 = arith.addf %440, %442 : vector<8x8xbf16>
    %444 = vector.broadcast %367 : bf16 to vector<8x8xbf16>
    %445 = arith.mulf %444, %41 : vector<8x8xbf16>
    %446 = arith.addf %443, %445 : vector<8x8xbf16>
    %447 = vector.broadcast %370 : bf16 to vector<8x8xbf16>
    %448 = arith.mulf %447, %44 : vector<8x8xbf16>
    %449 = arith.addf %446, %448 : vector<8x8xbf16>
    %450 = arith.maximumf %423, %449 : vector<8x8xbf16>
    %451 = vector.broadcast %346 : bf16 to vector<8x8xbf16>
    %452 = arith.mulf %451, %17 : vector<8x8xbf16>
    %453 = vector.broadcast %349 : bf16 to vector<8x8xbf16>
    %454 = arith.mulf %453, %20 : vector<8x8xbf16>
    %455 = arith.addf %452, %454 : vector<8x8xbf16>
    %456 = vector.broadcast %352 : bf16 to vector<8x8xbf16>
    %457 = arith.mulf %456, %23 : vector<8x8xbf16>
    %458 = arith.addf %455, %457 : vector<8x8xbf16>
    %459 = vector.broadcast %355 : bf16 to vector<8x8xbf16>
    %460 = arith.mulf %459, %29 : vector<8x8xbf16>
    %461 = arith.addf %458, %460 : vector<8x8xbf16>
    %462 = vector.broadcast %358 : bf16 to vector<8x8xbf16>
    %463 = arith.mulf %462, %32 : vector<8x8xbf16>
    %464 = arith.addf %461, %463 : vector<8x8xbf16>
    %465 = vector.broadcast %361 : bf16 to vector<8x8xbf16>
    %466 = arith.mulf %465, %35 : vector<8x8xbf16>
    %467 = arith.addf %464, %466 : vector<8x8xbf16>
    %468 = vector.broadcast %364 : bf16 to vector<8x8xbf16>
    %469 = arith.mulf %468, %41 : vector<8x8xbf16>
    %470 = arith.addf %467, %469 : vector<8x8xbf16>
    %471 = vector.broadcast %367 : bf16 to vector<8x8xbf16>
    %472 = arith.mulf %471, %44 : vector<8x8xbf16>
    %473 = arith.addf %470, %472 : vector<8x8xbf16>
    %474 = vector.broadcast %370 : bf16 to vector<8x8xbf16>
    %475 = arith.mulf %474, %47 : vector<8x8xbf16>
    %476 = arith.addf %473, %475 : vector<8x8xbf16>
    %477 = arith.maximumf %450, %476 : vector<8x8xbf16>
    %478 = arith.extf %477 : vector<8x8xbf16> to vector<8x8xf32>
    %479 = arith.index_cast %343 : i32 to index
    %480 = memref.load %arg4[%479] : memref<32xf32, #tpu.memory_space<smem>>
    %481 = vector.broadcast %480 : f32 to vector<8x8xf32>
    %482 = arith.addf %478, %481 : vector<8x8xf32>
    %cst_93 = arith.constant 0.000000e+00 : f32
    %483 = vector.broadcast %cst_93 : f32 to vector<8x8xf32>
    %484 = arith.maximumf %482, %483 : vector<8x8xf32>
    %485 = arith.truncf %484 : vector<8x8xf32> to vector<8x8xbf16>
    %c0_94 = arith.constant 0 : index
    %c2_95 = arith.constant 2 : index
    %c0_96 = arith.constant 0 : index
    %c0_97 = arith.constant 0 : index
    %486 = vector.load %arg5[%c0_94, %c2_95, %c0_96, %c0_97] : memref<1x8x8x8xbf16, #tpu.memory_space<vmem>>, vector<1x1x8x8xbf16>
    %487 = vector.shape_cast %486 : vector<1x1x8x8xbf16> to vector<8x8xbf16>
    %488 = vector.shape_cast %485 : vector<8x8xbf16> to vector<1x1x8x8xbf16>
    tpu.vector_store %arg5[%c0_94, %c2_95, %c0_96, %c0_97], %488 {strides = array<i32>} : memref<1x8x8x8xbf16, #tpu.memory_space<vmem>>, vector<1x1x8x8xbf16>,
    %c8_i32_98 = arith.constant 8 : i32
    %489 = arith.muli %arg1, %c8_i32_98 : i32
    %c3_i32 = arith.constant 3 : i32
    %490 = arith.addi %489, %c3_i32 : i32
    %491 = arith.index_cast %490 : i32 to index
    %c0_99 = arith.constant 0 : index
    %492 = memref.load %arg3[%491, %c0_99] : memref<32x9xf32, #tpu.memory_space<smem>>
    %493 = arith.truncf %492 : f32 to bf16
    %494 = arith.index_cast %490 : i32 to index
    %c1_100 = arith.constant 1 : index
    %495 = memref.load %arg3[%494, %c1_100] : memref<32x9xf32, #tpu.memory_space<smem>>
    %496 = arith.truncf %495 : f32 to bf16
    %497 = arith.index_cast %490 : i32 to index
    %c2_101 = arith.constant 2 : index
    %498 = memref.load %arg3[%497, %c2_101] : memref<32x9xf32, #tpu.memory_space<smem>>
    %499 = arith.truncf %498 : f32 to bf16
    %500 = arith.index_cast %490 : i32 to index
    %c3_102 = arith.constant 3 : index
    %501 = memref.load %arg3[%500, %c3_102] : memref<32x9xf32, #tpu.memory_space<smem>>
    %502 = arith.truncf %501 : f32 to bf16
    %503 = arith.index_cast %490 : i32 to index
    %c4_103 = arith.constant 4 : index
    %504 = memref.load %arg3[%503, %c4_103] : memref<32x9xf32, #tpu.memory_space<smem>>
    %505 = arith.truncf %504 : f32 to bf16
    %506 = arith.index_cast %490 : i32 to index
    %c5_104 = arith.constant 5 : index
    %507 = memref.load %arg3[%506, %c5_104] : memref<32x9xf32, #tpu.memory_space<smem>>
    %508 = arith.truncf %507 : f32 to bf16
    %509 = arith.index_cast %490 : i32 to index
    %c6_105 = arith.constant 6 : index
    %510 = memref.load %arg3[%509, %c6_105] : memref<32x9xf32, #tpu.memory_space<smem>>
    %511 = arith.truncf %510 : f32 to bf16
    %512 = arith.index_cast %490 : i32 to index
    %c7_106 = arith.constant 7 : index
    %513 = memref.load %arg3[%512, %c7_106] : memref<32x9xf32, #tpu.memory_space<smem>>
    %514 = arith.truncf %513 : f32 to bf16
    %515 = arith.index_cast %490 : i32 to index
    %c8_107 = arith.constant 8 : index
    %516 = memref.load %arg3[%515, %c8_107] : memref<32x9xf32, #tpu.memory_space<smem>>
    %517 = arith.truncf %516 : f32 to bf16
    %518 = vector.broadcast %493 : bf16 to vector<8x8xbf16>
    %519 = arith.mulf %518, %2 : vector<8x8xbf16>
    %520 = vector.broadcast %496 : bf16 to vector<8x8xbf16>
    %521 = arith.mulf %520, %5 : vector<8x8xbf16>
    %522 = arith.addf %519, %521 : vector<8x8xbf16>
    %523 = vector.broadcast %499 : bf16 to vector<8x8xbf16>
    %524 = arith.mulf %523, %8 : vector<8x8xbf16>
    %525 = arith.addf %522, %524 : vector<8x8xbf16>
    %526 = vector.broadcast %502 : bf16 to vector<8x8xbf16>
    %527 = arith.mulf %526, %14 : vector<8x8xbf16>
    %528 = arith.addf %525, %527 : vector<8x8xbf16>
    %529 = vector.broadcast %505 : bf16 to vector<8x8xbf16>
    %530 = arith.mulf %529, %17 : vector<8x8xbf16>
    %531 = arith.addf %528, %530 : vector<8x8xbf16>
    %532 = vector.broadcast %508 : bf16 to vector<8x8xbf16>
    %533 = arith.mulf %532, %20 : vector<8x8xbf16>
    %534 = arith.addf %531, %533 : vector<8x8xbf16>
    %535 = vector.broadcast %511 : bf16 to vector<8x8xbf16>
    %536 = arith.mulf %535, %26 : vector<8x8xbf16>
    %537 = arith.addf %534, %536 : vector<8x8xbf16>
    %538 = vector.broadcast %514 : bf16 to vector<8x8xbf16>
    %539 = arith.mulf %538, %29 : vector<8x8xbf16>
    %540 = arith.addf %537, %539 : vector<8x8xbf16>
    %541 = vector.broadcast %517 : bf16 to vector<8x8xbf16>
    %542 = arith.mulf %541, %32 : vector<8x8xbf16>
    %543 = arith.addf %540, %542 : vector<8x8xbf16>
    %544 = vector.broadcast %493 : bf16 to vector<8x8xbf16>
    %545 = arith.mulf %544, %5 : vector<8x8xbf16>
    %546 = vector.broadcast %496 : bf16 to vector<8x8xbf16>
    %547 = arith.mulf %546, %8 : vector<8x8xbf16>
    %548 = arith.addf %545, %547 : vector<8x8xbf16>
    %549 = vector.broadcast %499 : bf16 to vector<8x8xbf16>
    %550 = arith.mulf %549, %11 : vector<8x8xbf16>
    %551 = arith.addf %548, %550 : vector<8x8xbf16>
    %552 = vector.broadcast %502 : bf16 to vector<8x8xbf16>
    %553 = arith.mulf %552, %17 : vector<8x8xbf16>
    %554 = arith.addf %551, %553 : vector<8x8xbf16>
    %555 = vector.broadcast %505 : bf16 to vector<8x8xbf16>
    %556 = arith.mulf %555, %20 : vector<8x8xbf16>
    %557 = arith.addf %554, %556 : vector<8x8xbf16>
    %558 = vector.broadcast %508 : bf16 to vector<8x8xbf16>
    %559 = arith.mulf %558, %23 : vector<8x8xbf16>
    %560 = arith.addf %557, %559 : vector<8x8xbf16>
    %561 = vector.broadcast %511 : bf16 to vector<8x8xbf16>
    %562 = arith.mulf %561, %29 : vector<8x8xbf16>
    %563 = arith.addf %560, %562 : vector<8x8xbf16>
    %564 = vector.broadcast %514 : bf16 to vector<8x8xbf16>
    %565 = arith.mulf %564, %32 : vector<8x8xbf16>
    %566 = arith.addf %563, %565 : vector<8x8xbf16>
    %567 = vector.broadcast %517 : bf16 to vector<8x8xbf16>
    %568 = arith.mulf %567, %35 : vector<8x8xbf16>
    %569 = arith.addf %566, %568 : vector<8x8xbf16>
    %570 = arith.maximumf %543, %569 : vector<8x8xbf16>
    %571 = vector.broadcast %493 : bf16 to vector<8x8xbf16>
    %572 = arith.mulf %571, %14 : vector<8x8xbf16>
    %573 = vector.broadcast %496 : bf16 to vector<8x8xbf16>
    %574 = arith.mulf %573, %17 : vector<8x8xbf16>
    %575 = arith.addf %572, %574 : vector<8x8xbf16>
    %576 = vector.broadcast %499 : bf16 to vector<8x8xbf16>
    %577 = arith.mulf %576, %20 : vector<8x8xbf16>
    %578 = arith.addf %575, %577 : vector<8x8xbf16>
    %579 = vector.broadcast %502 : bf16 to vector<8x8xbf16>
    %580 = arith.mulf %579, %26 : vector<8x8xbf16>
    %581 = arith.addf %578, %580 : vector<8x8xbf16>
    %582 = vector.broadcast %505 : bf16 to vector<8x8xbf16>
    %583 = arith.mulf %582, %29 : vector<8x8xbf16>
    %584 = arith.addf %581, %583 : vector<8x8xbf16>
    %585 = vector.broadcast %508 : bf16 to vector<8x8xbf16>
    %586 = arith.mulf %585, %32 : vector<8x8xbf16>
    %587 = arith.addf %584, %586 : vector<8x8xbf16>
    %588 = vector.broadcast %511 : bf16 to vector<8x8xbf16>
    %589 = arith.mulf %588, %38 : vector<8x8xbf16>
    %590 = arith.addf %587, %589 : vector<8x8xbf16>
    %591 = vector.broadcast %514 : bf16 to vector<8x8xbf16>
    %592 = arith.mulf %591, %41 : vector<8x8xbf16>
    %593 = arith.addf %590, %592 : vector<8x8xbf16>
    %594 = vector.broadcast %517 : bf16 to vector<8x8xbf16>
    %595 = arith.mulf %594, %44 : vector<8x8xbf16>
    %596 = arith.addf %593, %595 : vector<8x8xbf16>
    %597 = arith.maximumf %570, %596 : vector<8x8xbf16>
    %598 = vector.broadcast %493 : bf16 to vector<8x8xbf16>
    %599 = arith.mulf %598, %17 : vector<8x8xbf16>
    %600 = vector.broadcast %496 : bf16 to vector<8x8xbf16>
    %601 = arith.mulf %600, %20 : vector<8x8xbf16>
    %602 = arith.addf %599, %601 : vector<8x8xbf16>
    %603 = vector.broadcast %499 : bf16 to vector<8x8xbf16>
    %604 = arith.mulf %603, %23 : vector<8x8xbf16>
    %605 = arith.addf %602, %604 : vector<8x8xbf16>
    %606 = vector.broadcast %502 : bf16 to vector<8x8xbf16>
    %607 = arith.mulf %606, %29 : vector<8x8xbf16>
    %608 = arith.addf %605, %607 : vector<8x8xbf16>
    %609 = vector.broadcast %505 : bf16 to vector<8x8xbf16>
    %610 = arith.mulf %609, %32 : vector<8x8xbf16>
    %611 = arith.addf %608, %610 : vector<8x8xbf16>
    %612 = vector.broadcast %508 : bf16 to vector<8x8xbf16>
    %613 = arith.mulf %612, %35 : vector<8x8xbf16>
    %614 = arith.addf %611, %613 : vector<8x8xbf16>
    %615 = vector.broadcast %511 : bf16 to vector<8x8xbf16>
    %616 = arith.mulf %615, %41 : vector<8x8xbf16>
    %617 = arith.addf %614, %616 : vector<8x8xbf16>
    %618 = vector.broadcast %514 : bf16 to vector<8x8xbf16>
    %619 = arith.mulf %618, %44 : vector<8x8xbf16>
    %620 = arith.addf %617, %619 : vector<8x8xbf16>
    %621 = vector.broadcast %517 : bf16 to vector<8x8xbf16>
    %622 = arith.mulf %621, %47 : vector<8x8xbf16>
    %623 = arith.addf %620, %622 : vector<8x8xbf16>
    %624 = arith.maximumf %597, %623 : vector<8x8xbf16>
    %625 = arith.extf %624 : vector<8x8xbf16> to vector<8x8xf32>
    %626 = arith.index_cast %490 : i32 to index
    %627 = memref.load %arg4[%626] : memref<32xf32, #tpu.memory_space<smem>>
    %628 = vector.broadcast %627 : f32 to vector<8x8xf32>
    %629 = arith.addf %625, %628 : vector<8x8xf32>
    %cst_108 = arith.constant 0.000000e+00 : f32
    %630 = vector.broadcast %cst_108 : f32 to vector<8x8xf32>
    %631 = arith.maximumf %629, %630 : vector<8x8xf32>
    %632 = arith.truncf %631 : vector<8x8xf32> to vector<8x8xbf16>
    %c0_109 = arith.constant 0 : index
    %c3_110 = arith.constant 3 : index
    %c0_111 = arith.constant 0 : index
    %c0_112 = arith.constant 0 : index
    %633 = vector.load %arg5[%c0_109, %c3_110, %c0_111, %c0_112] : memref<1x8x8x8xbf16, #tpu.memory_space<vmem>>, vector<1x1x8x8xbf16>
    %634 = vector.shape_cast %633 : vector<1x1x8x8xbf16> to vector<8x8xbf16>
    %635 = vector.shape_cast %632 : vector<8x8xbf16> to vector<1x1x8x8xbf16>
    tpu.vector_store %arg5[%c0_109, %c3_110, %c0_111, %c0_112], %635 {strides = array<i32>} : memref<1x8x8x8xbf16, #tpu.memory_space<vmem>>, vector<1x1x8x8xbf16>,
    %c8_i32_113 = arith.constant 8 : i32
    %636 = arith.muli %arg1, %c8_i32_113 : i32
    %c4_i32 = arith.constant 4 : i32
    %637 = arith.addi %636, %c4_i32 : i32
    %638 = arith.index_cast %637 : i32 to index
    %c0_114 = arith.constant 0 : index
    %639 = memref.load %arg3[%638, %c0_114] : memref<32x9xf32, #tpu.memory_space<smem>>
    %640 = arith.truncf %639 : f32 to bf16
    %641 = arith.index_cast %637 : i32 to index
    %c1_115 = arith.constant 1 : index
    %642 = memref.load %arg3[%641, %c1_115] : memref<32x9xf32, #tpu.memory_space<smem>>
    %643 = arith.truncf %642 : f32 to bf16
    %644 = arith.index_cast %637 : i32 to index
    %c2_116 = arith.constant 2 : index
    %645 = memref.load %arg3[%644, %c2_116] : memref<32x9xf32, #tpu.memory_space<smem>>
    %646 = arith.truncf %645 : f32 to bf16
    %647 = arith.index_cast %637 : i32 to index
    %c3_117 = arith.constant 3 : index
    %648 = memref.load %arg3[%647, %c3_117] : memref<32x9xf32, #tpu.memory_space<smem>>
    %649 = arith.truncf %648 : f32 to bf16
    %650 = arith.index_cast %637 : i32 to index
    %c4_118 = arith.constant 4 : index
    %651 = memref.load %arg3[%650, %c4_118] : memref<32x9xf32, #tpu.memory_space<smem>>
    %652 = arith.truncf %651 : f32 to bf16
    %653 = arith.index_cast %637 : i32 to index
    %c5_119 = arith.constant 5 : index
    %654 = memref.load %arg3[%653, %c5_119] : memref<32x9xf32, #tpu.memory_space<smem>>
    %655 = arith.truncf %654 : f32 to bf16
    %656 = arith.index_cast %637 : i32 to index
    %c6_120 = arith.constant 6 : index
    %657 = memref.load %arg3[%656, %c6_120] : memref<32x9xf32, #tpu.memory_space<smem>>
    %658 = arith.truncf %657 : f32 to bf16
    %659 = arith.index_cast %637 : i32 to index
    %c7_121 = arith.constant 7 : index
    %660 = memref.load %arg3[%659, %c7_121] : memref<32x9xf32, #tpu.memory_space<smem>>
    %661 = arith.truncf %660 : f32 to bf16
    %662 = arith.index_cast %637 : i32 to index
    %c8_122 = arith.constant 8 : index
    %663 = memref.load %arg3[%662, %c8_122] : memref<32x9xf32, #tpu.memory_space<smem>>
    %664 = arith.truncf %663 : f32 to bf16
    %665 = vector.broadcast %640 : bf16 to vector<8x8xbf16>
    %666 = arith.mulf %665, %2 : vector<8x8xbf16>
    %667 = vector.broadcast %643 : bf16 to vector<8x8xbf16>
    %668 = arith.mulf %667, %5 : vector<8x8xbf16>
    %669 = arith.addf %666, %668 : vector<8x8xbf16>
    %670 = vector.broadcast %646 : bf16 to vector<8x8xbf16>
    %671 = arith.mulf %670, %8 : vector<8x8xbf16>
    %672 = arith.addf %669, %671 : vector<8x8xbf16>
    %673 = vector.broadcast %649 : bf16 to vector<8x8xbf16>
    %674 = arith.mulf %673, %14 : vector<8x8xbf16>
    %675 = arith.addf %672, %674 : vector<8x8xbf16>
    %676 = vector.broadcast %652 : bf16 to vector<8x8xbf16>
    %677 = arith.mulf %676, %17 : vector<8x8xbf16>
    %678 = arith.addf %675, %677 : vector<8x8xbf16>
    %679 = vector.broadcast %655 : bf16 to vector<8x8xbf16>
    %680 = arith.mulf %679, %20 : vector<8x8xbf16>
    %681 = arith.addf %678, %680 : vector<8x8xbf16>
    %682 = vector.broadcast %658 : bf16 to vector<8x8xbf16>
    %683 = arith.mulf %682, %26 : vector<8x8xbf16>
    %684 = arith.addf %681, %683 : vector<8x8xbf16>
    %685 = vector.broadcast %661 : bf16 to vector<8x8xbf16>
    %686 = arith.mulf %685, %29 : vector<8x8xbf16>
    %687 = arith.addf %684, %686 : vector<8x8xbf16>
    %688 = vector.broadcast %664 : bf16 to vector<8x8xbf16>
    %689 = arith.mulf %688, %32 : vector<8x8xbf16>
    %690 = arith.addf %687, %689 : vector<8x8xbf16>
    %691 = vector.broadcast %640 : bf16 to vector<8x8xbf16>
    %692 = arith.mulf %691, %5 : vector<8x8xbf16>
    %693 = vector.broadcast %643 : bf16 to vector<8x8xbf16>
    %694 = arith.mulf %693, %8 : vector<8x8xbf16>
    %695 = arith.addf %692, %694 : vector<8x8xbf16>
    %696 = vector.broadcast %646 : bf16 to vector<8x8xbf16>
    %697 = arith.mulf %696, %11 : vector<8x8xbf16>
    %698 = arith.addf %695, %697 : vector<8x8xbf16>
    %699 = vector.broadcast %649 : bf16 to vector<8x8xbf16>
    %700 = arith.mulf %699, %17 : vector<8x8xbf16>
    %701 = arith.addf %698, %700 : vector<8x8xbf16>
    %702 = vector.broadcast %652 : bf16 to vector<8x8xbf16>
    %703 = arith.mulf %702, %20 : vector<8x8xbf16>
    %704 = arith.addf %701, %703 : vector<8x8xbf16>
    %705 = vector.broadcast %655 : bf16 to vector<8x8xbf16>
    %706 = arith.mulf %705, %23 : vector<8x8xbf16>
    %707 = arith.addf %704, %706 : vector<8x8xbf16>
    %708 = vector.broadcast %658 : bf16 to vector<8x8xbf16>
    %709 = arith.mulf %708, %29 : vector<8x8xbf16>
    %710 = arith.addf %707, %709 : vector<8x8xbf16>
    %711 = vector.broadcast %661 : bf16 to vector<8x8xbf16>
    %712 = arith.mulf %711, %32 : vector<8x8xbf16>
    %713 = arith.addf %710, %712 : vector<8x8xbf16>
    %714 = vector.broadcast %664 : bf16 to vector<8x8xbf16>
    %715 = arith.mulf %714, %35 : vector<8x8xbf16>
    %716 = arith.addf %713, %715 : vector<8x8xbf16>
    %717 = arith.maximumf %690, %716 : vector<8x8xbf16>
    %718 = vector.broadcast %640 : bf16 to vector<8x8xbf16>
    %719 = arith.mulf %718, %14 : vector<8x8xbf16>
    %720 = vector.broadcast %643 : bf16 to vector<8x8xbf16>
    %721 = arith.mulf %720, %17 : vector<8x8xbf16>
    %722 = arith.addf %719, %721 : vector<8x8xbf16>
    %723 = vector.broadcast %646 : bf16 to vector<8x8xbf16>
    %724 = arith.mulf %723, %20 : vector<8x8xbf16>
    %725 = arith.addf %722, %724 : vector<8x8xbf16>
    %726 = vector.broadcast %649 : bf16 to vector<8x8xbf16>
    %727 = arith.mulf %726, %26 : vector<8x8xbf16>
    %728 = arith.addf %725, %727 : vector<8x8xbf16>
    %729 = vector.broadcast %652 : bf16 to vector<8x8xbf16>
    %730 = arith.mulf %729, %29 : vector<8x8xbf16>
    %731 = arith.addf %728, %730 : vector<8x8xbf16>
    %732 = vector.broadcast %655 : bf16 to vector<8x8xbf16>
    %733 = arith.mulf %732, %32 : vector<8x8xbf16>
    %734 = arith.addf %731, %733 : vector<8x8xbf16>
    %735 = vector.broadcast %658 : bf16 to vector<8x8xbf16>
    %736 = arith.mulf %735, %38 : vector<8x8xbf16>
    %737 = arith.addf %734, %736 : vector<8x8xbf16>
    %738 = vector.broadcast %661 : bf16 to vector<8x8xbf16>
    %739 = arith.mulf %738, %41 : vector<8x8xbf16>
    %740 = arith.addf %737, %739 : vector<8x8xbf16>
    %741 = vector.broadcast %664 : bf16 to vector<8x8xbf16>
    %742 = arith.mulf %741, %44 : vector<8x8xbf16>
    %743 = arith.addf %740, %742 : vector<8x8xbf16>
    %744 = arith.maximumf %717, %743 : vector<8x8xbf16>
    %745 = vector.broadcast %640 : bf16 to vector<8x8xbf16>
    %746 = arith.mulf %745, %17 : vector<8x8xbf16>
    %747 = vector.broadcast %643 : bf16 to vector<8x8xbf16>
    %748 = arith.mulf %747, %20 : vector<8x8xbf16>
    %749 = arith.addf %746, %748 : vector<8x8xbf16>
    %750 = vector.broadcast %646 : bf16 to vector<8x8xbf16>
    %751 = arith.mulf %750, %23 : vector<8x8xbf16>
    %752 = arith.addf %749, %751 : vector<8x8xbf16>
    %753 = vector.broadcast %649 : bf16 to vector<8x8xbf16>
    %754 = arith.mulf %753, %29 : vector<8x8xbf16>
    %755 = arith.addf %752, %754 : vector<8x8xbf16>
    %756 = vector.broadcast %652 : bf16 to vector<8x8xbf16>
    %757 = arith.mulf %756, %32 : vector<8x8xbf16>
    %758 = arith.addf %755, %757 : vector<8x8xbf16>
    %759 = vector.broadcast %655 : bf16 to vector<8x8xbf16>
    %760 = arith.mulf %759, %35 : vector<8x8xbf16>
    %761 = arith.addf %758, %760 : vector<8x8xbf16>
    %762 = vector.broadcast %658 : bf16 to vector<8x8xbf16>
    %763 = arith.mulf %762, %41 : vector<8x8xbf16>
    %764 = arith.addf %761, %763 : vector<8x8xbf16>
    %765 = vector.broadcast %661 : bf16 to vector<8x8xbf16>
    %766 = arith.mulf %765, %44 : vector<8x8xbf16>
    %767 = arith.addf %764, %766 : vector<8x8xbf16>
    %768 = vector.broadcast %664 : bf16 to vector<8x8xbf16>
    %769 = arith.mulf %768, %47 : vector<8x8xbf16>
    %770 = arith.addf %767, %769 : vector<8x8xbf16>
    %771 = arith.maximumf %744, %770 : vector<8x8xbf16>
    %772 = arith.extf %771 : vector<8x8xbf16> to vector<8x8xf32>
    %773 = arith.index_cast %637 : i32 to index
    %774 = memref.load %arg4[%773] : memref<32xf32, #tpu.memory_space<smem>>
    %775 = vector.broadcast %774 : f32 to vector<8x8xf32>
    %776 = arith.addf %772, %775 : vector<8x8xf32>
    %cst_123 = arith.constant 0.000000e+00 : f32
    %777 = vector.broadcast %cst_123 : f32 to vector<8x8xf32>
    %778 = arith.maximumf %776, %777 : vector<8x8xf32>
    %779 = arith.truncf %778 : vector<8x8xf32> to vector<8x8xbf16>
    %c0_124 = arith.constant 0 : index
    %c4_125 = arith.constant 4 : index
    %c0_126 = arith.constant 0 : index
    %c0_127 = arith.constant 0 : index
    %780 = vector.load %arg5[%c0_124, %c4_125, %c0_126, %c0_127] : memref<1x8x8x8xbf16, #tpu.memory_space<vmem>>, vector<1x1x8x8xbf16>
    %781 = vector.shape_cast %780 : vector<1x1x8x8xbf16> to vector<8x8xbf16>
    %782 = vector.shape_cast %779 : vector<8x8xbf16> to vector<1x1x8x8xbf16>
    tpu.vector_store %arg5[%c0_124, %c4_125, %c0_126, %c0_127], %782 {strides = array<i32>} : memref<1x8x8x8xbf16, #tpu.memory_space<vmem>>, vector<1x1x8x8xbf16>,
    %c8_i32_128 = arith.constant 8 : i32
    %783 = arith.muli %arg1, %c8_i32_128 : i32
    %c5_i32 = arith.constant 5 : i32
    %784 = arith.addi %783, %c5_i32 : i32
    %785 = arith.index_cast %784 : i32 to index
    %c0_129 = arith.constant 0 : index
    %786 = memref.load %arg3[%785, %c0_129] : memref<32x9xf32, #tpu.memory_space<smem>>
    %787 = arith.truncf %786 : f32 to bf16
    %788 = arith.index_cast %784 : i32 to index
    %c1_130 = arith.constant 1 : index
    %789 = memref.load %arg3[%788, %c1_130] : memref<32x9xf32, #tpu.memory_space<smem>>
    %790 = arith.truncf %789 : f32 to bf16
    %791 = arith.index_cast %784 : i32 to index
    %c2_131 = arith.constant 2 : index
    %792 = memref.load %arg3[%791, %c2_131] : memref<32x9xf32, #tpu.memory_space<smem>>
    %793 = arith.truncf %792 : f32 to bf16
    %794 = arith.index_cast %784 : i32 to index
    %c3_132 = arith.constant 3 : index
    %795 = memref.load %arg3[%794, %c3_132] : memref<32x9xf32, #tpu.memory_space<smem>>
    %796 = arith.truncf %795 : f32 to bf16
    %797 = arith.index_cast %784 : i32 to index
    %c4_133 = arith.constant 4 : index
    %798 = memref.load %arg3[%797, %c4_133] : memref<32x9xf32, #tpu.memory_space<smem>>
    %799 = arith.truncf %798 : f32 to bf16
    %800 = arith.index_cast %784 : i32 to index
    %c5_134 = arith.constant 5 : index
    %801 = memref.load %arg3[%800, %c5_134] : memref<32x9xf32, #tpu.memory_space<smem>>
    %802 = arith.truncf %801 : f32 to bf16
    %803 = arith.index_cast %784 : i32 to index
    %c6_135 = arith.constant 6 : index
    %804 = memref.load %arg3[%803, %c6_135] : memref<32x9xf32, #tpu.memory_space<smem>>
    %805 = arith.truncf %804 : f32 to bf16
    %806 = arith.index_cast %784 : i32 to index
    %c7_136 = arith.constant 7 : index
    %807 = memref.load %arg3[%806, %c7_136] : memref<32x9xf32, #tpu.memory_space<smem>>
    %808 = arith.truncf %807 : f32 to bf16
    %809 = arith.index_cast %784 : i32 to index
    %c8_137 = arith.constant 8 : index
    %810 = memref.load %arg3[%809, %c8_137] : memref<32x9xf32, #tpu.memory_space<smem>>
    %811 = arith.truncf %810 : f32 to bf16
    %812 = vector.broadcast %787 : bf16 to vector<8x8xbf16>
    %813 = arith.mulf %812, %2 : vector<8x8xbf16>
    %814 = vector.broadcast %790 : bf16 to vector<8x8xbf16>
    %815 = arith.mulf %814, %5 : vector<8x8xbf16>
    %816 = arith.addf %813, %815 : vector<8x8xbf16>
    %817 = vector.broadcast %793 : bf16 to vector<8x8xbf16>
    %818 = arith.mulf %817, %8 : vector<8x8xbf16>
    %819 = arith.addf %816, %818 : vector<8x8xbf16>
    %820 = vector.broadcast %796 : bf16 to vector<8x8xbf16>
    %821 = arith.mulf %820, %14 : vector<8x8xbf16>
    %822 = arith.addf %819, %821 : vector<8x8xbf16>
    %823 = vector.broadcast %799 : bf16 to vector<8x8xbf16>
    %824 = arith.mulf %823, %17 : vector<8x8xbf16>
    %825 = arith.addf %822, %824 : vector<8x8xbf16>
    %826 = vector.broadcast %802 : bf16 to vector<8x8xbf16>
    %827 = arith.mulf %826, %20 : vector<8x8xbf16>
    %828 = arith.addf %825, %827 : vector<8x8xbf16>
    %829 = vector.broadcast %805 : bf16 to vector<8x8xbf16>
    %830 = arith.mulf %829, %26 : vector<8x8xbf16>
    %831 = arith.addf %828, %830 : vector<8x8xbf16>
    %832 = vector.broadcast %808 : bf16 to vector<8x8xbf16>
    %833 = arith.mulf %832, %29 : vector<8x8xbf16>
    %834 = arith.addf %831, %833 : vector<8x8xbf16>
    %835 = vector.broadcast %811 : bf16 to vector<8x8xbf16>
    %836 = arith.mulf %835, %32 : vector<8x8xbf16>
    %837 = arith.addf %834, %836 : vector<8x8xbf16>
    %838 = vector.broadcast %787 : bf16 to vector<8x8xbf16>
    %839 = arith.mulf %838, %5 : vector<8x8xbf16>
    %840 = vector.broadcast %790 : bf16 to vector<8x8xbf16>
    %841 = arith.mulf %840, %8 : vector<8x8xbf16>
    %842 = arith.addf %839, %841 : vector<8x8xbf16>
    %843 = vector.broadcast %793 : bf16 to vector<8x8xbf16>
    %844 = arith.mulf %843, %11 : vector<8x8xbf16>
    %845 = arith.addf %842, %844 : vector<8x8xbf16>
    %846 = vector.broadcast %796 : bf16 to vector<8x8xbf16>
    %847 = arith.mulf %846, %17 : vector<8x8xbf16>
    %848 = arith.addf %845, %847 : vector<8x8xbf16>
    %849 = vector.broadcast %799 : bf16 to vector<8x8xbf16>
    %850 = arith.mulf %849, %20 : vector<8x8xbf16>
    %851 = arith.addf %848, %850 : vector<8x8xbf16>
    %852 = vector.broadcast %802 : bf16 to vector<8x8xbf16>
    %853 = arith.mulf %852, %23 : vector<8x8xbf16>
    %854 = arith.addf %851, %853 : vector<8x8xbf16>
    %855 = vector.broadcast %805 : bf16 to vector<8x8xbf16>
    %856 = arith.mulf %855, %29 : vector<8x8xbf16>
    %857 = arith.addf %854, %856 : vector<8x8xbf16>
    %858 = vector.broadcast %808 : bf16 to vector<8x8xbf16>
    %859 = arith.mulf %858, %32 : vector<8x8xbf16>
    %860 = arith.addf %857, %859 : vector<8x8xbf16>
    %861 = vector.broadcast %811 : bf16 to vector<8x8xbf16>
    %862 = arith.mulf %861, %35 : vector<8x8xbf16>
    %863 = arith.addf %860, %862 : vector<8x8xbf16>
    %864 = arith.maximumf %837, %863 : vector<8x8xbf16>
    %865 = vector.broadcast %787 : bf16 to vector<8x8xbf16>
    %866 = arith.mulf %865, %14 : vector<8x8xbf16>
    %867 = vector.broadcast %790 : bf16 to vector<8x8xbf16>
    %868 = arith.mulf %867, %17 : vector<8x8xbf16>
    %869 = arith.addf %866, %868 : vector<8x8xbf16>
    %870 = vector.broadcast %793 : bf16 to vector<8x8xbf16>
    %871 = arith.mulf %870, %20 : vector<8x8xbf16>
    %872 = arith.addf %869, %871 : vector<8x8xbf16>
    %873 = vector.broadcast %796 : bf16 to vector<8x8xbf16>
    %874 = arith.mulf %873, %26 : vector<8x8xbf16>
    %875 = arith.addf %872, %874 : vector<8x8xbf16>
    %876 = vector.broadcast %799 : bf16 to vector<8x8xbf16>
    %877 = arith.mulf %876, %29 : vector<8x8xbf16>
    %878 = arith.addf %875, %877 : vector<8x8xbf16>
    %879 = vector.broadcast %802 : bf16 to vector<8x8xbf16>
    %880 = arith.mulf %879, %32 : vector<8x8xbf16>
    %881 = arith.addf %878, %880 : vector<8x8xbf16>
    %882 = vector.broadcast %805 : bf16 to vector<8x8xbf16>
    %883 = arith.mulf %882, %38 : vector<8x8xbf16>
    %884 = arith.addf %881, %883 : vector<8x8xbf16>
    %885 = vector.broadcast %808 : bf16 to vector<8x8xbf16>
    %886 = arith.mulf %885, %41 : vector<8x8xbf16>
    %887 = arith.addf %884, %886 : vector<8x8xbf16>
    %888 = vector.broadcast %811 : bf16 to vector<8x8xbf16>
    %889 = arith.mulf %888, %44 : vector<8x8xbf16>
    %890 = arith.addf %887, %889 : vector<8x8xbf16>
    %891 = arith.maximumf %864, %890 : vector<8x8xbf16>
    %892 = vector.broadcast %787 : bf16 to vector<8x8xbf16>
    %893 = arith.mulf %892, %17 : vector<8x8xbf16>
    %894 = vector.broadcast %790 : bf16 to vector<8x8xbf16>
    %895 = arith.mulf %894, %20 : vector<8x8xbf16>
    %896 = arith.addf %893, %895 : vector<8x8xbf16>
    %897 = vector.broadcast %793 : bf16 to vector<8x8xbf16>
    %898 = arith.mulf %897, %23 : vector<8x8xbf16>
    %899 = arith.addf %896, %898 : vector<8x8xbf16>
    %900 = vector.broadcast %796 : bf16 to vector<8x8xbf16>
    %901 = arith.mulf %900, %29 : vector<8x8xbf16>
    %902 = arith.addf %899, %901 : vector<8x8xbf16>
    %903 = vector.broadcast %799 : bf16 to vector<8x8xbf16>
    %904 = arith.mulf %903, %32 : vector<8x8xbf16>
    %905 = arith.addf %902, %904 : vector<8x8xbf16>
    %906 = vector.broadcast %802 : bf16 to vector<8x8xbf16>
    %907 = arith.mulf %906, %35 : vector<8x8xbf16>
    %908 = arith.addf %905, %907 : vector<8x8xbf16>
    %909 = vector.broadcast %805 : bf16 to vector<8x8xbf16>
    %910 = arith.mulf %909, %41 : vector<8x8xbf16>
    %911 = arith.addf %908, %910 : vector<8x8xbf16>
    %912 = vector.broadcast %808 : bf16 to vector<8x8xbf16>
    %913 = arith.mulf %912, %44 : vector<8x8xbf16>
    %914 = arith.addf %911, %913 : vector<8x8xbf16>
    %915 = vector.broadcast %811 : bf16 to vector<8x8xbf16>
    %916 = arith.mulf %915, %47 : vector<8x8xbf16>
    %917 = arith.addf %914, %916 : vector<8x8xbf16>
    %918 = arith.maximumf %891, %917 : vector<8x8xbf16>
    %919 = arith.extf %918 : vector<8x8xbf16> to vector<8x8xf32>
    %920 = arith.index_cast %784 : i32 to index
    %921 = memref.load %arg4[%920] : memref<32xf32, #tpu.memory_space<smem>>
    %922 = vector.broadcast %921 : f32 to vector<8x8xf32>
    %923 = arith.addf %919, %922 : vector<8x8xf32>
    %cst_138 = arith.constant 0.000000e+00 : f32
    %924 = vector.broadcast %cst_138 : f32 to vector<8x8xf32>
    %925 = arith.maximumf %923, %924 : vector<8x8xf32>
    %926 = arith.truncf %925 : vector<8x8xf32> to vector<8x8xbf16>
    %c0_139 = arith.constant 0 : index
    %c5_140 = arith.constant 5 : index
    %c0_141 = arith.constant 0 : index
    %c0_142 = arith.constant 0 : index
    %927 = vector.load %arg5[%c0_139, %c5_140, %c0_141, %c0_142] : memref<1x8x8x8xbf16, #tpu.memory_space<vmem>>, vector<1x1x8x8xbf16>
    %928 = vector.shape_cast %927 : vector<1x1x8x8xbf16> to vector<8x8xbf16>
    %929 = vector.shape_cast %926 : vector<8x8xbf16> to vector<1x1x8x8xbf16>
    tpu.vector_store %arg5[%c0_139, %c5_140, %c0_141, %c0_142], %929 {strides = array<i32>} : memref<1x8x8x8xbf16, #tpu.memory_space<vmem>>, vector<1x1x8x8xbf16>,
    %c8_i32_143 = arith.constant 8 : i32
    %930 = arith.muli %arg1, %c8_i32_143 : i32
    %c6_i32 = arith.constant 6 : i32
    %931 = arith.addi %930, %c6_i32 : i32
    %932 = arith.index_cast %931 : i32 to index
    %c0_144 = arith.constant 0 : index
    %933 = memref.load %arg3[%932, %c0_144] : memref<32x9xf32, #tpu.memory_space<smem>>
    %934 = arith.truncf %933 : f32 to bf16
    %935 = arith.index_cast %931 : i32 to index
    %c1_145 = arith.constant 1 : index
    %936 = memref.load %arg3[%935, %c1_145] : memref<32x9xf32, #tpu.memory_space<smem>>
    %937 = arith.truncf %936 : f32 to bf16
    %938 = arith.index_cast %931 : i32 to index
    %c2_146 = arith.constant 2 : index
    %939 = memref.load %arg3[%938, %c2_146] : memref<32x9xf32, #tpu.memory_space<smem>>
    %940 = arith.truncf %939 : f32 to bf16
    %941 = arith.index_cast %931 : i32 to index
    %c3_147 = arith.constant 3 : index
    %942 = memref.load %arg3[%941, %c3_147] : memref<32x9xf32, #tpu.memory_space<smem>>
    %943 = arith.truncf %942 : f32 to bf16
    %944 = arith.index_cast %931 : i32 to index
    %c4_148 = arith.constant 4 : index
    %945 = memref.load %arg3[%944, %c4_148] : memref<32x9xf32, #tpu.memory_space<smem>>
    %946 = arith.truncf %945 : f32 to bf16
    %947 = arith.index_cast %931 : i32 to index
    %c5_149 = arith.constant 5 : index
    %948 = memref.load %arg3[%947, %c5_149] : memref<32x9xf32, #tpu.memory_space<smem>>
    %949 = arith.truncf %948 : f32 to bf16
    %950 = arith.index_cast %931 : i32 to index
    %c6_150 = arith.constant 6 : index
    %951 = memref.load %arg3[%950, %c6_150] : memref<32x9xf32, #tpu.memory_space<smem>>
    %952 = arith.truncf %951 : f32 to bf16
    %953 = arith.index_cast %931 : i32 to index
    %c7_151 = arith.constant 7 : index
    %954 = memref.load %arg3[%953, %c7_151] : memref<32x9xf32, #tpu.memory_space<smem>>
    %955 = arith.truncf %954 : f32 to bf16
    %956 = arith.index_cast %931 : i32 to index
    %c8_152 = arith.constant 8 : index
    %957 = memref.load %arg3[%956, %c8_152] : memref<32x9xf32, #tpu.memory_space<smem>>
    %958 = arith.truncf %957 : f32 to bf16
    %959 = vector.broadcast %934 : bf16 to vector<8x8xbf16>
    %960 = arith.mulf %959, %2 : vector<8x8xbf16>
    %961 = vector.broadcast %937 : bf16 to vector<8x8xbf16>
    %962 = arith.mulf %961, %5 : vector<8x8xbf16>
    %963 = arith.addf %960, %962 : vector<8x8xbf16>
    %964 = vector.broadcast %940 : bf16 to vector<8x8xbf16>
    %965 = arith.mulf %964, %8 : vector<8x8xbf16>
    %966 = arith.addf %963, %965 : vector<8x8xbf16>
    %967 = vector.broadcast %943 : bf16 to vector<8x8xbf16>
    %968 = arith.mulf %967, %14 : vector<8x8xbf16>
    %969 = arith.addf %966, %968 : vector<8x8xbf16>
    %970 = vector.broadcast %946 : bf16 to vector<8x8xbf16>
    %971 = arith.mulf %970, %17 : vector<8x8xbf16>
    %972 = arith.addf %969, %971 : vector<8x8xbf16>
    %973 = vector.broadcast %949 : bf16 to vector<8x8xbf16>
    %974 = arith.mulf %973, %20 : vector<8x8xbf16>
    %975 = arith.addf %972, %974 : vector<8x8xbf16>
    %976 = vector.broadcast %952 : bf16 to vector<8x8xbf16>
    %977 = arith.mulf %976, %26 : vector<8x8xbf16>
    %978 = arith.addf %975, %977 : vector<8x8xbf16>
    %979 = vector.broadcast %955 : bf16 to vector<8x8xbf16>
    %980 = arith.mulf %979, %29 : vector<8x8xbf16>
    %981 = arith.addf %978, %980 : vector<8x8xbf16>
    %982 = vector.broadcast %958 : bf16 to vector<8x8xbf16>
    %983 = arith.mulf %982, %32 : vector<8x8xbf16>
    %984 = arith.addf %981, %983 : vector<8x8xbf16>
    %985 = vector.broadcast %934 : bf16 to vector<8x8xbf16>
    %986 = arith.mulf %985, %5 : vector<8x8xbf16>
    %987 = vector.broadcast %937 : bf16 to vector<8x8xbf16>
    %988 = arith.mulf %987, %8 : vector<8x8xbf16>
    %989 = arith.addf %986, %988 : vector<8x8xbf16>
    %990 = vector.broadcast %940 : bf16 to vector<8x8xbf16>
    %991 = arith.mulf %990, %11 : vector<8x8xbf16>
    %992 = arith.addf %989, %991 : vector<8x8xbf16>
    %993 = vector.broadcast %943 : bf16 to vector<8x8xbf16>
    %994 = arith.mulf %993, %17 : vector<8x8xbf16>
    %995 = arith.addf %992, %994 : vector<8x8xbf16>
    %996 = vector.broadcast %946 : bf16 to vector<8x8xbf16>
    %997 = arith.mulf %996, %20 : vector<8x8xbf16>
    %998 = arith.addf %995, %997 : vector<8x8xbf16>
    %999 = vector.broadcast %949 : bf16 to vector<8x8xbf16>
    %1000 = arith.mulf %999, %23 : vector<8x8xbf16>
    %1001 = arith.addf %998, %1000 : vector<8x8xbf16>
    %1002 = vector.broadcast %952 : bf16 to vector<8x8xbf16>
    %1003 = arith.mulf %1002, %29 : vector<8x8xbf16>
    %1004 = arith.addf %1001, %1003 : vector<8x8xbf16>
    %1005 = vector.broadcast %955 : bf16 to vector<8x8xbf16>
    %1006 = arith.mulf %1005, %32 : vector<8x8xbf16>
    %1007 = arith.addf %1004, %1006 : vector<8x8xbf16>
    %1008 = vector.broadcast %958 : bf16 to vector<8x8xbf16>
    %1009 = arith.mulf %1008, %35 : vector<8x8xbf16>
    %1010 = arith.addf %1007, %1009 : vector<8x8xbf16>
    %1011 = arith.maximumf %984, %1010 : vector<8x8xbf16>
    %1012 = vector.broadcast %934 : bf16 to vector<8x8xbf16>
    %1013 = arith.mulf %1012, %14 : vector<8x8xbf16>
    %1014 = vector.broadcast %937 : bf16 to vector<8x8xbf16>
    %1015 = arith.mulf %1014, %17 : vector<8x8xbf16>
    %1016 = arith.addf %1013, %1015 : vector<8x8xbf16>
    %1017 = vector.broadcast %940 : bf16 to vector<8x8xbf16>
    %1018 = arith.mulf %1017, %20 : vector<8x8xbf16>
    %1019 = arith.addf %1016, %1018 : vector<8x8xbf16>
    %1020 = vector.broadcast %943 : bf16 to vector<8x8xbf16>
    %1021 = arith.mulf %1020, %26 : vector<8x8xbf16>
    %1022 = arith.addf %1019, %1021 : vector<8x8xbf16>
    %1023 = vector.broadcast %946 : bf16 to vector<8x8xbf16>
    %1024 = arith.mulf %1023, %29 : vector<8x8xbf16>
    %1025 = arith.addf %1022, %1024 : vector<8x8xbf16>
    %1026 = vector.broadcast %949 : bf16 to vector<8x8xbf16>
    %1027 = arith.mulf %1026, %32 : vector<8x8xbf16>
    %1028 = arith.addf %1025, %1027 : vector<8x8xbf16>
    %1029 = vector.broadcast %952 : bf16 to vector<8x8xbf16>
    %1030 = arith.mulf %1029, %38 : vector<8x8xbf16>
    %1031 = arith.addf %1028, %1030 : vector<8x8xbf16>
    %1032 = vector.broadcast %955 : bf16 to vector<8x8xbf16>
    %1033 = arith.mulf %1032, %41 : vector<8x8xbf16>
    %1034 = arith.addf %1031, %1033 : vector<8x8xbf16>
    %1035 = vector.broadcast %958 : bf16 to vector<8x8xbf16>
    %1036 = arith.mulf %1035, %44 : vector<8x8xbf16>
    %1037 = arith.addf %1034, %1036 : vector<8x8xbf16>
    %1038 = arith.maximumf %1011, %1037 : vector<8x8xbf16>
    %1039 = vector.broadcast %934 : bf16 to vector<8x8xbf16>
    %1040 = arith.mulf %1039, %17 : vector<8x8xbf16>
    %1041 = vector.broadcast %937 : bf16 to vector<8x8xbf16>
    %1042 = arith.mulf %1041, %20 : vector<8x8xbf16>
    %1043 = arith.addf %1040, %1042 : vector<8x8xbf16>
    %1044 = vector.broadcast %940 : bf16 to vector<8x8xbf16>
    %1045 = arith.mulf %1044, %23 : vector<8x8xbf16>
    %1046 = arith.addf %1043, %1045 : vector<8x8xbf16>
    %1047 = vector.broadcast %943 : bf16 to vector<8x8xbf16>
    %1048 = arith.mulf %1047, %29 : vector<8x8xbf16>
    %1049 = arith.addf %1046, %1048 : vector<8x8xbf16>
    %1050 = vector.broadcast %946 : bf16 to vector<8x8xbf16>
    %1051 = arith.mulf %1050, %32 : vector<8x8xbf16>
    %1052 = arith.addf %1049, %1051 : vector<8x8xbf16>
    %1053 = vector.broadcast %949 : bf16 to vector<8x8xbf16>
    %1054 = arith.mulf %1053, %35 : vector<8x8xbf16>
    %1055 = arith.addf %1052, %1054 : vector<8x8xbf16>
    %1056 = vector.broadcast %952 : bf16 to vector<8x8xbf16>
    %1057 = arith.mulf %1056, %41 : vector<8x8xbf16>
    %1058 = arith.addf %1055, %1057 : vector<8x8xbf16>
    %1059 = vector.broadcast %955 : bf16 to vector<8x8xbf16>
    %1060 = arith.mulf %1059, %44 : vector<8x8xbf16>
    %1061 = arith.addf %1058, %1060 : vector<8x8xbf16>
    %1062 = vector.broadcast %958 : bf16 to vector<8x8xbf16>
    %1063 = arith.mulf %1062, %47 : vector<8x8xbf16>
    %1064 = arith.addf %1061, %1063 : vector<8x8xbf16>
    %1065 = arith.maximumf %1038, %1064 : vector<8x8xbf16>
    %1066 = arith.extf %1065 : vector<8x8xbf16> to vector<8x8xf32>
    %1067 = arith.index_cast %931 : i32 to index
    %1068 = memref.load %arg4[%1067] : memref<32xf32, #tpu.memory_space<smem>>
    %1069 = vector.broadcast %1068 : f32 to vector<8x8xf32>
    %1070 = arith.addf %1066, %1069 : vector<8x8xf32>
    %cst_153 = arith.constant 0.000000e+00 : f32
    %1071 = vector.broadcast %cst_153 : f32 to vector<8x8xf32>
    %1072 = arith.maximumf %1070, %1071 : vector<8x8xf32>
    %1073 = arith.truncf %1072 : vector<8x8xf32> to vector<8x8xbf16>
    %c0_154 = arith.constant 0 : index
    %c6_155 = arith.constant 6 : index
    %c0_156 = arith.constant 0 : index
    %c0_157 = arith.constant 0 : index
    %1074 = vector.load %arg5[%c0_154, %c6_155, %c0_156, %c0_157] : memref<1x8x8x8xbf16, #tpu.memory_space<vmem>>, vector<1x1x8x8xbf16>
    %1075 = vector.shape_cast %1074 : vector<1x1x8x8xbf16> to vector<8x8xbf16>
    %1076 = vector.shape_cast %1073 : vector<8x8xbf16> to vector<1x1x8x8xbf16>
    tpu.vector_store %arg5[%c0_154, %c6_155, %c0_156, %c0_157], %1076 {strides = array<i32>} : memref<1x8x8x8xbf16, #tpu.memory_space<vmem>>, vector<1x1x8x8xbf16>,
    %c8_i32_158 = arith.constant 8 : i32
    %1077 = arith.muli %arg1, %c8_i32_158 : i32
    %c7_i32 = arith.constant 7 : i32
    %1078 = arith.addi %1077, %c7_i32 : i32
    %1079 = arith.index_cast %1078 : i32 to index
    %c0_159 = arith.constant 0 : index
    %1080 = memref.load %arg3[%1079, %c0_159] : memref<32x9xf32, #tpu.memory_space<smem>>
    %1081 = arith.truncf %1080 : f32 to bf16
    %1082 = arith.index_cast %1078 : i32 to index
    %c1_160 = arith.constant 1 : index
    %1083 = memref.load %arg3[%1082, %c1_160] : memref<32x9xf32, #tpu.memory_space<smem>>
    %1084 = arith.truncf %1083 : f32 to bf16
    %1085 = arith.index_cast %1078 : i32 to index
    %c2_161 = arith.constant 2 : index
    %1086 = memref.load %arg3[%1085, %c2_161] : memref<32x9xf32, #tpu.memory_space<smem>>
    %1087 = arith.truncf %1086 : f32 to bf16
    %1088 = arith.index_cast %1078 : i32 to index
    %c3_162 = arith.constant 3 : index
    %1089 = memref.load %arg3[%1088, %c3_162] : memref<32x9xf32, #tpu.memory_space<smem>>
    %1090 = arith.truncf %1089 : f32 to bf16
    %1091 = arith.index_cast %1078 : i32 to index
    %c4_163 = arith.constant 4 : index
    %1092 = memref.load %arg3[%1091, %c4_163] : memref<32x9xf32, #tpu.memory_space<smem>>
    %1093 = arith.truncf %1092 : f32 to bf16
    %1094 = arith.index_cast %1078 : i32 to index
    %c5_164 = arith.constant 5 : index
    %1095 = memref.load %arg3[%1094, %c5_164] : memref<32x9xf32, #tpu.memory_space<smem>>
    %1096 = arith.truncf %1095 : f32 to bf16
    %1097 = arith.index_cast %1078 : i32 to index
    %c6_165 = arith.constant 6 : index
    %1098 = memref.load %arg3[%1097, %c6_165] : memref<32x9xf32, #tpu.memory_space<smem>>
    %1099 = arith.truncf %1098 : f32 to bf16
    %1100 = arith.index_cast %1078 : i32 to index
    %c7_166 = arith.constant 7 : index
    %1101 = memref.load %arg3[%1100, %c7_166] : memref<32x9xf32, #tpu.memory_space<smem>>
    %1102 = arith.truncf %1101 : f32 to bf16
    %1103 = arith.index_cast %1078 : i32 to index
    %c8_167 = arith.constant 8 : index
    %1104 = memref.load %arg3[%1103, %c8_167] : memref<32x9xf32, #tpu.memory_space<smem>>
    %1105 = arith.truncf %1104 : f32 to bf16
    %1106 = vector.broadcast %1081 : bf16 to vector<8x8xbf16>
    %1107 = arith.mulf %1106, %2 : vector<8x8xbf16>
    %1108 = vector.broadcast %1084 : bf16 to vector<8x8xbf16>
    %1109 = arith.mulf %1108, %5 : vector<8x8xbf16>
    %1110 = arith.addf %1107, %1109 : vector<8x8xbf16>
    %1111 = vector.broadcast %1087 : bf16 to vector<8x8xbf16>
    %1112 = arith.mulf %1111, %8 : vector<8x8xbf16>
    %1113 = arith.addf %1110, %1112 : vector<8x8xbf16>
    %1114 = vector.broadcast %1090 : bf16 to vector<8x8xbf16>
    %1115 = arith.mulf %1114, %14 : vector<8x8xbf16>
    %1116 = arith.addf %1113, %1115 : vector<8x8xbf16>
    %1117 = vector.broadcast %1093 : bf16 to vector<8x8xbf16>
    %1118 = arith.mulf %1117, %17 : vector<8x8xbf16>
    %1119 = arith.addf %1116, %1118 : vector<8x8xbf16>
    %1120 = vector.broadcast %1096 : bf16 to vector<8x8xbf16>
    %1121 = arith.mulf %1120, %20 : vector<8x8xbf16>
    %1122 = arith.addf %1119, %1121 : vector<8x8xbf16>
    %1123 = vector.broadcast %1099 : bf16 to vector<8x8xbf16>
    %1124 = arith.mulf %1123, %26 : vector<8x8xbf16>
    %1125 = arith.addf %1122, %1124 : vector<8x8xbf16>
    %1126 = vector.broadcast %1102 : bf16 to vector<8x8xbf16>
    %1127 = arith.mulf %1126, %29 : vector<8x8xbf16>
    %1128 = arith.addf %1125, %1127 : vector<8x8xbf16>
    %1129 = vector.broadcast %1105 : bf16 to vector<8x8xbf16>
    %1130 = arith.mulf %1129, %32 : vector<8x8xbf16>
    %1131 = arith.addf %1128, %1130 : vector<8x8xbf16>
    %1132 = vector.broadcast %1081 : bf16 to vector<8x8xbf16>
    %1133 = arith.mulf %1132, %5 : vector<8x8xbf16>
    %1134 = vector.broadcast %1084 : bf16 to vector<8x8xbf16>
    %1135 = arith.mulf %1134, %8 : vector<8x8xbf16>
    %1136 = arith.addf %1133, %1135 : vector<8x8xbf16>
    %1137 = vector.broadcast %1087 : bf16 to vector<8x8xbf16>
    %1138 = arith.mulf %1137, %11 : vector<8x8xbf16>
    %1139 = arith.addf %1136, %1138 : vector<8x8xbf16>
    %1140 = vector.broadcast %1090 : bf16 to vector<8x8xbf16>
    %1141 = arith.mulf %1140, %17 : vector<8x8xbf16>
    %1142 = arith.addf %1139, %1141 : vector<8x8xbf16>
    %1143 = vector.broadcast %1093 : bf16 to vector<8x8xbf16>
    %1144 = arith.mulf %1143, %20 : vector<8x8xbf16>
    %1145 = arith.addf %1142, %1144 : vector<8x8xbf16>
    %1146 = vector.broadcast %1096 : bf16 to vector<8x8xbf16>
    %1147 = arith.mulf %1146, %23 : vector<8x8xbf16>
    %1148 = arith.addf %1145, %1147 : vector<8x8xbf16>
    %1149 = vector.broadcast %1099 : bf16 to vector<8x8xbf16>
    %1150 = arith.mulf %1149, %29 : vector<8x8xbf16>
    %1151 = arith.addf %1148, %1150 : vector<8x8xbf16>
    %1152 = vector.broadcast %1102 : bf16 to vector<8x8xbf16>
    %1153 = arith.mulf %1152, %32 : vector<8x8xbf16>
    %1154 = arith.addf %1151, %1153 : vector<8x8xbf16>
    %1155 = vector.broadcast %1105 : bf16 to vector<8x8xbf16>
    %1156 = arith.mulf %1155, %35 : vector<8x8xbf16>
    %1157 = arith.addf %1154, %1156 : vector<8x8xbf16>
    %1158 = arith.maximumf %1131, %1157 : vector<8x8xbf16>
    %1159 = vector.broadcast %1081 : bf16 to vector<8x8xbf16>
    %1160 = arith.mulf %1159, %14 : vector<8x8xbf16>
    %1161 = vector.broadcast %1084 : bf16 to vector<8x8xbf16>
    %1162 = arith.mulf %1161, %17 : vector<8x8xbf16>
    %1163 = arith.addf %1160, %1162 : vector<8x8xbf16>
    %1164 = vector.broadcast %1087 : bf16 to vector<8x8xbf16>
    %1165 = arith.mulf %1164, %20 : vector<8x8xbf16>
    %1166 = arith.addf %1163, %1165 : vector<8x8xbf16>
    %1167 = vector.broadcast %1090 : bf16 to vector<8x8xbf16>
    %1168 = arith.mulf %1167, %26 : vector<8x8xbf16>
    %1169 = arith.addf %1166, %1168 : vector<8x8xbf16>
    %1170 = vector.broadcast %1093 : bf16 to vector<8x8xbf16>
    %1171 = arith.mulf %1170, %29 : vector<8x8xbf16>
    %1172 = arith.addf %1169, %1171 : vector<8x8xbf16>
    %1173 = vector.broadcast %1096 : bf16 to vector<8x8xbf16>
    %1174 = arith.mulf %1173, %32 : vector<8x8xbf16>
    %1175 = arith.addf %1172, %1174 : vector<8x8xbf16>
    %1176 = vector.broadcast %1099 : bf16 to vector<8x8xbf16>
    %1177 = arith.mulf %1176, %38 : vector<8x8xbf16>
    %1178 = arith.addf %1175, %1177 : vector<8x8xbf16>
    %1179 = vector.broadcast %1102 : bf16 to vector<8x8xbf16>
    %1180 = arith.mulf %1179, %41 : vector<8x8xbf16>
    %1181 = arith.addf %1178, %1180 : vector<8x8xbf16>
    %1182 = vector.broadcast %1105 : bf16 to vector<8x8xbf16>
    %1183 = arith.mulf %1182, %44 : vector<8x8xbf16>
    %1184 = arith.addf %1181, %1183 : vector<8x8xbf16>
    %1185 = arith.maximumf %1158, %1184 : vector<8x8xbf16>
    %1186 = vector.broadcast %1081 : bf16 to vector<8x8xbf16>
    %1187 = arith.mulf %1186, %17 : vector<8x8xbf16>
    %1188 = vector.broadcast %1084 : bf16 to vector<8x8xbf16>
    %1189 = arith.mulf %1188, %20 : vector<8x8xbf16>
    %1190 = arith.addf %1187, %1189 : vector<8x8xbf16>
    %1191 = vector.broadcast %1087 : bf16 to vector<8x8xbf16>
    %1192 = arith.mulf %1191, %23 : vector<8x8xbf16>
    %1193 = arith.addf %1190, %1192 : vector<8x8xbf16>
    %1194 = vector.broadcast %1090 : bf16 to vector<8x8xbf16>
    %1195 = arith.mulf %1194, %29 : vector<8x8xbf16>
    %1196 = arith.addf %1193, %1195 : vector<8x8xbf16>
    %1197 = vector.broadcast %1093 : bf16 to vector<8x8xbf16>
    %1198 = arith.mulf %1197, %32 : vector<8x8xbf16>
    %1199 = arith.addf %1196, %1198 : vector<8x8xbf16>
    %1200 = vector.broadcast %1096 : bf16 to vector<8x8xbf16>
    %1201 = arith.mulf %1200, %35 : vector<8x8xbf16>
    %1202 = arith.addf %1199, %1201 : vector<8x8xbf16>
    %1203 = vector.broadcast %1099 : bf16 to vector<8x8xbf16>
    %1204 = arith.mulf %1203, %41 : vector<8x8xbf16>
    %1205 = arith.addf %1202, %1204 : vector<8x8xbf16>
    %1206 = vector.broadcast %1102 : bf16 to vector<8x8xbf16>
    %1207 = arith.mulf %1206, %44 : vector<8x8xbf16>
    %1208 = arith.addf %1205, %1207 : vector<8x8xbf16>
    %1209 = vector.broadcast %1105 : bf16 to vector<8x8xbf16>
    %1210 = arith.mulf %1209, %47 : vector<8x8xbf16>
    %1211 = arith.addf %1208, %1210 : vector<8x8xbf16>
    %1212 = arith.maximumf %1185, %1211 : vector<8x8xbf16>
    %1213 = arith.extf %1212 : vector<8x8xbf16> to vector<8x8xf32>
    %1214 = arith.index_cast %1078 : i32 to index
    %1215 = memref.load %arg4[%1214] : memref<32xf32, #tpu.memory_space<smem>>
    %1216 = vector.broadcast %1215 : f32 to vector<8x8xf32>
    %1217 = arith.addf %1213, %1216 : vector<8x8xf32>
    %cst_168 = arith.constant 0.000000e+00 : f32
    %1218 = vector.broadcast %cst_168 : f32 to vector<8x8xf32>
    %1219 = arith.maximumf %1217, %1218 : vector<8x8xf32>
    %1220 = arith.truncf %1219 : vector<8x8xf32> to vector<8x8xbf16>
    %c0_169 = arith.constant 0 : index
    %c7_170 = arith.constant 7 : index
    %c0_171 = arith.constant 0 : index
    %c0_172 = arith.constant 0 : index
    %1221 = vector.load %arg5[%c0_169, %c7_170, %c0_171, %c0_172] : memref<1x8x8x8xbf16, #tpu.memory_space<vmem>>, vector<1x1x8x8xbf16>
    %1222 = vector.shape_cast %1221 : vector<1x1x8x8xbf16> to vector<8x8xbf16>
    %1223 = vector.shape_cast %1220 : vector<8x8xbf16> to vector<1x1x8x8xbf16>
    tpu.vector_store %arg5[%c0_169, %c7_170, %c0_171, %c0_172], %1223 {strides = array<i32>} : memref<1x8x8x8xbf16, #tpu.memory_space<vmem>>, vector<1x1x8x8xbf16>,
    return
  }
  func.func @transform_0(%arg0: i32, %arg1: i32) -> (i32, i32, i32, i32) {
    %c0_i32 = arith.constant 0 : i32
    %c0_i32_0 = arith.constant 0 : i32
    %c0_i32_1 = arith.constant 0 : i32
    %c0_i32_2 = arith.constant 0 : i32
    return %arg0, %c0_i32, %c0_i32_0, %c0_i32_1 : i32, i32, i32, i32
  }
  func.func @transform_1(%arg0: i32, %arg1: i32) -> (i32, i32) {
    %c0_i32 = arith.constant 0 : i32
    %c0_i32_0 = arith.constant 0 : i32
    %c0_i32_1 = arith.constant 0 : i32
    return %c0_i32, %c0_i32_0 : i32, i32
  }
  func.func @transform_2(%arg0: i32, %arg1: i32) -> i32 {
    %c0_i32 = arith.constant 0 : i32
    %c0_i32_0 = arith.constant 0 : i32
    return %c0_i32 : i32
  }
  func.func @transform_3(%arg0: i32, %arg1: i32) -> (i32, i32, i32, i32) {
    %c0_i32 = arith.constant 0 : i32
    %c0_i32_0 = arith.constant 0 : i32
    %c0_i32_1 = arith.constant 0 : i32
    return %arg0, %arg1, %c0_i32, %c0_i32_0 : i32, i32, i32, i32
  }
}

module attributes {stable_mosaic.version = 11 : i64} {
  func.func @_linear1_relu_kernel(%arg0: i32, %arg1: i32, %arg2: memref<2x2048xbf16, #tpu.memory_space<vmem>>, %arg3: memref<2048x256xbf16, #tpu.memory_space<vmem>>, %arg4: memref<1x256xf32, #tpu.memory_space<vmem>>, %arg5: memref<2x256xf32, #tpu.memory_space<vmem>>) attributes {dimension_semantics = [#tpu.dimension_semantics<parallel>, #tpu.dimension_semantics<arbitrary>], iteration_bounds = array<i64: 2, 1>, scalar_prefetch = 0 : i64, scratch_operands = 0 : i64, tpu.core_type = #tpu.core_type<tc>, window_params = [{transform_indices = @transform_0, window_bounds = array<i64: 2, 2048>}, {transform_indices = @transform_1, window_bounds = array<i64: 2048, 256>}, {transform_indices = @transform_2, window_bounds = array<i64: 1, 256>}, {transform_indices = @transform_3, window_bounds = array<i64: 2, 256>}]} {
    %c0_i32 = arith.constant 0 : i32
    %0 = arith.cmpi eq, %arg1, %c0_i32 : i32
    %1 = arith.extui %0 : i1 to i32
    %c0_i32_0 = arith.constant 0 : i32
    %2 = arith.cmpi ne, %1, %c0_i32_0 : i32
    scf.if %2 {
      %cst_10 = arith.constant 0.000000e+00 : f32
      %12 = vector.broadcast %cst_10 : f32 to vector<2x256xf32>
      %c0_11 = arith.constant 0 : index
      %c0_12 = arith.constant 0 : index
      %13 = vector.load %arg5[%c0_11, %c0_12] : memref<2x256xf32, #tpu.memory_space<vmem>>, vector<2x256xf32>
      tpu.vector_store %arg5[%c0_11, %c0_12], %12 {strides = array<i32>} : memref<2x256xf32, #tpu.memory_space<vmem>>, vector<2x256xf32>,
    } else {
    }
    %c0 = arith.constant 0 : index
    %c0_1 = arith.constant 0 : index
    %3 = vector.load %arg5[%c0, %c0_1] : memref<2x256xf32, #tpu.memory_space<vmem>>, vector<2x256xf32>
    %c0_2 = arith.constant 0 : index
    %c0_3 = arith.constant 0 : index
    %4 = vector.load %arg2[%c0_2, %c0_3] : memref<2x2048xbf16, #tpu.memory_space<vmem>>, vector<2x2048xbf16>
    %c0_4 = arith.constant 0 : index
    %c0_5 = arith.constant 0 : index
    %5 = vector.load %arg3[%c0_4, %c0_5] : memref<2048x256xbf16, #tpu.memory_space<vmem>>, vector<2048x256xbf16>
    %cst = arith.constant dense<0.000000e+00> : vector<2x256xf32>
    %6 = tpu.matmul %4, %5, %cst {dimension_numbers = #tpu.dot_dimension_numbers<[1], [0], [0], [1], [0, 0, 1, 1], [], []>} : vector<2x2048xbf16>, vector<2048x256xbf16>, vector<2x256xf32> -> vector<2x256xf32>
    %7 = arith.addf %3, %6 : vector<2x256xf32>
    %c0_6 = arith.constant 0 : index
    %c0_7 = arith.constant 0 : index
    %8 = vector.load %arg5[%c0_6, %c0_7] : memref<2x256xf32, #tpu.memory_space<vmem>>, vector<2x256xf32>
    tpu.vector_store %arg5[%c0_6, %c0_7], %7 {strides = array<i32>} : memref<2x256xf32, #tpu.memory_space<vmem>>, vector<2x256xf32>,
    %c0_i32_8 = arith.constant 0 : i32
    %9 = arith.cmpi eq, %arg1, %c0_i32_8 : i32
    %10 = arith.extui %9 : i1 to i32
    %c0_i32_9 = arith.constant 0 : i32
    %11 = arith.cmpi ne, %10, %c0_i32_9 : i32
    scf.if %11 {
      %c0_10 = arith.constant 0 : index
      %c0_11 = arith.constant 0 : index
      %12 = vector.load %arg5[%c0_10, %c0_11] : memref<2x256xf32, #tpu.memory_space<vmem>>, vector<2x256xf32>
      %c0_12 = arith.constant 0 : index
      %c0_13 = arith.constant 0 : index
      %13 = vector.load %arg4[%c0_12, %c0_13] : memref<1x256xf32, #tpu.memory_space<vmem>>, vector<1x256xf32>
      %14 = vector.broadcast %13 : vector<1x256xf32> to vector<2x256xf32>
      %15 = arith.addf %12, %14 : vector<2x256xf32>
      %cst_14 = arith.constant 0.000000e+00 : f32
      %16 = vector.broadcast %cst_14 : f32 to vector<2x256xf32>
      %17 = arith.maximumf %15, %16 : vector<2x256xf32>
      %c0_15 = arith.constant 0 : index
      %c0_16 = arith.constant 0 : index
      %18 = vector.load %arg5[%c0_15, %c0_16] : memref<2x256xf32, #tpu.memory_space<vmem>>, vector<2x256xf32>
      tpu.vector_store %arg5[%c0_15, %c0_16], %17 {strides = array<i32>} : memref<2x256xf32, #tpu.memory_space<vmem>>, vector<2x256xf32>,
    } else {
    }
    return
  }
  func.func @transform_0(%arg0: i32, %arg1: i32) -> (i32, i32) {
    %c0_i32 = arith.constant 0 : i32
    %c0_i32_0 = arith.constant 0 : i32
    return %c0_i32, %arg1 : i32, i32
  }
  func.func @transform_1(%arg0: i32, %arg1: i32) -> (i32, i32) {
    %c0_i32 = arith.constant 0 : i32
    return %arg1, %arg0 : i32, i32
  }
  func.func @transform_2(%arg0: i32, %arg1: i32) -> (i32, i32) {
    %c0_i32 = arith.constant 0 : i32
    %c0_i32_0 = arith.constant 0 : i32
    return %c0_i32, %arg0 : i32, i32
  }
  func.func @transform_3(%arg0: i32, %arg1: i32) -> (i32, i32) {
    %c0_i32 = arith.constant 0 : i32
    %c0_i32_0 = arith.constant 0 : i32
    return %c0_i32, %arg0 : i32, i32
  }
}

module attributes {stable_mosaic.version = 11 : i64} {
  func.func @_mlp_head_kernel(%arg0: i32, %arg1: memref<2x512xf32, #tpu.memory_space<vmem>>, %arg2: memref<512x256xbf16, #tpu.memory_space<vmem>>, %arg3: memref<1x256xf32, #tpu.memory_space<vmem>>, %arg4: memref<256x128xbf16, #tpu.memory_space<vmem>>, %arg5: memref<1x128xf32, #tpu.memory_space<vmem>>, %arg6: memref<1x128xbf16, #tpu.memory_space<vmem>>, %arg7: memref<1x1xf32, #tpu.memory_space<vmem>>, %arg8: memref<2x1xf32, #tpu.memory_space<vmem>>) attributes {dimension_semantics = [#tpu.dimension_semantics<arbitrary>], iteration_bounds = array<i64: 1>, scalar_prefetch = 0 : i64, scratch_operands = 0 : i64, tpu.core_type = #tpu.core_type<tc>, window_params = [{pipeline_mode = #tpu.pipeline_mode<synchronous>, transform_indices = @transform_0, window_bounds = array<i64: 2, 512>}, {pipeline_mode = #tpu.pipeline_mode<synchronous>, transform_indices = @transform_1, window_bounds = array<i64: 512, 256>}, {pipeline_mode = #tpu.pipeline_mode<synchronous>, transform_indices = @transform_2, window_bounds = array<i64: 1, 256>}, {pipeline_mode = #tpu.pipeline_mode<synchronous>, transform_indices = @transform_3, window_bounds = array<i64: 256, 128>}, {pipeline_mode = #tpu.pipeline_mode<synchronous>, transform_indices = @transform_4, window_bounds = array<i64: 1, 128>}, {pipeline_mode = #tpu.pipeline_mode<synchronous>, transform_indices = @transform_5, window_bounds = array<i64: 1, 128>}, {pipeline_mode = #tpu.pipeline_mode<synchronous>, transform_indices = @transform_6, window_bounds = array<i64: 1, 1>}, {pipeline_mode = #tpu.pipeline_mode<synchronous>, transform_indices = @transform_7, window_bounds = array<i64: 2, 1>}]} {
    %c0 = arith.constant 0 : index
    %c0_0 = arith.constant 0 : index
    %0 = vector.load %arg1[%c0, %c0_0] : memref<2x512xf32, #tpu.memory_space<vmem>>, vector<2x512xf32>
    %1 = arith.truncf %0 : vector<2x512xf32> to vector<2x512xbf16>
    %c0_1 = arith.constant 0 : index
    %c0_2 = arith.constant 0 : index
    %2 = vector.load %arg2[%c0_1, %c0_2] : memref<512x256xbf16, #tpu.memory_space<vmem>>, vector<512x256xbf16>
    %cst = arith.constant dense<0.000000e+00> : vector<2x256xf32>
    %3 = tpu.matmul %1, %2, %cst {dimension_numbers = #tpu.dot_dimension_numbers<[1], [0], [0], [1], [0, 0, 1, 1], [], []>} : vector<2x512xbf16>, vector<512x256xbf16>, vector<2x256xf32> -> vector<2x256xf32>
    %c0_3 = arith.constant 0 : index
    %c0_4 = arith.constant 0 : index
    %4 = vector.load %arg3[%c0_3, %c0_4] : memref<1x256xf32, #tpu.memory_space<vmem>>, vector<1x256xf32>
    %5 = vector.broadcast %4 : vector<1x256xf32> to vector<2x256xf32>
    %6 = arith.addf %3, %5 : vector<2x256xf32>
    %cst_5 = arith.constant 0.000000e+00 : f32
    %7 = vector.broadcast %cst_5 : f32 to vector<2x256xf32>
    %8 = arith.maximumf %6, %7 : vector<2x256xf32>
    %9 = arith.truncf %8 : vector<2x256xf32> to vector<2x256xbf16>
    %c0_6 = arith.constant 0 : index
    %c0_7 = arith.constant 0 : index
    %10 = vector.load %arg4[%c0_6, %c0_7] : memref<256x128xbf16, #tpu.memory_space<vmem>>, vector<256x128xbf16>
    %cst_8 = arith.constant dense<0.000000e+00> : vector<2x128xf32>
    %11 = tpu.matmul %9, %10, %cst_8 {dimension_numbers = #tpu.dot_dimension_numbers<[1], [0], [0], [1], [0, 0, 1, 1], [], []>} : vector<2x256xbf16>, vector<256x128xbf16>, vector<2x128xf32> -> vector<2x128xf32>
    %c0_9 = arith.constant 0 : index
    %c0_10 = arith.constant 0 : index
    %12 = vector.load %arg5[%c0_9, %c0_10] : memref<1x128xf32, #tpu.memory_space<vmem>>, vector<1x128xf32>
    %13 = vector.broadcast %12 : vector<1x128xf32> to vector<2x128xf32>
    %14 = arith.addf %11, %13 : vector<2x128xf32>
    %cst_11 = arith.constant 0.000000e+00 : f32
    %15 = vector.broadcast %cst_11 : f32 to vector<2x128xf32>
    %16 = arith.maximumf %14, %15 : vector<2x128xf32>
    %c0_12 = arith.constant 0 : index
    %c0_13 = arith.constant 0 : index
    %17 = vector.load %arg6[%c0_12, %c0_13] : memref<1x128xbf16, #tpu.memory_space<vmem>>, vector<1x128xbf16>
    %18 = arith.extf %17 : vector<1x128xbf16> to vector<1x128xf32>
    %19 = vector.broadcast %18 : vector<1x128xf32> to vector<2x128xf32>
    %20 = arith.mulf %16, %19 : vector<2x128xf32>
    %cst_14 = arith.constant dense<0.000000e+00> : vector<2xf32>
    %21 = vector.multi_reduction <add>, %20, %cst_14 [1] : vector<2x128xf32> to vector<2xf32>
    %22 = vector.shape_cast %21 : vector<2xf32> to vector<2x1xf32>
    %c0_15 = arith.constant 0 : index
    %c0_16 = arith.constant 0 : index
    %23 = vector.load %arg7[%c0_15, %c0_16] : memref<1x1xf32, #tpu.memory_space<vmem>>, vector<1x1xf32>
    %24 = vector.broadcast %23 : vector<1x1xf32> to vector<2x1xf32>
    %25 = arith.addf %22, %24 : vector<2x1xf32>
    %c0_17 = arith.constant 0 : index
    %c0_18 = arith.constant 0 : index
    %26 = vector.load %arg8[%c0_17, %c0_18] : memref<2x1xf32, #tpu.memory_space<vmem>>, vector<2x1xf32>
    tpu.vector_store %arg8[%c0_17, %c0_18], %25 {strides = array<i32>} : memref<2x1xf32, #tpu.memory_space<vmem>>, vector<2x1xf32>,
    return
  }
  func.func @transform_0(%arg0: i32) -> (i32, i32) {
    %c0_i32 = arith.constant 0 : i32
    %c0_i32_0 = arith.constant 0 : i32
    %c0_i32_1 = arith.constant 0 : i32
    return %c0_i32, %c0_i32_0 : i32, i32
  }
  func.func @transform_1(%arg0: i32) -> (i32, i32) {
    %c0_i32 = arith.constant 0 : i32
    %c0_i32_0 = arith.constant 0 : i32
    %c0_i32_1 = arith.constant 0 : i32
    return %c0_i32, %c0_i32_0 : i32, i32
  }
  func.func @transform_2(%arg0: i32) -> (i32, i32) {
    %c0_i32 = arith.constant 0 : i32
    %c0_i32_0 = arith.constant 0 : i32
    %c0_i32_1 = arith.constant 0 : i32
    return %c0_i32, %c0_i32_0 : i32, i32
  }
  func.func @transform_3(%arg0: i32) -> (i32, i32) {
    %c0_i32 = arith.constant 0 : i32
    %c0_i32_0 = arith.constant 0 : i32
    %c0_i32_1 = arith.constant 0 : i32
    return %c0_i32, %c0_i32_0 : i32, i32
  }
  func.func @transform_4(%arg0: i32) -> (i32, i32) {
    %c0_i32 = arith.constant 0 : i32
    %c0_i32_0 = arith.constant 0 : i32
    %c0_i32_1 = arith.constant 0 : i32
    return %c0_i32, %c0_i32_0 : i32, i32
  }
  func.func @transform_5(%arg0: i32) -> (i32, i32) {
    %c0_i32 = arith.constant 0 : i32
    %c0_i32_0 = arith.constant 0 : i32
    %c0_i32_1 = arith.constant 0 : i32
    return %c0_i32, %c0_i32_0 : i32, i32
  }
  func.func @transform_6(%arg0: i32) -> (i32, i32) {
    %c0_i32 = arith.constant 0 : i32
    %c0_i32_0 = arith.constant 0 : i32
    %c0_i32_1 = arith.constant 0 : i32
    return %c0_i32, %c0_i32_0 : i32, i32
  }
  func.func @transform_7(%arg0: i32) -> (i32, i32) {
    %c0_i32 = arith.constant 0 : i32
    %c0_i32_0 = arith.constant 0 : i32
    %c0_i32_1 = arith.constant 0 : i32
    return %c0_i32, %c0_i32_0 : i32, i32
  }
}

</mosaic_0001>

<llo_original>
// kernel: lifespan_predictor_forward.5
$region0: #{lifespan_predictor_forward.5}
  #allocation0 [shape = 'u32[]', space=smem, size = 0x4, offset = 0x4, fixed_abs, tag = 'smem constant byte address 0x4 - core index']
  #allocation1 [shape = 'u32[144,128]{1,0:T(1,128)}', space=vmem, size = 0x12000, scoped, tag = 'internal scratch']
  #allocation2 [shape = 'f32[1,1]{1,0:T(1,128)S(1)}', space=vmem, size = 0x200, scoped, tag = 'scoped memory for lifespan_predictor_forward.5']
  %s0 = inlined_call_operand.vmem [shape: f32[2,512], index: 0, kind: input, shape index: {}]
  %s1 = inlined_call_operand.vmem [shape: bf16[512,256], index: 1, kind: input, shape index: {}]
  %s2 = inlined_call_operand.vmem [shape: f32[1,256], index: 2, kind: input, shape index: {}]
  %s3 = inlined_call_operand.vmem [shape: bf16[256,128], index: 3, kind: input, shape index: {}]
  %s4 = inlined_call_operand.vmem [shape: f32[1,128], index: 4, kind: input, shape index: {}]
  %s5 = inlined_call_operand.vmem [shape: bf16[1,128], index: 5, kind: input, shape index: {}]
  %s6 = inlined_call_operand.<no memory space> [shape: f32[1,1], index: 6, kind: input, shape index: {}]
  %s7 = inlined_call_operand.vmem [shape: f32[2,1], index: 7, kind: output, shape index: {}]
  %s8 = sld [smem:[#allocation0]]
  $region38: #{lifespan_predictor_forward.5} parent=0
    _
  %s10 = ssub.s32 1, %s8
  %s11 = scalar_select 0, %s10, %s8
  %v12 = vstv %s6
  %13 = vst [vmem:[#allocation2] sm:$0x1] %v12
  // Predicated region
  $region2: #{lifespan_predictor_forward.5} parent=0 // pred_check
    _
  $region3: #{lifespan_predictor_forward.5} parent=0 // pred_check_branch
    %15 = sbr.rel (0) target = $region5
  $region4: #{lifespan_predictor_forward.5} parent=0 // pred_region
    _
  $region5: #{lifespan_predictor_forward.5} parent=0 // pred_fallthru
    _
  // Predicated region
  $region6: #{lifespan_predictor_forward.5} parent=0 // pred_check
    _
  $region7: #{lifespan_predictor_forward.5} parent=0 // pred_check_branch
    %17 = sbr.rel (0) target = $region9
  $region8: #{lifespan_predictor_forward.5} parent=0 // pred_region
    _
  $region9: #{lifespan_predictor_forward.5} parent=0 // pred_fallthru
    _
  // Predicated region
  $region10: #{lifespan_predictor_forward.5} parent=0 // pred_check
    _
  $region11: #{lifespan_predictor_forward.5} parent=0 // pred_check_branch
    %19 = sbr.rel (0) target = $region13
  $region12: #{lifespan_predictor_forward.5} parent=0 // pred_region
    _
  $region13: #{lifespan_predictor_forward.5} parent=0 // pred_fallthru
    _
  // Predicated region
  $region14: #{lifespan_predictor_forward.5} parent=0 // pred_check
    _
  $region15: #{lifespan_predictor_forward.5} parent=0 // pred_check_branch
    %21 = sbr.rel (0) target = $region17
  $region16: #{lifespan_predictor_forward.5} parent=0 // pred_region
    _
  $region17: #{lifespan_predictor_forward.5} parent=0 // pred_fallthru
    _
  // Predicated region
  $region18: #{lifespan_predictor_forward.5} parent=0 // pred_check
    _
  $region19: #{lifespan_predictor_forward.5} parent=0 // pred_check_branch
    %23 = sbr.rel (0) target = $region21
  $region20: #{lifespan_predictor_forward.5} parent=0 // pred_region
    _
  $region21: #{lifespan_predictor_forward.5} parent=0 // pred_fallthru
    _
  // Predicated region
  $region22: #{lifespan_predictor_forward.5} parent=0 // pred_check
    _
  $region23: #{lifespan_predictor_forward.5} parent=0 // pred_check_branch
    %25 = sbr.rel (0) target = $region25
  $region24: #{lifespan_predictor_forward.5} parent=0 // pred_region
    _
  $region25: #{lifespan_predictor_forward.5} parent=0 // pred_fallthru
    _
  // Predicated region
  $region26: #{lifespan_predictor_forward.5} parent=0 // pred_check
    _
  $region27: #{lifespan_predictor_forward.5} parent=0 // pred_check_branch
    %27 = sbr.rel (0) target = $region29
  $region28: #{lifespan_predictor_forward.5} parent=0 // pred_region
    _
  $region29: #{lifespan_predictor_forward.5} parent=0 // pred_fallthru
    _
  %v29 = vld [vmem:[%s0] sm:$0xff]
  %v31 = vcombine.high %v29, %v29
  %v33 = vunpack.c.l.s4 1983009808
  %v34 = vunpack.c.0.s8 %v33
  %v35 = vlaneseq
  %v36 = vshrl.u32 %v35, 7
  %v37 = vsub.s32 %v34, %v36
  %v38 = vrot.slane %v29, %v37
  %v40 = vunpack.c.l.s4 1983009808
  %v41 = vunpack.c.0.s8 %v40
  %v42 = vlaneseq
  %v43 = vshrl.u32 %v42, 7
  %v44 = vsub.s32 %v41, %v43
  %v45 = vrot.slane %v31, %v44
  %v46 = vcombine.high %v38, %v38
  %v47 = vcombine.high %v45, %v45
  %v52 = vpack.c.bf16 %v38, %v38
  %v53 = vpack.c.bf16 %v46, %v46
  %v54 = vpack.c.bf16 %v45, %v45
  %v55 = vpack.c.bf16 %v47, %v47
  %v56 = vld [vmem:[%s1] sm:$0xff]
  %v57 = vld [vmem:[%s1 + $0x8] sm:$0xff]
  %v58 = vld [vmem:[%s1 + $0x10] sm:$0xff]
  %v59 = vld [vmem:[%s1 + $0x18] sm:$0xff]
  %v60 = vld [vmem:[%s1 + $0x20] sm:$0xff]
  %v61 = vld [vmem:[%s1 + $0x28] sm:$0xff]
  %v62 = vld [vmem:[%s1 + $0x30] sm:$0xff]
  %v63 = vld [vmem:[%s1 + $0x38] sm:$0xff]
  %v64 = vld [vmem:[%s1 + $0x40] sm:$0xff]
  %v65 = vld [vmem:[%s1 + $0x48] sm:$0xff]
  %v66 = vld [vmem:[%s1 + $0x50] sm:$0xff]
  %v67 = vld [vmem:[%s1 + $0x58] sm:$0xff]
  %v68 = vld [vmem:[%s1 + $0x60] sm:$0xff]
  %v69 = vld [vmem:[%s1 + $0x68] sm:$0xff]
  %v70 = vld [vmem:[%s1 + $0x70] sm:$0xff]
  %v71 = vld [vmem:[%s1 + $0x78] sm:$0xff]
  %v72 = vld [vmem:[%s1 + $0x80] sm:$0xff]
  %v73 = vld [vmem:[%s1 + $0x88] sm:$0xff]
  %v74 = vld [vmem:[%s1 + $0x90] sm:$0xff]
  %v75 = vld [vmem:[%s1 + $0x98] sm:$0xff]
  %v76 = vld [vmem:[%s1 + $0xa0] sm:$0xff]
  %v77 = vld [vmem:[%s1 + $0xa8] sm:$0xff]
  %v78 = vld [vmem:[%s1 + $0xb0] sm:$0xff]
  %v79 = vld [vmem:[%s1 + $0xb8] sm:$0xff]
  %v80 = vld [vmem:[%s1 + $0xc0] sm:$0xff]
  %v81 = vld [vmem:[%s1 + $0xc8] sm:$0xff]
  %v82 = vld [vmem:[%s1 + $0xd0] sm:$0xff]
  %v83 = vld [vmem:[%s1 + $0xd8] sm:$0xff]
  %v84 = vld [vmem:[%s1 + $0xe0] sm:$0xff]
  %v85 = vld [vmem:[%s1 + $0xe8] sm:$0xff]
  %v86 = vld [vmem:[%s1 + $0xf0] sm:$0xff]
  %v87 = vld [vmem:[%s1 + $0xf8] sm:$0xff]
  %v88 = vld [vmem:[%s1 + $0x100] sm:$0xff]
  %v89 = vld [vmem:[%s1 + $0x108] sm:$0xff]
  %v90 = vld [vmem:[%s1 + $0x110] sm:$0xff]
  %v91 = vld [vmem:[%s1 + $0x118] sm:$0xff]
  %v92 = vld [vmem:[%s1 + $0x120] sm:$0xff]
  %v93 = vld [vmem:[%s1 + $0x128] sm:$0xff]
  %v94 = vld [vmem:[%s1 + $0x130] sm:$0xff]
  %v95 = vld [vmem:[%s1 + $0x138] sm:$0xff]
  %v96 = vld [vmem:[%s1 + $0x140] sm:$0xff]
  %v97 = vld [vmem:[%s1 + $0x148] sm:$0xff]
  %v98 = vld [vmem:[%s1 + $0x150] sm:$0xff]
  %v99 = vld [vmem:[%s1 + $0x158] sm:$0xff]
  %v100 = vld [vmem:[%s1 + $0x160] sm:$0xff]
  %v101 = vld [vmem:[%s1 + $0x168] sm:$0xff]
  %v102 = vld [vmem:[%s1 + $0x170] sm:$0xff]
  %v103 = vld [vmem:[%s1 + $0x178] sm:$0xff]
  %v104 = vld [vmem:[%s1 + $0x180] sm:$0xff]
  %v105 = vld [vmem:[%s1 + $0x188] sm:$0xff]
  %v106 = vld [vmem:[%s1 + $0x190] sm:$0xff]
  %v107 = vld [vmem:[%s1 + $0x198] sm:$0xff]
  %v108 = vld [vmem:[%s1 + $0x1a0] sm:$0xff]
  %v109 = vld [vmem:[%s1 + $0x1a8] sm:$0xff]
  %v110 = vld [vmem:[%s1 + $0x1b0] sm:$0xff]
  %v111 = vld [vmem:[%s1 + $0x1b8] sm:$0xff]
  %v112 = vld [vmem:[%s1 + $0x1c0] sm:$0xff]
  %v113 = vld [vmem:[%s1 + $0x1c8] sm:$0xff]
  %v114 = vld [vmem:[%s1 + $0x1d0] sm:$0xff]
  %v115 = vld [vmem:[%s1 + $0x1d8] sm:$0xff]
  %v116 = vld [vmem:[%s1 + $0x1e0] sm:$0xff]
  %v117 = vld [vmem:[%s1 + $0x1e8] sm:$0xff]
  %v118 = vld [vmem:[%s1 + $0x1f0] sm:$0xff]
  %v119 = vld [vmem:[%s1 + $0x1f8] sm:$0xff]
  %v120 = vld [vmem:[%s2] sm:$0x3]
  %v122 = vlaneseq
  %v123 = vshrl.u32 %v122, 7
  %v124 = vsub.s32 0, %v123
  %v125 = vrot.slane %v120, %v124
  %v126 = vlaneseq
  %v127 = vshrl.u32 %v126, 7
  %v128 = vsub.s32 1, %v127
  %v129 = vrot.slane %v120, %v128
  %v196 = vunpack.c.l.b16 %v56
  %v197 = vunpack.c.h.b16 %v56
  %v198 = vunpack.c.l.b16 %v57
  %v199 = vunpack.c.h.b16 %v57
  %v200 = vunpack.c.l.b16 %v58
  %v201 = vunpack.c.h.b16 %v58
  %v202 = vunpack.c.l.b16 %v59
  %v203 = vunpack.c.h.b16 %v59
  %v204 = vunpack.c.l.b16 %v60
  %v205 = vunpack.c.h.b16 %v60
  %v206 = vunpack.c.l.b16 %v61
  %v207 = vunpack.c.h.b16 %v61
  %v208 = vunpack.c.l.b16 %v62
  %v209 = vunpack.c.h.b16 %v62
  %v210 = vunpack.c.l.b16 %v63
  %v211 = vunpack.c.h.b16 %v63
  %v212 = vunpack.c.l.b16 %v64
  %v213 = vunpack.c.h.b16 %v64
  %v214 = vunpack.c.l.b16 %v65
  %v215 = vunpack.c.h.b16 %v65
  %v216 = vunpack.c.l.b16 %v66
  %v217 = vunpack.c.h.b16 %v66
  %v218 = vunpack.c.l.b16 %v67
  %v219 = vunpack.c.h.b16 %v67
  %v220 = vunpack.c.l.b16 %v68
  %v221 = vunpack.c.h.b16 %v68
  %v222 = vunpack.c.l.b16 %v69
  %v223 = vunpack.c.h.b16 %v69
  %v224 = vunpack.c.l.b16 %v70
  %v225 = vunpack.c.h.b16 %v70
  %v226 = vunpack.c.l.b16 %v71
  %v227 = vunpack.c.h.b16 %v71
  %v228 = vunpack.c.l.b16 %v72
  %v229 = vunpack.c.h.b16 %v72
  %v230 = vunpack.c.l.b16 %v73
  %v231 = vunpack.c.h.b16 %v73
  %v232 = vunpack.c.l.b16 %v74
  %v233 = vunpack.c.h.b16 %v74
  %v234 = vunpack.c.l.b16 %v75
  %v235 = vunpack.c.h.b16 %v75
  %v236 = vunpack.c.l.b16 %v76
  %v237 = vunpack.c.h.b16 %v76
  %v238 = vunpack.c.l.b16 %v77
  %v239 = vunpack.c.h.b16 %v77
  %v240 = vunpack.c.l.b16 %v78
  %v241 = vunpack.c.h.b16 %v78
  %v242 = vunpack.c.l.b16 %v79
  %v243 = vunpack.c.h.b16 %v79
  %v244 = vunpack.c.l.b16 %v80
  %v245 = vunpack.c.h.b16 %v80
  %v246 = vunpack.c.l.b16 %v81
  %v247 = vunpack.c.h.b16 %v81
  %v248 = vunpack.c.l.b16 %v82
  %v249 = vunpack.c.h.b16 %v82
  %v250 = vunpack.c.l.b16 %v83
  %v251 = vunpack.c.h.b16 %v83
  %v252 = vunpack.c.l.b16 %v84
  %v253 = vunpack.c.h.b16 %v84
  %v254 = vunpack.c.l.b16 %v85
  %v255 = vunpack.c.h.b16 %v85
  %v256 = vunpack.c.l.b16 %v86
  %v257 = vunpack.c.h.b16 %v86
  %v258 = vunpack.c.l.b16 %v87
  %v259 = vunpack.c.h.b16 %v87
  %v260 = vunpack.c.l.b16 %v88
  %v261 = vunpack.c.h.b16 %v88
  %v262 = vunpack.c.l.b16 %v89
  %v263 = vunpack.c.h.b16 %v89
  %v264 = vunpack.c.l.b16 %v90
  %v265 = vunpack.c.h.b16 %v90
  %v266 = vunpack.c.l.b16 %v91
  %v267 = vunpack.c.h.b16 %v91
  %v268 = vunpack.c.l.b16 %v92
  %v269 = vunpack.c.h.b16 %v92
  %v270 = vunpack.c.l.b16 %v93
  %v271 = vunpack.c.h.b16 %v93
  %v272 = vunpack.c.l.b16 %v94
  %v273 = vunpack.c.h.b16 %v94
  %v274 = vunpack.c.l.b16 %v95
  %v275 = vunpack.c.h.b16 %v95
  %v276 = vunpack.c.l.b16 %v96
  %v277 = vunpack.c.h.b16 %v96
  %v278 = vunpack.c.l.b16 %v97
  %v279 = vunpack.c.h.b16 %v97
  %v280 = vunpack.c.l.b16 %v98
  %v281 = vunpack.c.h.b16 %v98
  %v282 = vunpack.c.l.b16 %v99
  %v283 = vunpack.c.h.b16 %v99
  %v284 = vunpack.c.l.b16 %v100
  %v285 = vunpack.c.h.b16 %v100
  %v286 = vunpack.c.l.b16 %v101
  %v287 = vunpack.c.h.b16 %v101
  %v288 = vunpack.c.l.b16 %v102
  %v289 = vunpack.c.h.b16 %v102
  %v290 = vunpack.c.l.b16 %v103
  %v291 = vunpack.c.h.b16 %v103
  %v292 = vunpack.c.l.b16 %v104
  %v293 = vunpack.c.h.b16 %v104
  %v294 = vunpack.c.l.b16 %v105
  %v295 = vunpack.c.h.b16 %v105
  %v296 = vunpack.c.l.b16 %v106
  %v297 = vunpack.c.h.b16 %v106
  %v298 = vunpack.c.l.b16 %v107
  %v299 = vunpack.c.h.b16 %v107
  %v300 = vunpack.c.l.b16 %v108
  %v301 = vunpack.c.h.b16 %v108
  %v302 = vunpack.c.l.b16 %v109
  %v303 = vunpack.c.h.b16 %v109
  %v304 = vunpack.c.l.b16 %v110
  %v305 = vunpack.c.h.b16 %v110
  %v306 = vunpack.c.l.b16 %v111
  %v307 = vunpack.c.h.b16 %v111
  %v308 = vunpack.c.l.b16 %v112
  %v309 = vunpack.c.h.b16 %v112
  %v310 = vunpack.c.l.b16 %v113
  %v311 = vunpack.c.h.b16 %v113
  %v312 = vunpack.c.l.b16 %v114
  %v313 = vunpack.c.h.b16 %v114
  %v314 = vunpack.c.l.b16 %v115
  %v315 = vunpack.c.h.b16 %v115
  %v316 = vunpack.c.l.b16 %v116
  %v317 = vunpack.c.h.b16 %v116
  %v318 = vunpack.c.l.b16 %v117
  %v319 = vunpack.c.h.b16 %v117
  %v320 = vunpack.c.l.b16 %v118
  %v321 = vunpack.c.h.b16 %v118
  %v322 = vunpack.c.l.b16 %v119
  %v323 = vunpack.c.h.b16 %v119
  %v324 = vpack.c.b16 %v198, %v196
  %v325 = vpack.c.b16 %v199, %v197
  %v326 = vpack.c.b16 %v202, %v200
  %v327 = vpack.c.b16 %v203, %v201
  %v328 = vpack.c.b16 %v206, %v204
  %v329 = vpack.c.b16 %v207, %v205
  %v330 = vpack.c.b16 %v210, %v208
  %v331 = vpack.c.b16 %v211, %v209
  %v332 = vpack.c.b16 %v214, %v212
  %v333 = vpack.c.b16 %v215, %v213
  %v334 = vpack.c.b16 %v218, %v216
  %v335 = vpack.c.b16 %v219, %v217
  %v336 = vpack.c.b16 %v222, %v220
  %v337 = vpack.c.b16 %v223, %v221
  %v338 = vpack.c.b16 %v226, %v224
  %v339 = vpack.c.b16 %v227, %v225
  %v340 = vpack.c.b16 %v230, %v228
  %v341 = vpack.c.b16 %v231, %v229
  %v342 = vpack.c.b16 %v234, %v232
  %v343 = vpack.c.b16 %v235, %v233
  %v344 = vpack.c.b16 %v238, %v236
  %v345 = vpack.c.b16 %v239, %v237
  %v346 = vpack.c.b16 %v242, %v240
  %v347 = vpack.c.b16 %v243, %v241
  %v348 = vpack.c.b16 %v246, %v244
  %v349 = vpack.c.b16 %v247, %v245
  %v350 = vpack.c.b16 %v250, %v248
  %v351 = vpack.c.b16 %v251, %v249
  %v352 = vpack.c.b16 %v254, %v252
  %v353 = vpack.c.b16 %v255, %v253
  %v354 = vpack.c.b16 %v258, %v256
  %v355 = vpack.c.b16 %v259, %v257
  %v356 = vpack.c.b16 %v262, %v260
  %v357 = vpack.c.b16 %v263, %v261
  %v358 = vpack.c.b16 %v266, %v264
  %v359 = vpack.c.b16 %v267, %v265
  %v360 = vpack.c.b16 %v270, %v268
  %v361 = vpack.c.b16 %v271, %v269
  %v362 = vpack.c.b16 %v274, %v272
  %v363 = vpack.c.b16 %v275, %v273
  %v364 = vpack.c.b16 %v278, %v276
  %v365 = vpack.c.b16 %v279, %v277
  %v366 = vpack.c.b16 %v282, %v280
  %v367 = vpack.c.b16 %v283, %v281
  %v368 = vpack.c.b16 %v286, %v284
  %v369 = vpack.c.b16 %v287, %v285
  %v370 = vpack.c.b16 %v290, %v288
  %v371 = vpack.c.b16 %v291, %v289
  %v372 = vpack.c.b16 %v294, %v292
  %v373 = vpack.c.b16 %v295, %v293
  %v374 = vpack.c.b16 %v298, %v296
  %v375 = vpack.c.b16 %v299, %v297
  %v376 = vpack.c.b16 %v302, %v300
  %v377 = vpack.c.b16 %v303, %v301
  %v378 = vpack.c.b16 %v306, %v304
  %v379 = vpack.c.b16 %v307, %v305
  %v380 = vpack.c.b16 %v310, %v308
  %v381 = vpack.c.b16 %v311, %v309
  %v382 = vpack.c.b16 %v314, %v312
  %v383 = vpack.c.b16 %v315, %v313
  %v384 = vpack.c.b16 %v318, %v316
  %v385 = vpack.c.b16 %v319, %v317
  %v386 = vpack.c.b16 %v322, %v320
  %v387 = vpack.c.b16 %v323, %v321
  %452 = vmatprep.subr.bf16.mxu0 %v325
  %453 = vmatpush1.bf16.msra.mxu0 %v324
  %454 = vmatprep.subr.bf16.mxu0 %v327
  %455 = vmatpush1.bf16.msra.mxu0 %v326
  %456 = vmatprep.subr.bf16.mxu0 %v329
  %457 = vmatpush1.bf16.msra.mxu0 %v328
  %458 = vmatprep.subr.bf16.mxu0 %v331
  %459 = vmatpush1.bf16.msra.mxu0 %v330
  %460 = vmatprep.subr.bf16.mxu0 %v333
  %461 = vmatpush1.bf16.msra.mxu0 %v332
  %462 = vmatprep.subr.bf16.mxu0 %v335
  %463 = vmatpush1.bf16.msra.mxu0 %v334
  %464 = vmatprep.subr.bf16.mxu0 %v337
  %465 = vmatpush1.bf16.msra.mxu0 %v336
  %466 = vmatprep.subr.bf16.mxu0 %v339
  %467 = vmatpush1.bf16.msra.mxu0 %v338
  %468 = vmatprep.subr.bf16.mxu0 %v341
  %469 = vmatpush1.bf16.msra.mxu0 %v340
  %470 = vmatprep.subr.bf16.mxu0 %v343
  %471 = vmatpush1.bf16.msra.mxu0 %v342
  %472 = vmatprep.subr.bf16.mxu0 %v345
  %473 = vmatpush1.bf16.msra.mxu0 %v344
  %474 = vmatprep.subr.bf16.mxu0 %v347
  %475 = vmatpush1.bf16.msra.mxu0 %v346
  %476 = vmatprep.subr.bf16.mxu0 %v349
  %477 = vmatpush1.bf16.msra.mxu0 %v348
  %478 = vmatprep.subr.bf16.mxu0 %v351
  %479 = vmatpush1.bf16.msra.mxu0 %v350
  %480 = vmatprep.subr.bf16.mxu0 %v353
  %481 = vmatpush1.bf16.msra.mxu0 %v352
  %482 = vmatprep.subr.bf16.mxu0 %v355
  %483 = vmatpush1.bf16.msra.mxu0 %v354
  %484 = vmatprep.mubr.bf16.mxu0 %v53
  %485 = vmatmul.mubr.bf16.gmra.mrb[0].mxu0 %v52
  %v486 = vpop.f32.mrb[0].mxu0
  %v487 = vadd.f32 %v125, %v486
  %v488 = vpop.f32.mrb[0].mxu0
  %v489 = vadd.f32 %v129, %v488
  %v490 = vpop.f32.mrb[0].mxu0
  %v491 = vpop.f32.mrb[0].mxu0
  %492 = vdwg.mxu0
  %493 = vmatprep.subr.bf16.mxu0 %v357
  %494 = vmatpush1.bf16.msra.mxu0 %v356
  %495 = vmatprep.subr.bf16.mxu0 %v359
  %496 = vmatpush1.bf16.msra.mxu0 %v358
  %497 = vmatprep.subr.bf16.mxu0 %v361
  %498 = vmatpush1.bf16.msra.mxu0 %v360
  %499 = vmatprep.subr.bf16.mxu0 %v363
  %500 = vmatpush1.bf16.msra.mxu0 %v362
  %501 = vmatprep.subr.bf16.mxu0 %v365
  %502 = vmatpush1.bf16.msra.mxu0 %v364
  %503 = vmatprep.subr.bf16.mxu0 %v367
  %504 = vmatpush1.bf16.msra.mxu0 %v366
  %505 = vmatprep.subr.bf16.mxu0 %v369
  %506 = vmatpush1.bf16.msra.mxu0 %v368
  %507 = vmatprep.subr.bf16.mxu0 %v371
  %508 = vmatpush1.bf16.msra.mxu0 %v370
  %509 = vmatprep.subr.bf16.mxu0 %v373
  %510 = vmatpush1.bf16.msra.mxu0 %v372
  %511 = vmatprep.subr.bf16.mxu0 %v375
  %512 = vmatpush1.bf16.msra.mxu0 %v374
  %513 = vmatprep.subr.bf16.mxu0 %v377
  %514 = vmatpush1.bf16.msra.mxu0 %v376
  %515 = vmatprep.subr.bf16.mxu0 %v379
  %516 = vmatpush1.bf16.msra.mxu0 %v378
  %517 = vmatprep.subr.bf16.mxu0 %v381
  %518 = vmatpush1.bf16.msra.mxu0 %v380
  %519 = vmatprep.subr.bf16.mxu0 %v383
  %520 = vmatpush1.bf16.msra.mxu0 %v382
  %521 = vmatprep.subr.bf16.mxu0 %v385
  %522 = vmatpush1.bf16.msra.mxu0 %v384
  %523 = vmatprep.subr.bf16.mxu0 %v387
  %524 = vmatpush1.bf16.msra.mxu0 %v386
  %525 = vmatprep.mubr.bf16.mxu0 %v55
  %526 = vmatmul.mubr.bf16.gmra.mrb[0].mxu0 %v54
  %v527 = vpop.f32.mrb[0].mxu0
  %v528 = vadd.f32 %v487, %v527
  %v529 = vpop.f32.mrb[0].mxu0
  %v530 = vadd.f32 %v489, %v529
  %v531 = vpop.f32.mrb[0].mxu0
  %v532 = vpop.f32.mrb[0].mxu0
  %533 = vdwg.mxu0
  %v534 = vmax.f32 %v528, 0.0
  %v535 = vmax.f32 %v530, 0.0
  %v536 = vpack.c.bf16 %v534, %v534
  %v537 = vpack.c.bf16 %v535, %v535
  %v538 = vld [vmem:[%s3] sm:$0xf]
  %v539 = vld [vmem:[%s3 + $0x4] sm:$0xf]
  %v540 = vld [vmem:[%s3 + $0x8] sm:$0xf]
  %v541 = vld [vmem:[%s3 + $0xc] sm:$0xf]
  %v542 = vld [vmem:[%s3 + $0x10] sm:$0xf]
  %v543 = vld [vmem:[%s3 + $0x14] sm:$0xf]
  %v544 = vld [vmem:[%s3 + $0x18] sm:$0xf]
  %v545 = vld [vmem:[%s3 + $0x1c] sm:$0xf]
  %v546 = vld [vmem:[%s3 + $0x20] sm:$0xf]
  %v547 = vld [vmem:[%s3 + $0x24] sm:$0xf]
  %v548 = vld [vmem:[%s3 + $0x28] sm:$0xf]
  %v549 = vld [vmem:[%s3 + $0x2c] sm:$0xf]
  %v550 = vld [vmem:[%s3 + $0x30] sm:$0xf]
  %v551 = vld [vmem:[%s3 + $0x34] sm:$0xf]
  %v552 = vld [vmem:[%s3 + $0x38] sm:$0xf]
  %v553 = vld [vmem:[%s3 + $0x3c] sm:$0xf]
  %v554 = vld [vmem:[%s3 + $0x40] sm:$0xf]
  %v555 = vld [vmem:[%s3 + $0x44] sm:$0xf]
  %v556 = vld [vmem:[%s3 + $0x48] sm:$0xf]
  %v557 = vld [vmem:[%s3 + $0x4c] sm:$0xf]
  %v558 = vld [vmem:[%s3 + $0x50] sm:$0xf]
  %v559 = vld [vmem:[%s3 + $0x54] sm:$0xf]
  %v560 = vld [vmem:[%s3 + $0x58] sm:$0xf]
  %v561 = vld [vmem:[%s3 + $0x5c] sm:$0xf]
  %v562 = vld [vmem:[%s3 + $0x60] sm:$0xf]
  %v563 = vld [vmem:[%s3 + $0x64] sm:$0xf]
  %v564 = vld [vmem:[%s3 + $0x68] sm:$0xf]
  %v565 = vld [vmem:[%s3 + $0x6c] sm:$0xf]
  %v566 = vld [vmem:[%s3 + $0x70] sm:$0xf]
  %v567 = vld [vmem:[%s3 + $0x74] sm:$0xf]
  %v568 = vld [vmem:[%s3 + $0x78] sm:$0xf]
  %v569 = vld [vmem:[%s3 + $0x7c] sm:$0xf]
  %v570 = vld [vmem:[%s4] sm:$0x1]
  %v572 = vlaneseq
  %v573 = vshrl.u32 %v572, 7
  %v574 = vsub.s32 0, %v573
  %v575 = vrot.slane %v570, %v574
  %v609 = vunpack.c.l.b16 %v538
  %v610 = vunpack.c.l.b16 %v539
  %v611 = vunpack.c.l.b16 %v540
  %v612 = vunpack.c.l.b16 %v541
  %v613 = vunpack.c.l.b16 %v542
  %v614 = vunpack.c.l.b16 %v543
  %v615 = vunpack.c.l.b16 %v544
  %v616 = vunpack.c.l.b16 %v545
  %v617 = vunpack.c.l.b16 %v546
  %v618 = vunpack.c.l.b16 %v547
  %v619 = vunpack.c.l.b16 %v548
  %v620 = vunpack.c.l.b16 %v549
  %v621 = vunpack.c.l.b16 %v550
  %v622 = vunpack.c.l.b16 %v551
  %v623 = vunpack.c.l.b16 %v552
  %v624 = vunpack.c.l.b16 %v553
  %v625 = vunpack.c.l.b16 %v554
  %v626 = vunpack.c.l.b16 %v555
  %v627 = vunpack.c.l.b16 %v556
  %v628 = vunpack.c.l.b16 %v557
  %v629 = vunpack.c.l.b16 %v558
  %v630 = vunpack.c.l.b16 %v559
  %v631 = vunpack.c.l.b16 %v560
  %v632 = vunpack.c.l.b16 %v561
  %v633 = vunpack.c.l.b16 %v562
  %v634 = vunpack.c.l.b16 %v563
  %v635 = vunpack.c.l.b16 %v564
  %v636 = vunpack.c.l.b16 %v565
  %v637 = vunpack.c.l.b16 %v566
  %v638 = vunpack.c.l.b16 %v567
  %v639 = vunpack.c.l.b16 %v568
  %v640 = vunpack.c.l.b16 %v569
  %v641 = vpack.c.b16 %v610, %v609
  %v642 = vpack.c.b16 %v612, %v611
  %v643 = vpack.c.b16 %v614, %v613
  %v644 = vpack.c.b16 %v616, %v615
  %v645 = vpack.c.b16 %v618, %v617
  %v646 = vpack.c.b16 %v620, %v619
  %v647 = vpack.c.b16 %v622, %v621
  %v648 = vpack.c.b16 %v624, %v623
  %v649 = vpack.c.b16 %v626, %v625
  %v650 = vpack.c.b16 %v628, %v627
  %v651 = vpack.c.b16 %v630, %v629
  %v652 = vpack.c.b16 %v632, %v631
  %v653 = vpack.c.b16 %v634, %v633
  %v654 = vpack.c.b16 %v636, %v635
  %v655 = vpack.c.b16 %v638, %v637
  %v656 = vpack.c.b16 %v640, %v639
  %673 = vmatprep.subr.bf16.mxu0 0
  %674 = vmatpush1.bf16.msra.mxu0 %v641
  %675 = vmatprep.subr.bf16.mxu0 0
  %676 = vmatpush1.bf16.msra.mxu0 %v642
  %677 = vmatprep.subr.bf16.mxu0 0
  %678 = vmatpush1.bf16.msra.mxu0 %v643
  %679 = vmatprep.subr.bf16.mxu0 0
  %680 = vmatpush1.bf16.msra.mxu0 %v644
  %681 = vmatprep.subr.bf16.mxu0 0
  %682 = vmatpush1.bf16.msra.mxu0 %v645
  %683 = vmatprep.subr.bf16.mxu0 0
  %684 = vmatpush1.bf16.msra.mxu0 %v646
  %685 = vmatprep.subr.bf16.mxu0 0
  %686 = vmatpush1.bf16.msra.mxu0 %v647
  %687 = vmatprep.subr.bf16.mxu0 0
  %688 = vmatpush1.bf16.msra.mxu0 %v648
  %689 = vmatprep.subr.bf16.mxu0 0
  %690 = vmatpush1.bf16.msra.mxu0 %v649
  %691 = vmatprep.subr.bf16.mxu0 0
  %692 = vmatpush1.bf16.msra.mxu0 %v650
  %693 = vmatprep.subr.bf16.mxu0 0
  %694 = vmatpush1.bf16.msra.mxu0 %v651
  %695 = vmatprep.subr.bf16.mxu0 0
  %696 = vmatpush1.bf16.msra.mxu0 %v652
  %697 = vmatprep.subr.bf16.mxu0 0
  %698 = vmatpush1.bf16.msra.mxu0 %v653
  %699 = vmatprep.subr.bf16.mxu0 0
  %700 = vmatpush1.bf16.msra.mxu0 %v654
  %701 = vmatprep.subr.bf16.mxu0 0
  %702 = vmatpush1.bf16.msra.mxu0 %v655
  %703 = vmatprep.subr.bf16.mxu0 0
  %704 = vmatpush1.bf16.msra.mxu0 %v656
  %705 = vmatprep.mubr.bf16.mxu0 %v537
  %706 = vmatmul.mubr.bf16.gmra.mrb[0].mxu0 %v536
  %v707 = vpop.f32.mrb[0].mxu0
  %v708 = vadd.f32 %v575, %v707
  %v709 = vpop.f32.mrb[0].mxu0
  %v710 = vpop.f32.mrb[0].mxu0
  %v711 = vpop.f32.mrb[0].mxu0
  %712 = vdwg.mxu0
  %v713 = vmax.f32 %v708, 0.0
  %v714 = vld [vmem:[%s5] sm:$0x1]
  %v715 = vunpack.c.l.bf16 %v714
  %v716 = vlaneseq
  %v717 = vshrl.u32 %v716, 7
  %v718 = vsub.s32 0, %v717
  %v719 = vrot.slane %v715, %v718
  %v720 = vmul.f32 %v713, %v719
  %vm721 = vcmask 1041408
  %v722 = vsel %vm721, %v720, 0.0
  %723 = vadd.xlane.f32.xlu0 %v722
  %v724 = vpop.xlane.xlu0 %723
  %v725 = vld [vmem:[#allocation2] sm:$0x1]
  %v727 = vlaneseq
  %v728 = vshrl.u32 %v727, 7
  %v729 = vsub.s32 0, %v728
  %v730 = vrot.slane %v725, %v729
  %v732 = vadd.f32 %v724, %v730
  %vm733 = vcmask 1024
  %734 = vst.msk [vmem:[%s7] sm:$0x3] %vm733, %v732
  // Predicated region
  $region30: #{lifespan_predictor_forward.5} parent=0 // pred_check
    _
  $region31: #{lifespan_predictor_forward.5} parent=0 // pred_check_branch
    %736 = sbr.rel (0) target = $region33
  $region32: #{lifespan_predictor_forward.5} parent=0 // pred_region
    _
  $region33: #{lifespan_predictor_forward.5} parent=0 // pred_fallthru
    _
  // Predicated region
  $region34: #{lifespan_predictor_forward.5} parent=0 // pred_check
    _
  $region35: #{lifespan_predictor_forward.5} parent=0 // pred_check_branch
    %738 = sbr.rel (0) target = $region37
  $region36: #{lifespan_predictor_forward.5} parent=0 // pred_region
    _
  $region37: #{lifespan_predictor_forward.5} parent=0 // pred_fallthru
    _

// kernel: lifespan_predictor_forward.3
$region0: #{lifespan_predictor_forward.3}
  #allocation0 [shape = 'u32[]', space=smem, size = 0x4, offset = 0x4, fixed_abs, tag = 'smem constant byte address 0x4 - core index']
  #allocation1 [shape = 'u32[144,128]{1,0:T(1,128)}', space=vmem, size = 0x12000, scoped, tag = 'internal scratch']
  %s0 = inlined_call_operand.vmem [shape: f32[2,4,9,9], index: 0, kind: input, shape index: {}]
  %s1 = inlined_call_operand.vmem [shape: f32[32,9], index: 1, kind: input, shape index: {}]
  %s2 = inlined_call_operand.hbm [shape: f32[32], index: 2, kind: input, shape index: {}]
  %s3 = inlined_call_operand.vmem [shape: bf16[2,32,8,8], index: 3, kind: output, shape index: {}]
  %s4 = sld [smem:[#allocation0]]
  $region53: #{lifespan_predictor_forward.3} parent=0
    _
  %s6 = ssub.s32 1, %s4
  %s7 = scalar_select 0, %s6, %s4
  $region1: #{lifespan_predictor_forward.3} parent=0
    #allocation2 [shape = 'u8[16384]{0}', space=smem, size = 0x4000, scoped, tag = 'input window, operand 1, single buffered']
    #allocation3 [shape = 's32[2]{0}', space=sflag, size = 0x8, scoped, tag = 'scoped memory for lifespan_predictor_forward.3']
    #allocation4 [shape = 's32[2]{0}', space=sflag, size = 0x8, scoped, tag = 'scoped memory for lifespan_predictor_forward.3']
    #allocation5 [shape = 'u8[512]{0}', space=smem, size = 0x200, scoped, tag = 'input window, operand 2, single buffered']
    %8 = vsyncpa [#allocation4], 0
    %9 = vsyncpa [#allocation3], 0
    loop: start=0, step=1, limit=10
    $region2: #{lifespan_predictor_forward.3} parent=1 // loop_pre_header
      _
    $region3: #{lifespan_predictor_forward.3} parent=1 // loop_header
      %s11 = sphi 0, %s15
      %p12 = scmp.ge.s32.totalorder %s11, 10
      %s18 = sphi 0, %s30
      %s19 = sphi 0, %s26
      %s20 = sphi 0, %s18
      %s21 = sphi 0, %s19
      %s22 = sphi 0, %s20
      %s23 = sphi 0, %s21
      %s33 = sphi 0, %s35
      %s36 = sphi 0, %s33
      %s37 = sphi 0, %s36
      %s53 = sphi 0, %s37
      %s57 = sphi 0, %s57
      %s59 = sphi 0, %s57
      %s60 = sphi 0, %s59
      %s74 = sphi 0, %s60
      %s78 = sphi 0, %s78
      %s80 = sphi 0, %s78
      %s81 = sphi 0, %s80
      %s95 = sphi 0, %s81
      %s103 = sphi 0, %s105
      %s106 = sphi 0, %s103
      %s107 = sphi 0, %s106
      %s123 = sphi 0, %s107
    $region4: #{lifespan_predictor_forward.3} parent=1 // loop_header_branch
      %14 = sbr.rel (%p12) target = $region8
    $region5: #{lifespan_predictor_forward.3} parent=1 // loop_body
      %s16 = ssub.s32 %s11, 1
      %s17 = ssub.s32 %s11, 2
      %s24 = sadd.s32 1, %s19
      %p25 = scmp.ge.s32.totalorder %s24, 4
      %s26 = scalar_select %p25, 0, %s24
      %s27 = sadd.s32 1, %s18
      %s28 = scalar_select %p25, %s27, %s18
      %p29 = scmp.ge.s32.totalorder %s28, 2
      %s30 = scalar_select %p29, 0, %s28
      %s31 = ssub.s32 %s18, %s30
      %p32 = scmp.eq.s32.totalorder %s31, 0
      %s34 = sadd.s32 %s33, 1
      %s35 = scalar_select %p32, %s33, %s34
      %p38 = pneg %p32
      %p39 = scmp.eq.s32.totalorder %s11, 7
      %p40 = por %p38, %p39
      %p41 = scmp.ne.s32.totalorder %s33, %s36
      %p42 = scmp.eq.s32.totalorder %s11, 0
      %p43 = por %p41, %p42
      %p44 = scmp.ne.s32.totalorder %s33, %s36
      %p45 = scmp.eq.s32.totalorder %s16, 7
      %p46 = por %p44, %p45
      %p47 = scmp.ne.s32.totalorder %s36, %s37
      %p48 = scmp.eq.s32.totalorder %s16, 0
      %p49 = por %p47, %p48
      %p50 = scmp.ne.s32.totalorder %s36, %s37
      %p51 = scmp.eq.s32.totalorder %s17, 7
      %p52 = por %p50, %p51
      %p54 = scmp.ne.s32.totalorder %s37, %s53
      %p55 = scmp.eq.s32.totalorder %s17, 0
      %p56 = por %p54, %p55
      %s58 = sadd.s32 %s57, 1
      %p61 = scmp.eq.s32.totalorder %s11, 7
      %p62 = scmp.ne.s32.totalorder %s57, %s59
      %p63 = scmp.eq.s32.totalorder %s11, 0
      %p64 = por %p62, %p63
      %p65 = scmp.ne.s32.totalorder %s57, %s59
      %p66 = scmp.eq.s32.totalorder %s16, 7
      %p67 = por %p65, %p66
      %p68 = scmp.ne.s32.totalorder %s59, %s60
      %p69 = scmp.eq.s32.totalorder %s16, 0
      %p70 = por %p68, %p69
      %p71 = scmp.ne.s32.totalorder %s59, %s60
      %p72 = scmp.eq.s32.totalorder %s17, 7
      %p73 = por %p71, %p72
      %p75 = scmp.ne.s32.totalorder %s60, %s74
      %p76 = scmp.eq.s32.totalorder %s17, 0
      %p77 = por %p75, %p76
      %s79 = sadd.s32 %s78, 1
      %p82 = scmp.eq.s32.totalorder %s11, 7
      %p83 = scmp.ne.s32.totalorder %s78, %s80
      %p84 = scmp.eq.s32.totalorder %s11, 0
      %p85 = por %p83, %p84
      %p86 = scmp.ne.s32.totalorder %s78, %s80
      %p87 = scmp.eq.s32.totalorder %s16, 7
      %p88 = por %p86, %p87
      %p89 = scmp.ne.s32.totalorder %s80, %s81
      %p90 = scmp.eq.s32.totalorder %s16, 0
      %p91 = por %p89, %p90
      %p92 = scmp.ne.s32.totalorder %s80, %s81
      %p93 = scmp.eq.s32.totalorder %s17, 7
      %p94 = por %p92, %p93
      %p96 = scmp.ne.s32.totalorder %s81, %s95
      %p97 = scmp.eq.s32.totalorder %s17, 0
      %p98 = por %p96, %p97
      %s99 = ssub.s32 %s18, %s30
      %s100 = ssub.s32 %s19, %s26
      %s101 = sor.u32 %s99, %s100
      %p102 = scmp.eq.s32.totalorder %s101, 0
      %s104 = sadd.s32 %s103, 1
      %s105 = scalar_select %p102, %s103, %s104
      %p108 = pneg %p102
      %p109 = scmp.eq.s32.totalorder %s11, 7
      %p110 = por %p108, %p109
      %p111 = scmp.ne.s32.totalorder %s103, %s106
      %p112 = scmp.eq.s32.totalorder %s11, 0
      %p113 = por %p111, %p112
      %p114 = scmp.ne.s32.totalorder %s103, %s106
      %p115 = scmp.eq.s32.totalorder %s16, 7
      %p116 = por %p114, %p115
      %p117 = scmp.ne.s32.totalorder %s106, %s107
      %p118 = scmp.eq.s32.totalorder %s16, 0
      %p119 = por %p117, %p118
      %p120 = scmp.ne.s32.totalorder %s106, %s107
      %p121 = scmp.eq.s32.totalorder %s17, 7
      %p122 = por %p120, %p121
      %p124 = scmp.ne.s32.totalorder %s107, %s123
      %p125 = scmp.eq.s32.totalorder %s17, 0
      %p126 = por %p124, %p125
      %p127 = scmp.le.s32.totalorder 1, %s11
      %p128 = scmp.lt.s32.totalorder %s11, 9
      %p129 = pnand %p127, %p128
      %p130 = pneg %p129
      // Predicated region
      $region9: #{lifespan_predictor_forward.3} parent=5 // pred_check
        _
      $region10: #{lifespan_predictor_forward.3} parent=5 // pred_check_branch
        %132 = sbr.rel (%p129) target = $region12
      $region11: #{lifespan_predictor_forward.3} parent=5 // pred_region
        %s133 = ssub.s32 %s11, 1
        // Predicated region
        $region13: #{lifespan_predictor_forward.3} parent=11 // pred_check
          %p134 = pneg %p70
        $region14: #{lifespan_predictor_forward.3} parent=11 // pred_check_branch
          %136 = sbr.rel (%p134) target = $region16
        $region15: #{lifespan_predictor_forward.3} parent=11 // pred_region
          %s138 = ssub.s32 512, 512
          %139 = vsyncadd [#allocation4], %s138
          %s140 = sshll.u32 %s1, 4
          %s141 = int_to_ptr.vmem [resolvable:$true] %s140
          %146 = dma.vmem_to_smem %s141, 512, [#allocation2], [#allocation4], 128, 128, 8
        $region16: #{lifespan_predictor_forward.3} parent=11 // pred_fallthru
          _
        // Predicated region
        $region17: #{lifespan_predictor_forward.3} parent=11 // pred_check
          %p147 = pneg %p91
        $region18: #{lifespan_predictor_forward.3} parent=11 // pred_check_branch
          %149 = sbr.rel (%p147) target = $region20
        $region19: #{lifespan_predictor_forward.3} parent=11 // pred_region
          %s151 = ssub.s32 16, 16
          %152 = vsyncadd [#allocation3], %s151
          %155 = dma.hbm_to_smem %s2, 16, [#allocation5], [#allocation3]
        $region20: #{lifespan_predictor_forward.3} parent=11 // pred_fallthru
          _
      $region12: #{lifespan_predictor_forward.3} parent=5 // pred_fallthru
        _
      %p156 = scmp.lt.s32.totalorder %s11, 8
      // Predicated region
      $region21: #{lifespan_predictor_forward.3} parent=5 // pred_check
        %p157 = pneg %p156
      $region22: #{lifespan_predictor_forward.3} parent=5 // pred_check_branch
        %159 = sbr.rel (%p157) target = $region24
      $region23: #{lifespan_predictor_forward.3} parent=5 // pred_region
        // Predicated region
        $region25: #{lifespan_predictor_forward.3} parent=23 // pred_check
          %p160 = pneg %p43
        $region26: #{lifespan_predictor_forward.3} parent=23 // pred_check_branch
          %162 = sbr.rel (%p160) target = $region28
        $region27: #{lifespan_predictor_forward.3} parent=23 // pred_region
          %p163 = scmp.lt.s32.totalorder %s18, 1
          %s164 = scalar_select %p163, %s18, 1
          %s165 = smul.addr %s164, 8
          %s166 = smul.addr %s165, 8
          %s167 = scalar_lea.vmem %s0, %s166
        $region28: #{lifespan_predictor_forward.3} parent=23 // pred_fallthru
          _
      $region24: #{lifespan_predictor_forward.3} parent=5 // pred_fallthru
        _
      %p168 = scmp.le.s32.totalorder 1, %s11
      %p169 = scmp.lt.s32.totalorder %s11, 9
      %p170 = pnand %p168, %p169
      %p171 = pneg %p170
      // Predicated region
      $region29: #{lifespan_predictor_forward.3} parent=5 // pred_check
        _
      $region30: #{lifespan_predictor_forward.3} parent=5 // pred_check_branch
        %173 = sbr.rel (%p170) target = $region32
      $region31: #{lifespan_predictor_forward.3} parent=5 // pred_region
        %s174 = ssub.s32 %s11, 1
        // Predicated region
        $region33: #{lifespan_predictor_forward.3} parent=31 // pred_check
          %p175 = pneg %p70
        $region34: #{lifespan_predictor_forward.3} parent=31 // pred_check_branch
          %177 = sbr.rel (%p175) target = $region36
        $region35: #{lifespan_predictor_forward.3} parent=31 // pred_region
          %178 = dma.done [#allocation4], 512
        $region36: #{lifespan_predictor_forward.3} parent=31 // pred_fallthru
          _
        // Predicated region
        $region37: #{lifespan_predictor_forward.3} parent=31 // pred_check
          %p179 = pneg %p91
        $region38: #{lifespan_predictor_forward.3} parent=31 // pred_check_branch
          %181 = sbr.rel (%p179) target = $region40
        $region39: #{lifespan_predictor_forward.3} parent=31 // pred_region
          %182 = dma.done [#allocation3], 16
        $region40: #{lifespan_predictor_forward.3} parent=31 // pred_fallthru
          _
        %183 = sfence
        %p184 = scmp.lt.s32.totalorder %s20, 1
        %s185 = scalar_select %p184, %s20, 1
        %s186 = smul.addr %s185, 8
        %s187 = smul.addr %s186, 8
        %s188 = scalar_lea.vmem %s0, %s187
        %p189 = pneg %p49
        %p190 = pneg %p46
        %p191 = pneg %p70
        %p192 = pneg %p67
        %p193 = pneg %p91
        %p194 = pneg %p88
        %p195 = pneg %p119
        %p196 = pneg %p116
        %s197 = smul.u32 8, %s21
        %p198 = scmp.lt.s32.totalorder %s20, 1
        %s199 = scalar_select %p198, %s20, 1
        %p200 = scmp.lt.s32.totalorder %s197, 31
        %s201 = scalar_select %p200, %s197, 31
        %s202 = smul.addr %s199, 32
        %s203 = sadd.s32 %s201, %s202
        %s204 = smul.addr %s203, 4
        %s205 = scalar_lea.vmem %s3, %s204
        %p206 = scmp.lt.s32.totalorder %s20, 1
        %s207 = scalar_select %p206, %s20, 1
        %s208 = smul.addr %s207, 8
        %s209 = smul.addr %s208, 8
        %s210 = scalar_lea.vmem %s0, %s209
        %s211 = smul.u32 8, %s21
        %p212 = scmp.lt.s32.totalorder %s20, 1
        %s213 = scalar_select %p212, %s20, 1
        %p214 = scmp.lt.s32.totalorder %s211, 31
        %s215 = scalar_select %p214, %s211, 31
        %s216 = smul.addr %s213, 32
        %s217 = sadd.s32 %s215, %s216
        %s218 = smul.addr %s217, 4
        %s219 = scalar_lea.vmem %s3, %s218
        %s220 = smul.u32 8, %s21
        %v221 = vld [vmem:[%s210] sm:$0xff]
        %v222 = vpack.c.bf16 %v221, %v221
        %s223 = scalar_lea.vmem %s210, 16
        %v224 = vld [vmem:[%s223] sm:$0xff]
        %v225 = vpack.c.bf16 %v224, %v224
        %s226 = scalar_lea.vmem %s210, 32
        %v227 = vld [vmem:[%s226] sm:$0xff]
        %v228 = vpack.c.bf16 %v227, %v227
        %s229 = scalar_lea.vmem %s210, 48
        %v230 = vld [vmem:[%s229] sm:$0xff]
        %v231 = vpack.c.bf16 %v230, %v230
        %v232 = vld [vmem:[%s210 + $0x1] sm:$0xff]
        %v233 = vpack.c.bf16 %v232, %v232
        %v234 = vld [vmem:[%s223 + $0x1] sm:$0xff]
        %v235 = vpack.c.bf16 %v234, %v234
        %v236 = vld [vmem:[%s226 + $0x1] sm:$0xff]
        %v237 = vpack.c.bf16 %v236, %v236
        %v238 = vld [vmem:[%s229 + $0x1] sm:$0xff]
        %v239 = vpack.c.bf16 %v238, %v238
        %s240 = smul.u32 %s21, 8
        %s241 = smul.u32 %s240, 128
        %s242 = sld [smem:[#allocation2 + %s241]]
        %p244 = scmp.ne.f32.partialorder %s242, %s242
        %s245 = sshrl.u32 %s242, 16
        %s246 = sand.u32 %s245, 1
        %s247 = sadd.s32 32767, %s246
        %s248 = sadd.s32 %s242, %s247
        %s249 = sand.u32 %s248, 4294901760
        %s250 = scalar_select %p244, 2143289344, %s249
        %s252 = sshrl.u32 %s250, 16
        %s253 = sadd.s32 %s241, 1
        %s254 = sld [smem:[#allocation2 + %s253]]
        %p256 = scmp.ne.f32.partialorder %s254, %s254
        %s257 = sshrl.u32 %s254, 16
        %s258 = sand.u32 %s257, 1
        %s259 = sadd.s32 32767, %s258
        %s260 = sadd.s32 %s254, %s259
        %s261 = sand.u32 %s260, 4294901760
        %s262 = scalar_select %p256, 2143289344, %s261
        %s264 = sshrl.u32 %s262, 16
        %s265 = sadd.s32 %s241, 2
        %s266 = sld [smem:[#allocation2 + %s265]]
        %p268 = scmp.ne.f32.partialorder %s266, %s266
        %s269 = sshrl.u32 %s266, 16
        %s270 = sand.u32 %s269, 1
        %s271 = sadd.s32 32767, %s270
        %s272 = sadd.s32 %s266, %s271
        %s273 = sand.u32 %s272, 4294901760
        %s274 = scalar_select %p268, 2143289344, %s273
        %s276 = sshrl.u32 %s274, 16
        %s277 = sadd.s32 %s241, 3
        %s278 = sld [smem:[#allocation2 + %s277]]
        %p280 = scmp.ne.f32.partialorder %s278, %s278
        %s281 = sshrl.u32 %s278, 16
        %s282 = sand.u32 %s281, 1
        %s283 = sadd.s32 32767, %s282
        %s284 = sadd.s32 %s278, %s283
        %s285 = sand.u32 %s284, 4294901760
        %s286 = scalar_select %p280, 2143289344, %s285
        %s288 = sshrl.u32 %s286, 16
        %s289 = sadd.s32 %s241, 4
        %s290 = sld [smem:[#allocation2 + %s289]]
        %p292 = scmp.ne.f32.partialorder %s290, %s290
        %s293 = sshrl.u32 %s290, 16
        %s294 = sand.u32 %s293, 1
        %s295 = sadd.s32 32767, %s294
        %s296 = sadd.s32 %s290, %s295
        %s297 = sand.u32 %s296, 4294901760
        %s298 = scalar_select %p292, 2143289344, %s297
        %s300 = sshrl.u32 %s298, 16
        %s301 = sadd.s32 %s241, 5
        %s302 = sld [smem:[#allocation2 + %s301]]
        %p304 = scmp.ne.f32.partialorder %s302, %s302
        %s305 = sshrl.u32 %s302, 16
        %s306 = sand.u32 %s305, 1
        %s307 = sadd.s32 32767, %s306
        %s308 = sadd.s32 %s302, %s307
        %s309 = sand.u32 %s308, 4294901760
        %s310 = scalar_select %p304, 2143289344, %s309
        %s312 = sshrl.u32 %s310, 16
        %s313 = sadd.s32 %s241, 6
        %s314 = sld [smem:[#allocation2 + %s313]]
        %p316 = scmp.ne.f32.partialorder %s314, %s314
        %s317 = sshrl.u32 %s314, 16
        %s318 = sand.u32 %s317, 1
        %s319 = sadd.s32 32767, %s318
        %s320 = sadd.s32 %s314, %s319
        %s321 = sand.u32 %s320, 4294901760
        %s322 = scalar_select %p316, 2143289344, %s321
        %s324 = sshrl.u32 %s322, 16
        %s325 = sadd.s32 %s241, 7
        %s326 = sld [smem:[#allocation2 + %s325]]
        %p328 = scmp.ne.f32.partialorder %s326, %s326
        %s329 = sshrl.u32 %s326, 16
        %s330 = sand.u32 %s329, 1
        %s331 = sadd.s32 32767, %s330
        %s332 = sadd.s32 %s326, %s331
        %s333 = sand.u32 %s332, 4294901760
        %s334 = scalar_select %p328, 2143289344, %s333
        %s336 = sshrl.u32 %s334, 16
        %s337 = sadd.s32 %s241, 8
        %s338 = sld [smem:[#allocation2 + %s337]]
        %p340 = scmp.ne.f32.partialorder %s338, %s338
        %s341 = sshrl.u32 %s338, 16
        %s342 = sand.u32 %s341, 1
        %s343 = sadd.s32 32767, %s342
        %s344 = sadd.s32 %s338, %s343
        %s345 = sand.u32 %s344, 4294901760
        %s346 = scalar_select %p340, 2143289344, %s345
        %s348 = sshrl.u32 %s346, 16
        %s349 = sshll.u32 %s252, 16
        %s350 = sor.u32 %s252, %s349
        %v351 = vstv %s350
        %v353 = vmul.bf16 %v351, %v222
        %s354 = sshll.u32 %s264, 16
        %s355 = sor.u32 %s264, %s354
        %v356 = vstv %s355
        %v358 = vmul.bf16 %v356, %v225
        %v359 = vadd.bf16 %v353, %v358
        %s360 = sshll.u32 %s276, 16
        %s361 = sor.u32 %s276, %s360
        %v362 = vstv %s361
        %v364 = vmul.bf16 %v362, %v222
        %366 = vrot.lane.b32.xlu0 %v364, 127
        %v367 = vpop.permute.xlu0 %366
        %v369 = vadd.bf16 %v359, %v367
        %s370 = sshll.u32 %s288, 16
        %s371 = sor.u32 %s288, %s370
        %v372 = vstv %s371
        %v374 = vmul.bf16 %v372, %v228
        %v375 = vadd.bf16 %v369, %v374
        %s376 = sshll.u32 %s300, 16
        %s377 = sor.u32 %s300, %s376
        %v378 = vstv %s377
        %v380 = vmul.bf16 %v378, %v231
        %v381 = vadd.bf16 %v375, %v380
        %s382 = sshll.u32 %s312, 16
        %s383 = sor.u32 %s312, %s382
        %v384 = vstv %s383
        %v386 = vmul.bf16 %v384, %v228
        %388 = vrot.lane.b32.xlu0 %v386, 127
        %v389 = vpop.permute.xlu0 %388
        %v391 = vadd.bf16 %v381, %v389
        %s392 = sshll.u32 %s324, 16
        %s393 = sor.u32 %s324, %s392
        %v394 = vstv %s393
        %v396 = vmul.bf16 %v394, %v233
        %v397 = vadd.bf16 %v391, %v396
        %s398 = sshll.u32 %s336, 16
        %s399 = sor.u32 %s336, %s398
        %v400 = vstv %s399
        %v402 = vmul.bf16 %v400, %v235
        %v403 = vadd.bf16 %v397, %v402
        %s404 = sshll.u32 %s348, 16
        %s405 = sor.u32 %s348, %s404
        %v406 = vstv %s405
        %v408 = vmul.bf16 %v406, %v233
        %410 = vrot.lane.b32.xlu0 %v408, 127
        %v411 = vpop.permute.xlu0 %410
        %v413 = vadd.bf16 %v403, %v411
        %v414 = vmul.bf16 %v351, %v225
        %v415 = vmul.bf16 %v356, %v222
        %417 = vrot.lane.b32.xlu0 %v415, 127
        %v418 = vpop.permute.xlu0 %417
        %v420 = vadd.bf16 %v414, %v418
        %v421 = vmul.bf16 %v362, %v225
        %423 = vrot.lane.b32.xlu0 %v421, 127
        %v424 = vpop.permute.xlu0 %423
        %v426 = vadd.bf16 %v420, %v424
        %v427 = vmul.bf16 %v372, %v231
        %v428 = vadd.bf16 %v426, %v427
        %v429 = vmul.bf16 %v378, %v228
        %431 = vrot.lane.b32.xlu0 %v429, 127
        %v432 = vpop.permute.xlu0 %431
        %v434 = vadd.bf16 %v428, %v432
        %v435 = vmul.bf16 %v384, %v231
        %437 = vrot.lane.b32.xlu0 %v435, 127
        %v438 = vpop.permute.xlu0 %437
        %v440 = vadd.bf16 %v434, %v438
        %v441 = vmul.bf16 %v394, %v235
        %v442 = vadd.bf16 %v440, %v441
        %v443 = vmul.bf16 %v400, %v233
        %445 = vrot.lane.b32.xlu0 %v443, 127
        %v446 = vpop.permute.xlu0 %445
        %v448 = vadd.bf16 %v442, %v446
        %v449 = vmul.bf16 %v406, %v235
        %451 = vrot.lane.b32.xlu0 %v449, 127
        %v452 = vpop.permute.xlu0 %451
        %v454 = vadd.bf16 %v448, %v452
        %v455 = vmax.bf16 %v413, %v454
        %v456 = vmul.bf16 %v351, %v228
        %v457 = vmul.bf16 %v356, %v231
        %v458 = vadd.bf16 %v456, %v457
        %v459 = vmul.bf16 %v362, %v228
        %461 = vrot.lane.b32.xlu0 %v459, 127
        %v462 = vpop.permute.xlu0 %461
        %v464 = vadd.bf16 %v458, %v462
        %v465 = vmul.bf16 %v372, %v233
        %v466 = vadd.bf16 %v464, %v465
        %v467 = vmul.bf16 %v378, %v235
        %v468 = vadd.bf16 %v466, %v467
        %v469 = vmul.bf16 %v384, %v233
        %471 = vrot.lane.b32.xlu0 %v469, 127
        %v472 = vpop.permute.xlu0 %471
        %v474 = vadd.bf16 %v468, %v472
        %v475 = vmul.bf16 %v394, %v237
        %v476 = vadd.bf16 %v474, %v475
        %v477 = vmul.bf16 %v400, %v239
        %v478 = vadd.bf16 %v476, %v477
        %v479 = vmul.bf16 %v406, %v237
        %481 = vrot.lane.b32.xlu0 %v479, 127
        %v482 = vpop.permute.xlu0 %481
        %v484 = vadd.bf16 %v478, %v482
        %v485 = vmax.bf16 %v455, %v484
        %v486 = vmul.bf16 %v351, %v231
        %v487 = vmul.bf16 %v356, %v228
        %489 = vrot.lane.b32.xlu0 %v487, 127
        %v490 = vpop.permute.xlu0 %489
        %v492 = vadd.bf16 %v486, %v490
        %v493 = vmul.bf16 %v362, %v231
        %495 = vrot.lane.b32.xlu0 %v493, 127
        %v496 = vpop.permute.xlu0 %495
        %v498 = vadd.bf16 %v492, %v496
        %v499 = vmul.bf16 %v372, %v235
        %v500 = vadd.bf16 %v498, %v499
        %v501 = vmul.bf16 %v378, %v233
        %503 = vrot.lane.b32.xlu0 %v501, 127
        %v504 = vpop.permute.xlu0 %503
        %v506 = vadd.bf16 %v500, %v504
        %v507 = vmul.bf16 %v384, %v235
        %509 = vrot.lane.b32.xlu0 %v507, 127
        %v510 = vpop.permute.xlu0 %509
        %v512 = vadd.bf16 %v506, %v510
        %v513 = vmul.bf16 %v394, %v239
        %v514 = vadd.bf16 %v512, %v513
        %v515 = vmul.bf16 %v400, %v237
        %517 = vrot.lane.b32.xlu0 %v515, 127
        %v518 = vpop.permute.xlu0 %517
        %v520 = vadd.bf16 %v514, %v518
        %v521 = vmul.bf16 %v406, %v239
        %523 = vrot.lane.b32.xlu0 %v521, 127
        %v524 = vpop.permute.xlu0 %523
        %v526 = vadd.bf16 %v520, %v524
        %v527 = vmax.bf16 %v485, %v526
        %v528 = vunpack.c.l.bf16 %v527
        %s529 = sld [smem:[#allocation5 + %s240]]
        %v530 = vstv %s529
        %v531 = vadd.f32 %v528, %v530
        %v532 = vmax.f32 %v531, 0.0
        %v533 = vpack.c.bf16 %v532, %v532
        %vm534 = vcmask 60416
        %535 = vst.msk [vmem:[%s219] sm:$0xf] %vm534, %v533
        %s536 = sadd.s32 %s240, 1
        %s537 = smul.u32 %s536, 128
        %s538 = sld [smem:[#allocation2 + %s537]]
        %p540 = scmp.ne.f32.partialorder %s538, %s538
        %s541 = sshrl.u32 %s538, 16
        %s542 = sand.u32 %s541, 1
        %s543 = sadd.s32 32767, %s542
        %s544 = sadd.s32 %s538, %s543
        %s545 = sand.u32 %s544, 4294901760
        %s546 = scalar_select %p540, 2143289344, %s545
        %s548 = sshrl.u32 %s546, 16
        %s549 = sadd.s32 %s537, 1
        %s550 = sld [smem:[#allocation2 + %s549]]
        %p552 = scmp.ne.f32.partialorder %s550, %s550
        %s553 = sshrl.u32 %s550, 16
        %s554 = sand.u32 %s553, 1
        %s555 = sadd.s32 32767, %s554
        %s556 = sadd.s32 %s550, %s555
        %s557 = sand.u32 %s556, 4294901760
        %s558 = scalar_select %p552, 2143289344, %s557
        %s560 = sshrl.u32 %s558, 16
        %s561 = sadd.s32 %s537, 2
        %s562 = sld [smem:[#allocation2 + %s561]]
        %p564 = scmp.ne.f32.partialorder %s562, %s562
        %s565 = sshrl.u32 %s562, 16
        %s566 = sand.u32 %s565, 1
        %s567 = sadd.s32 32767, %s566
        %s568 = sadd.s32 %s562, %s567
        %s569 = sand.u32 %s568, 4294901760
        %s570 = scalar_select %p564, 2143289344, %s569
        %s572 = sshrl.u32 %s570, 16
        %s573 = sadd.s32 %s537, 3
        %s574 = sld [smem:[#allocation2 + %s573]]
        %p576 = scmp.ne.f32.partialorder %s574, %s574
        %s577 = sshrl.u32 %s574, 16
        %s578 = sand.u32 %s577, 1
        %s579 = sadd.s32 32767, %s578
        %s580 = sadd.s32 %s574, %s579
        %s581 = sand.u32 %s580, 4294901760
        %s582 = scalar_select %p576, 2143289344, %s581
        %s584 = sshrl.u32 %s582, 16
        %s585 = sadd.s32 %s537, 4
        %s586 = sld [smem:[#allocation2 + %s585]]
        %p588 = scmp.ne.f32.partialorder %s586, %s586
        %s589 = sshrl.u32 %s586, 16
        %s590 = sand.u32 %s589, 1
        %s591 = sadd.s32 32767, %s590
        %s592 = sadd.s32 %s586, %s591
        %s593 = sand.u32 %s592, 4294901760
        %s594 = scalar_select %p588, 2143289344, %s593
        %s596 = sshrl.u32 %s594, 16
        %s597 = sadd.s32 %s537, 5
        %s598 = sld [smem:[#allocation2 + %s597]]
        %p600 = scmp.ne.f32.partialorder %s598, %s598
        %s601 = sshrl.u32 %s598, 16
        %s602 = sand.u32 %s601, 1
        %s603 = sadd.s32 32767, %s602
        %s604 = sadd.s32 %s598, %s603
        %s605 = sand.u32 %s604, 4294901760
        %s606 = scalar_select %p600, 2143289344, %s605
        %s608 = sshrl.u32 %s606, 16
        %s609 = sadd.s32 %s537, 6
        %s610 = sld [smem:[#allocation2 + %s609]]
        %p612 = scmp.ne.f32.partialorder %s610, %s610
        %s613 = sshrl.u32 %s610, 16
        %s614 = sand.u32 %s613, 1
        %s615 = sadd.s32 32767, %s614
        %s616 = sadd.s32 %s610, %s615
        %s617 = sand.u32 %s616, 4294901760
        %s618 = scalar_select %p612, 2143289344, %s617
        %s620 = sshrl.u32 %s618, 16
        %s621 = sadd.s32 %s537, 7
        %s622 = sld [smem:[#allocation2 + %s621]]
        %p624 = scmp.ne.f32.partialorder %s622, %s622
        %s625 = sshrl.u32 %s622, 16
        %s626 = sand.u32 %s625, 1
        %s627 = sadd.s32 32767, %s626
        %s628 = sadd.s32 %s622, %s627
        %s629 = sand.u32 %s628, 4294901760
        %s630 = scalar_select %p624, 2143289344, %s629
        %s632 = sshrl.u32 %s630, 16
        %s633 = sadd.s32 %s537, 8
        %s634 = sld [smem:[#allocation2 + %s633]]
        %p636 = scmp.ne.f32.partialorder %s634, %s634
        %s637 = sshrl.u32 %s634, 16
        %s638 = sand.u32 %s637, 1
        %s639 = sadd.s32 32767, %s638
        %s640 = sadd.s32 %s634, %s639
        %s641 = sand.u32 %s640, 4294901760
        %s642 = scalar_select %p636, 2143289344, %s641
        %s644 = sshrl.u32 %s642, 16
        %s645 = sshll.u32 %s548, 16
        %s646 = sor.u32 %s548, %s645
        %v647 = vstv %s646
        %v649 = vmul.bf16 %v647, %v222
        %s650 = sshll.u32 %s560, 16
        %s651 = sor.u32 %s560, %s650
        %v652 = vstv %s651
        %v654 = vmul.bf16 %v652, %v225
        %v655 = vadd.bf16 %v649, %v654
        %s656 = sshll.u32 %s572, 16
        %s657 = sor.u32 %s572, %s656
        %v658 = vstv %s657
        %v660 = vmul.bf16 %v658, %v222
        %662 = vrot.lane.b32.xlu0 %v660, 127
        %v663 = vpop.permute.xlu0 %662
        %v665 = vadd.bf16 %v655, %v663
        %s666 = sshll.u32 %s584, 16
        %s667 = sor.u32 %s584, %s666
        %v668 = vstv %s667
        %v670 = vmul.bf16 %v668, %v228
        %v671 = vadd.bf16 %v665, %v670
        %s672 = sshll.u32 %s596, 16
        %s673 = sor.u32 %s596, %s672
        %v674 = vstv %s673
        %v676 = vmul.bf16 %v674, %v231
        %v677 = vadd.bf16 %v671, %v676
        %s678 = sshll.u32 %s608, 16
        %s679 = sor.u32 %s608, %s678
        %v680 = vstv %s679
        %v682 = vmul.bf16 %v680, %v228
        %684 = vrot.lane.b32.xlu0 %v682, 127
        %v685 = vpop.permute.xlu0 %684
        %v687 = vadd.bf16 %v677, %v685
        %s688 = sshll.u32 %s620, 16
        %s689 = sor.u32 %s620, %s688
        %v690 = vstv %s689
        %v692 = vmul.bf16 %v690, %v233
        %v693 = vadd.bf16 %v687, %v692
        %s694 = sshll.u32 %s632, 16
        %s695 = sor.u32 %s632, %s694
        %v696 = vstv %s695
        %v698 = vmul.bf16 %v696, %v235
        %v699 = vadd.bf16 %v693, %v698
        %s700 = sshll.u32 %s644, 16
        %s701 = sor.u32 %s644, %s700
        %v702 = vstv %s701
        %v704 = vmul.bf16 %v702, %v233
        %706 = vrot.lane.b32.xlu0 %v704, 127
        %v707 = vpop.permute.xlu0 %706
        %v709 = vadd.bf16 %v699, %v707
        %v710 = vmul.bf16 %v647, %v225
        %v711 = vmul.bf16 %v652, %v222
        %713 = vrot.lane.b32.xlu0 %v711, 127
        %v714 = vpop.permute.xlu0 %713
        %v716 = vadd.bf16 %v710, %v714
        %v717 = vmul.bf16 %v658, %v225
        %719 = vrot.lane.b32.xlu0 %v717, 127
        %v720 = vpop.permute.xlu0 %719
        %v722 = vadd.bf16 %v716, %v720
        %v723 = vmul.bf16 %v668, %v231
        %v724 = vadd.bf16 %v722, %v723
        %v725 = vmul.bf16 %v674, %v228
        %727 = vrot.lane.b32.xlu0 %v725, 127
        %v728 = vpop.permute.xlu0 %727
        %v730 = vadd.bf16 %v724, %v728
        %v731 = vmul.bf16 %v680, %v231
        %733 = vrot.lane.b32.xlu0 %v731, 127
        %v734 = vpop.permute.xlu0 %733
        %v736 = vadd.bf16 %v730, %v734
        %v737 = vmul.bf16 %v690, %v235
        %v738 = vadd.bf16 %v736, %v737
        %v739 = vmul.bf16 %v696, %v233
        %741 = vrot.lane.b32.xlu0 %v739, 127
        %v742 = vpop.permute.xlu0 %741
        %v744 = vadd.bf16 %v738, %v742
        %v745 = vmul.bf16 %v702, %v235
        %747 = vrot.lane.b32.xlu0 %v745, 127
        %v748 = vpop.permute.xlu0 %747
        %v750 = vadd.bf16 %v744, %v748
        %v751 = vmax.bf16 %v709, %v750
        %v752 = vmul.bf16 %v647, %v228
        %v753 = vmul.bf16 %v652, %v231
        %v754 = vadd.bf16 %v752, %v753
        %v755 = vmul.bf16 %v658, %v228
        %757 = vrot.lane.b32.xlu0 %v755, 127
        %v758 = vpop.permute.xlu0 %757
        %v760 = vadd.bf16 %v754, %v758
        %v761 = vmul.bf16 %v668, %v233
        %v762 = vadd.bf16 %v760, %v761
        %v763 = vmul.bf16 %v674, %v235
        %v764 = vadd.bf16 %v762, %v763
        %v765 = vmul.bf16 %v680, %v233
        %767 = vrot.lane.b32.xlu0 %v765, 127
        %v768 = vpop.permute.xlu0 %767
        %v770 = vadd.bf16 %v764, %v768
        %v771 = vmul.bf16 %v690, %v237
        %v772 = vadd.bf16 %v770, %v771
        %v773 = vmul.bf16 %v696, %v239
        %v774 = vadd.bf16 %v772, %v773
        %v775 = vmul.bf16 %v702, %v237
        %777 = vrot.lane.b32.xlu0 %v775, 127
        %v778 = vpop.permute.xlu0 %777
        %v780 = vadd.bf16 %v774, %v778
        %v781 = vmax.bf16 %v751, %v780
        %v782 = vmul.bf16 %v647, %v231
        %v783 = vmul.bf16 %v652, %v228
        %785 = vrot.lane.b32.xlu0 %v783, 127
        %v786 = vpop.permute.xlu0 %785
        %v788 = vadd.bf16 %v782, %v786
        %v789 = vmul.bf16 %v658, %v231
        %791 = vrot.lane.b32.xlu0 %v789, 127
        %v792 = vpop.permute.xlu0 %791
        %v794 = vadd.bf16 %v788, %v792
        %v795 = vmul.bf16 %v668, %v235
        %v796 = vadd.bf16 %v794, %v795
        %v797 = vmul.bf16 %v674, %v233
        %799 = vrot.lane.b32.xlu0 %v797, 127
        %v800 = vpop.permute.xlu0 %799
        %v802 = vadd.bf16 %v796, %v800
        %v803 = vmul.bf16 %v680, %v235
        %805 = vrot.lane.b32.xlu0 %v803, 127
        %v806 = vpop.permute.xlu0 %805
        %v808 = vadd.bf16 %v802, %v806
        %v809 = vmul.bf16 %v690, %v239
        %v810 = vadd.bf16 %v808, %v809
        %v811 = vmul.bf16 %v696, %v237
        %813 = vrot.lane.b32.xlu0 %v811, 127
        %v814 = vpop.permute.xlu0 %813
        %v816 = vadd.bf16 %v810, %v814
        %v817 = vmul.bf16 %v702, %v239
        %819 = vrot.lane.b32.xlu0 %v817, 127
        %v820 = vpop.permute.xlu0 %819
        %v822 = vadd.bf16 %v816, %v820
        %v823 = vmax.bf16 %v781, %v822
        %v824 = vunpack.c.l.bf16 %v823
        %s825 = sld [smem:[#allocation5 + %s536]]
        %v826 = vstv %s825
        %v827 = vadd.f32 %v824, %v826
        %v828 = vmax.f32 %v827, 0.0
        %v829 = vpack.c.bf16 %v828, %v828
        %s830 = scalar_lea.vmem %s219, 4
        %831 = vst.msk [vmem:[%s830] sm:$0xf] %vm534, %v829
        %s832 = sadd.s32 %s240, 2
        %s833 = smul.u32 %s832, 128
        %s834 = sld [smem:[#allocation2 + %s833]]
        %p836 = scmp.ne.f32.partialorder %s834, %s834
        %s837 = sshrl.u32 %s834, 16
        %s838 = sand.u32 %s837, 1
        %s839 = sadd.s32 32767, %s838
        %s840 = sadd.s32 %s834, %s839
        %s841 = sand.u32 %s840, 4294901760
        %s842 = scalar_select %p836, 2143289344, %s841
        %s844 = sshrl.u32 %s842, 16
        %s845 = sadd.s32 %s833, 1
        %s846 = sld [smem:[#allocation2 + %s845]]
        %p848 = scmp.ne.f32.partialorder %s846, %s846
        %s849 = sshrl.u32 %s846, 16
        %s850 = sand.u32 %s849, 1
        %s851 = sadd.s32 32767, %s850
        %s852 = sadd.s32 %s846, %s851
        %s853 = sand.u32 %s852, 4294901760
        %s854 = scalar_select %p848, 2143289344, %s853
        %s856 = sshrl.u32 %s854, 16
        %s857 = sadd.s32 %s833, 2
        %s858 = sld [smem:[#allocation2 + %s857]]
        %p860 = scmp.ne.f32.partialorder %s858, %s858
        %s861 = sshrl.u32 %s858, 16
        %s862 = sand.u32 %s861, 1
        %s863 = sadd.s32 32767, %s862
        %s864 = sadd.s32 %s858, %s863
        %s865 = sand.u32 %s864, 4294901760
        %s866 = scalar_select %p860, 2143289344, %s865
        %s868 = sshrl.u32 %s866, 16
        %s869 = sadd.s32 %s833, 3
        %s870 = sld [smem:[#allocation2 + %s869]]
        %p872 = scmp.ne.f32.partialorder %s870, %s870
        %s873 = sshrl.u32 %s870, 16
        %s874 = sand.u32 %s873, 1
        %s875 = sadd.s32 32767, %s874
        %s876 = sadd.s32 %s870, %s875
        %s877 = sand.u32 %s876, 4294901760
        %s878 = scalar_select %p872, 2143289344, %s877
        %s880 = sshrl.u32 %s878, 16
        %s881 = sadd.s32 %s833, 4
        %s882 = sld [smem:[#allocation2 + %s881]]
        %p884 = scmp.ne.f32.partialorder %s882, %s882
        %s885 = sshrl.u32 %s882, 16
        %s886 = sand.u32 %s885, 1
        %s887 = sadd.s32 32767, %s886
        %s888 = sadd.s32 %s882, %s887
        %s889 = sand.u32 %s888, 4294901760
        %s890 = scalar_select %p884, 2143289344, %s889
        %s892 = sshrl.u32 %s890, 16
        %s893 = sadd.s32 %s833, 5
        %s894 = sld [smem:[#allocation2 + %s893]]
        %p896 = scmp.ne.f32.partialorder %s894, %s894
        %s897 = sshrl.u32 %s894, 16
        %s898 = sand.u32 %s897, 1
        %s899 = sadd.s32 32767, %s898
        %s900 = sadd.s32 %s894, %s899
        %s901 = sand.u32 %s900, 4294901760
        %s902 = scalar_select %p896, 2143289344, %s901
        %s904 = sshrl.u32 %s902, 16
        %s905 = sadd.s32 %s833, 6
        %s906 = sld [smem:[#allocation2 + %s905]]
        %p908 = scmp.ne.f32.partialorder %s906, %s906
        %s909 = sshrl.u32 %s906, 16
        %s910 = sand.u32 %s909, 1
        %s911 = sadd.s32 32767, %s910
        %s912 = sadd.s32 %s906, %s911
        %s913 = sand.u32 %s912, 4294901760
        %s914 = scalar_select %p908, 2143289344, %s913
        %s916 = sshrl.u32 %s914, 16
        %s917 = sadd.s32 %s833, 7
        %s918 = sld [smem:[#allocation2 + %s917]]
        %p920 = scmp.ne.f32.partialorder %s918, %s918
        %s921 = sshrl.u32 %s918, 16
        %s922 = sand.u32 %s921, 1
        %s923 = sadd.s32 32767, %s922
        %s924 = sadd.s32 %s918, %s923
        %s925 = sand.u32 %s924, 4294901760
        %s926 = scalar_select %p920, 2143289344, %s925
        %s928 = sshrl.u32 %s926, 16
        %s929 = sadd.s32 %s833, 8
        %s930 = sld [smem:[#allocation2 + %s929]]
        %p932 = scmp.ne.f32.partialorder %s930, %s930
        %s933 = sshrl.u32 %s930, 16
        %s934 = sand.u32 %s933, 1
        %s935 = sadd.s32 32767, %s934
        %s936 = sadd.s32 %s930, %s935
        %s937 = sand.u32 %s936, 4294901760
        %s938 = scalar_select %p932, 2143289344, %s937
        %s940 = sshrl.u32 %s938, 16
        %s941 = sshll.u32 %s844, 16
        %s942 = sor.u32 %s844, %s941
        %v943 = vstv %s942
        %v945 = vmul.bf16 %v943, %v222
        %s946 = sshll.u32 %s856, 16
        %s947 = sor.u32 %s856, %s946
        %v948 = vstv %s947
        %v950 = vmul.bf16 %v948, %v225
        %v951 = vadd.bf16 %v945, %v950
        %s952 = sshll.u32 %s868, 16
        %s953 = sor.u32 %s868, %s952
        %v954 = vstv %s953
        %v956 = vmul.bf16 %v954, %v222
        %958 = vrot.lane.b32.xlu0 %v956, 127
        %v959 = vpop.permute.xlu0 %958
        %v961 = vadd.bf16 %v951, %v959
        %s962 = sshll.u32 %s880, 16
        %s963 = sor.u32 %s880, %s962
        %v964 = vstv %s963
        %v966 = vmul.bf16 %v964, %v228
        %v967 = vadd.bf16 %v961, %v966
        %s968 = sshll.u32 %s892, 16
        %s969 = sor.u32 %s892, %s968
        %v970 = vstv %s969
        %v972 = vmul.bf16 %v970, %v231
        %v973 = vadd.bf16 %v967, %v972
        %s974 = sshll.u32 %s904, 16
        %s975 = sor.u32 %s904, %s974
        %v976 = vstv %s975
        %v978 = vmul.bf16 %v976, %v228
        %980 = vrot.lane.b32.xlu0 %v978, 127
        %v981 = vpop.permute.xlu0 %980
        %v983 = vadd.bf16 %v973, %v981
        %s984 = sshll.u32 %s916, 16
        %s985 = sor.u32 %s916, %s984
        %v986 = vstv %s985
        %v988 = vmul.bf16 %v986, %v233
        %v989 = vadd.bf16 %v983, %v988
        %s990 = sshll.u32 %s928, 16
        %s991 = sor.u32 %s928, %s990
        %v992 = vstv %s991
        %v994 = vmul.bf16 %v992, %v235
        %v995 = vadd.bf16 %v989, %v994
        %s996 = sshll.u32 %s940, 16
        %s997 = sor.u32 %s940, %s996
        %v998 = vstv %s997
        %v1000 = vmul.bf16 %v998, %v233
        %1002 = vrot.lane.b32.xlu0 %v1000, 127
        %v1003 = vpop.permute.xlu0 %1002
        %v1005 = vadd.bf16 %v995, %v1003
        %v1006 = vmul.bf16 %v943, %v225
        %v1007 = vmul.bf16 %v948, %v222
        %1009 = vrot.lane.b32.xlu0 %v1007, 127
        %v1010 = vpop.permute.xlu0 %1009
        %v1012 = vadd.bf16 %v1006, %v1010
        %v1013 = vmul.bf16 %v954, %v225
        %1015 = vrot.lane.b32.xlu0 %v1013, 127
        %v1016 = vpop.permute.xlu0 %1015
        %v1018 = vadd.bf16 %v1012, %v1016
        %v1019 = vmul.bf16 %v964, %v231
        %v1020 = vadd.bf16 %v1018, %v1019
        %v1021 = vmul.bf16 %v970, %v228
        %1023 = vrot.lane.b32.xlu0 %v1021, 127
        %v1024 = vpop.permute.xlu0 %1023
        %v1026 = vadd.bf16 %v1020, %v1024
        %v1027 = vmul.bf16 %v976, %v231
        %1029 = vrot.lane.b32.xlu0 %v1027, 127
        %v1030 = vpop.permute.xlu0 %1029
        %v1032 = vadd.bf16 %v1026, %v1030
        %v1033 = vmul.bf16 %v986, %v235
        %v1034 = vadd.bf16 %v1032, %v1033
        %v1035 = vmul.bf16 %v992, %v233
        %1037 = vrot.lane.b32.xlu0 %v1035, 127
        %v1038 = vpop.permute.xlu0 %1037
        %v1040 = vadd.bf16 %v1034, %v1038
        %v1041 = vmul.bf16 %v998, %v235
        %1043 = vrot.lane.b32.xlu0 %v1041, 127
        %v1044 = vpop.permute.xlu0 %1043
        %v1046 = vadd.bf16 %v1040, %v1044
        %v1047 = vmax.bf16 %v1005, %v1046
        %v1048 = vmul.bf16 %v943, %v228
        %v1049 = vmul.bf16 %v948, %v231
        %v1050 = vadd.bf16 %v1048, %v1049
        %v1051 = vmul.bf16 %v954, %v228
        %1053 = vrot.lane.b32.xlu0 %v1051, 127
        %v1054 = vpop.permute.xlu0 %1053
        %v1056 = vadd.bf16 %v1050, %v1054
        %v1057 = vmul.bf16 %v964, %v233
        %v1058 = vadd.bf16 %v1056, %v1057
        %v1059 = vmul.bf16 %v970, %v235
        %v1060 = vadd.bf16 %v1058, %v1059
        %v1061 = vmul.bf16 %v976, %v233
        %1063 = vrot.lane.b32.xlu0 %v1061, 127
        %v1064 = vpop.permute.xlu0 %1063
        %v1066 = vadd.bf16 %v1060, %v1064
        %v1067 = vmul.bf16 %v986, %v237
        %v1068 = vadd.bf16 %v1066, %v1067
        %v1069 = vmul.bf16 %v992, %v239
        %v1070 = vadd.bf16 %v1068, %v1069
        %v1071 = vmul.bf16 %v998, %v237
        %1073 = vrot.lane.b32.xlu0 %v1071, 127
        %v1074 = vpop.permute.xlu0 %1073
        %v1076 = vadd.bf16 %v1070, %v1074
        %v1077 = vmax.bf16 %v1047, %v1076
        %v1078 = vmul.bf16 %v943, %v231
        %v1079 = vmul.bf16 %v948, %v228
        %1081 = vrot.lane.b32.xlu0 %v1079, 127
        %v1082 = vpop.permute.xlu0 %1081
        %v1084 = vadd.bf16 %v1078, %v1082
        %v1085 = vmul.bf16 %v954, %v231
        %1087 = vrot.lane.b32.xlu0 %v1085, 127
        %v1088 = vpop.permute.xlu0 %1087
        %v1090 = vadd.bf16 %v1084, %v1088
        %v1091 = vmul.bf16 %v964, %v235
        %v1092 = vadd.bf16 %v1090, %v1091
        %v1093 = vmul.bf16 %v970, %v233
        %1095 = vrot.lane.b32.xlu0 %v1093, 127
        %v1096 = vpop.permute.xlu0 %1095
        %v1098 = vadd.bf16 %v1092, %v1096
        %v1099 = vmul.bf16 %v976, %v235
        %1101 = vrot.lane.b32.xlu0 %v1099, 127
        %v1102 = vpop.permute.xlu0 %1101
        %v1104 = vadd.bf16 %v1098, %v1102
        %v1105 = vmul.bf16 %v986, %v239
        %v1106 = vadd.bf16 %v1104, %v1105
        %v1107 = vmul.bf16 %v992, %v237
        %1109 = vrot.lane.b32.xlu0 %v1107, 127
        %v1110 = vpop.permute.xlu0 %1109
        %v1112 = vadd.bf16 %v1106, %v1110
        %v1113 = vmul.bf16 %v998, %v239
        %1115 = vrot.lane.b32.xlu0 %v1113, 127
        %v1116 = vpop.permute.xlu0 %1115
        %v1118 = vadd.bf16 %v1112, %v1116
        %v1119 = vmax.bf16 %v1077, %v1118
        %v1120 = vunpack.c.l.bf16 %v1119
        %s1121 = sld [smem:[#allocation5 + %s832]]
        %v1122 = vstv %s1121
        %v1123 = vadd.f32 %v1120, %v1122
        %v1124 = vmax.f32 %v1123, 0.0
        %v1125 = vpack.c.bf16 %v1124, %v1124
        %s1126 = scalar_lea.vmem %s219, 8
        %1127 = vst.msk [vmem:[%s1126] sm:$0xf] %vm534, %v1125
        %s1128 = sadd.s32 %s240, 3
        %s1129 = smul.u32 %s1128, 128
        %s1130 = sld [smem:[#allocation2 + %s1129]]
        %p1132 = scmp.ne.f32.partialorder %s1130, %s1130
        %s1133 = sshrl.u32 %s1130, 16
        %s1134 = sand.u32 %s1133, 1
        %s1135 = sadd.s32 32767, %s1134
        %s1136 = sadd.s32 %s1130, %s1135
        %s1137 = sand.u32 %s1136, 4294901760
        %s1138 = scalar_select %p1132, 2143289344, %s1137
        %s1140 = sshrl.u32 %s1138, 16
        %s1141 = sadd.s32 %s1129, 1
        %s1142 = sld [smem:[#allocation2 + %s1141]]
        %p1144 = scmp.ne.f32.partialorder %s1142, %s1142
        %s1145 = sshrl.u32 %s1142, 16
        %s1146 = sand.u32 %s1145, 1
        %s1147 = sadd.s32 32767, %s1146
        %s1148 = sadd.s32 %s1142, %s1147
        %s1149 = sand.u32 %s1148, 4294901760
        %s1150 = scalar_select %p1144, 2143289344, %s1149
        %s1152 = sshrl.u32 %s1150, 16
        %s1153 = sadd.s32 %s1129, 2
        %s1154 = sld [smem:[#allocation2 + %s1153]]
        %p1156 = scmp.ne.f32.partialorder %s1154, %s1154
        %s1157 = sshrl.u32 %s1154, 16
        %s1158 = sand.u32 %s1157, 1
        %s1159 = sadd.s32 32767, %s1158
        %s1160 = sadd.s32 %s1154, %s1159
        %s1161 = sand.u32 %s1160, 4294901760
        %s1162 = scalar_select %p1156, 2143289344, %s1161
        %s1164 = sshrl.u32 %s1162, 16
        %s1165 = sadd.s32 %s1129, 3
        %s1166 = sld [smem:[#allocation2 + %s1165]]
        %p1168 = scmp.ne.f32.partialorder %s1166, %s1166
        %s1169 = sshrl.u32 %s1166, 16
        %s1170 = sand.u32 %s1169, 1
        %s1171 = sadd.s32 32767, %s1170
        %s1172 = sadd.s32 %s1166, %s1171
        %s1173 = sand.u32 %s1172, 4294901760
        %s1174 = scalar_select %p1168, 2143289344, %s1173
        %s1176 = sshrl.u32 %s1174, 16
        %s1177 = sadd.s32 %s1129, 4
        %s1178 = sld [smem:[#allocation2 + %s1177]]
        %p1180 = scmp.ne.f32.partialorder %s1178, %s1178
        %s1181 = sshrl.u32 %s1178, 16
        %s1182 = sand.u32 %s1181, 1
        %s1183 = sadd.s32 32767, %s1182
        %s1184 = sadd.s32 %s1178, %s1183
        %s1185 = sand.u32 %s1184, 4294901760
        %s1186 = scalar_select %p1180, 2143289344, %s1185
        %s1188 = sshrl.u32 %s1186, 16
        %s1189 = sadd.s32 %s1129, 5
        %s1190 = sld [smem:[#allocation2 + %s1189]]
        %p1192 = scmp.ne.f32.partialorder %s1190, %s1190
        %s1193 = sshrl.u32 %s1190, 16
        %s1194 = sand.u32 %s1193, 1
        %s1195 = sadd.s32 32767, %s1194
        %s1196 = sadd.s32 %s1190, %s1195
        %s1197 = sand.u32 %s1196, 4294901760
        %s1198 = scalar_select %p1192, 2143289344, %s1197
        %s1200 = sshrl.u32 %s1198, 16
        %s1201 = sadd.s32 %s1129, 6
        %s1202 = sld [smem:[#allocation2 + %s1201]]
        %p1204 = scmp.ne.f32.partialorder %s1202, %s1202
        %s1205 = sshrl.u32 %s1202, 16
        %s1206 = sand.u32 %s1205, 1
        %s1207 = sadd.s32 32767, %s1206
        %s1208 = sadd.s32 %s1202, %s1207
        %s1209 = sand.u32 %s1208, 4294901760
        %s1210 = scalar_select %p1204, 2143289344, %s1209
        %s1212 = sshrl.u32 %s1210, 16
        %s1213 = sadd.s32 %s1129, 7
        %s1214 = sld [smem:[#allocation2 + %s1213]]
        %p1216 = scmp.ne.f32.partialorder %s1214, %s1214
        %s1217 = sshrl.u32 %s1214, 16
        %s1218 = sand.u32 %s1217, 1
        %s1219 = sadd.s32 32767, %s1218
        %s1220 = sadd.s32 %s1214, %s1219
        %s1221 = sand.u32 %s1220, 4294901760
        %s1222 = scalar_select %p1216, 2143289344, %s1221
        %s1224 = sshrl.u32 %s1222, 16
        %s1225 = sadd.s32 %s1129, 8
        %s1226 = sld [smem:[#allocation2 + %s1225]]
        %p1228 = scmp.ne.f32.partialorder %s1226, %s1226
        %s1229 = sshrl.u32 %s1226, 16
        %s1230 = sand.u32 %s1229, 1
        %s1231 = sadd.s32 32767, %s1230
        %s1232 = sadd.s32 %s1226, %s1231
        %s1233 = sand.u32 %s1232, 4294901760
        %s1234 = scalar_select %p1228, 2143289344, %s1233
        %s1236 = sshrl.u32 %s1234, 16
        %s1237 = sshll.u32 %s1140, 16
        %s1238 = sor.u32 %s1140, %s1237
        %v1239 = vstv %s1238
        %v1241 = vmul.bf16 %v1239, %v222
        %s1242 = sshll.u32 %s1152, 16
        %s1243 = sor.u32 %s1152, %s1242
        %v1244 = vstv %s1243
        %v1246 = vmul.bf16 %v1244, %v225
        %v1247 = vadd.bf16 %v1241, %v1246
        %s1248 = sshll.u32 %s1164, 16
        %s1249 = sor.u32 %s1164, %s1248
        %v1250 = vstv %s1249
        %v1252 = vmul.bf16 %v1250, %v222
        %1254 = vrot.lane.b32.xlu0 %v1252, 127
        %v1255 = vpop.permute.xlu0 %1254
        %v1257 = vadd.bf16 %v1247, %v1255
        %s1258 = sshll.u32 %s1176, 16
        %s1259 = sor.u32 %s1176, %s1258
        %v1260 = vstv %s1259
        %v1262 = vmul.bf16 %v1260, %v228
        %v1263 = vadd.bf16 %v1257, %v1262
        %s1264 = sshll.u32 %s1188, 16
        %s1265 = sor.u32 %s1188, %s1264
        %v1266 = vstv %s1265
        %v1268 = vmul.bf16 %v1266, %v231
        %v1269 = vadd.bf16 %v1263, %v1268
        %s1270 = sshll.u32 %s1200, 16
        %s1271 = sor.u32 %s1200, %s1270
        %v1272 = vstv %s1271
        %v1274 = vmul.bf16 %v1272, %v228
        %1276 = vrot.lane.b32.xlu0 %v1274, 127
        %v1277 = vpop.permute.xlu0 %1276
        %v1279 = vadd.bf16 %v1269, %v1277
        %s1280 = sshll.u32 %s1212, 16
        %s1281 = sor.u32 %s1212, %s1280
        %v1282 = vstv %s1281
        %v1284 = vmul.bf16 %v1282, %v233
        %v1285 = vadd.bf16 %v1279, %v1284
        %s1286 = sshll.u32 %s1224, 16
        %s1287 = sor.u32 %s1224, %s1286
        %v1288 = vstv %s1287
        %v1290 = vmul.bf16 %v1288, %v235
        %v1291 = vadd.bf16 %v1285, %v1290
        %s1292 = sshll.u32 %s1236, 16
        %s1293 = sor.u32 %s1236, %s1292
        %v1294 = vstv %s1293
        %v1296 = vmul.bf16 %v1294, %v233
        %1298 = vrot.lane.b32.xlu0 %v1296, 127
        %v1299 = vpop.permute.xlu0 %1298
        %v1301 = vadd.bf16 %v1291, %v1299
        %v1302 = vmul.bf16 %v1239, %v225
        %v1303 = vmul.bf16 %v1244, %v222
        %1305 = vrot.lane.b32.xlu0 %v1303, 127
        %v1306 = vpop.permute.xlu0 %1305
        %v1308 = vadd.bf16 %v1302, %v1306
        %v1309 = vmul.bf16 %v1250, %v225
        %1311 = vrot.lane.b32.xlu0 %v1309, 127
        %v1312 = vpop.permute.xlu0 %1311
        %v1314 = vadd.bf16 %v1308, %v1312
        %v1315 = vmul.bf16 %v1260, %v231
        %v1316 = vadd.bf16 %v1314, %v1315
        %v1317 = vmul.bf16 %v1266, %v228
        %1319 = vrot.lane.b32.xlu0 %v1317, 127
        %v1320 = vpop.permute.xlu0 %1319
        %v1322 = vadd.bf16 %v1316, %v1320
        %v1323 = vmul.bf16 %v1272, %v231
        %1325 = vrot.lane.b32.xlu0 %v1323, 127
        %v1326 = vpop.permute.xlu0 %1325
        %v1328 = vadd.bf16 %v1322, %v1326
        %v1329 = vmul.bf16 %v1282, %v235
        %v1330 = vadd.bf16 %v1328, %v1329
        %v1331 = vmul.bf16 %v1288, %v233
        %1333 = vrot.lane.b32.xlu0 %v1331, 127
        %v1334 = vpop.permute.xlu0 %1333
        %v1336 = vadd.bf16 %v1330, %v1334
        %v1337 = vmul.bf16 %v1294, %v235
        %1339 = vrot.lane.b32.xlu0 %v1337, 127
        %v1340 = vpop.permute.xlu0 %1339
        %v1342 = vadd.bf16 %v1336, %v1340
        %v1343 = vmax.bf16 %v1301, %v1342
        %v1344 = vmul.bf16 %v1239, %v228
        %v1345 = vmul.bf16 %v1244, %v231
        %v1346 = vadd.bf16 %v1344, %v1345
        %v1347 = vmul.bf16 %v1250, %v228
        %1349 = vrot.lane.b32.xlu0 %v1347, 127
        %v1350 = vpop.permute.xlu0 %1349
        %v1352 = vadd.bf16 %v1346, %v1350
        %v1353 = vmul.bf16 %v1260, %v233
        %v1354 = vadd.bf16 %v1352, %v1353
        %v1355 = vmul.bf16 %v1266, %v235
        %v1356 = vadd.bf16 %v1354, %v1355
        %v1357 = vmul.bf16 %v1272, %v233
        %1359 = vrot.lane.b32.xlu0 %v1357, 127
        %v1360 = vpop.permute.xlu0 %1359
        %v1362 = vadd.bf16 %v1356, %v1360
        %v1363 = vmul.bf16 %v1282, %v237
        %v1364 = vadd.bf16 %v1362, %v1363
        %v1365 = vmul.bf16 %v1288, %v239
        %v1366 = vadd.bf16 %v1364, %v1365
        %v1367 = vmul.bf16 %v1294, %v237
        %1369 = vrot.lane.b32.xlu0 %v1367, 127
        %v1370 = vpop.permute.xlu0 %1369
        %v1372 = vadd.bf16 %v1366, %v1370
        %v1373 = vmax.bf16 %v1343, %v1372
        %v1374 = vmul.bf16 %v1239, %v231
        %v1375 = vmul.bf16 %v1244, %v228
        %1377 = vrot.lane.b32.xlu0 %v1375, 127
        %v1378 = vpop.permute.xlu0 %1377
        %v1380 = vadd.bf16 %v1374, %v1378
        %v1381 = vmul.bf16 %v1250, %v231
        %1383 = vrot.lane.b32.xlu0 %v1381, 127
        %v1384 = vpop.permute.xlu0 %1383
        %v1386 = vadd.bf16 %v1380, %v1384
        %v1387 = vmul.bf16 %v1260, %v235
        %v1388 = vadd.bf16 %v1386, %v1387
        %v1389 = vmul.bf16 %v1266, %v233
        %1391 = vrot.lane.b32.xlu0 %v1389, 127
        %v1392 = vpop.permute.xlu0 %1391
        %v1394 = vadd.bf16 %v1388, %v1392
        %v1395 = vmul.bf16 %v1272, %v235
        %1397 = vrot.lane.b32.xlu0 %v1395, 127
        %v1398 = vpop.permute.xlu0 %1397
        %v1400 = vadd.bf16 %v1394, %v1398
        %v1401 = vmul.bf16 %v1282, %v239
        %v1402 = vadd.bf16 %v1400, %v1401
        %v1403 = vmul.bf16 %v1288, %v237
        %1405 = vrot.lane.b32.xlu0 %v1403, 127
        %v1406 = vpop.permute.xlu0 %1405
        %v1408 = vadd.bf16 %v1402, %v1406
        %v1409 = vmul.bf16 %v1294, %v239
        %1411 = vrot.lane.b32.xlu0 %v1409, 127
        %v1412 = vpop.permute.xlu0 %1411
        %v1414 = vadd.bf16 %v1408, %v1412
        %v1415 = vmax.bf16 %v1373, %v1414
        %v1416 = vunpack.c.l.bf16 %v1415
        %s1417 = sld [smem:[#allocation5 + %s1128]]
        %v1418 = vstv %s1417
        %v1419 = vadd.f32 %v1416, %v1418
        %v1420 = vmax.f32 %v1419, 0.0
        %v1421 = vpack.c.bf16 %v1420, %v1420
        %s1422 = scalar_lea.vmem %s219, 12
        %1423 = vst.msk [vmem:[%s1422] sm:$0xf] %vm534, %v1421
        %s1424 = sadd.s32 %s240, 4
        %s1425 = smul.u32 %s1424, 128
        %s1426 = sld [smem:[#allocation2 + %s1425]]
        %p1428 = scmp.ne.f32.partialorder %s1426, %s1426
        %s1429 = sshrl.u32 %s1426, 16
        %s1430 = sand.u32 %s1429, 1
        %s1431 = sadd.s32 32767, %s1430
        %s1432 = sadd.s32 %s1426, %s1431
        %s1433 = sand.u32 %s1432, 4294901760
        %s1434 = scalar_select %p1428, 2143289344, %s1433
        %s1436 = sshrl.u32 %s1434, 16
        %s1437 = sadd.s32 %s1425, 1
        %s1438 = sld [smem:[#allocation2 + %s1437]]
        %p1440 = scmp.ne.f32.partialorder %s1438, %s1438
        %s1441 = sshrl.u32 %s1438, 16
        %s1442 = sand.u32 %s1441, 1
        %s1443 = sadd.s32 32767, %s1442
        %s1444 = sadd.s32 %s1438, %s1443
        %s1445 = sand.u32 %s1444, 4294901760
        %s1446 = scalar_select %p1440, 2143289344, %s1445
        %s1448 = sshrl.u32 %s1446, 16
        %s1449 = sadd.s32 %s1425, 2
        %s1450 = sld [smem:[#allocation2 + %s1449]]
        %p1452 = scmp.ne.f32.partialorder %s1450, %s1450
        %s1453 = sshrl.u32 %s1450, 16
        %s1454 = sand.u32 %s1453, 1
        %s1455 = sadd.s32 32767, %s1454
        %s1456 = sadd.s32 %s1450, %s1455
        %s1457 = sand.u32 %s1456, 4294901760
        %s1458 = scalar_select %p1452, 2143289344, %s1457
        %s1460 = sshrl.u32 %s1458, 16
        %s1461 = sadd.s32 %s1425, 3
        %s1462 = sld [smem:[#allocation2 + %s1461]]
        %p1464 = scmp.ne.f32.partialorder %s1462, %s1462
        %s1465 = sshrl.u32 %s1462, 16
        %s1466 = sand.u32 %s1465, 1
        %s1467 = sadd.s32 32767, %s1466
        %s1468 = sadd.s32 %s1462, %s1467
        %s1469 = sand.u32 %s1468, 4294901760
        %s1470 = scalar_select %p1464, 2143289344, %s1469
        %s1472 = sshrl.u32 %s1470, 16
        %s1473 = sadd.s32 %s1425, 4
        %s1474 = sld [smem:[#allocation2 + %s1473]]
        %p1476 = scmp.ne.f32.partialorder %s1474, %s1474
        %s1477 = sshrl.u32 %s1474, 16
        %s1478 = sand.u32 %s1477, 1
        %s1479 = sadd.s32 32767, %s1478
        %s1480 = sadd.s32 %s1474, %s1479
        %s1481 = sand.u32 %s1480, 4294901760
        %s1482 = scalar_select %p1476, 2143289344, %s1481
        %s1484 = sshrl.u32 %s1482, 16
        %s1485 = sadd.s32 %s1425, 5
        %s1486 = sld [smem:[#allocation2 + %s1485]]
        %p1488 = scmp.ne.f32.partialorder %s1486, %s1486
        %s1489 = sshrl.u32 %s1486, 16
        %s1490 = sand.u32 %s1489, 1
        %s1491 = sadd.s32 32767, %s1490
        %s1492 = sadd.s32 %s1486, %s1491
        %s1493 = sand.u32 %s1492, 4294901760
        %s1494 = scalar_select %p1488, 2143289344, %s1493
        %s1496 = sshrl.u32 %s1494, 16
        %s1497 = sadd.s32 %s1425, 6
        %s1498 = sld [smem:[#allocation2 + %s1497]]
        %p1500 = scmp.ne.f32.partialorder %s1498, %s1498
        %s1501 = sshrl.u32 %s1498, 16
        %s1502 = sand.u32 %s1501, 1
        %s1503 = sadd.s32 32767, %s1502
        %s1504 = sadd.s32 %s1498, %s1503
        %s1505 = sand.u32 %s1504, 4294901760
        %s1506 = scalar_select %p1500, 2143289344, %s1505
        %s1508 = sshrl.u32 %s1506, 16
        %s1509 = sadd.s32 %s1425, 7
        %s1510 = sld [smem:[#allocation2 + %s1509]]
        %p1512 = scmp.ne.f32.partialorder %s1510, %s1510
        %s1513 = sshrl.u32 %s1510, 16
        %s1514 = sand.u32 %s1513, 1
        %s1515 = sadd.s32 32767, %s1514
        %s1516 = sadd.s32 %s1510, %s1515
        %s1517 = sand.u32 %s1516, 4294901760
        %s1518 = scalar_select %p1512, 2143289344, %s1517
        %s1520 = sshrl.u32 %s1518, 16
        %s1521 = sadd.s32 %s1425, 8
        %s1522 = sld [smem:[#allocation2 + %s1521]]
        %p1524 = scmp.ne.f32.partialorder %s1522, %s1522
        %s1525 = sshrl.u32 %s1522, 16
        %s1526 = sand.u32 %s1525, 1
        %s1527 = sadd.s32 32767, %s1526
        %s1528 = sadd.s32 %s1522, %s1527
        %s1529 = sand.u32 %s1528, 4294901760
        %s1530 = scalar_select %p1524, 2143289344, %s1529
        %s1532 = sshrl.u32 %s1530, 16
        %s1533 = sshll.u32 %s1436, 16
        %s1534 = sor.u32 %s1436, %s1533
        %v1535 = vstv %s1534
        %v1537 = vmul.bf16 %v1535, %v222
        %s1538 = sshll.u32 %s1448, 16
        %s1539 = sor.u32 %s1448, %s1538
        %v1540 = vstv %s1539
        %v1542 = vmul.bf16 %v1540, %v225
        %v1543 = vadd.bf16 %v1537, %v1542
        %s1544 = sshll.u32 %s1460, 16
        %s1545 = sor.u32 %s1460, %s1544
        %v1546 = vstv %s1545
        %v1548 = vmul.bf16 %v1546, %v222
        %1550 = vrot.lane.b32.xlu0 %v1548, 127
        %v1551 = vpop.permute.xlu0 %1550
        %v1553 = vadd.bf16 %v1543, %v1551
        %s1554 = sshll.u32 %s1472, 16
        %s1555 = sor.u32 %s1472, %s1554
        %v1556 = vstv %s1555
        %v1558 = vmul.bf16 %v1556, %v228
        %v1559 = vadd.bf16 %v1553, %v1558
        %s1560 = sshll.u32 %s1484, 16
        %s1561 = sor.u32 %s1484, %s1560
        %v1562 = vstv %s1561
        %v1564 = vmul.bf16 %v1562, %v231
        %v1565 = vadd.bf16 %v1559, %v1564
        %s1566 = sshll.u32 %s1496, 16
        %s1567 = sor.u32 %s1496, %s1566
        %v1568 = vstv %s1567
        %v1570 = vmul.bf16 %v1568, %v228
        %1572 = vrot.lane.b32.xlu0 %v1570, 127
        %v1573 = vpop.permute.xlu0 %1572
        %v1575 = vadd.bf16 %v1565, %v1573
        %s1576 = sshll.u32 %s1508, 16
        %s1577 = sor.u32 %s1508, %s1576
        %v1578 = vstv %s1577
        %v1580 = vmul.bf16 %v1578, %v233
        %v1581 = vadd.bf16 %v1575, %v1580
        %s1582 = sshll.u32 %s1520, 16
        %s1583 = sor.u32 %s1520, %s1582
        %v1584 = vstv %s1583
        %v1586 = vmul.bf16 %v1584, %v235
        %v1587 = vadd.bf16 %v1581, %v1586
        %s1588 = sshll.u32 %s1532, 16
        %s1589 = sor.u32 %s1532, %s1588
        %v1590 = vstv %s1589
        %v1592 = vmul.bf16 %v1590, %v233
        %1594 = vrot.lane.b32.xlu0 %v1592, 127
        %v1595 = vpop.permute.xlu0 %1594
        %v1597 = vadd.bf16 %v1587, %v1595
        %v1598 = vmul.bf16 %v1535, %v225
        %v1599 = vmul.bf16 %v1540, %v222
        %1601 = vrot.lane.b32.xlu0 %v1599, 127
        %v1602 = vpop.permute.xlu0 %1601
        %v1604 = vadd.bf16 %v1598, %v1602
        %v1605 = vmul.bf16 %v1546, %v225
        %1607 = vrot.lane.b32.xlu0 %v1605, 127
        %v1608 = vpop.permute.xlu0 %1607
        %v1610 = vadd.bf16 %v1604, %v1608
        %v1611 = vmul.bf16 %v1556, %v231
        %v1612 = vadd.bf16 %v1610, %v1611
        %v1613 = vmul.bf16 %v1562, %v228
        %1615 = vrot.lane.b32.xlu0 %v1613, 127
        %v1616 = vpop.permute.xlu0 %1615
        %v1618 = vadd.bf16 %v1612, %v1616
        %v1619 = vmul.bf16 %v1568, %v231
        %1621 = vrot.lane.b32.xlu0 %v1619, 127
        %v1622 = vpop.permute.xlu0 %1621
        %v1624 = vadd.bf16 %v1618, %v1622
        %v1625 = vmul.bf16 %v1578, %v235
        %v1626 = vadd.bf16 %v1624, %v1625
        %v1627 = vmul.bf16 %v1584, %v233
        %1629 = vrot.lane.b32.xlu0 %v1627, 127
        %v1630 = vpop.permute.xlu0 %1629
        %v1632 = vadd.bf16 %v1626, %v1630
        %v1633 = vmul.bf16 %v1590, %v235
        %1635 = vrot.lane.b32.xlu0 %v1633, 127
        %v1636 = vpop.permute.xlu0 %1635
        %v1638 = vadd.bf16 %v1632, %v1636
        %v1639 = vmax.bf16 %v1597, %v1638
        %v1640 = vmul.bf16 %v1535, %v228
        %v1641 = vmul.bf16 %v1540, %v231
        %v1642 = vadd.bf16 %v1640, %v1641
        %v1643 = vmul.bf16 %v1546, %v228
        %1645 = vrot.lane.b32.xlu0 %v1643, 127
        %v1646 = vpop.permute.xlu0 %1645
        %v1648 = vadd.bf16 %v1642, %v1646
        %v1649 = vmul.bf16 %v1556, %v233
        %v1650 = vadd.bf16 %v1648, %v1649
        %v1651 = vmul.bf16 %v1562, %v235
        %v1652 = vadd.bf16 %v1650, %v1651
        %v1653 = vmul.bf16 %v1568, %v233
        %1655 = vrot.lane.b32.xlu0 %v1653, 127
        %v1656 = vpop.permute.xlu0 %1655
        %v1658 = vadd.bf16 %v1652, %v1656
        %v1659 = vmul.bf16 %v1578, %v237
        %v1660 = vadd.bf16 %v1658, %v1659
        %v1661 = vmul.bf16 %v1584, %v239
        %v1662 = vadd.bf16 %v1660, %v1661
        %v1663 = vmul.bf16 %v1590, %v237
        %1665 = vrot.lane.b32.xlu0 %v1663, 127
        %v1666 = vpop.permute.xlu0 %1665
        %v1668 = vadd.bf16 %v1662, %v1666
        %v1669 = vmax.bf16 %v1639, %v1668
        %v1670 = vmul.bf16 %v1535, %v231
        %v1671 = vmul.bf16 %v1540, %v228
        %1673 = vrot.lane.b32.xlu0 %v1671, 127
        %v1674 = vpop.permute.xlu0 %1673
        %v1676 = vadd.bf16 %v1670, %v1674
        %v1677 = vmul.bf16 %v1546, %v231
        %1679 = vrot.lane.b32.xlu0 %v1677, 127
        %v1680 = vpop.permute.xlu0 %1679
        %v1682 = vadd.bf16 %v1676, %v1680
        %v1683 = vmul.bf16 %v1556, %v235
        %v1684 = vadd.bf16 %v1682, %v1683
        %v1685 = vmul.bf16 %v1562, %v233
        %1687 = vrot.lane.b32.xlu0 %v1685, 127
        %v1688 = vpop.permute.xlu0 %1687
        %v1690 = vadd.bf16 %v1684, %v1688
        %v1691 = vmul.bf16 %v1568, %v235
        %1693 = vrot.lane.b32.xlu0 %v1691, 127
        %v1694 = vpop.permute.xlu0 %1693
        %v1696 = vadd.bf16 %v1690, %v1694
        %v1697 = vmul.bf16 %v1578, %v239
        %v1698 = vadd.bf16 %v1696, %v1697
        %v1699 = vmul.bf16 %v1584, %v237
        %1701 = vrot.lane.b32.xlu0 %v1699, 127
        %v1702 = vpop.permute.xlu0 %1701
        %v1704 = vadd.bf16 %v1698, %v1702
        %v1705 = vmul.bf16 %v1590, %v239
        %1707 = vrot.lane.b32.xlu0 %v1705, 127
        %v1708 = vpop.permute.xlu0 %1707
        %v1710 = vadd.bf16 %v1704, %v1708
        %v1711 = vmax.bf16 %v1669, %v1710
        %v1712 = vunpack.c.l.bf16 %v1711
        %s1713 = sld [smem:[#allocation5 + %s1424]]
        %v1714 = vstv %s1713
        %v1715 = vadd.f32 %v1712, %v1714
        %v1716 = vmax.f32 %v1715, 0.0
        %v1717 = vpack.c.bf16 %v1716, %v1716
        %s1718 = scalar_lea.vmem %s219, 16
        %1719 = vst.msk [vmem:[%s1718] sm:$0xf] %vm534, %v1717
        %s1720 = sadd.s32 %s240, 5
        %s1721 = smul.u32 %s1720, 128
        %s1722 = sld [smem:[#allocation2 + %s1721]]
        %p1724 = scmp.ne.f32.partialorder %s1722, %s1722
        %s1725 = sshrl.u32 %s1722, 16
        %s1726 = sand.u32 %s1725, 1
        %s1727 = sadd.s32 32767, %s1726
        %s1728 = sadd.s32 %s1722, %s1727
        %s1729 = sand.u32 %s1728, 4294901760
        %s1730 = scalar_select %p1724, 2143289344, %s1729
        %s1732 = sshrl.u32 %s1730, 16
        %s1733 = sadd.s32 %s1721, 1
        %s1734 = sld [smem:[#allocation2 + %s1733]]
        %p1736 = scmp.ne.f32.partialorder %s1734, %s1734
        %s1737 = sshrl.u32 %s1734, 16
        %s1738 = sand.u32 %s1737, 1
        %s1739 = sadd.s32 32767, %s1738
        %s1740 = sadd.s32 %s1734, %s1739
        %s1741 = sand.u32 %s1740, 4294901760
        %s1742 = scalar_select %p1736, 2143289344, %s1741
        %s1744 = sshrl.u32 %s1742, 16
        %s1745 = sadd.s32 %s1721, 2
        %s1746 = sld [smem:[#allocation2 + %s1745]]
        %p1748 = scmp.ne.f32.partialorder %s1746, %s1746
        %s1749 = sshrl.u32 %s1746, 16
        %s1750 = sand.u32 %s1749, 1
        %s1751 = sadd.s32 32767, %s1750
        %s1752 = sadd.s32 %s1746, %s1751
        %s1753 = sand.u32 %s1752, 4294901760
        %s1754 = scalar_select %p1748, 2143289344, %s1753
        %s1756 = sshrl.u32 %s1754, 16
        %s1757 = sadd.s32 %s1721, 3
        %s1758 = sld [smem:[#allocation2 + %s1757]]
        %p1760 = scmp.ne.f32.partialorder %s1758, %s1758
        %s1761 = sshrl.u32 %s1758, 16
        %s1762 = sand.u32 %s1761, 1
        %s1763 = sadd.s32 32767, %s1762
        %s1764 = sadd.s32 %s1758, %s1763
        %s1765 = sand.u32 %s1764, 4294901760
        %s1766 = scalar_select %p1760, 2143289344, %s1765
        %s1768 = sshrl.u32 %s1766, 16
        %s1769 = sadd.s32 %s1721, 4
        %s1770 = sld [smem:[#allocation2 + %s1769]]
        %p1772 = scmp.ne.f32.partialorder %s1770, %s1770
        %s1773 = sshrl.u32 %s1770, 16
        %s1774 = sand.u32 %s1773, 1
        %s1775 = sadd.s32 32767, %s1774
        %s1776 = sadd.s32 %s1770, %s1775
        %s1777 = sand.u32 %s1776, 4294901760
        %s1778 = scalar_select %p1772, 2143289344, %s1777
        %s1780 = sshrl.u32 %s1778, 16
        %s1781 = sadd.s32 %s1721, 5
        %s1782 = sld [smem:[#allocation2 + %s1781]]
        %p1784 = scmp.ne.f32.partialorder %s1782, %s1782
        %s1785 = sshrl.u32 %s1782, 16
        %s1786 = sand.u32 %s1785, 1
        %s1787 = sadd.s32 32767, %s1786
        %s1788 = sadd.s32 %s1782, %s1787
        %s1789 = sand.u32 %s1788, 4294901760
        %s1790 = scalar_select %p1784, 2143289344, %s1789
        %s1792 = sshrl.u32 %s1790, 16
        %s1793 = sadd.s32 %s1721, 6
        %s1794 = sld [smem:[#allocation2 + %s1793]]
        %p1796 = scmp.ne.f32.partialorder %s1794, %s1794
        %s1797 = sshrl.u32 %s1794, 16
        %s1798 = sand.u32 %s1797, 1
        %s1799 = sadd.s32 32767, %s1798
        %s1800 = sadd.s32 %s1794, %s1799
        %s1801 = sand.u32 %s1800, 4294901760
        %s1802 = scalar_select %p1796, 2143289344, %s1801
        %s1804 = sshrl.u32 %s1802, 16
        %s1805 = sadd.s32 %s1721, 7
        %s1806 = sld [smem:[#allocation2 + %s1805]]
        %p1808 = scmp.ne.f32.partialorder %s1806, %s1806
        %s1809 = sshrl.u32 %s1806, 16
        %s1810 = sand.u32 %s1809, 1
        %s1811 = sadd.s32 32767, %s1810
        %s1812 = sadd.s32 %s1806, %s1811
        %s1813 = sand.u32 %s1812, 4294901760
        %s1814 = scalar_select %p1808, 2143289344, %s1813
        %s1816 = sshrl.u32 %s1814, 16
        %s1817 = sadd.s32 %s1721, 8
        %s1818 = sld [smem:[#allocation2 + %s1817]]
        %p1820 = scmp.ne.f32.partialorder %s1818, %s1818
        %s1821 = sshrl.u32 %s1818, 16
        %s1822 = sand.u32 %s1821, 1
        %s1823 = sadd.s32 32767, %s1822
        %s1824 = sadd.s32 %s1818, %s1823
        %s1825 = sand.u32 %s1824, 4294901760
        %s1826 = scalar_select %p1820, 2143289344, %s1825
        %s1828 = sshrl.u32 %s1826, 16
        %s1829 = sshll.u32 %s1732, 16
        %s1830 = sor.u32 %s1732, %s1829
        %v1831 = vstv %s1830
        %v1833 = vmul.bf16 %v1831, %v222
        %s1834 = sshll.u32 %s1744, 16
        %s1835 = sor.u32 %s1744, %s1834
        %v1836 = vstv %s1835
        %v1838 = vmul.bf16 %v1836, %v225
        %v1839 = vadd.bf16 %v1833, %v1838
        %s1840 = sshll.u32 %s1756, 16
        %s1841 = sor.u32 %s1756, %s1840
        %v1842 = vstv %s1841
        %v1844 = vmul.bf16 %v1842, %v222
        %1846 = vrot.lane.b32.xlu0 %v1844, 127
        %v1847 = vpop.permute.xlu0 %1846
        %v1849 = vadd.bf16 %v1839, %v1847
        %s1850 = sshll.u32 %s1768, 16
        %s1851 = sor.u32 %s1768, %s1850
        %v1852 = vstv %s1851
        %v1854 = vmul.bf16 %v1852, %v228
        %v1855 = vadd.bf16 %v1849, %v1854
        %s1856 = sshll.u32 %s1780, 16
        %s1857 = sor.u32 %s1780, %s1856
        %v1858 = vstv %s1857
        %v1860 = vmul.bf16 %v1858, %v231
        %v1861 = vadd.bf16 %v1855, %v1860
        %s1862 = sshll.u32 %s1792, 16
        %s1863 = sor.u32 %s1792, %s1862
        %v1864 = vstv %s1863
        %v1866 = vmul.bf16 %v1864, %v228
        %1868 = vrot.lane.b32.xlu0 %v1866, 127
        %v1869 = vpop.permute.xlu0 %1868
        %v1871 = vadd.bf16 %v1861, %v1869
        %s1872 = sshll.u32 %s1804, 16
        %s1873 = sor.u32 %s1804, %s1872
        %v1874 = vstv %s1873
        %v1876 = vmul.bf16 %v1874, %v233
        %v1877 = vadd.bf16 %v1871, %v1876
        %s1878 = sshll.u32 %s1816, 16
        %s1879 = sor.u32 %s1816, %s1878
        %v1880 = vstv %s1879
        %v1882 = vmul.bf16 %v1880, %v235
        %v1883 = vadd.bf16 %v1877, %v1882
        %s1884 = sshll.u32 %s1828, 16
        %s1885 = sor.u32 %s1828, %s1884
        %v1886 = vstv %s1885
        %v1888 = vmul.bf16 %v1886, %v233
        %1890 = vrot.lane.b32.xlu0 %v1888, 127
        %v1891 = vpop.permute.xlu0 %1890
        %v1893 = vadd.bf16 %v1883, %v1891
        %v1894 = vmul.bf16 %v1831, %v225
        %v1895 = vmul.bf16 %v1836, %v222
        %1897 = vrot.lane.b32.xlu0 %v1895, 127
        %v1898 = vpop.permute.xlu0 %1897
        %v1900 = vadd.bf16 %v1894, %v1898
        %v1901 = vmul.bf16 %v1842, %v225
        %1903 = vrot.lane.b32.xlu0 %v1901, 127
        %v1904 = vpop.permute.xlu0 %1903
        %v1906 = vadd.bf16 %v1900, %v1904
        %v1907 = vmul.bf16 %v1852, %v231
        %v1908 = vadd.bf16 %v1906, %v1907
        %v1909 = vmul.bf16 %v1858, %v228
        %1911 = vrot.lane.b32.xlu0 %v1909, 127
        %v1912 = vpop.permute.xlu0 %1911
        %v1914 = vadd.bf16 %v1908, %v1912
        %v1915 = vmul.bf16 %v1864, %v231
        %1917 = vrot.lane.b32.xlu0 %v1915, 127
        %v1918 = vpop.permute.xlu0 %1917
        %v1920 = vadd.bf16 %v1914, %v1918
        %v1921 = vmul.bf16 %v1874, %v235
        %v1922 = vadd.bf16 %v1920, %v1921
        %v1923 = vmul.bf16 %v1880, %v233
        %1925 = vrot.lane.b32.xlu0 %v1923, 127
        %v1926 = vpop.permute.xlu0 %1925
        %v1928 = vadd.bf16 %v1922, %v1926
        %v1929 = vmul.bf16 %v1886, %v235
        %1931 = vrot.lane.b32.xlu0 %v1929, 127
        %v1932 = vpop.permute.xlu0 %1931
        %v1934 = vadd.bf16 %v1928, %v1932
        %v1935 = vmax.bf16 %v1893, %v1934
        %v1936 = vmul.bf16 %v1831, %v228
        %v1937 = vmul.bf16 %v1836, %v231
        %v1938 = vadd.bf16 %v1936, %v1937
        %v1939 = vmul.bf16 %v1842, %v228
        %1941 = vrot.lane.b32.xlu0 %v1939, 127
        %v1942 = vpop.permute.xlu0 %1941
        %v1944 = vadd.bf16 %v1938, %v1942
        %v1945 = vmul.bf16 %v1852, %v233
        %v1946 = vadd.bf16 %v1944, %v1945
        %v1947 = vmul.bf16 %v1858, %v235
        %v1948 = vadd.bf16 %v1946, %v1947
        %v1949 = vmul.bf16 %v1864, %v233
        %1951 = vrot.lane.b32.xlu0 %v1949, 127
        %v1952 = vpop.permute.xlu0 %1951
        %v1954 = vadd.bf16 %v1948, %v1952
        %v1955 = vmul.bf16 %v1874, %v237
        %v1956 = vadd.bf16 %v1954, %v1955
        %v1957 = vmul.bf16 %v1880, %v239
        %v1958 = vadd.bf16 %v1956, %v1957
        %v1959 = vmul.bf16 %v1886, %v237
        %1961 = vrot.lane.b32.xlu0 %v1959, 127
        %v1962 = vpop.permute.xlu0 %1961
        %v1964 = vadd.bf16 %v1958, %v1962
        %v1965 = vmax.bf16 %v1935, %v1964
        %v1966 = vmul.bf16 %v1831, %v231
        %v1967 = vmul.bf16 %v1836, %v228
        %1969 = vrot.lane.b32.xlu0 %v1967, 127
        %v1970 = vpop.permute.xlu0 %1969
        %v1972 = vadd.bf16 %v1966, %v1970
        %v1973 = vmul.bf16 %v1842, %v231
        %1975 = vrot.lane.b32.xlu0 %v1973, 127
        %v1976 = vpop.permute.xlu0 %1975
        %v1978 = vadd.bf16 %v1972, %v1976
        %v1979 = vmul.bf16 %v1852, %v235
        %v1980 = vadd.bf16 %v1978, %v1979
        %v1981 = vmul.bf16 %v1858, %v233
        %1983 = vrot.lane.b32.xlu0 %v1981, 127
        %v1984 = vpop.permute.xlu0 %1983
        %v1986 = vadd.bf16 %v1980, %v1984
        %v1987 = vmul.bf16 %v1864, %v235
        %1989 = vrot.lane.b32.xlu0 %v1987, 127
        %v1990 = vpop.permute.xlu0 %1989
        %v1992 = vadd.bf16 %v1986, %v1990
        %v1993 = vmul.bf16 %v1874, %v239
        %v1994 = vadd.bf16 %v1992, %v1993
        %v1995 = vmul.bf16 %v1880, %v237
        %1997 = vrot.lane.b32.xlu0 %v1995, 127
        %v1998 = vpop.permute.xlu0 %1997
        %v2000 = vadd.bf16 %v1994, %v1998
        %v2001 = vmul.bf16 %v1886, %v239
        %2003 = vrot.lane.b32.xlu0 %v2001, 127
        %v2004 = vpop.permute.xlu0 %2003
        %v2006 = vadd.bf16 %v2000, %v2004
        %v2007 = vmax.bf16 %v1965, %v2006
        %v2008 = vunpack.c.l.bf16 %v2007
        %s2009 = sld [smem:[#allocation5 + %s1720]]
        %v2010 = vstv %s2009
        %v2011 = vadd.f32 %v2008, %v2010
        %v2012 = vmax.f32 %v2011, 0.0
        %v2013 = vpack.c.bf16 %v2012, %v2012
        %s2014 = scalar_lea.vmem %s219, 20
        %2015 = vst.msk [vmem:[%s2014] sm:$0xf] %vm534, %v2013
        %s2016 = sadd.s32 %s240, 6
        %s2017 = smul.u32 %s2016, 128
        %s2018 = sld [smem:[#allocation2 + %s2017]]
        %p2020 = scmp.ne.f32.partialorder %s2018, %s2018
        %s2021 = sshrl.u32 %s2018, 16
        %s2022 = sand.u32 %s2021, 1
        %s2023 = sadd.s32 32767, %s2022
        %s2024 = sadd.s32 %s2018, %s2023
        %s2025 = sand.u32 %s2024, 4294901760
        %s2026 = scalar_select %p2020, 2143289344, %s2025
        %s2028 = sshrl.u32 %s2026, 16
        %s2029 = sadd.s32 %s2017, 1
        %s2030 = sld [smem:[#allocation2 + %s2029]]
        %p2032 = scmp.ne.f32.partialorder %s2030, %s2030
        %s2033 = sshrl.u32 %s2030, 16
        %s2034 = sand.u32 %s2033, 1
        %s2035 = sadd.s32 32767, %s2034
        %s2036 = sadd.s32 %s2030, %s2035
        %s2037 = sand.u32 %s2036, 4294901760
        %s2038 = scalar_select %p2032, 2143289344, %s2037
        %s2040 = sshrl.u32 %s2038, 16
        %s2041 = sadd.s32 %s2017, 2
        %s2042 = sld [smem:[#allocation2 + %s2041]]
        %p2044 = scmp.ne.f32.partialorder %s2042, %s2042
        %s2045 = sshrl.u32 %s2042, 16
        %s2046 = sand.u32 %s2045, 1
        %s2047 = sadd.s32 32767, %s2046
        %s2048 = sadd.s32 %s2042, %s2047
        %s2049 = sand.u32 %s2048, 4294901760
        %s2050 = scalar_select %p2044, 2143289344, %s2049
        %s2052 = sshrl.u32 %s2050, 16
        %s2053 = sadd.s32 %s2017, 3
        %s2054 = sld [smem:[#allocation2 + %s2053]]
        %p2056 = scmp.ne.f32.partialorder %s2054, %s2054
        %s2057 = sshrl.u32 %s2054, 16
        %s2058 = sand.u32 %s2057, 1
        %s2059 = sadd.s32 32767, %s2058
        %s2060 = sadd.s32 %s2054, %s2059
        %s2061 = sand.u32 %s2060, 4294901760
        %s2062 = scalar_select %p2056, 2143289344, %s2061
        %s2064 = sshrl.u32 %s2062, 16
        %s2065 = sadd.s32 %s2017, 4
        %s2066 = sld [smem:[#allocation2 + %s2065]]
        %p2068 = scmp.ne.f32.partialorder %s2066, %s2066
        %s2069 = sshrl.u32 %s2066, 16
        %s2070 = sand.u32 %s2069, 1
        %s2071 = sadd.s32 32767, %s2070
        %s2072 = sadd.s32 %s2066, %s2071
        %s2073 = sand.u32 %s2072, 4294901760
        %s2074 = scalar_select %p2068, 2143289344, %s2073
        %s2076 = sshrl.u32 %s2074, 16
        %s2077 = sadd.s32 %s2017, 5
        %s2078 = sld [smem:[#allocation2 + %s2077]]
        %p2080 = scmp.ne.f32.partialorder %s2078, %s2078
        %s2081 = sshrl.u32 %s2078, 16
        %s2082 = sand.u32 %s2081, 1
        %s2083 = sadd.s32 32767, %s2082
        %s2084 = sadd.s32 %s2078, %s2083
        %s2085 = sand.u32 %s2084, 4294901760
        %s2086 = scalar_select %p2080, 2143289344, %s2085
        %s2088 = sshrl.u32 %s2086, 16
        %s2089 = sadd.s32 %s2017, 6
        %s2090 = sld [smem:[#allocation2 + %s2089]]
        %p2092 = scmp.ne.f32.partialorder %s2090, %s2090
        %s2093 = sshrl.u32 %s2090, 16
        %s2094 = sand.u32 %s2093, 1
        %s2095 = sadd.s32 32767, %s2094
        %s2096 = sadd.s32 %s2090, %s2095
        %s2097 = sand.u32 %s2096, 4294901760
        %s2098 = scalar_select %p2092, 2143289344, %s2097
        %s2100 = sshrl.u32 %s2098, 16
        %s2101 = sadd.s32 %s2017, 7
        %s2102 = sld [smem:[#allocation2 + %s2101]]
        %p2104 = scmp.ne.f32.partialorder %s2102, %s2102
        %s2105 = sshrl.u32 %s2102, 16
        %s2106 = sand.u32 %s2105, 1
        %s2107 = sadd.s32 32767, %s2106
        %s2108 = sadd.s32 %s2102, %s2107
        %s2109 = sand.u32 %s2108, 4294901760
        %s2110 = scalar_select %p2104, 2143289344, %s2109
        %s2112 = sshrl.u32 %s2110, 16
        %s2113 = sadd.s32 %s2017, 8
        %s2114 = sld [smem:[#allocation2 + %s2113]]
        %p2116 = scmp.ne.f32.partialorder %s2114, %s2114
        %s2117 = sshrl.u32 %s2114, 16
        %s2118 = sand.u32 %s2117, 1
        %s2119 = sadd.s32 32767, %s2118
        %s2120 = sadd.s32 %s2114, %s2119
        %s2121 = sand.u32 %s2120, 4294901760
        %s2122 = scalar_select %p2116, 2143289344, %s2121
        %s2124 = sshrl.u32 %s2122, 16
        %s2125 = sshll.u32 %s2028, 16
        %s2126 = sor.u32 %s2028, %s2125
        %v2127 = vstv %s2126
        %v2129 = vmul.bf16 %v2127, %v222
        %s2130 = sshll.u32 %s2040, 16
        %s2131 = sor.u32 %s2040, %s2130
        %v2132 = vstv %s2131
        %v2134 = vmul.bf16 %v2132, %v225
        %v2135 = vadd.bf16 %v2129, %v2134
        %s2136 = sshll.u32 %s2052, 16
        %s2137 = sor.u32 %s2052, %s2136
        %v2138 = vstv %s2137
        %v2140 = vmul.bf16 %v2138, %v222
        %2142 = vrot.lane.b32.xlu0 %v2140, 127
        %v2143 = vpop.permute.xlu0 %2142
        %v2145 = vadd.bf16 %v2135, %v2143
        %s2146 = sshll.u32 %s2064, 16
        %s2147 = sor.u32 %s2064, %s2146
        %v2148 = vstv %s2147
        %v2150 = vmul.bf16 %v2148, %v228
        %v2151 = vadd.bf16 %v2145, %v2150
        %s2152 = sshll.u32 %s2076, 16
        %s2153 = sor.u32 %s2076, %s2152
        %v2154 = vstv %s2153
        %v2156 = vmul.bf16 %v2154, %v231
        %v2157 = vadd.bf16 %v2151, %v2156
        %s2158 = sshll.u32 %s2088, 16
        %s2159 = sor.u32 %s2088, %s2158
        %v2160 = vstv %s2159
        %v2162 = vmul.bf16 %v2160, %v228
        %2164 = vrot.lane.b32.xlu0 %v2162, 127
        %v2165 = vpop.permute.xlu0 %2164
        %v2167 = vadd.bf16 %v2157, %v2165
        %s2168 = sshll.u32 %s2100, 16
        %s2169 = sor.u32 %s2100, %s2168
        %v2170 = vstv %s2169
        %v2172 = vmul.bf16 %v2170, %v233
        %v2173 = vadd.bf16 %v2167, %v2172
        %s2174 = sshll.u32 %s2112, 16
        %s2175 = sor.u32 %s2112, %s2174
        %v2176 = vstv %s2175
        %v2178 = vmul.bf16 %v2176, %v235
        %v2179 = vadd.bf16 %v2173, %v2178
        %s2180 = sshll.u32 %s2124, 16
        %s2181 = sor.u32 %s2124, %s2180
        %v2182 = vstv %s2181
        %v2184 = vmul.bf16 %v2182, %v233
        %2186 = vrot.lane.b32.xlu0 %v2184, 127
        %v2187 = vpop.permute.xlu0 %2186
        %v2189 = vadd.bf16 %v2179, %v2187
        %v2190 = vmul.bf16 %v2127, %v225
        %v2191 = vmul.bf16 %v2132, %v222
        %2193 = vrot.lane.b32.xlu0 %v2191, 127
        %v2194 = vpop.permute.xlu0 %2193
        %v2196 = vadd.bf16 %v2190, %v2194
        %v2197 = vmul.bf16 %v2138, %v225
        %2199 = vrot.lane.b32.xlu0 %v2197, 127
        %v2200 = vpop.permute.xlu0 %2199
        %v2202 = vadd.bf16 %v2196, %v2200
        %v2203 = vmul.bf16 %v2148, %v231
        %v2204 = vadd.bf16 %v2202, %v2203
        %v2205 = vmul.bf16 %v2154, %v228
        %2207 = vrot.lane.b32.xlu0 %v2205, 127
        %v2208 = vpop.permute.xlu0 %2207
        %v2210 = vadd.bf16 %v2204, %v2208
        %v2211 = vmul.bf16 %v2160, %v231
        %2213 = vrot.lane.b32.xlu0 %v2211, 127
        %v2214 = vpop.permute.xlu0 %2213
        %v2216 = vadd.bf16 %v2210, %v2214
        %v2217 = vmul.bf16 %v2170, %v235
        %v2218 = vadd.bf16 %v2216, %v2217
        %v2219 = vmul.bf16 %v2176, %v233
        %2221 = vrot.lane.b32.xlu0 %v2219, 127
        %v2222 = vpop.permute.xlu0 %2221
        %v2224 = vadd.bf16 %v2218, %v2222
        %v2225 = vmul.bf16 %v2182, %v235
        %2227 = vrot.lane.b32.xlu0 %v2225, 127
        %v2228 = vpop.permute.xlu0 %2227
        %v2230 = vadd.bf16 %v2224, %v2228
        %v2231 = vmax.bf16 %v2189, %v2230
        %v2232 = vmul.bf16 %v2127, %v228
        %v2233 = vmul.bf16 %v2132, %v231
        %v2234 = vadd.bf16 %v2232, %v2233
        %v2235 = vmul.bf16 %v2138, %v228
        %2237 = vrot.lane.b32.xlu0 %v2235, 127
        %v2238 = vpop.permute.xlu0 %2237
        %v2240 = vadd.bf16 %v2234, %v2238
        %v2241 = vmul.bf16 %v2148, %v233
        %v2242 = vadd.bf16 %v2240, %v2241
        %v2243 = vmul.bf16 %v2154, %v235
        %v2244 = vadd.bf16 %v2242, %v2243
        %v2245 = vmul.bf16 %v2160, %v233
        %2247 = vrot.lane.b32.xlu0 %v2245, 127
        %v2248 = vpop.permute.xlu0 %2247
        %v2250 = vadd.bf16 %v2244, %v2248
        %v2251 = vmul.bf16 %v2170, %v237
        %v2252 = vadd.bf16 %v2250, %v2251
        %v2253 = vmul.bf16 %v2176, %v239
        %v2254 = vadd.bf16 %v2252, %v2253
        %v2255 = vmul.bf16 %v2182, %v237
        %2257 = vrot.lane.b32.xlu0 %v2255, 127
        %v2258 = vpop.permute.xlu0 %2257
        %v2260 = vadd.bf16 %v2254, %v2258
        %v2261 = vmax.bf16 %v2231, %v2260
        %v2262 = vmul.bf16 %v2127, %v231
        %v2263 = vmul.bf16 %v2132, %v228
        %2265 = vrot.lane.b32.xlu0 %v2263, 127
        %v2266 = vpop.permute.xlu0 %2265
        %v2268 = vadd.bf16 %v2262, %v2266
        %v2269 = vmul.bf16 %v2138, %v231
        %2271 = vrot.lane.b32.xlu0 %v2269, 127
        %v2272 = vpop.permute.xlu0 %2271
        %v2274 = vadd.bf16 %v2268, %v2272
        %v2275 = vmul.bf16 %v2148, %v235
        %v2276 = vadd.bf16 %v2274, %v2275
        %v2277 = vmul.bf16 %v2154, %v233
        %2279 = vrot.lane.b32.xlu0 %v2277, 127
        %v2280 = vpop.permute.xlu0 %2279
        %v2282 = vadd.bf16 %v2276, %v2280
        %v2283 = vmul.bf16 %v2160, %v235
        %2285 = vrot.lane.b32.xlu0 %v2283, 127
        %v2286 = vpop.permute.xlu0 %2285
        %v2288 = vadd.bf16 %v2282, %v2286
        %v2289 = vmul.bf16 %v2170, %v239
        %v2290 = vadd.bf16 %v2288, %v2289
        %v2291 = vmul.bf16 %v2176, %v237
        %2293 = vrot.lane.b32.xlu0 %v2291, 127
        %v2294 = vpop.permute.xlu0 %2293
        %v2296 = vadd.bf16 %v2290, %v2294
        %v2297 = vmul.bf16 %v2182, %v239
        %2299 = vrot.lane.b32.xlu0 %v2297, 127
        %v2300 = vpop.permute.xlu0 %2299
        %v2302 = vadd.bf16 %v2296, %v2300
        %v2303 = vmax.bf16 %v2261, %v2302
        %v2304 = vunpack.c.l.bf16 %v2303
        %s2305 = sld [smem:[#allocation5 + %s2016]]
        %v2306 = vstv %s2305
        %v2307 = vadd.f32 %v2304, %v2306
        %v2308 = vmax.f32 %v2307, 0.0
        %v2309 = vpack.c.bf16 %v2308, %v2308
        %s2310 = scalar_lea.vmem %s219, 24
        %2311 = vst.msk [vmem:[%s2310] sm:$0xf] %vm534, %v2309
        %s2312 = sadd.s32 %s240, 7
        %s2313 = smul.u32 %s2312, 128
        %s2314 = sld [smem:[#allocation2 + %s2313]]
        %p2316 = scmp.ne.f32.partialorder %s2314, %s2314
        %s2317 = sshrl.u32 %s2314, 16
        %s2318 = sand.u32 %s2317, 1
        %s2319 = sadd.s32 32767, %s2318
        %s2320 = sadd.s32 %s2314, %s2319
        %s2321 = sand.u32 %s2320, 4294901760
        %s2322 = scalar_select %p2316, 2143289344, %s2321
        %s2324 = sshrl.u32 %s2322, 16
        %s2325 = sadd.s32 %s2313, 1
        %s2326 = sld [smem:[#allocation2 + %s2325]]
        %p2328 = scmp.ne.f32.partialorder %s2326, %s2326
        %s2329 = sshrl.u32 %s2326, 16
        %s2330 = sand.u32 %s2329, 1
        %s2331 = sadd.s32 32767, %s2330
        %s2332 = sadd.s32 %s2326, %s2331
        %s2333 = sand.u32 %s2332, 4294901760
        %s2334 = scalar_select %p2328, 2143289344, %s2333
        %s2336 = sshrl.u32 %s2334, 16
        %s2337 = sadd.s32 %s2313, 2
        %s2338 = sld [smem:[#allocation2 + %s2337]]
        %p2340 = scmp.ne.f32.partialorder %s2338, %s2338
        %s2341 = sshrl.u32 %s2338, 16
        %s2342 = sand.u32 %s2341, 1
        %s2343 = sadd.s32 32767, %s2342
        %s2344 = sadd.s32 %s2338, %s2343
        %s2345 = sand.u32 %s2344, 4294901760
        %s2346 = scalar_select %p2340, 2143289344, %s2345
        %s2348 = sshrl.u32 %s2346, 16
        %s2349 = sadd.s32 %s2313, 3
        %s2350 = sld [smem:[#allocation2 + %s2349]]
        %p2352 = scmp.ne.f32.partialorder %s2350, %s2350
        %s2353 = sshrl.u32 %s2350, 16
        %s2354 = sand.u32 %s2353, 1
        %s2355 = sadd.s32 32767, %s2354
        %s2356 = sadd.s32 %s2350, %s2355
        %s2357 = sand.u32 %s2356, 4294901760
        %s2358 = scalar_select %p2352, 2143289344, %s2357
        %s2360 = sshrl.u32 %s2358, 16
        %s2361 = sadd.s32 %s2313, 4
        %s2362 = sld [smem:[#allocation2 + %s2361]]
        %p2364 = scmp.ne.f32.partialorder %s2362, %s2362
        %s2365 = sshrl.u32 %s2362, 16
        %s2366 = sand.u32 %s2365, 1
        %s2367 = sadd.s32 32767, %s2366
        %s2368 = sadd.s32 %s2362, %s2367
        %s2369 = sand.u32 %s2368, 4294901760
        %s2370 = scalar_select %p2364, 2143289344, %s2369
        %s2372 = sshrl.u32 %s2370, 16
        %s2373 = sadd.s32 %s2313, 5
        %s2374 = sld [smem:[#allocation2 + %s2373]]
        %p2376 = scmp.ne.f32.partialorder %s2374, %s2374
        %s2377 = sshrl.u32 %s2374, 16
        %s2378 = sand.u32 %s2377, 1
        %s2379 = sadd.s32 32767, %s2378
        %s2380 = sadd.s32 %s2374, %s2379
        %s2381 = sand.u32 %s2380, 4294901760
        %s2382 = scalar_select %p2376, 2143289344, %s2381
        %s2384 = sshrl.u32 %s2382, 16
        %s2385 = sadd.s32 %s2313, 6
        %s2386 = sld [smem:[#allocation2 + %s2385]]
        %p2388 = scmp.ne.f32.partialorder %s2386, %s2386
        %s2389 = sshrl.u32 %s2386, 16
        %s2390 = sand.u32 %s2389, 1
        %s2391 = sadd.s32 32767, %s2390
        %s2392 = sadd.s32 %s2386, %s2391
        %s2393 = sand.u32 %s2392, 4294901760
        %s2394 = scalar_select %p2388, 2143289344, %s2393
        %s2396 = sshrl.u32 %s2394, 16
        %s2397 = sadd.s32 %s2313, 7
        %s2398 = sld [smem:[#allocation2 + %s2397]]
        %p2400 = scmp.ne.f32.partialorder %s2398, %s2398
        %s2401 = sshrl.u32 %s2398, 16
        %s2402 = sand.u32 %s2401, 1
        %s2403 = sadd.s32 32767, %s2402
        %s2404 = sadd.s32 %s2398, %s2403
        %s2405 = sand.u32 %s2404, 4294901760
        %s2406 = scalar_select %p2400, 2143289344, %s2405
        %s2408 = sshrl.u32 %s2406, 16
        %s2409 = sadd.s32 %s2313, 8
        %s2410 = sld [smem:[#allocation2 + %s2409]]
        %p2412 = scmp.ne.f32.partialorder %s2410, %s2410
        %s2413 = sshrl.u32 %s2410, 16
        %s2414 = sand.u32 %s2413, 1
        %s2415 = sadd.s32 32767, %s2414
        %s2416 = sadd.s32 %s2410, %s2415
        %s2417 = sand.u32 %s2416, 4294901760
        %s2418 = scalar_select %p2412, 2143289344, %s2417
        %s2420 = sshrl.u32 %s2418, 16
        %s2421 = sshll.u32 %s2324, 16
        %s2422 = sor.u32 %s2324, %s2421
        %v2423 = vstv %s2422
        %v2425 = vmul.bf16 %v2423, %v222
        %s2426 = sshll.u32 %s2336, 16
        %s2427 = sor.u32 %s2336, %s2426
        %v2428 = vstv %s2427
        %v2430 = vmul.bf16 %v2428, %v225
        %v2431 = vadd.bf16 %v2425, %v2430
        %s2432 = sshll.u32 %s2348, 16
        %s2433 = sor.u32 %s2348, %s2432
        %v2434 = vstv %s2433
        %v2436 = vmul.bf16 %v2434, %v222
        %2438 = vrot.lane.b32.xlu0 %v2436, 127
        %v2439 = vpop.permute.xlu0 %2438
        %v2441 = vadd.bf16 %v2431, %v2439
        %s2442 = sshll.u32 %s2360, 16
        %s2443 = sor.u32 %s2360, %s2442
        %v2444 = vstv %s2443
        %v2446 = vmul.bf16 %v2444, %v228
        %v2447 = vadd.bf16 %v2441, %v2446
        %s2448 = sshll.u32 %s2372, 16
        %s2449 = sor.u32 %s2372, %s2448
        %v2450 = vstv %s2449
        %v2452 = vmul.bf16 %v2450, %v231
        %v2453 = vadd.bf16 %v2447, %v2452
        %s2454 = sshll.u32 %s2384, 16
        %s2455 = sor.u32 %s2384, %s2454
        %v2456 = vstv %s2455
        %v2458 = vmul.bf16 %v2456, %v228
        %2460 = vrot.lane.b32.xlu0 %v2458, 127
        %v2461 = vpop.permute.xlu0 %2460
        %v2463 = vadd.bf16 %v2453, %v2461
        %s2464 = sshll.u32 %s2396, 16
        %s2465 = sor.u32 %s2396, %s2464
        %v2466 = vstv %s2465
        %v2468 = vmul.bf16 %v2466, %v233
        %v2469 = vadd.bf16 %v2463, %v2468
        %s2470 = sshll.u32 %s2408, 16
        %s2471 = sor.u32 %s2408, %s2470
        %v2472 = vstv %s2471
        %v2474 = vmul.bf16 %v2472, %v235
        %v2475 = vadd.bf16 %v2469, %v2474
        %s2476 = sshll.u32 %s2420, 16
        %s2477 = sor.u32 %s2420, %s2476
        %v2478 = vstv %s2477
        %v2480 = vmul.bf16 %v2478, %v233
        %2482 = vrot.lane.b32.xlu0 %v2480, 127
        %v2483 = vpop.permute.xlu0 %2482
        %v2485 = vadd.bf16 %v2475, %v2483
        %v2486 = vmul.bf16 %v2423, %v225
        %v2487 = vmul.bf16 %v2428, %v222
        %2489 = vrot.lane.b32.xlu0 %v2487, 127
        %v2490 = vpop.permute.xlu0 %2489
        %v2492 = vadd.bf16 %v2486, %v2490
        %v2493 = vmul.bf16 %v2434, %v225
        %2495 = vrot.lane.b32.xlu0 %v2493, 127
        %v2496 = vpop.permute.xlu0 %2495
        %v2498 = vadd.bf16 %v2492, %v2496
        %v2499 = vmul.bf16 %v2444, %v231
        %v2500 = vadd.bf16 %v2498, %v2499
        %v2501 = vmul.bf16 %v2450, %v228
        %2503 = vrot.lane.b32.xlu0 %v2501, 127
        %v2504 = vpop.permute.xlu0 %2503
        %v2506 = vadd.bf16 %v2500, %v2504
        %v2507 = vmul.bf16 %v2456, %v231
        %2509 = vrot.lane.b32.xlu0 %v2507, 127
        %v2510 = vpop.permute.xlu0 %2509
        %v2512 = vadd.bf16 %v2506, %v2510
        %v2513 = vmul.bf16 %v2466, %v235
        %v2514 = vadd.bf16 %v2512, %v2513
        %v2515 = vmul.bf16 %v2472, %v233
        %2517 = vrot.lane.b32.xlu0 %v2515, 127
        %v2518 = vpop.permute.xlu0 %2517
        %v2520 = vadd.bf16 %v2514, %v2518
        %v2521 = vmul.bf16 %v2478, %v235
        %2523 = vrot.lane.b32.xlu0 %v2521, 127
        %v2524 = vpop.permute.xlu0 %2523
        %v2526 = vadd.bf16 %v2520, %v2524
        %v2527 = vmax.bf16 %v2485, %v2526
        %v2528 = vmul.bf16 %v2423, %v228
        %v2529 = vmul.bf16 %v2428, %v231
        %v2530 = vadd.bf16 %v2528, %v2529
        %v2531 = vmul.bf16 %v2434, %v228
        %2533 = vrot.lane.b32.xlu0 %v2531, 127
        %v2534 = vpop.permute.xlu0 %2533
        %v2536 = vadd.bf16 %v2530, %v2534
        %v2537 = vmul.bf16 %v2444, %v233
        %v2538 = vadd.bf16 %v2536, %v2537
        %v2539 = vmul.bf16 %v2450, %v235
        %v2540 = vadd.bf16 %v2538, %v2539
        %v2541 = vmul.bf16 %v2456, %v233
        %2543 = vrot.lane.b32.xlu0 %v2541, 127
        %v2544 = vpop.permute.xlu0 %2543
        %v2546 = vadd.bf16 %v2540, %v2544
        %v2547 = vmul.bf16 %v2466, %v237
        %v2548 = vadd.bf16 %v2546, %v2547
        %v2549 = vmul.bf16 %v2472, %v239
        %v2550 = vadd.bf16 %v2548, %v2549
        %v2551 = vmul.bf16 %v2478, %v237
        %2553 = vrot.lane.b32.xlu0 %v2551, 127
        %v2554 = vpop.permute.xlu0 %2553
        %v2556 = vadd.bf16 %v2550, %v2554
        %v2557 = vmax.bf16 %v2527, %v2556
        %v2558 = vmul.bf16 %v2423, %v231
        %v2559 = vmul.bf16 %v2428, %v228
        %2561 = vrot.lane.b32.xlu0 %v2559, 127
        %v2562 = vpop.permute.xlu0 %2561
        %v2564 = vadd.bf16 %v2558, %v2562
        %v2565 = vmul.bf16 %v2434, %v231
        %2567 = vrot.lane.b32.xlu0 %v2565, 127
        %v2568 = vpop.permute.xlu0 %2567
        %v2570 = vadd.bf16 %v2564, %v2568
        %v2571 = vmul.bf16 %v2444, %v235
        %v2572 = vadd.bf16 %v2570, %v2571
        %v2573 = vmul.bf16 %v2450, %v233
        %2575 = vrot.lane.b32.xlu0 %v2573, 127
        %v2576 = vpop.permute.xlu0 %2575
        %v2578 = vadd.bf16 %v2572, %v2576
        %v2579 = vmul.bf16 %v2456, %v235
        %2581 = vrot.lane.b32.xlu0 %v2579, 127
        %v2582 = vpop.permute.xlu0 %2581
        %v2584 = vadd.bf16 %v2578, %v2582
        %v2585 = vmul.bf16 %v2466, %v239
        %v2586 = vadd.bf16 %v2584, %v2585
        %v2587 = vmul.bf16 %v2472, %v237
        %2589 = vrot.lane.b32.xlu0 %v2587, 127
        %v2590 = vpop.permute.xlu0 %2589
        %v2592 = vadd.bf16 %v2586, %v2590
        %v2593 = vmul.bf16 %v2478, %v239
        %2595 = vrot.lane.b32.xlu0 %v2593, 127
        %v2596 = vpop.permute.xlu0 %2595
        %v2598 = vadd.bf16 %v2592, %v2596
        %v2599 = vmax.bf16 %v2557, %v2598
        %v2600 = vunpack.c.l.bf16 %v2599
        %s2601 = sld [smem:[#allocation5 + %s2312]]
        %v2602 = vstv %s2601
        %v2603 = vadd.f32 %v2600, %v2602
        %v2604 = vmax.f32 %v2603, 0.0
        %v2605 = vpack.c.bf16 %v2604, %v2604
        %s2606 = scalar_lea.vmem %s219, 28
        %2607 = vst.msk [vmem:[%s2606] sm:$0xf] %vm534, %v2605
        %s2608 = smul.u32 8, %s21
        %p2609 = scmp.lt.s32.totalorder %s20, 1
        %s2610 = scalar_select %p2609, %s20, 1
        %p2611 = scmp.lt.s32.totalorder %s2608, 31
        %s2612 = scalar_select %p2611, %s2608, 31
        %s2613 = smul.addr %s2610, 32
        %s2614 = sadd.s32 %s2612, %s2613
        %s2615 = smul.addr %s2614, 4
        %s2616 = scalar_lea.vmem %s3, %s2615
        // Predicated region
        $region41: #{lifespan_predictor_forward.3} parent=31 // pred_check
          %p2617 = pneg %p116
        $region42: #{lifespan_predictor_forward.3} parent=31 // pred_check_branch
          %2619 = sbr.rel (%p2617) target = $region44
        $region43: #{lifespan_predictor_forward.3} parent=31 // pred_region
          %s2620 = smul.u32 8, %s21
        $region44: #{lifespan_predictor_forward.3} parent=31 // pred_fallthru
          _
      $region32: #{lifespan_predictor_forward.3} parent=5 // pred_fallthru
        _
      %p2621 = scmp.le.s32.totalorder 2, %s11
      // Predicated region
      $region45: #{lifespan_predictor_forward.3} parent=5 // pred_check
        %p2622 = pneg %p2621
      $region46: #{lifespan_predictor_forward.3} parent=5 // pred_check_branch
        %2624 = sbr.rel (%p2622) target = $region48
      $region47: #{lifespan_predictor_forward.3} parent=5 // pred_region
        %s2625 = ssub.s32 %s11, 2
        // Predicated region
        $region49: #{lifespan_predictor_forward.3} parent=47 // pred_check
          %p2626 = pneg %p122
        $region50: #{lifespan_predictor_forward.3} parent=47 // pred_check_branch
          %2628 = sbr.rel (%p2626) target = $region52
        $region51: #{lifespan_predictor_forward.3} parent=47 // pred_region
          %s2629 = smul.u32 8, %s23
          %p2630 = scmp.lt.s32.totalorder %s22, 1
          %s2631 = scalar_select %p2630, %s22, 1
          %p2632 = scmp.lt.s32.totalorder %s2629, 31
          %s2633 = scalar_select %p2632, %s2629, 31
          %s2634 = smul.addr %s2631, 32
          %s2635 = sadd.s32 %s2633, %s2634
          %s2636 = smul.addr %s2635, 4
          %s2637 = scalar_lea.vmem %s3, %s2636
        $region52: #{lifespan_predictor_forward.3} parent=47 // pred_fallthru
          _
      $region48: #{lifespan_predictor_forward.3} parent=5 // pred_fallthru
        _
    $region6: #{lifespan_predictor_forward.3} parent=1 // loop_footer
      %s15 = sadd.s32 1, %s11
    $region7: #{lifespan_predictor_forward.3} parent=1 // loop_footer_branch
      %10 = sbr.rel target = $region3
    $region8: #{lifespan_predictor_forward.3} parent=1 // loop_exit
      _
    %2638 = vsyncpa [#allocation3], 1
    %s2639 = scalar_lea.sflag [#allocation3], 1
    %2640 = vsyncpa %s2639, 1
    %2641 = vsyncpa [#allocation4], 1
    %s2642 = scalar_lea.sflag [#allocation4], 1
    %2643 = vsyncpa %s2642, 1

// kernel: lifespan_predictor_forward.4
$region0: #{lifespan_predictor_forward.4}
  #allocation0 [shape = 'u32[]', space=smem, size = 0x4, offset = 0x4, fixed_abs, tag = 'smem constant byte address 0x4 - core index']
  #allocation1 [shape = 'u32[144,128]{1,0:T(1,128)}', space=vmem, size = 0x12000, scoped, tag = 'internal scratch']
  %s0 = inlined_call_operand.vmem [shape: bf16[2,2048], index: 0, kind: input, shape index: {}]
  %s1 = inlined_call_operand.hbm [shape: bf16[2048,512], index: 1, kind: input, shape index: {}]
  %s2 = inlined_call_operand.hbm [shape: f32[1,512], index: 2, kind: input, shape index: {}]
  %s3 = inlined_call_operand.vmem [shape: f32[2,512], index: 3, kind: output, shape index: {}]
  %s4 = sld [smem:[#allocation0]]
  $region61: #{lifespan_predictor_forward.4} parent=0
    _
  %s6 = ssub.s32 1, %s4
  %s7 = scalar_select 0, %s6, %s4
  $region1: #{lifespan_predictor_forward.4} parent=0
    #allocation2 [shape = 'u8[2097152]{0}', space=vmem, size = 0x200000, scoped, tag = 'input window, operand 1']
    #allocation3 [shape = 's32[2]{0}', space=sflag, size = 0x8, scoped, tag = 'scoped memory for lifespan_predictor_forward.4']
    #allocation4 [shape = 'u8[2048]{0}', space=vmem, size = 0x800, scoped, tag = 'input window, operand 2']
    #allocation5 [shape = 's32[2]{0}', space=sflag, size = 0x8, scoped, tag = 'scoped memory for lifespan_predictor_forward.4']
    %8 = vsyncpa [#allocation3], 0
    %s9 = scalar_lea.sflag [#allocation3], 1
    %10 = vsyncpa %s9, 0
    %11 = vsyncpa [#allocation5], 0
    %s12 = scalar_lea.sflag [#allocation5], 1
    %13 = vsyncpa %s12, 0
    loop: start=0, step=1, limit=4
    $region2: #{lifespan_predictor_forward.4} parent=1 // loop_pre_header
      _
    $region3: #{lifespan_predictor_forward.4} parent=1 // loop_header
      %s15 = sphi 0, %s19
      %p16 = scmp.ge.s32.totalorder %s15, 4
      %s22 = sphi 0, %s34
      %s23 = sphi 0, %s30
      %s24 = sphi 0, %s22
      %s25 = sphi 0, %s23
      %s26 = sphi 0, %s24
      %s27 = sphi 0, %s25
      %s37 = sphi 0, %s39
      %s40 = sphi 0, %s37
      %s41 = sphi 0, %s40
      %s57 = sphi 0, %s41
      %s65 = sphi 0, %s67
      %s68 = sphi 0, %s65
      %s69 = sphi 0, %s68
      %s85 = sphi 0, %s69
      %s91 = sphi 0, %s93
      %s94 = sphi 0, %s91
      %s95 = sphi 0, %s94
      %s111 = sphi 0, %s95
      %s117 = sphi 0, %s119
      %s120 = sphi 0, %s117
      %s121 = sphi 0, %s120
      %s137 = sphi 0, %s121
    $region4: #{lifespan_predictor_forward.4} parent=1 // loop_header_branch
      %18 = sbr.rel (%p16) target = $region8
    $region5: #{lifespan_predictor_forward.4} parent=1 // loop_body
      %s20 = ssub.s32 %s15, 1
      %s21 = ssub.s32 %s15, 2
      %s28 = sadd.s32 1, %s23
      %p29 = scmp.ge.s32.totalorder %s28, 1
      %s30 = scalar_select %p29, 0, %s28
      %s31 = sadd.s32 1, %s22
      %s32 = scalar_select %p29, %s31, %s22
      %p33 = scmp.ge.s32.totalorder %s32, 2
      %s34 = scalar_select %p33, 0, %s32
      %s35 = ssub.s32 %s23, %s30
      %p36 = scmp.eq.s32.totalorder %s35, 0
      %s38 = sadd.s32 %s37, 1
      %s39 = scalar_select %p36, %s37, %s38
      %p42 = pneg %p36
      %p43 = scmp.eq.s32.totalorder %s15, 1
      %p44 = por %p42, %p43
      %p45 = scmp.ne.s32.totalorder %s37, %s40
      %p46 = scmp.eq.s32.totalorder %s15, 0
      %p47 = por %p45, %p46
      %p48 = scmp.ne.s32.totalorder %s37, %s40
      %p49 = scmp.eq.s32.totalorder %s20, 1
      %p50 = por %p48, %p49
      %p51 = scmp.ne.s32.totalorder %s40, %s41
      %p52 = scmp.eq.s32.totalorder %s20, 0
      %p53 = por %p51, %p52
      %p54 = scmp.ne.s32.totalorder %s40, %s41
      %p55 = scmp.eq.s32.totalorder %s21, 1
      %p56 = por %p54, %p55
      %p58 = scmp.ne.s32.totalorder %s41, %s57
      %p59 = scmp.eq.s32.totalorder %s21, 0
      %p60 = por %p58, %p59
      %s61 = ssub.s32 %s23, %s30
      %s62 = ssub.s32 %s22, %s34
      %s63 = sor.u32 %s61, %s62
      %p64 = scmp.eq.s32.totalorder %s63, 0
      %s66 = sadd.s32 %s65, 1
      %s67 = scalar_select %p64, %s65, %s66
      %p70 = pneg %p64
      %p71 = scmp.eq.s32.totalorder %s15, 1
      %p72 = por %p70, %p71
      %p73 = scmp.ne.s32.totalorder %s65, %s68
      %p74 = scmp.eq.s32.totalorder %s15, 0
      %p75 = por %p73, %p74
      %p76 = scmp.ne.s32.totalorder %s65, %s68
      %p77 = scmp.eq.s32.totalorder %s20, 1
      %p78 = por %p76, %p77
      %p79 = scmp.ne.s32.totalorder %s68, %s69
      %p80 = scmp.eq.s32.totalorder %s20, 0
      %p81 = por %p79, %p80
      %p82 = scmp.ne.s32.totalorder %s68, %s69
      %p83 = scmp.eq.s32.totalorder %s21, 1
      %p84 = por %p82, %p83
      %p86 = scmp.ne.s32.totalorder %s69, %s85
      %p87 = scmp.eq.s32.totalorder %s21, 0
      %p88 = por %p86, %p87
      %s89 = ssub.s32 %s22, %s34
      %p90 = scmp.eq.s32.totalorder %s89, 0
      %s92 = sadd.s32 %s91, 1
      %s93 = scalar_select %p90, %s91, %s92
      %p96 = pneg %p90
      %p97 = scmp.eq.s32.totalorder %s15, 1
      %p98 = por %p96, %p97
      %p99 = scmp.ne.s32.totalorder %s91, %s94
      %p100 = scmp.eq.s32.totalorder %s15, 0
      %p101 = por %p99, %p100
      %p102 = scmp.ne.s32.totalorder %s91, %s94
      %p103 = scmp.eq.s32.totalorder %s20, 1
      %p104 = por %p102, %p103
      %p105 = scmp.ne.s32.totalorder %s94, %s95
      %p106 = scmp.eq.s32.totalorder %s20, 0
      %p107 = por %p105, %p106
      %p108 = scmp.ne.s32.totalorder %s94, %s95
      %p109 = scmp.eq.s32.totalorder %s21, 1
      %p110 = por %p108, %p109
      %p112 = scmp.ne.s32.totalorder %s95, %s111
      %p113 = scmp.eq.s32.totalorder %s21, 0
      %p114 = por %p112, %p113
      %s115 = ssub.s32 %s22, %s34
      %p116 = scmp.eq.s32.totalorder %s115, 0
      %s118 = sadd.s32 %s117, 1
      %s119 = scalar_select %p116, %s117, %s118
      %p122 = pneg %p116
      %p123 = scmp.eq.s32.totalorder %s15, 1
      %p124 = por %p122, %p123
      %p125 = scmp.ne.s32.totalorder %s117, %s120
      %p126 = scmp.eq.s32.totalorder %s15, 0
      %p127 = por %p125, %p126
      %p128 = scmp.ne.s32.totalorder %s117, %s120
      %p129 = scmp.eq.s32.totalorder %s20, 1
      %p130 = por %p128, %p129
      %p131 = scmp.ne.s32.totalorder %s120, %s121
      %p132 = scmp.eq.s32.totalorder %s20, 0
      %p133 = por %p131, %p132
      %p134 = scmp.ne.s32.totalorder %s120, %s121
      %p135 = scmp.eq.s32.totalorder %s21, 1
      %p136 = por %p134, %p135
      %p138 = scmp.ne.s32.totalorder %s121, %s137
      %p139 = scmp.eq.s32.totalorder %s21, 0
      %p140 = por %p138, %p139
      %p141 = scmp.le.s32.totalorder 1, %s15
      %p142 = scmp.lt.s32.totalorder %s15, 3
      %p143 = pnand %p141, %p142
      %p144 = pneg %p143
      // Predicated region
      $region9: #{lifespan_predictor_forward.4} parent=5 // pred_check
        _
      $region10: #{lifespan_predictor_forward.4} parent=5 // pred_check_branch
        %146 = sbr.rel (%p143) target = $region12
      $region11: #{lifespan_predictor_forward.4} parent=5 // pred_region
        %s147 = ssub.s32 %s15, 1
        // Predicated region
        $region13: #{lifespan_predictor_forward.4} parent=11 // pred_check
          %p148 = pneg %p53
        $region14: #{lifespan_predictor_forward.4} parent=11 // pred_check_branch
          %150 = sbr.rel (%p148) target = $region16
        $region15: #{lifespan_predictor_forward.4} parent=11 // pred_region
          %s151 = smul.u32 16, %s25
          %p152 = scmp.lt.s32.totalorder %s151, 15
          %s153 = scalar_select %p152, %s151, 15
          %s154 = scalar_lea.vmem %s0, %s153
          %s155 = smul.u32 16, %s25
        $region16: #{lifespan_predictor_forward.4} parent=11 // pred_fallthru
          _
      $region12: #{lifespan_predictor_forward.4} parent=5 // pred_fallthru
        _
      %p156 = scmp.lt.s32.totalorder %s15, 2
      // Predicated region
      $region17: #{lifespan_predictor_forward.4} parent=5 // pred_check
        %p157 = pneg %p156
      $region18: #{lifespan_predictor_forward.4} parent=5 // pred_check_branch
        %159 = sbr.rel (%p157) target = $region20
      $region19: #{lifespan_predictor_forward.4} parent=5 // pred_region
        // Predicated region
        $region21: #{lifespan_predictor_forward.4} parent=19 // pred_check
          %p160 = pneg %p75
        $region22: #{lifespan_predictor_forward.4} parent=19 // pred_check_branch
          %162 = sbr.rel (%p160) target = $region24
        $region23: #{lifespan_predictor_forward.4} parent=19 // pred_region
          %s163 = sand.u32 %s65, 1
          %s164 = scalar_lea.sflag [#allocation3], %s163
          %s165 = sand.u32 %s65, 1
          %s166 = smul.addr %s165, 2048
          %s167 = scalar_lea.vmem [#allocation2], %s166
          %s168 = smul.u32 256, %s23
          %s169 = smul.u32 2, %s22
          %s171 = ssub.s32 32768, 32768
          %172 = vsyncadd %s164, %s171
          %s173 = smul.addr %s168, 4
          %s174 = sadd.s32 %s169, %s173
          %s175 = smul.addr %s174, 64
          %s176 = scalar_lea.hbm %s1, %s175
          %s177 = sshll.u32 %s167, 4
          %s178 = int_to_ptr.vmem [resolvable:$true] %s177
          %183 = dma.hbm_to_vmem [thread:$0]  %s176, 32768, %s178, %s164, 256, 128, 8
        $region24: #{lifespan_predictor_forward.4} parent=19 // pred_fallthru
          _
        // Predicated region
        $region25: #{lifespan_predictor_forward.4} parent=19 // pred_check
          %p184 = pneg %p101
        $region26: #{lifespan_predictor_forward.4} parent=19 // pred_check_branch
          %186 = sbr.rel (%p184) target = $region28
        $region27: #{lifespan_predictor_forward.4} parent=19 // pred_region
          %s187 = sand.u32 %s91, 1
          %s188 = scalar_lea.sflag [#allocation5], %s187
          %s189 = sand.u32 %s91, 1
          %s190 = smul.addr %s189, 2
          %s191 = scalar_lea.vmem [#allocation4], %s190
          %s192 = smul.u32 2, %s22
          %s194 = ssub.s32 32, 32
          %195 = vsyncadd %s188, %s194
          %s196 = smul.addr %s192, 16
          %s197 = scalar_lea.hbm %s2, %s196
          %s199 = sshll.u32 %s191, 4
          %s200 = int_to_ptr.vmem [resolvable:$true] %s199
          %202 = dma.hbm_to_vmem [thread:$0]  %s197, 32, %s200, %s188
        $region28: #{lifespan_predictor_forward.4} parent=19 // pred_fallthru
          _
      $region20: #{lifespan_predictor_forward.4} parent=5 // pred_fallthru
        _
      %p203 = scmp.le.s32.totalorder 1, %s15
      %p204 = scmp.lt.s32.totalorder %s15, 3
      %p205 = pnand %p203, %p204
      %p206 = pneg %p205
      // Predicated region
      $region29: #{lifespan_predictor_forward.4} parent=5 // pred_check
        _
      $region30: #{lifespan_predictor_forward.4} parent=5 // pred_check_branch
        %208 = sbr.rel (%p205) target = $region32
      $region31: #{lifespan_predictor_forward.4} parent=5 // pred_region
        %s209 = ssub.s32 %s15, 1
        %s210 = sand.u32 %s68, 1
        %s211 = scalar_lea.sflag [#allocation3], %s210
        %s212 = sand.u32 %s68, 1
        %s213 = smul.addr %s212, 2048
        %s214 = scalar_lea.vmem [#allocation2], %s213
        // Predicated region
        $region33: #{lifespan_predictor_forward.4} parent=31 // pred_check
          %p215 = pneg %p81
        $region34: #{lifespan_predictor_forward.4} parent=31 // pred_check_branch
          %217 = sbr.rel (%p215) target = $region36
        $region35: #{lifespan_predictor_forward.4} parent=31 // pred_region
          %218 = dma.done %s211, 32768
        $region36: #{lifespan_predictor_forward.4} parent=31 // pred_fallthru
          _
        %s219 = sand.u32 %s94, 1
        %s220 = scalar_lea.sflag [#allocation5], %s219
        %s221 = sand.u32 %s94, 1
        %s222 = smul.addr %s221, 2
        %s223 = scalar_lea.vmem [#allocation4], %s222
        // Predicated region
        $region37: #{lifespan_predictor_forward.4} parent=31 // pred_check
          %p224 = pneg %p107
        $region38: #{lifespan_predictor_forward.4} parent=31 // pred_check_branch
          %226 = sbr.rel (%p224) target = $region40
        $region39: #{lifespan_predictor_forward.4} parent=31 // pred_region
          %227 = dma.done %s220, 32
        $region40: #{lifespan_predictor_forward.4} parent=31 // pred_fallthru
          _
        %s228 = smul.u32 16, %s25
        %p229 = scmp.lt.s32.totalorder %s228, 15
        %s230 = scalar_select %p229, %s228, 15
        %s231 = scalar_lea.vmem %s0, %s230
        %p232 = pneg %p53
        %p233 = pneg %p50
        %s234 = sand.u32 %s68, 1
        %s235 = scalar_lea.sflag [#allocation3], %s234
        %s236 = sand.u32 %s68, 1
        %s237 = smul.addr %s236, 2048
        %s238 = scalar_lea.vmem [#allocation2], %s237
        %p239 = pneg %p81
        %p240 = pneg %p78
        %s241 = sand.u32 %s94, 1
        %s242 = scalar_lea.sflag [#allocation5], %s241
        %s243 = sand.u32 %s94, 1
        %s244 = smul.addr %s243, 2
        %s245 = scalar_lea.vmem [#allocation4], %s244
        %p246 = pneg %p107
        %p247 = pneg %p104
        %p248 = pneg %p133
        %p249 = pneg %p130
        %s250 = smul.u32 2, %s24
        %p251 = scmp.lt.s32.totalorder %s250, 3
        %s252 = scalar_select %p251, %s250, 3
        %s253 = smul.addr %s252, 2
        %s254 = scalar_lea.vmem %s3, %s253
        %s255 = smul.u32 16, %s25
        %p256 = scmp.lt.s32.totalorder %s255, 15
        %s257 = scalar_select %p256, %s255, 15
        %s258 = scalar_lea.vmem %s0, %s257
        %s259 = smul.u32 16, %s25
        %s260 = smul.u32 256, %s25
        %s261 = smul.u32 2, %s24
        %s262 = smul.u32 2, %s24
        %s263 = smul.u32 2, %s24
        %p264 = scmp.lt.s32.totalorder %s263, 3
        %s265 = scalar_select %p264, %s263, 3
        %s266 = smul.addr %s265, 2
        %s267 = scalar_lea.vmem %s3, %s266
        %s268 = smul.u32 2, %s24
        %p269 = scmp.eq.s32.totalorder %s25, 0
        // Predicated region
        $region41: #{lifespan_predictor_forward.4} parent=31 // pred_check
          %p270 = pneg %p269
        $region42: #{lifespan_predictor_forward.4} parent=31 // pred_check_branch
          %272 = sbr.rel (%p270) target = $region44
        $region43: #{lifespan_predictor_forward.4} parent=31 // pred_region
          %273 = vst [vmem:[%s267] sm:$0xf] 0.0
        $region44: #{lifespan_predictor_forward.4} parent=31 // pred_fallthru
          _
        %v274 = vld [vmem:[%s267] sm:$0xf]
        %v275 = vld [vmem:[%s258] sm:$0xff]
        %v276 = vld [vmem:[%s258 + $0x8] sm:$0xff]
        %v277 = vld [vmem:[%s214] sm:$0xff]
        %v278 = vld [vmem:[%s214 + $0x8] sm:$0xff]
        %v279 = vld [vmem:[%s214 + $0x10] sm:$0xff]
        %v280 = vld [vmem:[%s214 + $0x18] sm:$0xff]
        %v281 = vld [vmem:[%s214 + $0x20] sm:$0xff]
        %v282 = vld [vmem:[%s214 + $0x28] sm:$0xff]
        %v283 = vld [vmem:[%s214 + $0x30] sm:$0xff]
        %v284 = vld [vmem:[%s214 + $0x38] sm:$0xff]
        %v285 = vld [vmem:[%s214 + $0x40] sm:$0xff]
        %v286 = vld [vmem:[%s214 + $0x48] sm:$0xff]
        %v287 = vld [vmem:[%s214 + $0x50] sm:$0xff]
        %v288 = vld [vmem:[%s214 + $0x58] sm:$0xff]
        %v289 = vld [vmem:[%s214 + $0x60] sm:$0xff]
        %v290 = vld [vmem:[%s214 + $0x68] sm:$0xff]
        %v291 = vld [vmem:[%s214 + $0x70] sm:$0xff]
        %v292 = vld [vmem:[%s214 + $0x78] sm:$0xff]
        %v293 = vld [vmem:[%s214 + $0x80] sm:$0xff]
        %v294 = vld [vmem:[%s214 + $0x88] sm:$0xff]
        %v295 = vld [vmem:[%s214 + $0x90] sm:$0xff]
        %v296 = vld [vmem:[%s214 + $0x98] sm:$0xff]
        %v297 = vld [vmem:[%s214 + $0xa0] sm:$0xff]
        %v298 = vld [vmem:[%s214 + $0xa8] sm:$0xff]
        %v299 = vld [vmem:[%s214 + $0xb0] sm:$0xff]
        %v300 = vld [vmem:[%s214 + $0xb8] sm:$0xff]
        %v301 = vld [vmem:[%s214 + $0xc0] sm:$0xff]
        %v302 = vld [vmem:[%s214 + $0xc8] sm:$0xff]
        %v303 = vld [vmem:[%s214 + $0xd0] sm:$0xff]
        %v304 = vld [vmem:[%s214 + $0xd8] sm:$0xff]
        %v305 = vld [vmem:[%s214 + $0xe0] sm:$0xff]
        %v306 = vld [vmem:[%s214 + $0xe8] sm:$0xff]
        %v307 = vld [vmem:[%s214 + $0xf0] sm:$0xff]
        %v308 = vld [vmem:[%s214 + $0xf8] sm:$0xff]
        %v309 = vld [vmem:[%s214 + $0x100] sm:$0xff]
        %v310 = vld [vmem:[%s214 + $0x108] sm:$0xff]
        %v311 = vld [vmem:[%s214 + $0x110] sm:$0xff]
        %v312 = vld [vmem:[%s214 + $0x118] sm:$0xff]
        %v313 = vld [vmem:[%s214 + $0x120] sm:$0xff]
        %v314 = vld [vmem:[%s214 + $0x128] sm:$0xff]
        %v315 = vld [vmem:[%s214 + $0x130] sm:$0xff]
        %v316 = vld [vmem:[%s214 + $0x138] sm:$0xff]
        %v317 = vld [vmem:[%s214 + $0x140] sm:$0xff]
        %v318 = vld [vmem:[%s214 + $0x148] sm:$0xff]
        %v319 = vld [vmem:[%s214 + $0x150] sm:$0xff]
        %v320 = vld [vmem:[%s214 + $0x158] sm:$0xff]
        %v321 = vld [vmem:[%s214 + $0x160] sm:$0xff]
        %v322 = vld [vmem:[%s214 + $0x168] sm:$0xff]
        %v323 = vld [vmem:[%s214 + $0x170] sm:$0xff]
        %v324 = vld [vmem:[%s214 + $0x178] sm:$0xff]
        %v325 = vld [vmem:[%s214 + $0x180] sm:$0xff]
        %v326 = vld [vmem:[%s214 + $0x188] sm:$0xff]
        %v327 = vld [vmem:[%s214 + $0x190] sm:$0xff]
        %v328 = vld [vmem:[%s214 + $0x198] sm:$0xff]
        %v329 = vld [vmem:[%s214 + $0x1a0] sm:$0xff]
        %v330 = vld [vmem:[%s214 + $0x1a8] sm:$0xff]
        %v331 = vld [vmem:[%s214 + $0x1b0] sm:$0xff]
        %v332 = vld [vmem:[%s214 + $0x1b8] sm:$0xff]
        %v333 = vld [vmem:[%s214 + $0x1c0] sm:$0xff]
        %v334 = vld [vmem:[%s214 + $0x1c8] sm:$0xff]
        %v335 = vld [vmem:[%s214 + $0x1d0] sm:$0xff]
        %v336 = vld [vmem:[%s214 + $0x1d8] sm:$0xff]
        %v337 = vld [vmem:[%s214 + $0x1e0] sm:$0xff]
        %v338 = vld [vmem:[%s214 + $0x1e8] sm:$0xff]
        %v339 = vld [vmem:[%s214 + $0x1f0] sm:$0xff]
        %v340 = vld [vmem:[%s214 + $0x1f8] sm:$0xff]
        %v341 = vld [vmem:[%s214 + $0x200] sm:$0xff]
        %v342 = vld [vmem:[%s214 + $0x208] sm:$0xff]
        %v343 = vld [vmem:[%s214 + $0x210] sm:$0xff]
        %v344 = vld [vmem:[%s214 + $0x218] sm:$0xff]
        %v345 = vld [vmem:[%s214 + $0x220] sm:$0xff]
        %v346 = vld [vmem:[%s214 + $0x228] sm:$0xff]
        %v347 = vld [vmem:[%s214 + $0x230] sm:$0xff]
        %v348 = vld [vmem:[%s214 + $0x238] sm:$0xff]
        %v349 = vld [vmem:[%s214 + $0x240] sm:$0xff]
        %v350 = vld [vmem:[%s214 + $0x248] sm:$0xff]
        %v351 = vld [vmem:[%s214 + $0x250] sm:$0xff]
        %v352 = vld [vmem:[%s214 + $0x258] sm:$0xff]
        %v353 = vld [vmem:[%s214 + $0x260] sm:$0xff]
        %v354 = vld [vmem:[%s214 + $0x268] sm:$0xff]
        %v355 = vld [vmem:[%s214 + $0x270] sm:$0xff]
        %v356 = vld [vmem:[%s214 + $0x278] sm:$0xff]
        %v357 = vld [vmem:[%s214 + $0x280] sm:$0xff]
        %v358 = vld [vmem:[%s214 + $0x288] sm:$0xff]
        %v359 = vld [vmem:[%s214 + $0x290] sm:$0xff]
        %v360 = vld [vmem:[%s214 + $0x298] sm:$0xff]
        %v361 = vld [vmem:[%s214 + $0x2a0] sm:$0xff]
        %v362 = vld [vmem:[%s214 + $0x2a8] sm:$0xff]
        %v363 = vld [vmem:[%s214 + $0x2b0] sm:$0xff]
        %v364 = vld [vmem:[%s214 + $0x2b8] sm:$0xff]
        %v365 = vld [vmem:[%s214 + $0x2c0] sm:$0xff]
        %v366 = vld [vmem:[%s214 + $0x2c8] sm:$0xff]
        %v367 = vld [vmem:[%s214 + $0x2d0] sm:$0xff]
        %v368 = vld [vmem:[%s214 + $0x2d8] sm:$0xff]
        %v369 = vld [vmem:[%s214 + $0x2e0] sm:$0xff]
        %v370 = vld [vmem:[%s214 + $0x2e8] sm:$0xff]
        %v371 = vld [vmem:[%s214 + $0x2f0] sm:$0xff]
        %v372 = vld [vmem:[%s214 + $0x2f8] sm:$0xff]
        %v373 = vld [vmem:[%s214 + $0x300] sm:$0xff]
        %v374 = vld [vmem:[%s214 + $0x308] sm:$0xff]
        %v375 = vld [vmem:[%s214 + $0x310] sm:$0xff]
        %v376 = vld [vmem:[%s214 + $0x318] sm:$0xff]
        %v377 = vld [vmem:[%s214 + $0x320] sm:$0xff]
        %v378 = vld [vmem:[%s214 + $0x328] sm:$0xff]
        %v379 = vld [vmem:[%s214 + $0x330] sm:$0xff]
        %v380 = vld [vmem:[%s214 + $0x338] sm:$0xff]
        %v381 = vld [vmem:[%s214 + $0x340] sm:$0xff]
        %v382 = vld [vmem:[%s214 + $0x348] sm:$0xff]
        %v383 = vld [vmem:[%s214 + $0x350] sm:$0xff]
        %v384 = vld [vmem:[%s214 + $0x358] sm:$0xff]
        %v385 = vld [vmem:[%s214 + $0x360] sm:$0xff]
        %v386 = vld [vmem:[%s214 + $0x368] sm:$0xff]
        %v387 = vld [vmem:[%s214 + $0x370] sm:$0xff]
        %v388 = vld [vmem:[%s214 + $0x378] sm:$0xff]
        %v389 = vld [vmem:[%s214 + $0x380] sm:$0xff]
        %v390 = vld [vmem:[%s214 + $0x388] sm:$0xff]
        %v391 = vld [vmem:[%s214 + $0x390] sm:$0xff]
        %v392 = vld [vmem:[%s214 + $0x398] sm:$0xff]
        %v393 = vld [vmem:[%s214 + $0x3a0] sm:$0xff]
        %v394 = vld [vmem:[%s214 + $0x3a8] sm:$0xff]
        %v395 = vld [vmem:[%s214 + $0x3b0] sm:$0xff]
        %v396 = vld [vmem:[%s214 + $0x3b8] sm:$0xff]
        %v397 = vld [vmem:[%s214 + $0x3c0] sm:$0xff]
        %v398 = vld [vmem:[%s214 + $0x3c8] sm:$0xff]
        %v399 = vld [vmem:[%s214 + $0x3d0] sm:$0xff]
        %v400 = vld [vmem:[%s214 + $0x3d8] sm:$0xff]
        %v401 = vld [vmem:[%s214 + $0x3e0] sm:$0xff]
        %v402 = vld [vmem:[%s214 + $0x3e8] sm:$0xff]
        %v403 = vld [vmem:[%s214 + $0x3f0] sm:$0xff]
        %v404 = vld [vmem:[%s214 + $0x3f8] sm:$0xff]
        %v405 = vld [vmem:[%s214 + $0x400] sm:$0xff]
        %v406 = vld [vmem:[%s214 + $0x408] sm:$0xff]
        %v407 = vld [vmem:[%s214 + $0x410] sm:$0xff]
        %v408 = vld [vmem:[%s214 + $0x418] sm:$0xff]
        %v409 = vld [vmem:[%s214 + $0x420] sm:$0xff]
        %v410 = vld [vmem:[%s214 + $0x428] sm:$0xff]
        %v411 = vld [vmem:[%s214 + $0x430] sm:$0xff]
        %v412 = vld [vmem:[%s214 + $0x438] sm:$0xff]
        %v413 = vld [vmem:[%s214 + $0x440] sm:$0xff]
        %v414 = vld [vmem:[%s214 + $0x448] sm:$0xff]
        %v415 = vld [vmem:[%s214 + $0x450] sm:$0xff]
        %v416 = vld [vmem:[%s214 + $0x458] sm:$0xff]
        %v417 = vld [vmem:[%s214 + $0x460] sm:$0xff]
        %v418 = vld [vmem:[%s214 + $0x468] sm:$0xff]
        %v419 = vld [vmem:[%s214 + $0x470] sm:$0xff]
        %v420 = vld [vmem:[%s214 + $0x478] sm:$0xff]
        %v421 = vld [vmem:[%s214 + $0x480] sm:$0xff]
        %v422 = vld [vmem:[%s214 + $0x488] sm:$0xff]
        %v423 = vld [vmem:[%s214 + $0x490] sm:$0xff]
        %v424 = vld [vmem:[%s214 + $0x498] sm:$0xff]
        %v425 = vld [vmem:[%s214 + $0x4a0] sm:$0xff]
        %v426 = vld [vmem:[%s214 + $0x4a8] sm:$0xff]
        %v427 = vld [vmem:[%s214 + $0x4b0] sm:$0xff]
        %v428 = vld [vmem:[%s214 + $0x4b8] sm:$0xff]
        %v429 = vld [vmem:[%s214 + $0x4c0] sm:$0xff]
        %v430 = vld [vmem:[%s214 + $0x4c8] sm:$0xff]
        %v431 = vld [vmem:[%s214 + $0x4d0] sm:$0xff]
        %v432 = vld [vmem:[%s214 + $0x4d8] sm:$0xff]
        %v433 = vld [vmem:[%s214 + $0x4e0] sm:$0xff]
        %v434 = vld [vmem:[%s214 + $0x4e8] sm:$0xff]
        %v435 = vld [vmem:[%s214 + $0x4f0] sm:$0xff]
        %v436 = vld [vmem:[%s214 + $0x4f8] sm:$0xff]
        %v437 = vld [vmem:[%s214 + $0x500] sm:$0xff]
        %v438 = vld [vmem:[%s214 + $0x508] sm:$0xff]
        %v439 = vld [vmem:[%s214 + $0x510] sm:$0xff]
        %v440 = vld [vmem:[%s214 + $0x518] sm:$0xff]
        %v441 = vld [vmem:[%s214 + $0x520] sm:$0xff]
        %v442 = vld [vmem:[%s214 + $0x528] sm:$0xff]
        %v443 = vld [vmem:[%s214 + $0x530] sm:$0xff]
        %v444 = vld [vmem:[%s214 + $0x538] sm:$0xff]
        %v445 = vld [vmem:[%s214 + $0x540] sm:$0xff]
        %v446 = vld [vmem:[%s214 + $0x548] sm:$0xff]
        %v447 = vld [vmem:[%s214 + $0x550] sm:$0xff]
        %v448 = vld [vmem:[%s214 + $0x558] sm:$0xff]
        %v449 = vld [vmem:[%s214 + $0x560] sm:$0xff]
        %v450 = vld [vmem:[%s214 + $0x568] sm:$0xff]
        %v451 = vld [vmem:[%s214 + $0x570] sm:$0xff]
        %v452 = vld [vmem:[%s214 + $0x578] sm:$0xff]
        %v453 = vld [vmem:[%s214 + $0x580] sm:$0xff]
        %v454 = vld [vmem:[%s214 + $0x588] sm:$0xff]
        %v455 = vld [vmem:[%s214 + $0x590] sm:$0xff]
        %v456 = vld [vmem:[%s214 + $0x598] sm:$0xff]
        %v457 = vld [vmem:[%s214 + $0x5a0] sm:$0xff]
        %v458 = vld [vmem:[%s214 + $0x5a8] sm:$0xff]
        %v459 = vld [vmem:[%s214 + $0x5b0] sm:$0xff]
        %v460 = vld [vmem:[%s214 + $0x5b8] sm:$0xff]
        %v461 = vld [vmem:[%s214 + $0x5c0] sm:$0xff]
        %v462 = vld [vmem:[%s214 + $0x5c8] sm:$0xff]
        %v463 = vld [vmem:[%s214 + $0x5d0] sm:$0xff]
        %v464 = vld [vmem:[%s214 + $0x5d8] sm:$0xff]
        %v465 = vld [vmem:[%s214 + $0x5e0] sm:$0xff]
        %v466 = vld [vmem:[%s214 + $0x5e8] sm:$0xff]
        %v467 = vld [vmem:[%s214 + $0x5f0] sm:$0xff]
        %v468 = vld [vmem:[%s214 + $0x5f8] sm:$0xff]
        %v469 = vld [vmem:[%s214 + $0x600] sm:$0xff]
        %v470 = vld [vmem:[%s214 + $0x608] sm:$0xff]
        %v471 = vld [vmem:[%s214 + $0x610] sm:$0xff]
        %v472 = vld [vmem:[%s214 + $0x618] sm:$0xff]
        %v473 = vld [vmem:[%s214 + $0x620] sm:$0xff]
        %v474 = vld [vmem:[%s214 + $0x628] sm:$0xff]
        %v475 = vld [vmem:[%s214 + $0x630] sm:$0xff]
        %v476 = vld [vmem:[%s214 + $0x638] sm:$0xff]
        %v477 = vld [vmem:[%s214 + $0x640] sm:$0xff]
        %v478 = vld [vmem:[%s214 + $0x648] sm:$0xff]
        %v479 = vld [vmem:[%s214 + $0x650] sm:$0xff]
        %v480 = vld [vmem:[%s214 + $0x658] sm:$0xff]
        %v481 = vld [vmem:[%s214 + $0x660] sm:$0xff]
        %v482 = vld [vmem:[%s214 + $0x668] sm:$0xff]
        %v483 = vld [vmem:[%s214 + $0x670] sm:$0xff]
        %v484 = vld [vmem:[%s214 + $0x678] sm:$0xff]
        %v485 = vld [vmem:[%s214 + $0x680] sm:$0xff]
        %v486 = vld [vmem:[%s214 + $0x688] sm:$0xff]
        %v487 = vld [vmem:[%s214 + $0x690] sm:$0xff]
        %v488 = vld [vmem:[%s214 + $0x698] sm:$0xff]
        %v489 = vld [vmem:[%s214 + $0x6a0] sm:$0xff]
        %v490 = vld [vmem:[%s214 + $0x6a8] sm:$0xff]
        %v491 = vld [vmem:[%s214 + $0x6b0] sm:$0xff]
        %v492 = vld [vmem:[%s214 + $0x6b8] sm:$0xff]
        %v493 = vld [vmem:[%s214 + $0x6c0] sm:$0xff]
        %v494 = vld [vmem:[%s214 + $0x6c8] sm:$0xff]
        %v495 = vld [vmem:[%s214 + $0x6d0] sm:$0xff]
        %v496 = vld [vmem:[%s214 + $0x6d8] sm:$0xff]
        %v497 = vld [vmem:[%s214 + $0x6e0] sm:$0xff]
        %v498 = vld [vmem:[%s214 + $0x6e8] sm:$0xff]
        %v499 = vld [vmem:[%s214 + $0x6f0] sm:$0xff]
        %v500 = vld [vmem:[%s214 + $0x6f8] sm:$0xff]
        %v501 = vld [vmem:[%s214 + $0x700] sm:$0xff]
        %v502 = vld [vmem:[%s214 + $0x708] sm:$0xff]
        %v503 = vld [vmem:[%s214 + $0x710] sm:$0xff]
        %v504 = vld [vmem:[%s214 + $0x718] sm:$0xff]
        %v505 = vld [vmem:[%s214 + $0x720] sm:$0xff]
        %v506 = vld [vmem:[%s214 + $0x728] sm:$0xff]
        %v507 = vld [vmem:[%s214 + $0x730] sm:$0xff]
        %v508 = vld [vmem:[%s214 + $0x738] sm:$0xff]
        %v509 = vld [vmem:[%s214 + $0x740] sm:$0xff]
        %v510 = vld [vmem:[%s214 + $0x748] sm:$0xff]
        %v511 = vld [vmem:[%s214 + $0x750] sm:$0xff]
        %v512 = vld [vmem:[%s214 + $0x758] sm:$0xff]
        %v513 = vld [vmem:[%s214 + $0x760] sm:$0xff]
        %v514 = vld [vmem:[%s214 + $0x768] sm:$0xff]
        %v515 = vld [vmem:[%s214 + $0x770] sm:$0xff]
        %v516 = vld [vmem:[%s214 + $0x778] sm:$0xff]
        %v517 = vld [vmem:[%s214 + $0x780] sm:$0xff]
        %v518 = vld [vmem:[%s214 + $0x788] sm:$0xff]
        %v519 = vld [vmem:[%s214 + $0x790] sm:$0xff]
        %v520 = vld [vmem:[%s214 + $0x798] sm:$0xff]
        %v521 = vld [vmem:[%s214 + $0x7a0] sm:$0xff]
        %v522 = vld [vmem:[%s214 + $0x7a8] sm:$0xff]
        %v523 = vld [vmem:[%s214 + $0x7b0] sm:$0xff]
        %v524 = vld [vmem:[%s214 + $0x7b8] sm:$0xff]
        %v525 = vld [vmem:[%s214 + $0x7c0] sm:$0xff]
        %v526 = vld [vmem:[%s214 + $0x7c8] sm:$0xff]
        %v527 = vld [vmem:[%s214 + $0x7d0] sm:$0xff]
        %v528 = vld [vmem:[%s214 + $0x7d8] sm:$0xff]
        %v529 = vld [vmem:[%s214 + $0x7e0] sm:$0xff]
        %v530 = vld [vmem:[%s214 + $0x7e8] sm:$0xff]
        %v531 = vld [vmem:[%s214 + $0x7f0] sm:$0xff]
        %v532 = vld [vmem:[%s214 + $0x7f8] sm:$0xff]
        %v535 = vcombine.high %v275, %v275
        %v537 = vunpack.c.l.s4 1966171168
        %v538 = vunpack.c.0.s8 %v537
        %v539 = vlaneseq
        %v540 = vshrl.u32 %v539, 7
        %v541 = vsub.s32 %v538, %v540
        %v542 = vrot.slane %v275, %v541
        %v544 = vunpack.c.l.s4 1966171168
        %v545 = vunpack.c.0.s8 %v544
        %v546 = vlaneseq
        %v547 = vshrl.u32 %v546, 7
        %v548 = vsub.s32 %v545, %v547
        %v549 = vrot.slane %v535, %v548
        %v550 = vcombine.high %v542, %v542
        %v551 = vcombine.high %v549, %v549
        %v553 = vunpack.c.l.s4 1966171168
        %v554 = vunpack.c.0.s8 %v553
        %v555 = vlaneseq
        %v556 = vshrl.u32 %v555, 7
        %v557 = vsub.s32 %v554, %v556
        %v558 = vrot.slane %v542, %v557
        %v560 = vunpack.c.l.s4 1966171168
        %v561 = vunpack.c.0.s8 %v560
        %v562 = vlaneseq
        %v563 = vshrl.u32 %v562, 7
        %v564 = vsub.s32 %v561, %v563
        %v565 = vrot.slane %v549, %v564
        %v567 = vunpack.c.l.s4 1966171168
        %v568 = vunpack.c.0.s8 %v567
        %v569 = vlaneseq
        %v570 = vshrl.u32 %v569, 7
        %v571 = vsub.s32 %v568, %v570
        %v572 = vrot.slane %v550, %v571
        %v574 = vunpack.c.l.s4 1966171168
        %v575 = vunpack.c.0.s8 %v574
        %v576 = vlaneseq
        %v577 = vshrl.u32 %v576, 7
        %v578 = vsub.s32 %v575, %v577
        %v579 = vrot.slane %v551, %v578
        %v580 = vcombine.high %v558, %v558
        %v581 = vcombine.high %v565, %v565
        %v582 = vcombine.high %v572, %v572
        %v583 = vcombine.high %v579, %v579
        %v584 = vcombine.high %v276, %v276
        %v586 = vunpack.c.l.s4 1966171168
        %v587 = vunpack.c.0.s8 %v586
        %v588 = vlaneseq
        %v589 = vshrl.u32 %v588, 7
        %v590 = vsub.s32 %v587, %v589
        %v591 = vrot.slane %v276, %v590
        %v593 = vunpack.c.l.s4 1966171168
        %v594 = vunpack.c.0.s8 %v593
        %v595 = vlaneseq
        %v596 = vshrl.u32 %v595, 7
        %v597 = vsub.s32 %v594, %v596
        %v598 = vrot.slane %v584, %v597
        %v599 = vcombine.high %v591, %v591
        %v600 = vcombine.high %v598, %v598
        %v602 = vunpack.c.l.s4 1966171168
        %v603 = vunpack.c.0.s8 %v602
        %v604 = vlaneseq
        %v605 = vshrl.u32 %v604, 7
        %v606 = vsub.s32 %v603, %v605
        %v607 = vrot.slane %v591, %v606
        %v609 = vunpack.c.l.s4 1966171168
        %v610 = vunpack.c.0.s8 %v609
        %v611 = vlaneseq
        %v612 = vshrl.u32 %v611, 7
        %v613 = vsub.s32 %v610, %v612
        %v614 = vrot.slane %v598, %v613
        %v616 = vunpack.c.l.s4 1966171168
        %v617 = vunpack.c.0.s8 %v616
        %v618 = vlaneseq
        %v619 = vshrl.u32 %v618, 7
        %v620 = vsub.s32 %v617, %v619
        %v621 = vrot.slane %v599, %v620
        %v623 = vunpack.c.l.s4 1966171168
        %v624 = vunpack.c.0.s8 %v623
        %v625 = vlaneseq
        %v626 = vshrl.u32 %v625, 7
        %v627 = vsub.s32 %v624, %v626
        %v628 = vrot.slane %v600, %v627
        %v629 = vcombine.high %v607, %v607
        %v630 = vcombine.high %v614, %v614
        %v631 = vcombine.high %v621, %v621
        %v632 = vcombine.high %v628, %v628
        %v905 = vunpack.c.l.b16 %v277
        %v906 = vunpack.c.h.b16 %v277
        %v907 = vunpack.c.l.b16 %v278
        %v908 = vunpack.c.h.b16 %v278
        %v909 = vunpack.c.l.b16 %v279
        %v910 = vunpack.c.h.b16 %v279
        %v911 = vunpack.c.l.b16 %v280
        %v912 = vunpack.c.h.b16 %v280
        %v913 = vunpack.c.l.b16 %v281
        %v914 = vunpack.c.h.b16 %v281
        %v915 = vunpack.c.l.b16 %v282
        %v916 = vunpack.c.h.b16 %v282
        %v917 = vunpack.c.l.b16 %v283
        %v918 = vunpack.c.h.b16 %v283
        %v919 = vunpack.c.l.b16 %v284
        %v920 = vunpack.c.h.b16 %v284
        %v921 = vunpack.c.l.b16 %v285
        %v922 = vunpack.c.h.b16 %v285
        %v923 = vunpack.c.l.b16 %v286
        %v924 = vunpack.c.h.b16 %v286
        %v925 = vunpack.c.l.b16 %v287
        %v926 = vunpack.c.h.b16 %v287
        %v927 = vunpack.c.l.b16 %v288
        %v928 = vunpack.c.h.b16 %v288
        %v929 = vunpack.c.l.b16 %v289
        %v930 = vunpack.c.h.b16 %v289
        %v931 = vunpack.c.l.b16 %v290
        %v932 = vunpack.c.h.b16 %v290
        %v933 = vunpack.c.l.b16 %v291
        %v934 = vunpack.c.h.b16 %v291
        %v935 = vunpack.c.l.b16 %v292
        %v936 = vunpack.c.h.b16 %v292
        %v937 = vunpack.c.l.b16 %v293
        %v938 = vunpack.c.h.b16 %v293
        %v939 = vunpack.c.l.b16 %v294
        %v940 = vunpack.c.h.b16 %v294
        %v941 = vunpack.c.l.b16 %v295
        %v942 = vunpack.c.h.b16 %v295
        %v943 = vunpack.c.l.b16 %v296
        %v944 = vunpack.c.h.b16 %v296
        %v945 = vunpack.c.l.b16 %v297
        %v946 = vunpack.c.h.b16 %v297
        %v947 = vunpack.c.l.b16 %v298
        %v948 = vunpack.c.h.b16 %v298
        %v949 = vunpack.c.l.b16 %v299
        %v950 = vunpack.c.h.b16 %v299
        %v951 = vunpack.c.l.b16 %v300
        %v952 = vunpack.c.h.b16 %v300
        %v953 = vunpack.c.l.b16 %v301
        %v954 = vunpack.c.h.b16 %v301
        %v955 = vunpack.c.l.b16 %v302
        %v956 = vunpack.c.h.b16 %v302
        %v957 = vunpack.c.l.b16 %v303
        %v958 = vunpack.c.h.b16 %v303
        %v959 = vunpack.c.l.b16 %v304
        %v960 = vunpack.c.h.b16 %v304
        %v961 = vunpack.c.l.b16 %v305
        %v962 = vunpack.c.h.b16 %v305
        %v963 = vunpack.c.l.b16 %v306
        %v964 = vunpack.c.h.b16 %v306
        %v965 = vunpack.c.l.b16 %v307
        %v966 = vunpack.c.h.b16 %v307
        %v967 = vunpack.c.l.b16 %v308
        %v968 = vunpack.c.h.b16 %v308
        %v969 = vunpack.c.l.b16 %v309
        %v970 = vunpack.c.h.b16 %v309
        %v971 = vunpack.c.l.b16 %v310
        %v972 = vunpack.c.h.b16 %v310
        %v973 = vunpack.c.l.b16 %v311
        %v974 = vunpack.c.h.b16 %v311
        %v975 = vunpack.c.l.b16 %v312
        %v976 = vunpack.c.h.b16 %v312
        %v977 = vunpack.c.l.b16 %v313
        %v978 = vunpack.c.h.b16 %v313
        %v979 = vunpack.c.l.b16 %v314
        %v980 = vunpack.c.h.b16 %v314
        %v981 = vunpack.c.l.b16 %v315
        %v982 = vunpack.c.h.b16 %v315
        %v983 = vunpack.c.l.b16 %v316
        %v984 = vunpack.c.h.b16 %v316
        %v985 = vunpack.c.l.b16 %v317
        %v986 = vunpack.c.h.b16 %v317
        %v987 = vunpack.c.l.b16 %v318
        %v988 = vunpack.c.h.b16 %v318
        %v989 = vunpack.c.l.b16 %v319
        %v990 = vunpack.c.h.b16 %v319
        %v991 = vunpack.c.l.b16 %v320
        %v992 = vunpack.c.h.b16 %v320
        %v993 = vunpack.c.l.b16 %v321
        %v994 = vunpack.c.h.b16 %v321
        %v995 = vunpack.c.l.b16 %v322
        %v996 = vunpack.c.h.b16 %v322
        %v997 = vunpack.c.l.b16 %v323
        %v998 = vunpack.c.h.b16 %v323
        %v999 = vunpack.c.l.b16 %v324
        %v1000 = vunpack.c.h.b16 %v324
        %v1001 = vunpack.c.l.b16 %v325
        %v1002 = vunpack.c.h.b16 %v325
        %v1003 = vunpack.c.l.b16 %v326
        %v1004 = vunpack.c.h.b16 %v326
        %v1005 = vunpack.c.l.b16 %v327
        %v1006 = vunpack.c.h.b16 %v327
        %v1007 = vunpack.c.l.b16 %v328
        %v1008 = vunpack.c.h.b16 %v328
        %v1009 = vunpack.c.l.b16 %v329
        %v1010 = vunpack.c.h.b16 %v329
        %v1011 = vunpack.c.l.b16 %v330
        %v1012 = vunpack.c.h.b16 %v330
        %v1013 = vunpack.c.l.b16 %v331
        %v1014 = vunpack.c.h.b16 %v331
        %v1015 = vunpack.c.l.b16 %v332
        %v1016 = vunpack.c.h.b16 %v332
        %v1017 = vunpack.c.l.b16 %v333
        %v1018 = vunpack.c.h.b16 %v333
        %v1019 = vunpack.c.l.b16 %v334
        %v1020 = vunpack.c.h.b16 %v334
        %v1021 = vunpack.c.l.b16 %v335
        %v1022 = vunpack.c.h.b16 %v335
        %v1023 = vunpack.c.l.b16 %v336
        %v1024 = vunpack.c.h.b16 %v336
        %v1025 = vunpack.c.l.b16 %v337
        %v1026 = vunpack.c.h.b16 %v337
        %v1027 = vunpack.c.l.b16 %v338
        %v1028 = vunpack.c.h.b16 %v338
        %v1029 = vunpack.c.l.b16 %v339
        %v1030 = vunpack.c.h.b16 %v339
        %v1031 = vunpack.c.l.b16 %v340
        %v1032 = vunpack.c.h.b16 %v340
        %v1033 = vunpack.c.l.b16 %v341
        %v1034 = vunpack.c.h.b16 %v341
        %v1035 = vunpack.c.l.b16 %v342
        %v1036 = vunpack.c.h.b16 %v342
        %v1037 = vunpack.c.l.b16 %v343
        %v1038 = vunpack.c.h.b16 %v343
        %v1039 = vunpack.c.l.b16 %v344
        %v1040 = vunpack.c.h.b16 %v344
        %v1041 = vunpack.c.l.b16 %v345
        %v1042 = vunpack.c.h.b16 %v345
        %v1043 = vunpack.c.l.b16 %v346
        %v1044 = vunpack.c.h.b16 %v346
        %v1045 = vunpack.c.l.b16 %v347
        %v1046 = vunpack.c.h.b16 %v347
        %v1047 = vunpack.c.l.b16 %v348
        %v1048 = vunpack.c.h.b16 %v348
        %v1049 = vunpack.c.l.b16 %v349
        %v1050 = vunpack.c.h.b16 %v349
        %v1051 = vunpack.c.l.b16 %v350
        %v1052 = vunpack.c.h.b16 %v350
        %v1053 = vunpack.c.l.b16 %v351
        %v1054 = vunpack.c.h.b16 %v351
        %v1055 = vunpack.c.l.b16 %v352
        %v1056 = vunpack.c.h.b16 %v352
        %v1057 = vunpack.c.l.b16 %v353
        %v1058 = vunpack.c.h.b16 %v353
        %v1059 = vunpack.c.l.b16 %v354
        %v1060 = vunpack.c.h.b16 %v354
        %v1061 = vunpack.c.l.b16 %v355
        %v1062 = vunpack.c.h.b16 %v355
        %v1063 = vunpack.c.l.b16 %v356
        %v1064 = vunpack.c.h.b16 %v356
        %v1065 = vunpack.c.l.b16 %v357
        %v1066 = vunpack.c.h.b16 %v357
        %v1067 = vunpack.c.l.b16 %v358
        %v1068 = vunpack.c.h.b16 %v358
        %v1069 = vunpack.c.l.b16 %v359
        %v1070 = vunpack.c.h.b16 %v359
        %v1071 = vunpack.c.l.b16 %v360
        %v1072 = vunpack.c.h.b16 %v360
        %v1073 = vunpack.c.l.b16 %v361
        %v1074 = vunpack.c.h.b16 %v361
        %v1075 = vunpack.c.l.b16 %v362
        %v1076 = vunpack.c.h.b16 %v362
        %v1077 = vunpack.c.l.b16 %v363
        %v1078 = vunpack.c.h.b16 %v363
        %v1079 = vunpack.c.l.b16 %v364
        %v1080 = vunpack.c.h.b16 %v364
        %v1081 = vunpack.c.l.b16 %v365
        %v1082 = vunpack.c.h.b16 %v365
        %v1083 = vunpack.c.l.b16 %v366
        %v1084 = vunpack.c.h.b16 %v366
        %v1085 = vunpack.c.l.b16 %v367
        %v1086 = vunpack.c.h.b16 %v367
        %v1087 = vunpack.c.l.b16 %v368
        %v1088 = vunpack.c.h.b16 %v368
        %v1089 = vunpack.c.l.b16 %v369
        %v1090 = vunpack.c.h.b16 %v369
        %v1091 = vunpack.c.l.b16 %v370
        %v1092 = vunpack.c.h.b16 %v370
        %v1093 = vunpack.c.l.b16 %v371
        %v1094 = vunpack.c.h.b16 %v371
        %v1095 = vunpack.c.l.b16 %v372
        %v1096 = vunpack.c.h.b16 %v372
        %v1097 = vunpack.c.l.b16 %v373
        %v1098 = vunpack.c.h.b16 %v373
        %v1099 = vunpack.c.l.b16 %v374
        %v1100 = vunpack.c.h.b16 %v374
        %v1101 = vunpack.c.l.b16 %v375
        %v1102 = vunpack.c.h.b16 %v375
        %v1103 = vunpack.c.l.b16 %v376
        %v1104 = vunpack.c.h.b16 %v376
        %v1105 = vunpack.c.l.b16 %v377
        %v1106 = vunpack.c.h.b16 %v377
        %v1107 = vunpack.c.l.b16 %v378
        %v1108 = vunpack.c.h.b16 %v378
        %v1109 = vunpack.c.l.b16 %v379
        %v1110 = vunpack.c.h.b16 %v379
        %v1111 = vunpack.c.l.b16 %v380
        %v1112 = vunpack.c.h.b16 %v380
        %v1113 = vunpack.c.l.b16 %v381
        %v1114 = vunpack.c.h.b16 %v381
        %v1115 = vunpack.c.l.b16 %v382
        %v1116 = vunpack.c.h.b16 %v382
        %v1117 = vunpack.c.l.b16 %v383
        %v1118 = vunpack.c.h.b16 %v383
        %v1119 = vunpack.c.l.b16 %v384
        %v1120 = vunpack.c.h.b16 %v384
        %v1121 = vunpack.c.l.b16 %v385
        %v1122 = vunpack.c.h.b16 %v385
        %v1123 = vunpack.c.l.b16 %v386
        %v1124 = vunpack.c.h.b16 %v386
        %v1125 = vunpack.c.l.b16 %v387
        %v1126 = vunpack.c.h.b16 %v387
        %v1127 = vunpack.c.l.b16 %v388
        %v1128 = vunpack.c.h.b16 %v388
        %v1129 = vunpack.c.l.b16 %v389
        %v1130 = vunpack.c.h.b16 %v389
        %v1131 = vunpack.c.l.b16 %v390
        %v1132 = vunpack.c.h.b16 %v390
        %v1133 = vunpack.c.l.b16 %v391
        %v1134 = vunpack.c.h.b16 %v391
        %v1135 = vunpack.c.l.b16 %v392
        %v1136 = vunpack.c.h.b16 %v392
        %v1137 = vunpack.c.l.b16 %v393
        %v1138 = vunpack.c.h.b16 %v393
        %v1139 = vunpack.c.l.b16 %v394
        %v1140 = vunpack.c.h.b16 %v394
        %v1141 = vunpack.c.l.b16 %v395
        %v1142 = vunpack.c.h.b16 %v395
        %v1143 = vunpack.c.l.b16 %v396
        %v1144 = vunpack.c.h.b16 %v396
        %v1145 = vunpack.c.l.b16 %v397
        %v1146 = vunpack.c.h.b16 %v397
        %v1147 = vunpack.c.l.b16 %v398
        %v1148 = vunpack.c.h.b16 %v398
        %v1149 = vunpack.c.l.b16 %v399
        %v1150 = vunpack.c.h.b16 %v399
        %v1151 = vunpack.c.l.b16 %v400
        %v1152 = vunpack.c.h.b16 %v400
        %v1153 = vunpack.c.l.b16 %v401
        %v1154 = vunpack.c.h.b16 %v401
        %v1155 = vunpack.c.l.b16 %v402
        %v1156 = vunpack.c.h.b16 %v402
        %v1157 = vunpack.c.l.b16 %v403
        %v1158 = vunpack.c.h.b16 %v403
        %v1159 = vunpack.c.l.b16 %v404
        %v1160 = vunpack.c.h.b16 %v404
        %v1161 = vunpack.c.l.b16 %v405
        %v1162 = vunpack.c.h.b16 %v405
        %v1163 = vunpack.c.l.b16 %v406
        %v1164 = vunpack.c.h.b16 %v406
        %v1165 = vunpack.c.l.b16 %v407
        %v1166 = vunpack.c.h.b16 %v407
        %v1167 = vunpack.c.l.b16 %v408
        %v1168 = vunpack.c.h.b16 %v408
        %v1169 = vunpack.c.l.b16 %v409
        %v1170 = vunpack.c.h.b16 %v409
        %v1171 = vunpack.c.l.b16 %v410
        %v1172 = vunpack.c.h.b16 %v410
        %v1173 = vunpack.c.l.b16 %v411
        %v1174 = vunpack.c.h.b16 %v411
        %v1175 = vunpack.c.l.b16 %v412
        %v1176 = vunpack.c.h.b16 %v412
        %v1177 = vunpack.c.l.b16 %v413
        %v1178 = vunpack.c.h.b16 %v413
        %v1179 = vunpack.c.l.b16 %v414
        %v1180 = vunpack.c.h.b16 %v414
        %v1181 = vunpack.c.l.b16 %v415
        %v1182 = vunpack.c.h.b16 %v415
        %v1183 = vunpack.c.l.b16 %v416
        %v1184 = vunpack.c.h.b16 %v416
        %v1185 = vunpack.c.l.b16 %v417
        %v1186 = vunpack.c.h.b16 %v417
        %v1187 = vunpack.c.l.b16 %v418
        %v1188 = vunpack.c.h.b16 %v418
        %v1189 = vunpack.c.l.b16 %v419
        %v1190 = vunpack.c.h.b16 %v419
        %v1191 = vunpack.c.l.b16 %v420
        %v1192 = vunpack.c.h.b16 %v420
        %v1193 = vunpack.c.l.b16 %v421
        %v1194 = vunpack.c.h.b16 %v421
        %v1195 = vunpack.c.l.b16 %v422
        %v1196 = vunpack.c.h.b16 %v422
        %v1197 = vunpack.c.l.b16 %v423
        %v1198 = vunpack.c.h.b16 %v423
        %v1199 = vunpack.c.l.b16 %v424
        %v1200 = vunpack.c.h.b16 %v424
        %v1201 = vunpack.c.l.b16 %v425
        %v1202 = vunpack.c.h.b16 %v425
        %v1203 = vunpack.c.l.b16 %v426
        %v1204 = vunpack.c.h.b16 %v426
        %v1205 = vunpack.c.l.b16 %v427
        %v1206 = vunpack.c.h.b16 %v427
        %v1207 = vunpack.c.l.b16 %v428
        %v1208 = vunpack.c.h.b16 %v428
        %v1209 = vunpack.c.l.b16 %v429
        %v1210 = vunpack.c.h.b16 %v429
        %v1211 = vunpack.c.l.b16 %v430
        %v1212 = vunpack.c.h.b16 %v430
        %v1213 = vunpack.c.l.b16 %v431
        %v1214 = vunpack.c.h.b16 %v431
        %v1215 = vunpack.c.l.b16 %v432
        %v1216 = vunpack.c.h.b16 %v432
        %v1217 = vunpack.c.l.b16 %v433
        %v1218 = vunpack.c.h.b16 %v433
        %v1219 = vunpack.c.l.b16 %v434
        %v1220 = vunpack.c.h.b16 %v434
        %v1221 = vunpack.c.l.b16 %v435
        %v1222 = vunpack.c.h.b16 %v435
        %v1223 = vunpack.c.l.b16 %v436
        %v1224 = vunpack.c.h.b16 %v436
        %v1225 = vunpack.c.l.b16 %v437
        %v1226 = vunpack.c.h.b16 %v437
        %v1227 = vunpack.c.l.b16 %v438
        %v1228 = vunpack.c.h.b16 %v438
        %v1229 = vunpack.c.l.b16 %v439
        %v1230 = vunpack.c.h.b16 %v439
        %v1231 = vunpack.c.l.b16 %v440
        %v1232 = vunpack.c.h.b16 %v440
        %v1233 = vunpack.c.l.b16 %v441
        %v1234 = vunpack.c.h.b16 %v441
        %v1235 = vunpack.c.l.b16 %v442
        %v1236 = vunpack.c.h.b16 %v442
        %v1237 = vunpack.c.l.b16 %v443
        %v1238 = vunpack.c.h.b16 %v443
        %v1239 = vunpack.c.l.b16 %v444
        %v1240 = vunpack.c.h.b16 %v444
        %v1241 = vunpack.c.l.b16 %v445
        %v1242 = vunpack.c.h.b16 %v445
        %v1243 = vunpack.c.l.b16 %v446
        %v1244 = vunpack.c.h.b16 %v446
        %v1245 = vunpack.c.l.b16 %v447
        %v1246 = vunpack.c.h.b16 %v447
        %v1247 = vunpack.c.l.b16 %v448
        %v1248 = vunpack.c.h.b16 %v448
        %v1249 = vunpack.c.l.b16 %v449
        %v1250 = vunpack.c.h.b16 %v449
        %v1251 = vunpack.c.l.b16 %v450
        %v1252 = vunpack.c.h.b16 %v450
        %v1253 = vunpack.c.l.b16 %v451
        %v1254 = vunpack.c.h.b16 %v451
        %v1255 = vunpack.c.l.b16 %v452
        %v1256 = vunpack.c.h.b16 %v452
        %v1257 = vunpack.c.l.b16 %v453
        %v1258 = vunpack.c.h.b16 %v453
        %v1259 = vunpack.c.l.b16 %v454
        %v1260 = vunpack.c.h.b16 %v454
        %v1261 = vunpack.c.l.b16 %v455
        %v1262 = vunpack.c.h.b16 %v455
        %v1263 = vunpack.c.l.b16 %v456
        %v1264 = vunpack.c.h.b16 %v456
        %v1265 = vunpack.c.l.b16 %v457
        %v1266 = vunpack.c.h.b16 %v457
        %v1267 = vunpack.c.l.b16 %v458
        %v1268 = vunpack.c.h.b16 %v458
        %v1269 = vunpack.c.l.b16 %v459
        %v1270 = vunpack.c.h.b16 %v459
        %v1271 = vunpack.c.l.b16 %v460
        %v1272 = vunpack.c.h.b16 %v460
        %v1273 = vunpack.c.l.b16 %v461
        %v1274 = vunpack.c.h.b16 %v461
        %v1275 = vunpack.c.l.b16 %v462
        %v1276 = vunpack.c.h.b16 %v462
        %v1277 = vunpack.c.l.b16 %v463
        %v1278 = vunpack.c.h.b16 %v463
        %v1279 = vunpack.c.l.b16 %v464
        %v1280 = vunpack.c.h.b16 %v464
        %v1281 = vunpack.c.l.b16 %v465
        %v1282 = vunpack.c.h.b16 %v465
        %v1283 = vunpack.c.l.b16 %v466
        %v1284 = vunpack.c.h.b16 %v466
        %v1285 = vunpack.c.l.b16 %v467
        %v1286 = vunpack.c.h.b16 %v467
        %v1287 = vunpack.c.l.b16 %v468
        %v1288 = vunpack.c.h.b16 %v468
        %v1289 = vunpack.c.l.b16 %v469
        %v1290 = vunpack.c.h.b16 %v469
        %v1291 = vunpack.c.l.b16 %v470
        %v1292 = vunpack.c.h.b16 %v470
        %v1293 = vunpack.c.l.b16 %v471
        %v1294 = vunpack.c.h.b16 %v471
        %v1295 = vunpack.c.l.b16 %v472
        %v1296 = vunpack.c.h.b16 %v472
        %v1297 = vunpack.c.l.b16 %v473
        %v1298 = vunpack.c.h.b16 %v473
        %v1299 = vunpack.c.l.b16 %v474
        %v1300 = vunpack.c.h.b16 %v474
        %v1301 = vunpack.c.l.b16 %v475
        %v1302 = vunpack.c.h.b16 %v475
        %v1303 = vunpack.c.l.b16 %v476
        %v1304 = vunpack.c.h.b16 %v476
        %v1305 = vunpack.c.l.b16 %v477
        %v1306 = vunpack.c.h.b16 %v477
        %v1307 = vunpack.c.l.b16 %v478
        %v1308 = vunpack.c.h.b16 %v478
        %v1309 = vunpack.c.l.b16 %v479
        %v1310 = vunpack.c.h.b16 %v479
        %v1311 = vunpack.c.l.b16 %v480
        %v1312 = vunpack.c.h.b16 %v480
        %v1313 = vunpack.c.l.b16 %v481
        %v1314 = vunpack.c.h.b16 %v481
        %v1315 = vunpack.c.l.b16 %v482
        %v1316 = vunpack.c.h.b16 %v482
        %v1317 = vunpack.c.l.b16 %v483
        %v1318 = vunpack.c.h.b16 %v483
        %v1319 = vunpack.c.l.b16 %v484
        %v1320 = vunpack.c.h.b16 %v484
        %v1321 = vunpack.c.l.b16 %v485
        %v1322 = vunpack.c.h.b16 %v485
        %v1323 = vunpack.c.l.b16 %v486
        %v1324 = vunpack.c.h.b16 %v486
        %v1325 = vunpack.c.l.b16 %v487
        %v1326 = vunpack.c.h.b16 %v487
        %v1327 = vunpack.c.l.b16 %v488
        %v1328 = vunpack.c.h.b16 %v488
        %v1329 = vunpack.c.l.b16 %v489
        %v1330 = vunpack.c.h.b16 %v489
        %v1331 = vunpack.c.l.b16 %v490
        %v1332 = vunpack.c.h.b16 %v490
        %v1333 = vunpack.c.l.b16 %v491
        %v1334 = vunpack.c.h.b16 %v491
        %v1335 = vunpack.c.l.b16 %v492
        %v1336 = vunpack.c.h.b16 %v492
        %v1337 = vunpack.c.l.b16 %v493
        %v1338 = vunpack.c.h.b16 %v493
        %v1339 = vunpack.c.l.b16 %v494
        %v1340 = vunpack.c.h.b16 %v494
        %v1341 = vunpack.c.l.b16 %v495
        %v1342 = vunpack.c.h.b16 %v495
        %v1343 = vunpack.c.l.b16 %v496
        %v1344 = vunpack.c.h.b16 %v496
        %v1345 = vunpack.c.l.b16 %v497
        %v1346 = vunpack.c.h.b16 %v497
        %v1347 = vunpack.c.l.b16 %v498
        %v1348 = vunpack.c.h.b16 %v498
        %v1349 = vunpack.c.l.b16 %v499
        %v1350 = vunpack.c.h.b16 %v499
        %v1351 = vunpack.c.l.b16 %v500
        %v1352 = vunpack.c.h.b16 %v500
        %v1353 = vunpack.c.l.b16 %v501
        %v1354 = vunpack.c.h.b16 %v501
        %v1355 = vunpack.c.l.b16 %v502
        %v1356 = vunpack.c.h.b16 %v502
        %v1357 = vunpack.c.l.b16 %v503
        %v1358 = vunpack.c.h.b16 %v503
        %v1359 = vunpack.c.l.b16 %v504
        %v1360 = vunpack.c.h.b16 %v504
        %v1361 = vunpack.c.l.b16 %v505
        %v1362 = vunpack.c.h.b16 %v505
        %v1363 = vunpack.c.l.b16 %v506
        %v1364 = vunpack.c.h.b16 %v506
        %v1365 = vunpack.c.l.b16 %v507
        %v1366 = vunpack.c.h.b16 %v507
        %v1367 = vunpack.c.l.b16 %v508
        %v1368 = vunpack.c.h.b16 %v508
        %v1369 = vunpack.c.l.b16 %v509
        %v1370 = vunpack.c.h.b16 %v509
        %v1371 = vunpack.c.l.b16 %v510
        %v1372 = vunpack.c.h.b16 %v510
        %v1373 = vunpack.c.l.b16 %v511
        %v1374 = vunpack.c.h.b16 %v511
        %v1375 = vunpack.c.l.b16 %v512
        %v1376 = vunpack.c.h.b16 %v512
        %v1377 = vunpack.c.l.b16 %v513
        %v1378 = vunpack.c.h.b16 %v513
        %v1379 = vunpack.c.l.b16 %v514
        %v1380 = vunpack.c.h.b16 %v514
        %v1381 = vunpack.c.l.b16 %v515
        %v1382 = vunpack.c.h.b16 %v515
        %v1383 = vunpack.c.l.b16 %v516
        %v1384 = vunpack.c.h.b16 %v516
        %v1385 = vunpack.c.l.b16 %v517
        %v1386 = vunpack.c.h.b16 %v517
        %v1387 = vunpack.c.l.b16 %v518
        %v1388 = vunpack.c.h.b16 %v518
        %v1389 = vunpack.c.l.b16 %v519
        %v1390 = vunpack.c.h.b16 %v519
        %v1391 = vunpack.c.l.b16 %v520
        %v1392 = vunpack.c.h.b16 %v520
        %v1393 = vunpack.c.l.b16 %v521
        %v1394 = vunpack.c.h.b16 %v521
        %v1395 = vunpack.c.l.b16 %v522
        %v1396 = vunpack.c.h.b16 %v522
        %v1397 = vunpack.c.l.b16 %v523
        %v1398 = vunpack.c.h.b16 %v523
        %v1399 = vunpack.c.l.b16 %v524
        %v1400 = vunpack.c.h.b16 %v524
        %v1401 = vunpack.c.l.b16 %v525
        %v1402 = vunpack.c.h.b16 %v525
        %v1403 = vunpack.c.l.b16 %v526
        %v1404 = vunpack.c.h.b16 %v526
        %v1405 = vunpack.c.l.b16 %v527
        %v1406 = vunpack.c.h.b16 %v527
        %v1407 = vunpack.c.l.b16 %v528
        %v1408 = vunpack.c.h.b16 %v528
        %v1409 = vunpack.c.l.b16 %v529
        %v1410 = vunpack.c.h.b16 %v529
        %v1411 = vunpack.c.l.b16 %v530
        %v1412 = vunpack.c.h.b16 %v530
        %v1413 = vunpack.c.l.b16 %v531
        %v1414 = vunpack.c.h.b16 %v531
        %v1415 = vunpack.c.l.b16 %v532
        %v1416 = vunpack.c.h.b16 %v532
        %v1417 = vpack.c.b16 %v907, %v905
        %v1418 = vpack.c.b16 %v908, %v906
        %v1419 = vpack.c.b16 %v911, %v909
        %v1420 = vpack.c.b16 %v912, %v910
        %v1421 = vpack.c.b16 %v915, %v913
        %v1422 = vpack.c.b16 %v916, %v914
        %v1423 = vpack.c.b16 %v919, %v917
        %v1424 = vpack.c.b16 %v920, %v918
        %v1425 = vpack.c.b16 %v923, %v921
        %v1426 = vpack.c.b16 %v924, %v922
        %v1427 = vpack.c.b16 %v927, %v925
        %v1428 = vpack.c.b16 %v928, %v926
        %v1429 = vpack.c.b16 %v931, %v929
        %v1430 = vpack.c.b16 %v932, %v930
        %v1431 = vpack.c.b16 %v935, %v933
        %v1432 = vpack.c.b16 %v936, %v934
        %v1433 = vpack.c.b16 %v939, %v937
        %v1434 = vpack.c.b16 %v940, %v938
        %v1435 = vpack.c.b16 %v943, %v941
        %v1436 = vpack.c.b16 %v944, %v942
        %v1437 = vpack.c.b16 %v947, %v945
        %v1438 = vpack.c.b16 %v948, %v946
        %v1439 = vpack.c.b16 %v951, %v949
        %v1440 = vpack.c.b16 %v952, %v950
        %v1441 = vpack.c.b16 %v955, %v953
        %v1442 = vpack.c.b16 %v956, %v954
        %v1443 = vpack.c.b16 %v959, %v957
        %v1444 = vpack.c.b16 %v960, %v958
        %v1445 = vpack.c.b16 %v963, %v961
        %v1446 = vpack.c.b16 %v964, %v962
        %v1447 = vpack.c.b16 %v967, %v965
        %v1448 = vpack.c.b16 %v968, %v966
        %v1449 = vpack.c.b16 %v971, %v969
        %v1450 = vpack.c.b16 %v972, %v970
        %v1451 = vpack.c.b16 %v975, %v973
        %v1452 = vpack.c.b16 %v976, %v974
        %v1453 = vpack.c.b16 %v979, %v977
        %v1454 = vpack.c.b16 %v980, %v978
        %v1455 = vpack.c.b16 %v983, %v981
        %v1456 = vpack.c.b16 %v984, %v982
        %v1457 = vpack.c.b16 %v987, %v985
        %v1458 = vpack.c.b16 %v988, %v986
        %v1459 = vpack.c.b16 %v991, %v989
        %v1460 = vpack.c.b16 %v992, %v990
        %v1461 = vpack.c.b16 %v995, %v993
        %v1462 = vpack.c.b16 %v996, %v994
        %v1463 = vpack.c.b16 %v999, %v997
        %v1464 = vpack.c.b16 %v1000, %v998
        %v1465 = vpack.c.b16 %v1003, %v1001
        %v1466 = vpack.c.b16 %v1004, %v1002
        %v1467 = vpack.c.b16 %v1007, %v1005
        %v1468 = vpack.c.b16 %v1008, %v1006
        %v1469 = vpack.c.b16 %v1011, %v1009
        %v1470 = vpack.c.b16 %v1012, %v1010
        %v1471 = vpack.c.b16 %v1015, %v1013
        %v1472 = vpack.c.b16 %v1016, %v1014
        %v1473 = vpack.c.b16 %v1019, %v1017
        %v1474 = vpack.c.b16 %v1020, %v1018
        %v1475 = vpack.c.b16 %v1023, %v1021
        %v1476 = vpack.c.b16 %v1024, %v1022
        %v1477 = vpack.c.b16 %v1027, %v1025
        %v1478 = vpack.c.b16 %v1028, %v1026
        %v1479 = vpack.c.b16 %v1031, %v1029
        %v1480 = vpack.c.b16 %v1032, %v1030
        %v1481 = vpack.c.b16 %v1035, %v1033
        %v1482 = vpack.c.b16 %v1036, %v1034
        %v1483 = vpack.c.b16 %v1039, %v1037
        %v1484 = vpack.c.b16 %v1040, %v1038
        %v1485 = vpack.c.b16 %v1043, %v1041
        %v1486 = vpack.c.b16 %v1044, %v1042
        %v1487 = vpack.c.b16 %v1047, %v1045
        %v1488 = vpack.c.b16 %v1048, %v1046
        %v1489 = vpack.c.b16 %v1051, %v1049
        %v1490 = vpack.c.b16 %v1052, %v1050
        %v1491 = vpack.c.b16 %v1055, %v1053
        %v1492 = vpack.c.b16 %v1056, %v1054
        %v1493 = vpack.c.b16 %v1059, %v1057
        %v1494 = vpack.c.b16 %v1060, %v1058
        %v1495 = vpack.c.b16 %v1063, %v1061
        %v1496 = vpack.c.b16 %v1064, %v1062
        %v1497 = vpack.c.b16 %v1067, %v1065
        %v1498 = vpack.c.b16 %v1068, %v1066
        %v1499 = vpack.c.b16 %v1071, %v1069
        %v1500 = vpack.c.b16 %v1072, %v1070
        %v1501 = vpack.c.b16 %v1075, %v1073
        %v1502 = vpack.c.b16 %v1076, %v1074
        %v1503 = vpack.c.b16 %v1079, %v1077
        %v1504 = vpack.c.b16 %v1080, %v1078
        %v1505 = vpack.c.b16 %v1083, %v1081
        %v1506 = vpack.c.b16 %v1084, %v1082
        %v1507 = vpack.c.b16 %v1087, %v1085
        %v1508 = vpack.c.b16 %v1088, %v1086
        %v1509 = vpack.c.b16 %v1091, %v1089
        %v1510 = vpack.c.b16 %v1092, %v1090
        %v1511 = vpack.c.b16 %v1095, %v1093
        %v1512 = vpack.c.b16 %v1096, %v1094
        %v1513 = vpack.c.b16 %v1099, %v1097
        %v1514 = vpack.c.b16 %v1100, %v1098
        %v1515 = vpack.c.b16 %v1103, %v1101
        %v1516 = vpack.c.b16 %v1104, %v1102
        %v1517 = vpack.c.b16 %v1107, %v1105
        %v1518 = vpack.c.b16 %v1108, %v1106
        %v1519 = vpack.c.b16 %v1111, %v1109
        %v1520 = vpack.c.b16 %v1112, %v1110
        %v1521 = vpack.c.b16 %v1115, %v1113
        %v1522 = vpack.c.b16 %v1116, %v1114
        %v1523 = vpack.c.b16 %v1119, %v1117
        %v1524 = vpack.c.b16 %v1120, %v1118
        %v1525 = vpack.c.b16 %v1123, %v1121
        %v1526 = vpack.c.b16 %v1124, %v1122
        %v1527 = vpack.c.b16 %v1127, %v1125
        %v1528 = vpack.c.b16 %v1128, %v1126
        %v1529 = vpack.c.b16 %v1131, %v1129
        %v1530 = vpack.c.b16 %v1132, %v1130
        %v1531 = vpack.c.b16 %v1135, %v1133
        %v1532 = vpack.c.b16 %v1136, %v1134
        %v1533 = vpack.c.b16 %v1139, %v1137
        %v1534 = vpack.c.b16 %v1140, %v1138
        %v1535 = vpack.c.b16 %v1143, %v1141
        %v1536 = vpack.c.b16 %v1144, %v1142
        %v1537 = vpack.c.b16 %v1147, %v1145
        %v1538 = vpack.c.b16 %v1148, %v1146
        %v1539 = vpack.c.b16 %v1151, %v1149
        %v1540 = vpack.c.b16 %v1152, %v1150
        %v1541 = vpack.c.b16 %v1155, %v1153
        %v1542 = vpack.c.b16 %v1156, %v1154
        %v1543 = vpack.c.b16 %v1159, %v1157
        %v1544 = vpack.c.b16 %v1160, %v1158
        %v1545 = vpack.c.b16 %v1163, %v1161
        %v1546 = vpack.c.b16 %v1164, %v1162
        %v1547 = vpack.c.b16 %v1167, %v1165
        %v1548 = vpack.c.b16 %v1168, %v1166
        %v1549 = vpack.c.b16 %v1171, %v1169
        %v1550 = vpack.c.b16 %v1172, %v1170
        %v1551 = vpack.c.b16 %v1175, %v1173
        %v1552 = vpack.c.b16 %v1176, %v1174
        %v1553 = vpack.c.b16 %v1179, %v1177
        %v1554 = vpack.c.b16 %v1180, %v1178
        %v1555 = vpack.c.b16 %v1183, %v1181
        %v1556 = vpack.c.b16 %v1184, %v1182
        %v1557 = vpack.c.b16 %v1187, %v1185
        %v1558 = vpack.c.b16 %v1188, %v1186
        %v1559 = vpack.c.b16 %v1191, %v1189
        %v1560 = vpack.c.b16 %v1192, %v1190
        %v1561 = vpack.c.b16 %v1195, %v1193
        %v1562 = vpack.c.b16 %v1196, %v1194
        %v1563 = vpack.c.b16 %v1199, %v1197
        %v1564 = vpack.c.b16 %v1200, %v1198
        %v1565 = vpack.c.b16 %v1203, %v1201
        %v1566 = vpack.c.b16 %v1204, %v1202
        %v1567 = vpack.c.b16 %v1207, %v1205
        %v1568 = vpack.c.b16 %v1208, %v1206
        %v1569 = vpack.c.b16 %v1211, %v1209
        %v1570 = vpack.c.b16 %v1212, %v1210
        %v1571 = vpack.c.b16 %v1215, %v1213
        %v1572 = vpack.c.b16 %v1216, %v1214
        %v1573 = vpack.c.b16 %v1219, %v1217
        %v1574 = vpack.c.b16 %v1220, %v1218
        %v1575 = vpack.c.b16 %v1223, %v1221
        %v1576 = vpack.c.b16 %v1224, %v1222
        %v1577 = vpack.c.b16 %v1227, %v1225
        %v1578 = vpack.c.b16 %v1228, %v1226
        %v1579 = vpack.c.b16 %v1231, %v1229
        %v1580 = vpack.c.b16 %v1232, %v1230
        %v1581 = vpack.c.b16 %v1235, %v1233
        %v1582 = vpack.c.b16 %v1236, %v1234
        %v1583 = vpack.c.b16 %v1239, %v1237
        %v1584 = vpack.c.b16 %v1240, %v1238
        %v1585 = vpack.c.b16 %v1243, %v1241
        %v1586 = vpack.c.b16 %v1244, %v1242
        %v1587 = vpack.c.b16 %v1247, %v1245
        %v1588 = vpack.c.b16 %v1248, %v1246
        %v1589 = vpack.c.b16 %v1251, %v1249
        %v1590 = vpack.c.b16 %v1252, %v1250
        %v1591 = vpack.c.b16 %v1255, %v1253
        %v1592 = vpack.c.b16 %v1256, %v1254
        %v1593 = vpack.c.b16 %v1259, %v1257
        %v1594 = vpack.c.b16 %v1260, %v1258
        %v1595 = vpack.c.b16 %v1263, %v1261
        %v1596 = vpack.c.b16 %v1264, %v1262
        %v1597 = vpack.c.b16 %v1267, %v1265
        %v1598 = vpack.c.b16 %v1268, %v1266
        %v1599 = vpack.c.b16 %v1271, %v1269
        %v1600 = vpack.c.b16 %v1272, %v1270
        %v1601 = vpack.c.b16 %v1275, %v1273
        %v1602 = vpack.c.b16 %v1276, %v1274
        %v1603 = vpack.c.b16 %v1279, %v1277
        %v1604 = vpack.c.b16 %v1280, %v1278
        %v1605 = vpack.c.b16 %v1283, %v1281
        %v1606 = vpack.c.b16 %v1284, %v1282
        %v1607 = vpack.c.b16 %v1287, %v1285
        %v1608 = vpack.c.b16 %v1288, %v1286
        %v1609 = vpack.c.b16 %v1291, %v1289
        %v1610 = vpack.c.b16 %v1292, %v1290
        %v1611 = vpack.c.b16 %v1295, %v1293
        %v1612 = vpack.c.b16 %v1296, %v1294
        %v1613 = vpack.c.b16 %v1299, %v1297
        %v1614 = vpack.c.b16 %v1300, %v1298
        %v1615 = vpack.c.b16 %v1303, %v1301
        %v1616 = vpack.c.b16 %v1304, %v1302
        %v1617 = vpack.c.b16 %v1307, %v1305
        %v1618 = vpack.c.b16 %v1308, %v1306
        %v1619 = vpack.c.b16 %v1311, %v1309
        %v1620 = vpack.c.b16 %v1312, %v1310
        %v1621 = vpack.c.b16 %v1315, %v1313
        %v1622 = vpack.c.b16 %v1316, %v1314
        %v1623 = vpack.c.b16 %v1319, %v1317
        %v1624 = vpack.c.b16 %v1320, %v1318
        %v1625 = vpack.c.b16 %v1323, %v1321
        %v1626 = vpack.c.b16 %v1324, %v1322
        %v1627 = vpack.c.b16 %v1327, %v1325
        %v1628 = vpack.c.b16 %v1328, %v1326
        %v1629 = vpack.c.b16 %v1331, %v1329
        %v1630 = vpack.c.b16 %v1332, %v1330
        %v1631 = vpack.c.b16 %v1335, %v1333
        %v1632 = vpack.c.b16 %v1336, %v1334
        %v1633 = vpack.c.b16 %v1339, %v1337
        %v1634 = vpack.c.b16 %v1340, %v1338
        %v1635 = vpack.c.b16 %v1343, %v1341
        %v1636 = vpack.c.b16 %v1344, %v1342
        %v1637 = vpack.c.b16 %v1347, %v1345
        %v1638 = vpack.c.b16 %v1348, %v1346
        %v1639 = vpack.c.b16 %v1351, %v1349
        %v1640 = vpack.c.b16 %v1352, %v1350
        %v1641 = vpack.c.b16 %v1355, %v1353
        %v1642 = vpack.c.b16 %v1356, %v1354
        %v1643 = vpack.c.b16 %v1359, %v1357
        %v1644 = vpack.c.b16 %v1360, %v1358
        %v1645 = vpack.c.b16 %v1363, %v1361
        %v1646 = vpack.c.b16 %v1364, %v1362
        %v1647 = vpack.c.b16 %v1367, %v1365
        %v1648 = vpack.c.b16 %v1368, %v1366
        %v1649 = vpack.c.b16 %v1371, %v1369
        %v1650 = vpack.c.b16 %v1372, %v1370
        %v1651 = vpack.c.b16 %v1375, %v1373
        %v1652 = vpack.c.b16 %v1376, %v1374
        %v1653 = vpack.c.b16 %v1379, %v1377
        %v1654 = vpack.c.b16 %v1380, %v1378
        %v1655 = vpack.c.b16 %v1383, %v1381
        %v1656 = vpack.c.b16 %v1384, %v1382
        %v1657 = vpack.c.b16 %v1387, %v1385
        %v1658 = vpack.c.b16 %v1388, %v1386
        %v1659 = vpack.c.b16 %v1391, %v1389
        %v1660 = vpack.c.b16 %v1392, %v1390
        %v1661 = vpack.c.b16 %v1395, %v1393
        %v1662 = vpack.c.b16 %v1396, %v1394
        %v1663 = vpack.c.b16 %v1399, %v1397
        %v1664 = vpack.c.b16 %v1400, %v1398
        %v1665 = vpack.c.b16 %v1403, %v1401
        %v1666 = vpack.c.b16 %v1404, %v1402
        %v1667 = vpack.c.b16 %v1407, %v1405
        %v1668 = vpack.c.b16 %v1408, %v1406
        %v1669 = vpack.c.b16 %v1411, %v1409
        %v1670 = vpack.c.b16 %v1412, %v1410
        %v1671 = vpack.c.b16 %v1415, %v1413
        %v1672 = vpack.c.b16 %v1416, %v1414
        %1929 = vmatprep.subr.bf16.mxu0 %v1418
        %1930 = vmatpush1.bf16.msra.mxu0 %v1417
        %1931 = vmatprep.subr.bf16.mxu0 %v1420
        %1932 = vmatpush1.bf16.msra.mxu0 %v1419
        %1933 = vmatprep.subr.bf16.mxu0 %v1422
        %1934 = vmatpush1.bf16.msra.mxu0 %v1421
        %1935 = vmatprep.subr.bf16.mxu0 %v1424
        %1936 = vmatpush1.bf16.msra.mxu0 %v1423
        %1937 = vmatprep.subr.bf16.mxu0 %v1426
        %1938 = vmatpush1.bf16.msra.mxu0 %v1425
        %1939 = vmatprep.subr.bf16.mxu0 %v1428
        %1940 = vmatpush1.bf16.msra.mxu0 %v1427
        %1941 = vmatprep.subr.bf16.mxu0 %v1430
        %1942 = vmatpush1.bf16.msra.mxu0 %v1429
        %1943 = vmatprep.subr.bf16.mxu0 %v1432
        %1944 = vmatpush1.bf16.msra.mxu0 %v1431
        %1945 = vmatprep.subr.bf16.mxu0 %v1434
        %1946 = vmatpush1.bf16.msra.mxu0 %v1433
        %1947 = vmatprep.subr.bf16.mxu0 %v1436
        %1948 = vmatpush1.bf16.msra.mxu0 %v1435
        %1949 = vmatprep.subr.bf16.mxu0 %v1438
        %1950 = vmatpush1.bf16.msra.mxu0 %v1437
        %1951 = vmatprep.subr.bf16.mxu0 %v1440
        %1952 = vmatpush1.bf16.msra.mxu0 %v1439
        %1953 = vmatprep.subr.bf16.mxu0 %v1442
        %1954 = vmatpush1.bf16.msra.mxu0 %v1441
        %1955 = vmatprep.subr.bf16.mxu0 %v1444
        %1956 = vmatpush1.bf16.msra.mxu0 %v1443
        %1957 = vmatprep.subr.bf16.mxu0 %v1446
        %1958 = vmatpush1.bf16.msra.mxu0 %v1445
        %1959 = vmatprep.subr.bf16.mxu0 %v1448
        %1960 = vmatpush1.bf16.msra.mxu0 %v1447
        %1961 = vmatprep.mubr.bf16.mxu0 %v572
        %1962 = vmatmul.mubr.bf16.gmra.mrb[0].mxu0 %v558
        %v1963 = vpop.f32.mrb[0].mxu0
        %v1964 = vadd.f32 0.0, %v1963
        %v1965 = vpop.f32.mrb[0].mxu0
        %v1966 = vadd.f32 0.0, %v1965
        %v1967 = vpop.f32.mrb[0].mxu0
        %v1968 = vpop.f32.mrb[0].mxu0
        %1969 = vdwg.mxu0
        %1970 = vmatprep.subr.bf16.mxu0 %v1450
        %1971 = vmatpush1.bf16.msra.mxu0 %v1449
        %1972 = vmatprep.subr.bf16.mxu0 %v1452
        %1973 = vmatpush1.bf16.msra.mxu0 %v1451
        %1974 = vmatprep.subr.bf16.mxu0 %v1454
        %1975 = vmatpush1.bf16.msra.mxu0 %v1453
        %1976 = vmatprep.subr.bf16.mxu0 %v1456
        %1977 = vmatpush1.bf16.msra.mxu0 %v1455
        %1978 = vmatprep.subr.bf16.mxu0 %v1458
        %1979 = vmatpush1.bf16.msra.mxu0 %v1457
        %1980 = vmatprep.subr.bf16.mxu0 %v1460
        %1981 = vmatpush1.bf16.msra.mxu0 %v1459
        %1982 = vmatprep.subr.bf16.mxu0 %v1462
        %1983 = vmatpush1.bf16.msra.mxu0 %v1461
        %1984 = vmatprep.subr.bf16.mxu0 %v1464
        %1985 = vmatpush1.bf16.msra.mxu0 %v1463
        %1986 = vmatprep.subr.bf16.mxu0 %v1466
        %1987 = vmatpush1.bf16.msra.mxu0 %v1465
        %1988 = vmatprep.subr.bf16.mxu0 %v1468
        %1989 = vmatpush1.bf16.msra.mxu0 %v1467
        %1990 = vmatprep.subr.bf16.mxu0 %v1470
        %1991 = vmatpush1.bf16.msra.mxu0 %v1469
        %1992 = vmatprep.subr.bf16.mxu0 %v1472
        %1993 = vmatpush1.bf16.msra.mxu0 %v1471
        %1994 = vmatprep.subr.bf16.mxu0 %v1474
        %1995 = vmatpush1.bf16.msra.mxu0 %v1473
        %1996 = vmatprep.subr.bf16.mxu0 %v1476
        %1997 = vmatpush1.bf16.msra.mxu0 %v1475
        %1998 = vmatprep.subr.bf16.mxu0 %v1478
        %1999 = vmatpush1.bf16.msra.mxu0 %v1477
        %2000 = vmatprep.subr.bf16.mxu0 %v1480
        %2001 = vmatpush1.bf16.msra.mxu0 %v1479
        %2002 = vmatprep.mubr.bf16.mxu0 %v582
        %2003 = vmatmul.mubr.bf16.gmra.mrb[0].mxu0 %v580
        %v2004 = vpop.f32.mrb[0].mxu0
        %v2005 = vadd.f32 %v1964, %v2004
        %v2006 = vpop.f32.mrb[0].mxu0
        %v2007 = vadd.f32 %v1966, %v2006
        %v2008 = vpop.f32.mrb[0].mxu0
        %v2009 = vpop.f32.mrb[0].mxu0
        %2010 = vdwg.mxu0
        %2011 = vmatprep.subr.bf16.mxu0 %v1482
        %2012 = vmatpush1.bf16.msra.mxu0 %v1481
        %2013 = vmatprep.subr.bf16.mxu0 %v1484
        %2014 = vmatpush1.bf16.msra.mxu0 %v1483
        %2015 = vmatprep.subr.bf16.mxu0 %v1486
        %2016 = vmatpush1.bf16.msra.mxu0 %v1485
        %2017 = vmatprep.subr.bf16.mxu0 %v1488
        %2018 = vmatpush1.bf16.msra.mxu0 %v1487
        %2019 = vmatprep.subr.bf16.mxu0 %v1490
        %2020 = vmatpush1.bf16.msra.mxu0 %v1489
        %2021 = vmatprep.subr.bf16.mxu0 %v1492
        %2022 = vmatpush1.bf16.msra.mxu0 %v1491
        %2023 = vmatprep.subr.bf16.mxu0 %v1494
        %2024 = vmatpush1.bf16.msra.mxu0 %v1493
        %2025 = vmatprep.subr.bf16.mxu0 %v1496
        %2026 = vmatpush1.bf16.msra.mxu0 %v1495
        %2027 = vmatprep.subr.bf16.mxu0 %v1498
        %2028 = vmatpush1.bf16.msra.mxu0 %v1497
        %2029 = vmatprep.subr.bf16.mxu0 %v1500
        %2030 = vmatpush1.bf16.msra.mxu0 %v1499
        %2031 = vmatprep.subr.bf16.mxu0 %v1502
        %2032 = vmatpush1.bf16.msra.mxu0 %v1501
        %2033 = vmatprep.subr.bf16.mxu0 %v1504
        %2034 = vmatpush1.bf16.msra.mxu0 %v1503
        %2035 = vmatprep.subr.bf16.mxu0 %v1506
        %2036 = vmatpush1.bf16.msra.mxu0 %v1505
        %2037 = vmatprep.subr.bf16.mxu0 %v1508
        %2038 = vmatpush1.bf16.msra.mxu0 %v1507
        %2039 = vmatprep.subr.bf16.mxu0 %v1510
        %2040 = vmatpush1.bf16.msra.mxu0 %v1509
        %2041 = vmatprep.subr.bf16.mxu0 %v1512
        %2042 = vmatpush1.bf16.msra.mxu0 %v1511
        %2043 = vmatprep.mubr.bf16.mxu0 %v579
        %2044 = vmatmul.mubr.bf16.gmra.mrb[0].mxu0 %v565
        %v2045 = vpop.f32.mrb[0].mxu0
        %v2046 = vadd.f32 %v2005, %v2045
        %v2047 = vpop.f32.mrb[0].mxu0
        %v2048 = vadd.f32 %v2007, %v2047
        %v2049 = vpop.f32.mrb[0].mxu0
        %v2050 = vpop.f32.mrb[0].mxu0
        %2051 = vdwg.mxu0
        %2052 = vmatprep.subr.bf16.mxu0 %v1514
        %2053 = vmatpush1.bf16.msra.mxu0 %v1513
        %2054 = vmatprep.subr.bf16.mxu0 %v1516
        %2055 = vmatpush1.bf16.msra.mxu0 %v1515
        %2056 = vmatprep.subr.bf16.mxu0 %v1518
        %2057 = vmatpush1.bf16.msra.mxu0 %v1517
        %2058 = vmatprep.subr.bf16.mxu0 %v1520
        %2059 = vmatpush1.bf16.msra.mxu0 %v1519
        %2060 = vmatprep.subr.bf16.mxu0 %v1522
        %2061 = vmatpush1.bf16.msra.mxu0 %v1521
        %2062 = vmatprep.subr.bf16.mxu0 %v1524
        %2063 = vmatpush1.bf16.msra.mxu0 %v1523
        %2064 = vmatprep.subr.bf16.mxu0 %v1526
        %2065 = vmatpush1.bf16.msra.mxu0 %v1525
        %2066 = vmatprep.subr.bf16.mxu0 %v1528
        %2067 = vmatpush1.bf16.msra.mxu0 %v1527
        %2068 = vmatprep.subr.bf16.mxu0 %v1530
        %2069 = vmatpush1.bf16.msra.mxu0 %v1529
        %2070 = vmatprep.subr.bf16.mxu0 %v1532
        %2071 = vmatpush1.bf16.msra.mxu0 %v1531
        %2072 = vmatprep.subr.bf16.mxu0 %v1534
        %2073 = vmatpush1.bf16.msra.mxu0 %v1533
        %2074 = vmatprep.subr.bf16.mxu0 %v1536
        %2075 = vmatpush1.bf16.msra.mxu0 %v1535
        %2076 = vmatprep.subr.bf16.mxu0 %v1538
        %2077 = vmatpush1.bf16.msra.mxu0 %v1537
        %2078 = vmatprep.subr.bf16.mxu0 %v1540
        %2079 = vmatpush1.bf16.msra.mxu0 %v1539
        %2080 = vmatprep.subr.bf16.mxu0 %v1542
        %2081 = vmatpush1.bf16.msra.mxu0 %v1541
        %2082 = vmatprep.subr.bf16.mxu0 %v1544
        %2083 = vmatpush1.bf16.msra.mxu0 %v1543
        %2084 = vmatprep.mubr.bf16.mxu0 %v583
        %2085 = vmatmul.mubr.bf16.gmra.mrb[0].mxu0 %v581
        %v2086 = vpop.f32.mrb[0].mxu0
        %v2087 = vadd.f32 %v2046, %v2086
        %v2088 = vpop.f32.mrb[0].mxu0
        %v2089 = vadd.f32 %v2048, %v2088
        %v2090 = vpop.f32.mrb[0].mxu0
        %v2091 = vpop.f32.mrb[0].mxu0
        %2092 = vdwg.mxu0
        %2093 = vmatprep.subr.bf16.mxu0 %v1546
        %2094 = vmatpush1.bf16.msra.mxu0 %v1545
        %2095 = vmatprep.subr.bf16.mxu0 %v1548
        %2096 = vmatpush1.bf16.msra.mxu0 %v1547
        %2097 = vmatprep.subr.bf16.mxu0 %v1550
        %2098 = vmatpush1.bf16.msra.mxu0 %v1549
        %2099 = vmatprep.subr.bf16.mxu0 %v1552
        %2100 = vmatpush1.bf16.msra.mxu0 %v1551
        %2101 = vmatprep.subr.bf16.mxu0 %v1554
        %2102 = vmatpush1.bf16.msra.mxu0 %v1553
        %2103 = vmatprep.subr.bf16.mxu0 %v1556
        %2104 = vmatpush1.bf16.msra.mxu0 %v1555
        %2105 = vmatprep.subr.bf16.mxu0 %v1558
        %2106 = vmatpush1.bf16.msra.mxu0 %v1557
        %2107 = vmatprep.subr.bf16.mxu0 %v1560
        %2108 = vmatpush1.bf16.msra.mxu0 %v1559
        %2109 = vmatprep.subr.bf16.mxu0 %v1562
        %2110 = vmatpush1.bf16.msra.mxu0 %v1561
        %2111 = vmatprep.subr.bf16.mxu0 %v1564
        %2112 = vmatpush1.bf16.msra.mxu0 %v1563
        %2113 = vmatprep.subr.bf16.mxu0 %v1566
        %2114 = vmatpush1.bf16.msra.mxu0 %v1565
        %2115 = vmatprep.subr.bf16.mxu0 %v1568
        %2116 = vmatpush1.bf16.msra.mxu0 %v1567
        %2117 = vmatprep.subr.bf16.mxu0 %v1570
        %2118 = vmatpush1.bf16.msra.mxu0 %v1569
        %2119 = vmatprep.subr.bf16.mxu0 %v1572
        %2120 = vmatpush1.bf16.msra.mxu0 %v1571
        %2121 = vmatprep.subr.bf16.mxu0 %v1574
        %2122 = vmatpush1.bf16.msra.mxu0 %v1573
        %2123 = vmatprep.subr.bf16.mxu0 %v1576
        %2124 = vmatpush1.bf16.msra.mxu0 %v1575
        %2125 = vmatprep.mubr.bf16.mxu0 %v621
        %2126 = vmatmul.mubr.bf16.gmra.mrb[0].mxu0 %v607
        %v2127 = vpop.f32.mrb[0].mxu0
        %v2128 = vadd.f32 %v2087, %v2127
        %v2129 = vpop.f32.mrb[0].mxu0
        %v2130 = vadd.f32 %v2089, %v2129
        %v2131 = vpop.f32.mrb[0].mxu0
        %v2132 = vpop.f32.mrb[0].mxu0
        %2133 = vdwg.mxu0
        %2134 = vmatprep.subr.bf16.mxu0 %v1578
        %2135 = vmatpush1.bf16.msra.mxu0 %v1577
        %2136 = vmatprep.subr.bf16.mxu0 %v1580
        %2137 = vmatpush1.bf16.msra.mxu0 %v1579
        %2138 = vmatprep.subr.bf16.mxu0 %v1582
        %2139 = vmatpush1.bf16.msra.mxu0 %v1581
        %2140 = vmatprep.subr.bf16.mxu0 %v1584
        %2141 = vmatpush1.bf16.msra.mxu0 %v1583
        %2142 = vmatprep.subr.bf16.mxu0 %v1586
        %2143 = vmatpush1.bf16.msra.mxu0 %v1585
        %2144 = vmatprep.subr.bf16.mxu0 %v1588
        %2145 = vmatpush1.bf16.msra.mxu0 %v1587
        %2146 = vmatprep.subr.bf16.mxu0 %v1590
        %2147 = vmatpush1.bf16.msra.mxu0 %v1589
        %2148 = vmatprep.subr.bf16.mxu0 %v1592
        %2149 = vmatpush1.bf16.msra.mxu0 %v1591
        %2150 = vmatprep.subr.bf16.mxu0 %v1594
        %2151 = vmatpush1.bf16.msra.mxu0 %v1593
        %2152 = vmatprep.subr.bf16.mxu0 %v1596
        %2153 = vmatpush1.bf16.msra.mxu0 %v1595
        %2154 = vmatprep.subr.bf16.mxu0 %v1598
        %2155 = vmatpush1.bf16.msra.mxu0 %v1597
        %2156 = vmatprep.subr.bf16.mxu0 %v1600
        %2157 = vmatpush1.bf16.msra.mxu0 %v1599
        %2158 = vmatprep.subr.bf16.mxu0 %v1602
        %2159 = vmatpush1.bf16.msra.mxu0 %v1601
        %2160 = vmatprep.subr.bf16.mxu0 %v1604
        %2161 = vmatpush1.bf16.msra.mxu0 %v1603
        %2162 = vmatprep.subr.bf16.mxu0 %v1606
        %2163 = vmatpush1.bf16.msra.mxu0 %v1605
        %2164 = vmatprep.subr.bf16.mxu0 %v1608
        %2165 = vmatpush1.bf16.msra.mxu0 %v1607
        %2166 = vmatprep.mubr.bf16.mxu0 %v631
        %2167 = vmatmul.mubr.bf16.gmra.mrb[0].mxu0 %v629
        %v2168 = vpop.f32.mrb[0].mxu0
        %v2169 = vadd.f32 %v2128, %v2168
        %v2170 = vpop.f32.mrb[0].mxu0
        %v2171 = vadd.f32 %v2130, %v2170
        %v2172 = vpop.f32.mrb[0].mxu0
        %v2173 = vpop.f32.mrb[0].mxu0
        %2174 = vdwg.mxu0
        %2175 = vmatprep.subr.bf16.mxu0 %v1610
        %2176 = vmatpush1.bf16.msra.mxu0 %v1609
        %2177 = vmatprep.subr.bf16.mxu0 %v1612
        %2178 = vmatpush1.bf16.msra.mxu0 %v1611
        %2179 = vmatprep.subr.bf16.mxu0 %v1614
        %2180 = vmatpush1.bf16.msra.mxu0 %v1613
        %2181 = vmatprep.subr.bf16.mxu0 %v1616
        %2182 = vmatpush1.bf16.msra.mxu0 %v1615
        %2183 = vmatprep.subr.bf16.mxu0 %v1618
        %2184 = vmatpush1.bf16.msra.mxu0 %v1617
        %2185 = vmatprep.subr.bf16.mxu0 %v1620
        %2186 = vmatpush1.bf16.msra.mxu0 %v1619
        %2187 = vmatprep.subr.bf16.mxu0 %v1622
        %2188 = vmatpush1.bf16.msra.mxu0 %v1621
        %2189 = vmatprep.subr.bf16.mxu0 %v1624
        %2190 = vmatpush1.bf16.msra.mxu0 %v1623
        %2191 = vmatprep.subr.bf16.mxu0 %v1626
        %2192 = vmatpush1.bf16.msra.mxu0 %v1625
        %2193 = vmatprep.subr.bf16.mxu0 %v1628
        %2194 = vmatpush1.bf16.msra.mxu0 %v1627
        %2195 = vmatprep.subr.bf16.mxu0 %v1630
        %2196 = vmatpush1.bf16.msra.mxu0 %v1629
        %2197 = vmatprep.subr.bf16.mxu0 %v1632
        %2198 = vmatpush1.bf16.msra.mxu0 %v1631
        %2199 = vmatprep.subr.bf16.mxu0 %v1634
        %2200 = vmatpush1.bf16.msra.mxu0 %v1633
        %2201 = vmatprep.subr.bf16.mxu0 %v1636
        %2202 = vmatpush1.bf16.msra.mxu0 %v1635
        %2203 = vmatprep.subr.bf16.mxu0 %v1638
        %2204 = vmatpush1.bf16.msra.mxu0 %v1637
        %2205 = vmatprep.subr.bf16.mxu0 %v1640
        %2206 = vmatpush1.bf16.msra.mxu0 %v1639
        %2207 = vmatprep.mubr.bf16.mxu0 %v628
        %2208 = vmatmul.mubr.bf16.gmra.mrb[0].mxu0 %v614
        %v2209 = vpop.f32.mrb[0].mxu0
        %v2210 = vadd.f32 %v2169, %v2209
        %v2211 = vpop.f32.mrb[0].mxu0
        %v2212 = vadd.f32 %v2171, %v2211
        %v2213 = vpop.f32.mrb[0].mxu0
        %v2214 = vpop.f32.mrb[0].mxu0
        %2215 = vdwg.mxu0
        %2216 = vmatprep.subr.bf16.mxu0 %v1642
        %2217 = vmatpush1.bf16.msra.mxu0 %v1641
        %2218 = vmatprep.subr.bf16.mxu0 %v1644
        %2219 = vmatpush1.bf16.msra.mxu0 %v1643
        %2220 = vmatprep.subr.bf16.mxu0 %v1646
        %2221 = vmatpush1.bf16.msra.mxu0 %v1645
        %2222 = vmatprep.subr.bf16.mxu0 %v1648
        %2223 = vmatpush1.bf16.msra.mxu0 %v1647
        %2224 = vmatprep.subr.bf16.mxu0 %v1650
        %2225 = vmatpush1.bf16.msra.mxu0 %v1649
        %2226 = vmatprep.subr.bf16.mxu0 %v1652
        %2227 = vmatpush1.bf16.msra.mxu0 %v1651
        %2228 = vmatprep.subr.bf16.mxu0 %v1654
        %2229 = vmatpush1.bf16.msra.mxu0 %v1653
        %2230 = vmatprep.subr.bf16.mxu0 %v1656
        %2231 = vmatpush1.bf16.msra.mxu0 %v1655
        %2232 = vmatprep.subr.bf16.mxu0 %v1658
        %2233 = vmatpush1.bf16.msra.mxu0 %v1657
        %2234 = vmatprep.subr.bf16.mxu0 %v1660
        %2235 = vmatpush1.bf16.msra.mxu0 %v1659
        %2236 = vmatprep.subr.bf16.mxu0 %v1662
        %2237 = vmatpush1.bf16.msra.mxu0 %v1661
        %2238 = vmatprep.subr.bf16.mxu0 %v1664
        %2239 = vmatpush1.bf16.msra.mxu0 %v1663
        %2240 = vmatprep.subr.bf16.mxu0 %v1666
        %2241 = vmatpush1.bf16.msra.mxu0 %v1665
        %2242 = vmatprep.subr.bf16.mxu0 %v1668
        %2243 = vmatpush1.bf16.msra.mxu0 %v1667
        %2244 = vmatprep.subr.bf16.mxu0 %v1670
        %2245 = vmatpush1.bf16.msra.mxu0 %v1669
        %2246 = vmatprep.subr.bf16.mxu0 %v1672
        %2247 = vmatpush1.bf16.msra.mxu0 %v1671
        %2248 = vmatprep.mubr.bf16.mxu0 %v632
        %2249 = vmatmul.mubr.bf16.gmra.mrb[0].mxu0 %v630
        %v2250 = vpop.f32.mrb[0].mxu0
        %v2251 = vadd.f32 %v2210, %v2250
        %v2252 = vpop.f32.mrb[0].mxu0
        %v2253 = vadd.f32 %v2212, %v2252
        %v2254 = vpop.f32.mrb[0].mxu0
        %v2255 = vpop.f32.mrb[0].mxu0
        %2256 = vdwg.mxu0
        %v2259 = vcombine.low %v2251, %v2253
        %v2261 = vunpack.c.l.s4 1983009808
        %v2262 = vunpack.c.0.s8 %v2261
        %v2263 = vlaneseq
        %v2264 = vshrl.u32 %v2263, 7
        %v2265 = vsub.s32 %v2262, %v2264
        %v2266 = vrot.slane %v2259, %v2265
        %v2268 = vadd.f32 %v274, %v2266
        %2269 = vst [vmem:[%s267] sm:$0xf] %v2268
        // Predicated region
        $region45: #{lifespan_predictor_forward.4} parent=31 // pred_check
          %p2270 = pneg %p269
        $region46: #{lifespan_predictor_forward.4} parent=31 // pred_check_branch
          %2272 = sbr.rel (%p2270) target = $region48
        $region47: #{lifespan_predictor_forward.4} parent=31 // pred_region
          %v2273 = vld [vmem:[%s267] sm:$0xf]
          %v2274 = vld [vmem:[%s223] sm:$0x3]
          %v2276 = vlaneseq
          %v2277 = vshrl.u32 %v2276, 7
          %v2278 = vsub.s32 0, %v2277
          %v2279 = vrot.slane %v2274, %v2278
          %v2280 = vlaneseq
          %v2281 = vshrl.u32 %v2280, 7
          %v2282 = vsub.s32 1, %v2281
          %v2283 = vrot.slane %v2274, %v2282
          %v2284 = vcombine.low %v2279, %v2283
          %v2286 = vunpack.c.l.s4 1983009808
          %v2287 = vunpack.c.0.s8 %v2286
          %v2288 = vlaneseq
          %v2289 = vshrl.u32 %v2288, 7
          %v2290 = vsub.s32 %v2287, %v2289
          %v2291 = vrot.slane %v2284, %v2290
          %v2293 = vadd.f32 %v2273, %v2291
          %v2294 = vmax.f32 %v2293, 0.0
          %2295 = vst [vmem:[%s267] sm:$0xf] %v2294
        $region48: #{lifespan_predictor_forward.4} parent=31 // pred_fallthru
          _
        %s2296 = smul.u32 2, %s24
        %p2297 = scmp.lt.s32.totalorder %s2296, 3
        %s2298 = scalar_select %p2297, %s2296, 3
        %s2299 = smul.addr %s2298, 2
        %s2300 = scalar_lea.vmem %s3, %s2299
        // Predicated region
        $region49: #{lifespan_predictor_forward.4} parent=31 // pred_check
          %p2301 = pneg %p130
        $region50: #{lifespan_predictor_forward.4} parent=31 // pred_check_branch
          %2303 = sbr.rel (%p2301) target = $region52
        $region51: #{lifespan_predictor_forward.4} parent=31 // pred_region
          %s2304 = smul.u32 2, %s24
        $region52: #{lifespan_predictor_forward.4} parent=31 // pred_fallthru
          _
      $region32: #{lifespan_predictor_forward.4} parent=5 // pred_fallthru
        _
      %p2305 = scmp.le.s32.totalorder 2, %s15
      // Predicated region
      $region53: #{lifespan_predictor_forward.4} parent=5 // pred_check
        %p2306 = pneg %p2305
      $region54: #{lifespan_predictor_forward.4} parent=5 // pred_check_branch
        %2308 = sbr.rel (%p2306) target = $region56
      $region55: #{lifespan_predictor_forward.4} parent=5 // pred_region
        %s2309 = ssub.s32 %s15, 2
        // Predicated region
        $region57: #{lifespan_predictor_forward.4} parent=55 // pred_check
          %p2310 = pneg %p136
        $region58: #{lifespan_predictor_forward.4} parent=55 // pred_check_branch
          %2312 = sbr.rel (%p2310) target = $region60
        $region59: #{lifespan_predictor_forward.4} parent=55 // pred_region
          %s2313 = smul.u32 2, %s26
          %p2314 = scmp.lt.s32.totalorder %s2313, 3
          %s2315 = scalar_select %p2314, %s2313, 3
          %s2316 = smul.addr %s2315, 2
          %s2317 = scalar_lea.vmem %s3, %s2316
        $region60: #{lifespan_predictor_forward.4} parent=55 // pred_fallthru
          _
      $region56: #{lifespan_predictor_forward.4} parent=5 // pred_fallthru
        _
    $region6: #{lifespan_predictor_forward.4} parent=1 // loop_footer
      %s19 = sadd.s32 1, %s15
    $region7: #{lifespan_predictor_forward.4} parent=1 // loop_footer_branch
      %14 = sbr.rel target = $region3
    $region8: #{lifespan_predictor_forward.4} parent=1 // loop_exit
      _
    %2318 = vsyncpa [#allocation3], 1
    %s2319 = scalar_lea.sflag [#allocation3], 1
    %2320 = vsyncpa %s2319, 1
    %2321 = vsyncpa [#allocation5], 1
    %s2322 = scalar_lea.sflag [#allocation5], 1
    %2323 = vsyncpa %s2322, 1

</llo_original>
